<compile_context>
chip_gen: v7x
topology: tpu7x:2x2x1
jax: 0.10.0
libtpu: 0.0.40
codegen_flags: <defaults>
</compile_context>

<pallas_src>
import jax
import jax.numpy as jnp
from jax.experimental import pallas as pl
from jax.experimental.pallas import tpu as pltpu


# Model (~5 MiB weights, <1 MiB activations) fits trivially; explicit limit keeps sizing
# identical across v5e (16 MiB default scoped), v6e (32 MiB) and v7x (32 MiB / 64 MiB phys).
_COMPILER_PARAMS = pltpu.CompilerParams(vmem_limit_bytes=32 * 1024 * 1024)


def _full_spec(shape):
    # Single-block (no grid) spec: the whole array lives in VMEM.
    return pl.BlockSpec(shape, lambda: (0,) * len(shape))


# ------------------------- fused Pallas kernels -------------------------

def _conv_bn_lrelu_kernel(p_ref, w_ref, b_ref, g_ref, be_ref, o_ref):
    """im2col matmul + bias + BatchNorm1d (training-mode batch stats) + LeakyReLU(0.01)."""
    y = jnp.dot(p_ref[...], w_ref[...], preferred_element_type=jnp.float32) + b_ref[...]
    mean = jnp.mean(y, axis=0, keepdims=True)
    var = jnp.mean(jnp.square(y - mean), axis=0, keepdims=True)   # biased, as BN training
    y = (y - mean) * jax.lax.rsqrt(var + 1e-5) * g_ref[...] + be_ref[...]
    o_ref[...] = jnp.where(y >= 0.0, y, 0.01 * y)


def conv_bn_lrelu(patches, w, b, gamma, beta):
    M = patches.shape[0]
    C = w.shape[1]
    return pl.pallas_call(
        _conv_bn_lrelu_kernel,
        out_shape=jax.ShapeDtypeStruct((M, C), jnp.float32),
        in_specs=[_full_spec(patches.shape), _full_spec(w.shape), _full_spec(b.shape),
                  _full_spec(gamma.shape), _full_spec(beta.shape)],
        out_specs=_full_spec((M, C)),
        compiler_params=_COMPILER_PARAMS,
    )(patches, w, b, gamma, beta)


def _convt_bn_lrelu_kernel(x_ref, xn_ref, w0_ref, w1_ref, w2_ref, b_ref, g_ref, be_ref,
                           oe_ref, oo_ref):
    """ConvTranspose1d(k=3, s=2, p=1, output_padding=1) + BN + LeakyReLU, fully fused.

    out[2j]   = x[j] @ W1
    out[2j+1] = x[j] @ W2 + x[j+1] @ W0     (x[Li] treated as 0)
    BN statistics are shared across the even/odd output phases, i.e. computed over all
    N * (2*Li) positions per channel, matching BatchNorm1d on the interleaved output.
    """
    x = x_ref[...]
    xn = xn_ref[...]
    b = b_ref[...]
    ye = jnp.dot(x, w1_ref[...], preferred_element_type=jnp.float32) + b
    yo = (jnp.dot(x, w2_ref[...], preferred_element_type=jnp.float32)
          + jnp.dot(xn, w0_ref[...], preferred_element_type=jnp.float32) + b)
    mean = 0.5 * (jnp.mean(ye, axis=0, keepdims=True) + jnp.mean(yo, axis=0, keepdims=True))
    var = 0.5 * (jnp.mean(jnp.square(ye - mean), axis=0, keepdims=True)
                 + jnp.mean(jnp.square(yo - mean), axis=0, keepdims=True))
    scale = jax.lax.rsqrt(var + 1e-5) * g_ref[...]
    shift = be_ref[...] - mean * scale
    ye = ye * scale + shift
    yo = yo * scale + shift
    oe_ref[...] = jnp.where(ye >= 0.0, ye, 0.01 * ye)
    oo_ref[...] = jnp.where(yo >= 0.0, yo, 0.01 * yo)


def convt_bn_lrelu(x_nlc, wk, b, gamma, beta):
    """Fused ConvTranspose1d + BN + LeakyReLU. x: (N, Li, Cin); wk = [W0, W1, W2] each (Cin, Cout)."""
    N, Li, Cin = x_nlc.shape
    W0, W1, W2 = wk
    Cout = W0.shape[1]
    x_next = jnp.concatenate([x_nlc[:, 1:, :], jnp.zeros((N, 1, Cin), x_nlc.dtype)], axis=1)
    x2 = x_nlc.reshape(N * Li, Cin)
    xn2 = x_next.reshape(N * Li, Cin)
    ye, yo = pl.pallas_call(
        _convt_bn_lrelu_kernel,
        out_shape=(jax.ShapeDtypeStruct((N * Li, Cout), jnp.float32),
                   jax.ShapeDtypeStruct((N * Li, Cout), jnp.float32)),
        in_specs=[_full_spec((N * Li, Cin))] * 2
                 + [_full_spec((Cin, Cout))] * 3
                 + [_full_spec((1, Cout))] * 3,
        out_specs=(_full_spec((N * Li, Cout)), _full_spec((N * Li, Cout))),
        compiler_params=_COMPILER_PARAMS,
    )(x2, xn2, W0, W1, W2, b, gamma, beta)
    # interleave even/odd output positions -> (N, 2*Li, Cout)
    y = jnp.stack([ye.reshape(N, Li, Cout), yo.reshape(N, Li, Cout)], axis=2)
    return y.reshape(N, 2 * Li, Cout)


def _latent_kernel(enc_ref, wmu_ref, bmu_ref, wvar_ref, bvar_ref, eps_ref,
                   wdec_ref, bdec_ref, mu_ref, lv_ref, d_ref):
    """fc_mu + fc_var + reparameterize + decoder_input in one kernel (z never leaves VMEM)."""
    enc = enc_ref[...]
    mu = jnp.dot(enc, wmu_ref[...], preferred_element_type=jnp.float32) + bmu_ref[...]
    lv = jnp.dot(enc, wvar_ref[...], preferred_element_type=jnp.float32) + bvar_ref[...]
    z = eps_ref[...] * jnp.exp(0.5 * lv) + mu
    mu_ref[...] = mu
    lv_ref[...] = lv
    d_ref[...] = jnp.dot(z, wdec_ref[...], preferred_element_type=jnp.float32) + bdec_ref[...]


def latent_block(enc_flat, p_mu, p_var, p_dec, eps):
    N = enc_flat.shape[0]
    latent = p_mu['w'].shape[1]
    feat = p_dec['w'].shape[1]
    return pl.pallas_call(
        _latent_kernel,
        out_shape=(jax.ShapeDtypeStruct((N, latent), jnp.float32),
                   jax.ShapeDtypeStruct((N, latent), jnp.float32),
                   jax.ShapeDtypeStruct((N, feat), jnp.float32)),
        in_specs=[_full_spec(enc_flat.shape),
                  _full_spec(p_mu['w'].shape), _full_spec(p_mu['b'].shape),
                  _full_spec(p_var['w'].shape), _full_spec(p_var['b'].shape),
                  _full_spec(eps.shape),
                  _full_spec(p_dec['w'].shape), _full_spec(p_dec['b'].shape)],
        out_specs=(_full_spec((N, latent)), _full_spec((N, latent)), _full_spec((N, feat))),
        compiler_params=_COMPILER_PARAMS,
    )(enc_flat, p_mu['w'], p_mu['b'], p_var['w'], p_var['b'], eps, p_dec['w'], p_dec['b'])


def _conv_tanh_t_kernel(p_ref, w_ref, b_ref, o_ref):
    """Final Conv1d(k=3, s=1, p=1) + Tanh in transposed layout.

    p_ref: (3*Cin, N*L) im2col patches (transposed), w_ref: (Cout, 3*Cin), b_ref: (Cout, 1).
    Output (Cout, N*L) is lane-dense (last dim a multiple of 128) -> full-width vector stores.
    """
    y = jnp.dot(w_ref[...], p_ref[...], preferred_element_type=jnp.float32) + b_ref[...]
    o_ref[...] = jnp.tanh(y)


def conv_tanh_t(patches_t, w_t, b_t):
    K, M = patches_t.shape
    Cout = w_t.shape[0]
    return pl.pallas_call(
        _conv_tanh_t_kernel,
        out_shape=jax.ShapeDtypeStruct((Cout, M), jnp.float32),
        in_specs=[_full_spec(patches_t.shape), _full_spec(w_t.shape), _full_spec(b_t.shape)],
        out_specs=_full_spec((Cout, M)),
        compiler_params=_COMPILER_PARAMS,
    )(patches_t, w_t, b_t)


# ------------------------- im2col glue (fuses into the jitted XLA program) -------------------------

def _patches_s2(x_nlc):
    """Conv1d(k=3, stride=2, pad=1) patches. x: (N, Li, Cin) -> (N*Lo, 3*Cin)."""
    N, Li, Cin = x_nlc.shape
    Lo = Li // 2
    xp = jnp.pad(x_nlc, ((0, 0), (1, 1), (0, 0)))
    cols = [xp[:, k:k + 2 * Lo:2, :] for k in range(3)]
    return jnp.concatenate(cols, axis=-1).reshape(N * Lo, 3 * Cin), N, Lo


def _patches_s1_t(x_nlc):
    """Conv1d(k=3, stride=1, pad=1) patches, TRANSPOSED. x: (N, L, Cin) -> (3*Cin, N*L)."""
    N, L, Cin = x_nlc.shape
    xp = jnp.pad(x_nlc, ((0, 0), (1, 1), (0, 0)))
    cols = [xp[:, k:k + L, :] for k in range(3)]
    p = jnp.concatenate(cols, axis=-1).reshape(N * L, 3 * Cin)
    return jnp.transpose(p, (1, 0))


# ------------------------- parameters (synthetic, deterministic) -------------------------

def make_params(in_channels, latent_dim, hidden_dims, key):
    keys = iter(jax.random.split(key, 64))

    def w(shape, fan_in):
        return jax.random.normal(next(keys), shape, jnp.float32) / jnp.sqrt(float(fan_in))

    p = {}
    enc = []
    cin = in_channels
    for h in hidden_dims:
        enc.append(dict(w=w((3 * cin, h), 3 * cin),
                        b=w((1, h), 3 * cin),
                        gamma=jnp.ones((1, h), jnp.float32),
                        beta=jnp.zeros((1, h), jnp.float32)))
        cin = h
    p['encoder'] = enc

    feat = hidden_dims[-1] * 4
    p['fc_mu'] = dict(w=w((feat, latent_dim), feat), b=jnp.zeros((1, latent_dim), jnp.float32))
    p['fc_var'] = dict(w=w((feat, latent_dim), feat), b=jnp.zeros((1, latent_dim), jnp.float32))
    p['decoder_input'] = dict(w=w((latent_dim, feat), latent_dim),
                              b=jnp.zeros((1, feat), jnp.float32))

    rh = list(hidden_dims)[::-1]
    dec = []
    for i in range(len(rh) - 1):
        ci, co = rh[i], rh[i + 1]
        dec.append(dict(wk=[w((ci, co), ci) for _ in range(3)],
                        b=jnp.zeros((1, co), jnp.float32),
                        gamma=jnp.ones((1, co), jnp.float32),
                        beta=jnp.zeros((1, co), jnp.float32)))
    p['decoder'] = dec

    c = rh[-1]
    p['final_ct'] = dict(wk=[w((c, c), c) for _ in range(3)],
                         b=jnp.zeros((1, c), jnp.float32),
                         gamma=jnp.ones((1, c), jnp.float32),
                         beta=jnp.zeros((1, c), jnp.float32))
    # Final Conv1d weights stored in transposed layout (Cout, 3*Cin) / (Cout, 1) so the last
    # kernel writes a lane-dense (3, N*L) output.
    p['final_conv'] = dict(w_t=w((3, 3 * c), 3 * c), b_t=jnp.zeros((3, 1), jnp.float32))
    return p


# ------------------------- forward -------------------------

def vae_forward(params, x_ncl, eps, hidden_dims):
    N, C, L = x_ncl.shape
    x = jnp.transpose(x_ncl, (0, 2, 1)).astype(jnp.float32)   # NCL -> NLC

    # ---- encoder: 5 x fused [Conv1d(s=2) + BN + LeakyReLU] (one pallas_call per layer) ----
    for layer in params['encoder']:
        patches, n, lo = _patches_s2(x)
        y = conv_bn_lrelu(patches, layer['w'], layer['b'], layer['gamma'], layer['beta'])
        x = y.reshape(n, lo, -1)

    # torch.flatten(result, start_dim=1) on NCL layout -> (N, C*L), channel-major
    enc_flat = jnp.transpose(x, (0, 2, 1)).reshape(N, -1)

    # ---- fused fc_mu + fc_var + reparameterize + decoder_input (single pallas_call) ----
    mu, log_var, d = latent_block(enc_flat, params['fc_mu'], params['fc_var'],
                                  params['decoder_input'], eps)

    # TODO(synk): PyTorch's result.view(-1, 512, 2, 2) is 4-D and would be rejected by
    #             ConvTranspose1d; interpreted here as view(-1, 512, 4) so the 1-D decoder runs.
    h_last = hidden_dims[-1]
    x = jnp.transpose(d.reshape(N, h_last, 4), (0, 2, 1))     # NLC (N, 4, 512)

    # ---- decoder: fused [ConvTranspose1d(s=2) + BN + LeakyReLU] per layer ----
    for layer in params['decoder']:
        x = convt_bn_lrelu(x, layer['wk'], layer['b'], layer['gamma'], layer['beta'])

    fl = params['final_ct']
    x = convt_bn_lrelu(x, fl['wk'], fl['b'], fl['gamma'], fl['beta'])

    # ---- final Conv1d(k=3, s=1, p=1) fused with Tanh (lane-dense transposed output) ----
    n, lo, co = x.shape
    fc = params['final_conv']
    y_t = conv_tanh_t(_patches_s1_t(x), fc['w_t'], fc['b_t'])   # (3, N*L)
    recon = jnp.transpose(y_t.reshape(3, N, lo), (1, 0, 2))     # back to NCL (N, 3, L)

    return [recon, x_ncl, mu, log_var]


if __name__ == "__main__":
    IN_CHANNELS = 3
    LATENT_DIM = 16
    HIDDEN_DIMS = (32, 64, 128, 256, 512)
    BATCH = 2
    LENGTH = 128   # 5 stride-2 convs -> length 4, matching fc_mu's hidden_dims[-1]*4 input

    key = jax.random.PRNGKey(0)
    kx, keps, kp = jax.random.split(key, 3)
    params = make_params(IN_CHANNELS, LATENT_DIM, HIDDEN_DIMS, kp)
    x = jax.random.normal(kx, (BATCH, IN_CHANNELS, LENGTH), jnp.float32)
    eps = jax.random.normal(keps, (BATCH, LATENT_DIM), jnp.float32)   # torch.randn_like(std)

    fwd = jax.jit(lambda p, xi, e: vae_forward(p, xi, e, HIDDEN_DIMS))
    outs = fwd(params, x, eps)
    jax.block_until_ready(outs)

    recon, inp, mu, log_var = outs
    assert recon.shape == (BATCH, 3, LENGTH)
    assert mu.shape == (BATCH, LATENT_DIM) and log_var.shape == (BATCH, LATENT_DIM)
    assert bool(jnp.all(jnp.isfinite(recon))) and bool(jnp.all(jnp.isfinite(mu)))
    print("KERNEL_OK")
</pallas_src>

<mosaic_0001>
module attributes {stable_mosaic.version = 11 : i64} {
  func.func @_conv_bn_lrelu_kernel(%arg0: memref<128x9xf32, #tpu.memory_space<vmem>>, %arg1: memref<9x32xf32, #tpu.memory_space<vmem>>, %arg2: memref<1x32xf32, #tpu.memory_space<vmem>>, %arg3: memref<1x32xf32, #tpu.memory_space<vmem>>, %arg4: memref<1x32xf32, #tpu.memory_space<vmem>>, %arg5: memref<128x32xf32, #tpu.memory_space<vmem>>) attributes {dimension_semantics = [], scalar_prefetch = 0 : i64, scratch_operands = 0 : i64, tpu.core_type = #tpu.core_type<tc>} {
    %c0 = arith.constant 0 : index
    %c0_0 = arith.constant 0 : index
    %0 = vector.load %arg0[%c0, %c0_0] : memref<128x9xf32, #tpu.memory_space<vmem>>, vector<128x9xf32>
    %c0_1 = arith.constant 0 : index
    %c0_2 = arith.constant 0 : index
    %1 = vector.load %arg1[%c0_1, %c0_2] : memref<9x32xf32, #tpu.memory_space<vmem>>, vector<9x32xf32>
    %cst = arith.constant dense<0.000000e+00> : vector<128x32xf32>
    %2 = tpu.matmul %0, %1, %cst {dimension_numbers = #tpu.dot_dimension_numbers<[1], [0], [0], [1], [0, 0, 1, 1], [], []>} : vector<128x9xf32>, vector<9x32xf32>, vector<128x32xf32> -> vector<128x32xf32>
    %c0_3 = arith.constant 0 : index
    %c0_4 = arith.constant 0 : index
    %3 = vector.load %arg2[%c0_3, %c0_4] : memref<1x32xf32, #tpu.memory_space<vmem>>, vector<1x32xf32>
    %4 = vector.broadcast %3 : vector<1x32xf32> to vector<128x32xf32>
    %5 = arith.addf %2, %4 : vector<128x32xf32>
    %cst_5 = arith.constant dense<0.000000e+00> : vector<32xf32>
    %6 = vector.multi_reduction <add>, %5, %cst_5 [0] : vector<128x32xf32> to vector<32xf32>
    %7 = vector.shape_cast %6 : vector<32xf32> to vector<1x32xf32>
    %cst_6 = arith.constant 1.280000e+02 : f32
    %8 = vector.broadcast %cst_6 : f32 to vector<1x32xf32>
    %9 = arith.divf %7, %8 : vector<1x32xf32>
    %10 = vector.broadcast %9 : vector<1x32xf32> to vector<128x32xf32>
    %11 = arith.subf %5, %10 : vector<128x32xf32>
    %12 = arith.mulf %11, %11 : vector<128x32xf32>
    %cst_7 = arith.constant dense<0.000000e+00> : vector<32xf32>
    %13 = vector.multi_reduction <add>, %12, %cst_7 [0] : vector<128x32xf32> to vector<32xf32>
    %14 = vector.shape_cast %13 : vector<32xf32> to vector<1x32xf32>
    %cst_8 = arith.constant 1.280000e+02 : f32
    %15 = vector.broadcast %cst_8 : f32 to vector<1x32xf32>
    %16 = arith.divf %14, %15 : vector<1x32xf32>
    %17 = vector.broadcast %9 : vector<1x32xf32> to vector<128x32xf32>
    %18 = arith.subf %5, %17 : vector<128x32xf32>
    %cst_9 = arith.constant 9.99999974E-6 : f32
    %19 = vector.broadcast %cst_9 : f32 to vector<1x32xf32>
    %20 = arith.addf %16, %19 : vector<1x32xf32>
    %21 = math.rsqrt %20 : vector<1x32xf32>
    %22 = vector.broadcast %21 : vector<1x32xf32> to vector<128x32xf32>
    %23 = arith.mulf %18, %22 : vector<128x32xf32>
    %c0_10 = arith.constant 0 : index
    %c0_11 = arith.constant 0 : index
    %24 = vector.load %arg3[%c0_10, %c0_11] : memref<1x32xf32, #tpu.memory_space<vmem>>, vector<1x32xf32>
    %25 = vector.broadcast %24 : vector<1x32xf32> to vector<128x32xf32>
    %26 = arith.mulf %23, %25 : vector<128x32xf32>
    %c0_12 = arith.constant 0 : index
    %c0_13 = arith.constant 0 : index
    %27 = vector.load %arg4[%c0_12, %c0_13] : memref<1x32xf32, #tpu.memory_space<vmem>>, vector<1x32xf32>
    %28 = vector.broadcast %27 : vector<1x32xf32> to vector<128x32xf32>
    %29 = arith.addf %26, %28 : vector<128x32xf32>
    %cst_14 = arith.constant 0.000000e+00 : f32
    %30 = vector.broadcast %cst_14 : f32 to vector<128x32xf32>
    %31 = arith.cmpf oge, %29, %30 : vector<128x32xf32>
    %cst_15 = arith.constant 0.00999999977 : f32
    %32 = vector.broadcast %cst_15 : f32 to vector<128x32xf32>
    %33 = arith.mulf %32, %29 : vector<128x32xf32>
    %34 = arith.select %31, %29, %33 : vector<128x32xi1>, vector<128x32xf32>
    %c0_16 = arith.constant 0 : index
    %c0_17 = arith.constant 0 : index
    %35 = vector.load %arg5[%c0_16, %c0_17] : memref<128x32xf32, #tpu.memory_space<vmem>>, vector<128x32xf32>
    tpu.vector_store %arg5[%c0_16, %c0_17], %34 {strides = array<i32>} : memref<128x32xf32, #tpu.memory_space<vmem>>, vector<128x32xf32>,
    return
  }
}

module attributes {stable_mosaic.version = 11 : i64} {
  func.func @_conv_bn_lrelu_kernel(%arg0: memref<64x96xf32, #tpu.memory_space<vmem>>, %arg1: memref<96x64xf32, #tpu.memory_space<vmem>>, %arg2: memref<1x64xf32, #tpu.memory_space<vmem>>, %arg3: memref<1x64xf32, #tpu.memory_space<vmem>>, %arg4: memref<1x64xf32, #tpu.memory_space<vmem>>, %arg5: memref<64x64xf32, #tpu.memory_space<vmem>>) attributes {dimension_semantics = [], scalar_prefetch = 0 : i64, scratch_operands = 0 : i64, tpu.core_type = #tpu.core_type<tc>} {
    %c0 = arith.constant 0 : index
    %c0_0 = arith.constant 0 : index
    %0 = vector.load %arg0[%c0, %c0_0] : memref<64x96xf32, #tpu.memory_space<vmem>>, vector<64x96xf32>
    %c0_1 = arith.constant 0 : index
    %c0_2 = arith.constant 0 : index
    %1 = vector.load %arg1[%c0_1, %c0_2] : memref<96x64xf32, #tpu.memory_space<vmem>>, vector<96x64xf32>
    %cst = arith.constant dense<0.000000e+00> : vector<64x64xf32>
    %2 = tpu.matmul %0, %1, %cst {dimension_numbers = #tpu.dot_dimension_numbers<[1], [0], [0], [1], [0, 0, 1, 1], [], []>} : vector<64x96xf32>, vector<96x64xf32>, vector<64x64xf32> -> vector<64x64xf32>
    %c0_3 = arith.constant 0 : index
    %c0_4 = arith.constant 0 : index
    %3 = vector.load %arg2[%c0_3, %c0_4] : memref<1x64xf32, #tpu.memory_space<vmem>>, vector<1x64xf32>
    %4 = vector.broadcast %3 : vector<1x64xf32> to vector<64x64xf32>
    %5 = arith.addf %2, %4 : vector<64x64xf32>
    %cst_5 = arith.constant dense<0.000000e+00> : vector<64xf32>
    %6 = vector.multi_reduction <add>, %5, %cst_5 [0] : vector<64x64xf32> to vector<64xf32>
    %7 = vector.shape_cast %6 : vector<64xf32> to vector<1x64xf32>
    %cst_6 = arith.constant 6.400000e+01 : f32
    %8 = vector.broadcast %cst_6 : f32 to vector<1x64xf32>
    %9 = arith.divf %7, %8 : vector<1x64xf32>
    %10 = vector.broadcast %9 : vector<1x64xf32> to vector<64x64xf32>
    %11 = arith.subf %5, %10 : vector<64x64xf32>
    %12 = arith.mulf %11, %11 : vector<64x64xf32>
    %cst_7 = arith.constant dense<0.000000e+00> : vector<64xf32>
    %13 = vector.multi_reduction <add>, %12, %cst_7 [0] : vector<64x64xf32> to vector<64xf32>
    %14 = vector.shape_cast %13 : vector<64xf32> to vector<1x64xf32>
    %cst_8 = arith.constant 6.400000e+01 : f32
    %15 = vector.broadcast %cst_8 : f32 to vector<1x64xf32>
    %16 = arith.divf %14, %15 : vector<1x64xf32>
    %17 = vector.broadcast %9 : vector<1x64xf32> to vector<64x64xf32>
    %18 = arith.subf %5, %17 : vector<64x64xf32>
    %cst_9 = arith.constant 9.99999974E-6 : f32
    %19 = vector.broadcast %cst_9 : f32 to vector<1x64xf32>
    %20 = arith.addf %16, %19 : vector<1x64xf32>
    %21 = math.rsqrt %20 : vector<1x64xf32>
    %22 = vector.broadcast %21 : vector<1x64xf32> to vector<64x64xf32>
    %23 = arith.mulf %18, %22 : vector<64x64xf32>
    %c0_10 = arith.constant 0 : index
    %c0_11 = arith.constant 0 : index
    %24 = vector.load %arg3[%c0_10, %c0_11] : memref<1x64xf32, #tpu.memory_space<vmem>>, vector<1x64xf32>
    %25 = vector.broadcast %24 : vector<1x64xf32> to vector<64x64xf32>
    %26 = arith.mulf %23, %25 : vector<64x64xf32>
    %c0_12 = arith.constant 0 : index
    %c0_13 = arith.constant 0 : index
    %27 = vector.load %arg4[%c0_12, %c0_13] : memref<1x64xf32, #tpu.memory_space<vmem>>, vector<1x64xf32>
    %28 = vector.broadcast %27 : vector<1x64xf32> to vector<64x64xf32>
    %29 = arith.addf %26, %28 : vector<64x64xf32>
    %cst_14 = arith.constant 0.000000e+00 : f32
    %30 = vector.broadcast %cst_14 : f32 to vector<64x64xf32>
    %31 = arith.cmpf oge, %29, %30 : vector<64x64xf32>
    %cst_15 = arith.constant 0.00999999977 : f32
    %32 = vector.broadcast %cst_15 : f32 to vector<64x64xf32>
    %33 = arith.mulf %32, %29 : vector<64x64xf32>
    %34 = arith.select %31, %29, %33 : vector<64x64xi1>, vector<64x64xf32>
    %c0_16 = arith.constant 0 : index
    %c0_17 = arith.constant 0 : index
    %35 = vector.load %arg5[%c0_16, %c0_17] : memref<64x64xf32, #tpu.memory_space<vmem>>, vector<64x64xf32>
    tpu.vector_store %arg5[%c0_16, %c0_17], %34 {strides = array<i32>} : memref<64x64xf32, #tpu.memory_space<vmem>>, vector<64x64xf32>,
    return
  }
}

module attributes {stable_mosaic.version = 11 : i64} {
  func.func @_conv_bn_lrelu_kernel(%arg0: memref<32x192xf32, #tpu.memory_space<vmem>>, %arg1: memref<192x128xf32, #tpu.memory_space<vmem>>, %arg2: memref<1x128xf32, #tpu.memory_space<vmem>>, %arg3: memref<1x128xf32, #tpu.memory_space<vmem>>, %arg4: memref<1x128xf32, #tpu.memory_space<vmem>>, %arg5: memref<32x128xf32, #tpu.memory_space<vmem>>) attributes {dimension_semantics = [], scalar_prefetch = 0 : i64, scratch_operands = 0 : i64, tpu.core_type = #tpu.core_type<tc>} {
    %c0 = arith.constant 0 : index
    %c0_0 = arith.constant 0 : index
    %0 = vector.load %arg0[%c0, %c0_0] : memref<32x192xf32, #tpu.memory_space<vmem>>, vector<32x192xf32>
    %c0_1 = arith.constant 0 : index
    %c0_2 = arith.constant 0 : index
    %1 = vector.load %arg1[%c0_1, %c0_2] : memref<192x128xf32, #tpu.memory_space<vmem>>, vector<192x128xf32>
    %cst = arith.constant dense<0.000000e+00> : vector<32x128xf32>
    %2 = tpu.matmul %0, %1, %cst {dimension_numbers = #tpu.dot_dimension_numbers<[1], [0], [0], [1], [0, 0, 1, 1], [], []>} : vector<32x192xf32>, vector<192x128xf32>, vector<32x128xf32> -> vector<32x128xf32>
    %c0_3 = arith.constant 0 : index
    %c0_4 = arith.constant 0 : index
    %3 = vector.load %arg2[%c0_3, %c0_4] : memref<1x128xf32, #tpu.memory_space<vmem>>, vector<1x128xf32>
    %4 = vector.broadcast %3 : vector<1x128xf32> to vector<32x128xf32>
    %5 = arith.addf %2, %4 : vector<32x128xf32>
    %cst_5 = arith.constant dense<0.000000e+00> : vector<128xf32>
    %6 = vector.multi_reduction <add>, %5, %cst_5 [0] : vector<32x128xf32> to vector<128xf32>
    %7 = vector.shape_cast %6 : vector<128xf32> to vector<1x128xf32>
    %cst_6 = arith.constant 3.200000e+01 : f32
    %8 = vector.broadcast %cst_6 : f32 to vector<1x128xf32>
    %9 = arith.divf %7, %8 : vector<1x128xf32>
    %10 = vector.broadcast %9 : vector<1x128xf32> to vector<32x128xf32>
    %11 = arith.subf %5, %10 : vector<32x128xf32>
    %12 = arith.mulf %11, %11 : vector<32x128xf32>
    %cst_7 = arith.constant dense<0.000000e+00> : vector<128xf32>
    %13 = vector.multi_reduction <add>, %12, %cst_7 [0] : vector<32x128xf32> to vector<128xf32>
    %14 = vector.shape_cast %13 : vector<128xf32> to vector<1x128xf32>
    %cst_8 = arith.constant 3.200000e+01 : f32
    %15 = vector.broadcast %cst_8 : f32 to vector<1x128xf32>
    %16 = arith.divf %14, %15 : vector<1x128xf32>
    %17 = vector.broadcast %9 : vector<1x128xf32> to vector<32x128xf32>
    %18 = arith.subf %5, %17 : vector<32x128xf32>
    %cst_9 = arith.constant 9.99999974E-6 : f32
    %19 = vector.broadcast %cst_9 : f32 to vector<1x128xf32>
    %20 = arith.addf %16, %19 : vector<1x128xf32>
    %21 = math.rsqrt %20 : vector<1x128xf32>
    %22 = vector.broadcast %21 : vector<1x128xf32> to vector<32x128xf32>
    %23 = arith.mulf %18, %22 : vector<32x128xf32>
    %c0_10 = arith.constant 0 : index
    %c0_11 = arith.constant 0 : index
    %24 = vector.load %arg3[%c0_10, %c0_11] : memref<1x128xf32, #tpu.memory_space<vmem>>, vector<1x128xf32>
    %25 = vector.broadcast %24 : vector<1x128xf32> to vector<32x128xf32>
    %26 = arith.mulf %23, %25 : vector<32x128xf32>
    %c0_12 = arith.constant 0 : index
    %c0_13 = arith.constant 0 : index
    %27 = vector.load %arg4[%c0_12, %c0_13] : memref<1x128xf32, #tpu.memory_space<vmem>>, vector<1x128xf32>
    %28 = vector.broadcast %27 : vector<1x128xf32> to vector<32x128xf32>
    %29 = arith.addf %26, %28 : vector<32x128xf32>
    %cst_14 = arith.constant 0.000000e+00 : f32
    %30 = vector.broadcast %cst_14 : f32 to vector<32x128xf32>
    %31 = arith.cmpf oge, %29, %30 : vector<32x128xf32>
    %cst_15 = arith.constant 0.00999999977 : f32
    %32 = vector.broadcast %cst_15 : f32 to vector<32x128xf32>
    %33 = arith.mulf %32, %29 : vector<32x128xf32>
    %34 = arith.select %31, %29, %33 : vector<32x128xi1>, vector<32x128xf32>
    %c0_16 = arith.constant 0 : index
    %c0_17 = arith.constant 0 : index
    %35 = vector.load %arg5[%c0_16, %c0_17] : memref<32x128xf32, #tpu.memory_space<vmem>>, vector<32x128xf32>
    tpu.vector_store %arg5[%c0_16, %c0_17], %34 {strides = array<i32>} : memref<32x128xf32, #tpu.memory_space<vmem>>, vector<32x128xf32>,
    return
  }
}

module attributes {stable_mosaic.version = 11 : i64} {
  func.func @_conv_bn_lrelu_kernel(%arg0: memref<16x384xf32, #tpu.memory_space<vmem>>, %arg1: memref<384x256xf32, #tpu.memory_space<vmem>>, %arg2: memref<1x256xf32, #tpu.memory_space<vmem>>, %arg3: memref<1x256xf32, #tpu.memory_space<vmem>>, %arg4: memref<1x256xf32, #tpu.memory_space<vmem>>, %arg5: memref<16x256xf32, #tpu.memory_space<vmem>>) attributes {dimension_semantics = [], scalar_prefetch = 0 : i64, scratch_operands = 0 : i64, tpu.core_type = #tpu.core_type<tc>} {
    %c0 = arith.constant 0 : index
    %c0_0 = arith.constant 0 : index
    %0 = vector.load %arg0[%c0, %c0_0] : memref<16x384xf32, #tpu.memory_space<vmem>>, vector<16x384xf32>
    %c0_1 = arith.constant 0 : index
    %c0_2 = arith.constant 0 : index
    %1 = vector.load %arg1[%c0_1, %c0_2] : memref<384x256xf32, #tpu.memory_space<vmem>>, vector<384x256xf32>
    %cst = arith.constant dense<0.000000e+00> : vector<16x256xf32>
    %2 = tpu.matmul %0, %1, %cst {dimension_numbers = #tpu.dot_dimension_numbers<[1], [0], [0], [1], [0, 0, 1, 1], [], []>} : vector<16x384xf32>, vector<384x256xf32>, vector<16x256xf32> -> vector<16x256xf32>
    %c0_3 = arith.constant 0 : index
    %c0_4 = arith.constant 0 : index
    %3 = vector.load %arg2[%c0_3, %c0_4] : memref<1x256xf32, #tpu.memory_space<vmem>>, vector<1x256xf32>
    %4 = vector.broadcast %3 : vector<1x256xf32> to vector<16x256xf32>
    %5 = arith.addf %2, %4 : vector<16x256xf32>
    %cst_5 = arith.constant dense<0.000000e+00> : vector<256xf32>
    %6 = vector.multi_reduction <add>, %5, %cst_5 [0] : vector<16x256xf32> to vector<256xf32>
    %7 = vector.shape_cast %6 : vector<256xf32> to vector<1x256xf32>
    %cst_6 = arith.constant 1.600000e+01 : f32
    %8 = vector.broadcast %cst_6 : f32 to vector<1x256xf32>
    %9 = arith.divf %7, %8 : vector<1x256xf32>
    %10 = vector.broadcast %9 : vector<1x256xf32> to vector<16x256xf32>
    %11 = arith.subf %5, %10 : vector<16x256xf32>
    %12 = arith.mulf %11, %11 : vector<16x256xf32>
    %cst_7 = arith.constant dense<0.000000e+00> : vector<256xf32>
    %13 = vector.multi_reduction <add>, %12, %cst_7 [0] : vector<16x256xf32> to vector<256xf32>
    %14 = vector.shape_cast %13 : vector<256xf32> to vector<1x256xf32>
    %cst_8 = arith.constant 1.600000e+01 : f32
    %15 = vector.broadcast %cst_8 : f32 to vector<1x256xf32>
    %16 = arith.divf %14, %15 : vector<1x256xf32>
    %17 = vector.broadcast %9 : vector<1x256xf32> to vector<16x256xf32>
    %18 = arith.subf %5, %17 : vector<16x256xf32>
    %cst_9 = arith.constant 9.99999974E-6 : f32
    %19 = vector.broadcast %cst_9 : f32 to vector<1x256xf32>
    %20 = arith.addf %16, %19 : vector<1x256xf32>
    %21 = math.rsqrt %20 : vector<1x256xf32>
    %22 = vector.broadcast %21 : vector<1x256xf32> to vector<16x256xf32>
    %23 = arith.mulf %18, %22 : vector<16x256xf32>
    %c0_10 = arith.constant 0 : index
    %c0_11 = arith.constant 0 : index
    %24 = vector.load %arg3[%c0_10, %c0_11] : memref<1x256xf32, #tpu.memory_space<vmem>>, vector<1x256xf32>
    %25 = vector.broadcast %24 : vector<1x256xf32> to vector<16x256xf32>
    %26 = arith.mulf %23, %25 : vector<16x256xf32>
    %c0_12 = arith.constant 0 : index
    %c0_13 = arith.constant 0 : index
    %27 = vector.load %arg4[%c0_12, %c0_13] : memref<1x256xf32, #tpu.memory_space<vmem>>, vector<1x256xf32>
    %28 = vector.broadcast %27 : vector<1x256xf32> to vector<16x256xf32>
    %29 = arith.addf %26, %28 : vector<16x256xf32>
    %cst_14 = arith.constant 0.000000e+00 : f32
    %30 = vector.broadcast %cst_14 : f32 to vector<16x256xf32>
    %31 = arith.cmpf oge, %29, %30 : vector<16x256xf32>
    %cst_15 = arith.constant 0.00999999977 : f32
    %32 = vector.broadcast %cst_15 : f32 to vector<16x256xf32>
    %33 = arith.mulf %32, %29 : vector<16x256xf32>
    %34 = arith.select %31, %29, %33 : vector<16x256xi1>, vector<16x256xf32>
    %c0_16 = arith.constant 0 : index
    %c0_17 = arith.constant 0 : index
    %35 = vector.load %arg5[%c0_16, %c0_17] : memref<16x256xf32, #tpu.memory_space<vmem>>, vector<16x256xf32>
    tpu.vector_store %arg5[%c0_16, %c0_17], %34 {strides = array<i32>} : memref<16x256xf32, #tpu.memory_space<vmem>>, vector<16x256xf32>,
    return
  }
}

module attributes {stable_mosaic.version = 11 : i64} {
  func.func @_conv_bn_lrelu_kernel(%arg0: memref<8x768xf32, #tpu.memory_space<vmem>>, %arg1: memref<768x512xf32, #tpu.memory_space<vmem>>, %arg2: memref<1x512xf32, #tpu.memory_space<vmem>>, %arg3: memref<1x512xf32, #tpu.memory_space<vmem>>, %arg4: memref<1x512xf32, #tpu.memory_space<vmem>>, %arg5: memref<8x512xf32, #tpu.memory_space<vmem>>) attributes {dimension_semantics = [], scalar_prefetch = 0 : i64, scratch_operands = 0 : i64, tpu.core_type = #tpu.core_type<tc>} {
    %c0 = arith.constant 0 : index
    %c0_0 = arith.constant 0 : index
    %0 = vector.load %arg0[%c0, %c0_0] : memref<8x768xf32, #tpu.memory_space<vmem>>, vector<8x768xf32>
    %c0_1 = arith.constant 0 : index
    %c0_2 = arith.constant 0 : index
    %1 = vector.load %arg1[%c0_1, %c0_2] : memref<768x512xf32, #tpu.memory_space<vmem>>, vector<768x512xf32>
    %cst = arith.constant dense<0.000000e+00> : vector<8x512xf32>
    %2 = tpu.matmul %0, %1, %cst {dimension_numbers = #tpu.dot_dimension_numbers<[1], [0], [0], [1], [0, 0, 1, 1], [], []>} : vector<8x768xf32>, vector<768x512xf32>, vector<8x512xf32> -> vector<8x512xf32>
    %c0_3 = arith.constant 0 : index
    %c0_4 = arith.constant 0 : index
    %3 = vector.load %arg2[%c0_3, %c0_4] : memref<1x512xf32, #tpu.memory_space<vmem>>, vector<1x512xf32>
    %4 = vector.broadcast %3 : vector<1x512xf32> to vector<8x512xf32>
    %5 = arith.addf %2, %4 : vector<8x512xf32>
    %cst_5 = arith.constant dense<0.000000e+00> : vector<512xf32>
    %6 = vector.multi_reduction <add>, %5, %cst_5 [0] : vector<8x512xf32> to vector<512xf32>
    %7 = vector.shape_cast %6 : vector<512xf32> to vector<1x512xf32>
    %cst_6 = arith.constant 8.000000e+00 : f32
    %8 = vector.broadcast %cst_6 : f32 to vector<1x512xf32>
    %9 = arith.divf %7, %8 : vector<1x512xf32>
    %10 = vector.broadcast %9 : vector<1x512xf32> to vector<8x512xf32>
    %11 = arith.subf %5, %10 : vector<8x512xf32>
    %12 = arith.mulf %11, %11 : vector<8x512xf32>
    %cst_7 = arith.constant dense<0.000000e+00> : vector<512xf32>
    %13 = vector.multi_reduction <add>, %12, %cst_7 [0] : vector<8x512xf32> to vector<512xf32>
    %14 = vector.shape_cast %13 : vector<512xf32> to vector<1x512xf32>
    %cst_8 = arith.constant 8.000000e+00 : f32
    %15 = vector.broadcast %cst_8 : f32 to vector<1x512xf32>
    %16 = arith.divf %14, %15 : vector<1x512xf32>
    %17 = vector.broadcast %9 : vector<1x512xf32> to vector<8x512xf32>
    %18 = arith.subf %5, %17 : vector<8x512xf32>
    %cst_9 = arith.constant 9.99999974E-6 : f32
    %19 = vector.broadcast %cst_9 : f32 to vector<1x512xf32>
    %20 = arith.addf %16, %19 : vector<1x512xf32>
    %21 = math.rsqrt %20 : vector<1x512xf32>
    %22 = vector.broadcast %21 : vector<1x512xf32> to vector<8x512xf32>
    %23 = arith.mulf %18, %22 : vector<8x512xf32>
    %c0_10 = arith.constant 0 : index
    %c0_11 = arith.constant 0 : index
    %24 = vector.load %arg3[%c0_10, %c0_11] : memref<1x512xf32, #tpu.memory_space<vmem>>, vector<1x512xf32>
    %25 = vector.broadcast %24 : vector<1x512xf32> to vector<8x512xf32>
    %26 = arith.mulf %23, %25 : vector<8x512xf32>
    %c0_12 = arith.constant 0 : index
    %c0_13 = arith.constant 0 : index
    %27 = vector.load %arg4[%c0_12, %c0_13] : memref<1x512xf32, #tpu.memory_space<vmem>>, vector<1x512xf32>
    %28 = vector.broadcast %27 : vector<1x512xf32> to vector<8x512xf32>
    %29 = arith.addf %26, %28 : vector<8x512xf32>
    %cst_14 = arith.constant 0.000000e+00 : f32
    %30 = vector.broadcast %cst_14 : f32 to vector<8x512xf32>
    %31 = arith.cmpf oge, %29, %30 : vector<8x512xf32>
    %cst_15 = arith.constant 0.00999999977 : f32
    %32 = vector.broadcast %cst_15 : f32 to vector<8x512xf32>
    %33 = arith.mulf %32, %29 : vector<8x512xf32>
    %34 = arith.select %31, %29, %33 : vector<8x512xi1>, vector<8x512xf32>
    %c0_16 = arith.constant 0 : index
    %c0_17 = arith.constant 0 : index
    %35 = vector.load %arg5[%c0_16, %c0_17] : memref<8x512xf32, #tpu.memory_space<vmem>>, vector<8x512xf32>
    tpu.vector_store %arg5[%c0_16, %c0_17], %34 {strides = array<i32>} : memref<8x512xf32, #tpu.memory_space<vmem>>, vector<8x512xf32>,
    return
  }
}

module attributes {stable_mosaic.version = 11 : i64} {
  func.func @_latent_kernel(%arg0: memref<2x2048xf32, #tpu.memory_space<vmem>>, %arg1: memref<2048x16xf32, #tpu.memory_space<vmem>>, %arg2: memref<1x16xf32, #tpu.memory_space<vmem>>, %arg3: memref<2048x16xf32, #tpu.memory_space<vmem>>, %arg4: memref<1x16xf32, #tpu.memory_space<vmem>>, %arg5: memref<2x16xf32, #tpu.memory_space<vmem>>, %arg6: memref<16x2048xf32, #tpu.memory_space<vmem>>, %arg7: memref<1x2048xf32, #tpu.memory_space<vmem>>, %arg8: memref<2x16xf32, #tpu.memory_space<vmem>>, %arg9: memref<2x16xf32, #tpu.memory_space<vmem>>, %arg10: memref<2x2048xf32, #tpu.memory_space<vmem>>) attributes {dimension_semantics = [], scalar_prefetch = 0 : i64, scratch_operands = 0 : i64, tpu.core_type = #tpu.core_type<tc>} {
    %c0 = arith.constant 0 : index
    %c0_0 = arith.constant 0 : index
    %0 = vector.load %arg0[%c0, %c0_0] : memref<2x2048xf32, #tpu.memory_space<vmem>>, vector<2x2048xf32>
    %c0_1 = arith.constant 0 : index
    %c0_2 = arith.constant 0 : index
    %1 = vector.load %arg1[%c0_1, %c0_2] : memref<2048x16xf32, #tpu.memory_space<vmem>>, vector<2048x16xf32>
    %cst = arith.constant dense<0.000000e+00> : vector<2x16xf32>
    %2 = tpu.matmul %0, %1, %cst {dimension_numbers = #tpu.dot_dimension_numbers<[1], [0], [0], [1], [0, 0, 1, 1], [], []>} : vector<2x2048xf32>, vector<2048x16xf32>, vector<2x16xf32> -> vector<2x16xf32>
    %c0_3 = arith.constant 0 : index
    %c0_4 = arith.constant 0 : index
    %3 = vector.load %arg2[%c0_3, %c0_4] : memref<1x16xf32, #tpu.memory_space<vmem>>, vector<1x16xf32>
    %4 = vector.broadcast %3 : vector<1x16xf32> to vector<2x16xf32>
    %5 = arith.addf %2, %4 : vector<2x16xf32>
    %c0_5 = arith.constant 0 : index
    %c0_6 = arith.constant 0 : index
    %6 = vector.load %arg3[%c0_5, %c0_6] : memref<2048x16xf32, #tpu.memory_space<vmem>>, vector<2048x16xf32>
    %cst_7 = arith.constant dense<0.000000e+00> : vector<2x16xf32>
    %7 = tpu.matmul %0, %6, %cst_7 {dimension_numbers = #tpu.dot_dimension_numbers<[1], [0], [0], [1], [0, 0, 1, 1], [], []>} : vector<2x2048xf32>, vector<2048x16xf32>, vector<2x16xf32> -> vector<2x16xf32>
    %c0_8 = arith.constant 0 : index
    %c0_9 = arith.constant 0 : index
    %8 = vector.load %arg4[%c0_8, %c0_9] : memref<1x16xf32, #tpu.memory_space<vmem>>, vector<1x16xf32>
    %9 = vector.broadcast %8 : vector<1x16xf32> to vector<2x16xf32>
    %10 = arith.addf %7, %9 : vector<2x16xf32>
    %c0_10 = arith.constant 0 : index
    %c0_11 = arith.constant 0 : index
    %11 = vector.load %arg5[%c0_10, %c0_11] : memref<2x16xf32, #tpu.memory_space<vmem>>, vector<2x16xf32>
    %cst_12 = arith.constant 5.000000e-01 : f32
    %12 = vector.broadcast %cst_12 : f32 to vector<2x16xf32>
    %13 = arith.mulf %12, %10 : vector<2x16xf32>
    %14 = math.exp %13 : vector<2x16xf32>
    %15 = arith.mulf %11, %14 : vector<2x16xf32>
    %16 = arith.addf %15, %5 : vector<2x16xf32>
    %c0_13 = arith.constant 0 : index
    %c0_14 = arith.constant 0 : index
    %17 = vector.load %arg8[%c0_13, %c0_14] : memref<2x16xf32, #tpu.memory_space<vmem>>, vector<2x16xf32>
    tpu.vector_store %arg8[%c0_13, %c0_14], %5 {strides = array<i32>} : memref<2x16xf32, #tpu.memory_space<vmem>>, vector<2x16xf32>,
    %c0_15 = arith.constant 0 : index
    %c0_16 = arith.constant 0 : index
    %18 = vector.load %arg9[%c0_15, %c0_16] : memref<2x16xf32, #tpu.memory_space<vmem>>, vector<2x16xf32>
    tpu.vector_store %arg9[%c0_15, %c0_16], %10 {strides = array<i32>} : memref<2x16xf32, #tpu.memory_space<vmem>>, vector<2x16xf32>,
    %c0_17 = arith.constant 0 : index
    %c0_18 = arith.constant 0 : index
    %19 = vector.load %arg6[%c0_17, %c0_18] : memref<16x2048xf32, #tpu.memory_space<vmem>>, vector<16x2048xf32>
    %cst_19 = arith.constant dense<0.000000e+00> : vector<2x2048xf32>
    %20 = tpu.matmul %16, %19, %cst_19 {dimension_numbers = #tpu.dot_dimension_numbers<[1], [0], [0], [1], [0, 0, 1, 1], [], []>} : vector<2x16xf32>, vector<16x2048xf32>, vector<2x2048xf32> -> vector<2x2048xf32>
    %c0_20 = arith.constant 0 : index
    %c0_21 = arith.constant 0 : index
    %21 = vector.load %arg7[%c0_20, %c0_21] : memref<1x2048xf32, #tpu.memory_space<vmem>>, vector<1x2048xf32>
    %22 = vector.broadcast %21 : vector<1x2048xf32> to vector<2x2048xf32>
    %23 = arith.addf %20, %22 : vector<2x2048xf32>
    %c0_22 = arith.constant 0 : index
    %c0_23 = arith.constant 0 : index
    %24 = vector.load %arg10[%c0_22, %c0_23] : memref<2x2048xf32, #tpu.memory_space<vmem>>, vector<2x2048xf32>
    tpu.vector_store %arg10[%c0_22, %c0_23], %23 {strides = array<i32>} : memref<2x2048xf32, #tpu.memory_space<vmem>>, vector<2x2048xf32>,
    return
  }
}

module attributes {stable_mosaic.version = 11 : i64} {
  func.func @_convt_bn_lrelu_kernel(%arg0: memref<8x512xf32, #tpu.memory_space<vmem>>, %arg1: memref<8x512xf32, #tpu.memory_space<vmem>>, %arg2: memref<512x256xf32, #tpu.memory_space<vmem>>, %arg3: memref<512x256xf32, #tpu.memory_space<vmem>>, %arg4: memref<512x256xf32, #tpu.memory_space<vmem>>, %arg5: memref<1x256xf32, #tpu.memory_space<vmem>>, %arg6: memref<1x256xf32, #tpu.memory_space<vmem>>, %arg7: memref<1x256xf32, #tpu.memory_space<vmem>>, %arg8: memref<8x256xf32, #tpu.memory_space<vmem>>, %arg9: memref<8x256xf32, #tpu.memory_space<vmem>>) attributes {dimension_semantics = [], scalar_prefetch = 0 : i64, scratch_operands = 0 : i64, tpu.core_type = #tpu.core_type<tc>} {
    %c0 = arith.constant 0 : index
    %c0_0 = arith.constant 0 : index
    %0 = vector.load %arg0[%c0, %c0_0] : memref<8x512xf32, #tpu.memory_space<vmem>>, vector<8x512xf32>
    %c0_1 = arith.constant 0 : index
    %c0_2 = arith.constant 0 : index
    %1 = vector.load %arg1[%c0_1, %c0_2] : memref<8x512xf32, #tpu.memory_space<vmem>>, vector<8x512xf32>
    %c0_3 = arith.constant 0 : index
    %c0_4 = arith.constant 0 : index
    %2 = vector.load %arg5[%c0_3, %c0_4] : memref<1x256xf32, #tpu.memory_space<vmem>>, vector<1x256xf32>
    %c0_5 = arith.constant 0 : index
    %c0_6 = arith.constant 0 : index
    %3 = vector.load %arg3[%c0_5, %c0_6] : memref<512x256xf32, #tpu.memory_space<vmem>>, vector<512x256xf32>
    %cst = arith.constant dense<0.000000e+00> : vector<8x256xf32>
    %4 = tpu.matmul %0, %3, %cst {dimension_numbers = #tpu.dot_dimension_numbers<[1], [0], [0], [1], [0, 0, 1, 1], [], []>} : vector<8x512xf32>, vector<512x256xf32>, vector<8x256xf32> -> vector<8x256xf32>
    %5 = vector.broadcast %2 : vector<1x256xf32> to vector<8x256xf32>
    %6 = arith.addf %4, %5 : vector<8x256xf32>
    %c0_7 = arith.constant 0 : index
    %c0_8 = arith.constant 0 : index
    %7 = vector.load %arg4[%c0_7, %c0_8] : memref<512x256xf32, #tpu.memory_space<vmem>>, vector<512x256xf32>
    %cst_9 = arith.constant dense<0.000000e+00> : vector<8x256xf32>
    %8 = tpu.matmul %0, %7, %cst_9 {dimension_numbers = #tpu.dot_dimension_numbers<[1], [0], [0], [1], [0, 0, 1, 1], [], []>} : vector<8x512xf32>, vector<512x256xf32>, vector<8x256xf32> -> vector<8x256xf32>
    %c0_10 = arith.constant 0 : index
    %c0_11 = arith.constant 0 : index
    %9 = vector.load %arg2[%c0_10, %c0_11] : memref<512x256xf32, #tpu.memory_space<vmem>>, vector<512x256xf32>
    %cst_12 = arith.constant dense<0.000000e+00> : vector<8x256xf32>
    %10 = tpu.matmul %1, %9, %cst_12 {dimension_numbers = #tpu.dot_dimension_numbers<[1], [0], [0], [1], [0, 0, 1, 1], [], []>} : vector<8x512xf32>, vector<512x256xf32>, vector<8x256xf32> -> vector<8x256xf32>
    %11 = arith.addf %8, %10 : vector<8x256xf32>
    %12 = vector.broadcast %2 : vector<1x256xf32> to vector<8x256xf32>
    %13 = arith.addf %11, %12 : vector<8x256xf32>
    %cst_13 = arith.constant dense<0.000000e+00> : vector<256xf32>
    %14 = vector.multi_reduction <add>, %6, %cst_13 [0] : vector<8x256xf32> to vector<256xf32>
    %15 = vector.shape_cast %14 : vector<256xf32> to vector<1x256xf32>
    %cst_14 = arith.constant 8.000000e+00 : f32
    %16 = vector.broadcast %cst_14 : f32 to vector<1x256xf32>
    %17 = arith.divf %15, %16 : vector<1x256xf32>
    %cst_15 = arith.constant dense<0.000000e+00> : vector<256xf32>
    %18 = vector.multi_reduction <add>, %13, %cst_15 [0] : vector<8x256xf32> to vector<256xf32>
    %19 = vector.shape_cast %18 : vector<256xf32> to vector<1x256xf32>
    %cst_16 = arith.constant 8.000000e+00 : f32
    %20 = vector.broadcast %cst_16 : f32 to vector<1x256xf32>
    %21 = arith.divf %19, %20 : vector<1x256xf32>
    %22 = arith.addf %17, %21 : vector<1x256xf32>
    %cst_17 = arith.constant 5.000000e-01 : f32
    %23 = vector.broadcast %cst_17 : f32 to vector<1x256xf32>
    %24 = arith.mulf %23, %22 : vector<1x256xf32>
    %25 = vector.broadcast %24 : vector<1x256xf32> to vector<8x256xf32>
    %26 = arith.subf %6, %25 : vector<8x256xf32>
    %27 = arith.mulf %26, %26 : vector<8x256xf32>
    %cst_18 = arith.constant dense<0.000000e+00> : vector<256xf32>
    %28 = vector.multi_reduction <add>, %27, %cst_18 [0] : vector<8x256xf32> to vector<256xf32>
    %29 = vector.shape_cast %28 : vector<256xf32> to vector<1x256xf32>
    %cst_19 = arith.constant 8.000000e+00 : f32
    %30 = vector.broadcast %cst_19 : f32 to vector<1x256xf32>
    %31 = arith.divf %29, %30 : vector<1x256xf32>
    %32 = vector.broadcast %24 : vector<1x256xf32> to vector<8x256xf32>
    %33 = arith.subf %13, %32 : vector<8x256xf32>
    %34 = arith.mulf %33, %33 : vector<8x256xf32>
    %cst_20 = arith.constant dense<0.000000e+00> : vector<256xf32>
    %35 = vector.multi_reduction <add>, %34, %cst_20 [0] : vector<8x256xf32> to vector<256xf32>
    %36 = vector.shape_cast %35 : vector<256xf32> to vector<1x256xf32>
    %cst_21 = arith.constant 8.000000e+00 : f32
    %37 = vector.broadcast %cst_21 : f32 to vector<1x256xf32>
    %38 = arith.divf %36, %37 : vector<1x256xf32>
    %39 = arith.addf %31, %38 : vector<1x256xf32>
    %cst_22 = arith.constant 5.000000e-01 : f32
    %40 = vector.broadcast %cst_22 : f32 to vector<1x256xf32>
    %41 = arith.mulf %40, %39 : vector<1x256xf32>
    %cst_23 = arith.constant 9.99999974E-6 : f32
    %42 = vector.broadcast %cst_23 : f32 to vector<1x256xf32>
    %43 = arith.addf %41, %42 : vector<1x256xf32>
    %44 = math.rsqrt %43 : vector<1x256xf32>
    %c0_24 = arith.constant 0 : index
    %c0_25 = arith.constant 0 : index
    %45 = vector.load %arg6[%c0_24, %c0_25] : memref<1x256xf32, #tpu.memory_space<vmem>>, vector<1x256xf32>
    %46 = arith.mulf %44, %45 : vector<1x256xf32>
    %c0_26 = arith.constant 0 : index
    %c0_27 = arith.constant 0 : index
    %47 = vector.load %arg7[%c0_26, %c0_27] : memref<1x256xf32, #tpu.memory_space<vmem>>, vector<1x256xf32>
    %48 = arith.mulf %24, %46 : vector<1x256xf32>
    %49 = arith.subf %47, %48 : vector<1x256xf32>
    %50 = vector.broadcast %46 : vector<1x256xf32> to vector<8x256xf32>
    %51 = arith.mulf %6, %50 : vector<8x256xf32>
    %52 = vector.broadcast %49 : vector<1x256xf32> to vector<8x256xf32>
    %53 = arith.addf %51, %52 : vector<8x256xf32>
    %54 = vector.broadcast %46 : vector<1x256xf32> to vector<8x256xf32>
    %55 = arith.mulf %13, %54 : vector<8x256xf32>
    %56 = vector.broadcast %49 : vector<1x256xf32> to vector<8x256xf32>
    %57 = arith.addf %55, %56 : vector<8x256xf32>
    %cst_28 = arith.constant 0.000000e+00 : f32
    %58 = vector.broadcast %cst_28 : f32 to vector<8x256xf32>
    %59 = arith.cmpf oge, %53, %58 : vector<8x256xf32>
    %cst_29 = arith.constant 0.00999999977 : f32
    %60 = vector.broadcast %cst_29 : f32 to vector<8x256xf32>
    %61 = arith.mulf %60, %53 : vector<8x256xf32>
    %62 = arith.select %59, %53, %61 : vector<8x256xi1>, vector<8x256xf32>
    %c0_30 = arith.constant 0 : index
    %c0_31 = arith.constant 0 : index
    %63 = vector.load %arg8[%c0_30, %c0_31] : memref<8x256xf32, #tpu.memory_space<vmem>>, vector<8x256xf32>
    tpu.vector_store %arg8[%c0_30, %c0_31], %62 {strides = array<i32>} : memref<8x256xf32, #tpu.memory_space<vmem>>, vector<8x256xf32>,
    %cst_32 = arith.constant 0.000000e+00 : f32
    %64 = vector.broadcast %cst_32 : f32 to vector<8x256xf32>
    %65 = arith.cmpf oge, %57, %64 : vector<8x256xf32>
    %cst_33 = arith.constant 0.00999999977 : f32
    %66 = vector.broadcast %cst_33 : f32 to vector<8x256xf32>
    %67 = arith.mulf %66, %57 : vector<8x256xf32>
    %68 = arith.select %65, %57, %67 : vector<8x256xi1>, vector<8x256xf32>
    %c0_34 = arith.constant 0 : index
    %c0_35 = arith.constant 0 : index
    %69 = vector.load %arg9[%c0_34, %c0_35] : memref<8x256xf32, #tpu.memory_space<vmem>>, vector<8x256xf32>
    tpu.vector_store %arg9[%c0_34, %c0_35], %68 {strides = array<i32>} : memref<8x256xf32, #tpu.memory_space<vmem>>, vector<8x256xf32>,
    return
  }
}

module attributes {stable_mosaic.version = 11 : i64} {
  func.func @_convt_bn_lrelu_kernel(%arg0: memref<16x256xf32, #tpu.memory_space<vmem>>, %arg1: memref<16x256xf32, #tpu.memory_space<vmem>>, %arg2: memref<256x128xf32, #tpu.memory_space<vmem>>, %arg3: memref<256x128xf32, #tpu.memory_space<vmem>>, %arg4: memref<256x128xf32, #tpu.memory_space<vmem>>, %arg5: memref<1x128xf32, #tpu.memory_space<vmem>>, %arg6: memref<1x128xf32, #tpu.memory_space<vmem>>, %arg7: memref<1x128xf32, #tpu.memory_space<vmem>>, %arg8: memref<16x128xf32, #tpu.memory_space<vmem>>, %arg9: memref<16x128xf32, #tpu.memory_space<vmem>>) attributes {dimension_semantics = [], scalar_prefetch = 0 : i64, scratch_operands = 0 : i64, tpu.core_type = #tpu.core_type<tc>} {
    %c0 = arith.constant 0 : index
    %c0_0 = arith.constant 0 : index
    %0 = vector.load %arg0[%c0, %c0_0] : memref<16x256xf32, #tpu.memory_space<vmem>>, vector<16x256xf32>
    %c0_1 = arith.constant 0 : index
    %c0_2 = arith.constant 0 : index
    %1 = vector.load %arg1[%c0_1, %c0_2] : memref<16x256xf32, #tpu.memory_space<vmem>>, vector<16x256xf32>
    %c0_3 = arith.constant 0 : index
    %c0_4 = arith.constant 0 : index
    %2 = vector.load %arg5[%c0_3, %c0_4] : memref<1x128xf32, #tpu.memory_space<vmem>>, vector<1x128xf32>
    %c0_5 = arith.constant 0 : index
    %c0_6 = arith.constant 0 : index
    %3 = vector.load %arg3[%c0_5, %c0_6] : memref<256x128xf32, #tpu.memory_space<vmem>>, vector<256x128xf32>
    %cst = arith.constant dense<0.000000e+00> : vector<16x128xf32>
    %4 = tpu.matmul %0, %3, %cst {dimension_numbers = #tpu.dot_dimension_numbers<[1], [0], [0], [1], [0, 0, 1, 1], [], []>} : vector<16x256xf32>, vector<256x128xf32>, vector<16x128xf32> -> vector<16x128xf32>
    %5 = vector.broadcast %2 : vector<1x128xf32> to vector<16x128xf32>
    %6 = arith.addf %4, %5 : vector<16x128xf32>
    %c0_7 = arith.constant 0 : index
    %c0_8 = arith.constant 0 : index
    %7 = vector.load %arg4[%c0_7, %c0_8] : memref<256x128xf32, #tpu.memory_space<vmem>>, vector<256x128xf32>
    %cst_9 = arith.constant dense<0.000000e+00> : vector<16x128xf32>
    %8 = tpu.matmul %0, %7, %cst_9 {dimension_numbers = #tpu.dot_dimension_numbers<[1], [0], [0], [1], [0, 0, 1, 1], [], []>} : vector<16x256xf32>, vector<256x128xf32>, vector<16x128xf32> -> vector<16x128xf32>
    %c0_10 = arith.constant 0 : index
    %c0_11 = arith.constant 0 : index
    %9 = vector.load %arg2[%c0_10, %c0_11] : memref<256x128xf32, #tpu.memory_space<vmem>>, vector<256x128xf32>
    %cst_12 = arith.constant dense<0.000000e+00> : vector<16x128xf32>
    %10 = tpu.matmul %1, %9, %cst_12 {dimension_numbers = #tpu.dot_dimension_numbers<[1], [0], [0], [1], [0, 0, 1, 1], [], []>} : vector<16x256xf32>, vector<256x128xf32>, vector<16x128xf32> -> vector<16x128xf32>
    %11 = arith.addf %8, %10 : vector<16x128xf32>
    %12 = vector.broadcast %2 : vector<1x128xf32> to vector<16x128xf32>
    %13 = arith.addf %11, %12 : vector<16x128xf32>
    %cst_13 = arith.constant dense<0.000000e+00> : vector<128xf32>
    %14 = vector.multi_reduction <add>, %6, %cst_13 [0] : vector<16x128xf32> to vector<128xf32>
    %15 = vector.shape_cast %14 : vector<128xf32> to vector<1x128xf32>
    %cst_14 = arith.constant 1.600000e+01 : f32
    %16 = vector.broadcast %cst_14 : f32 to vector<1x128xf32>
    %17 = arith.divf %15, %16 : vector<1x128xf32>
    %cst_15 = arith.constant dense<0.000000e+00> : vector<128xf32>
    %18 = vector.multi_reduction <add>, %13, %cst_15 [0] : vector<16x128xf32> to vector<128xf32>
    %19 = vector.shape_cast %18 : vector<128xf32> to vector<1x128xf32>
    %cst_16 = arith.constant 1.600000e+01 : f32
    %20 = vector.broadcast %cst_16 : f32 to vector<1x128xf32>
    %21 = arith.divf %19, %20 : vector<1x128xf32>
    %22 = arith.addf %17, %21 : vector<1x128xf32>
    %cst_17 = arith.constant 5.000000e-01 : f32
    %23 = vector.broadcast %cst_17 : f32 to vector<1x128xf32>
    %24 = arith.mulf %23, %22 : vector<1x128xf32>
    %25 = vector.broadcast %24 : vector<1x128xf32> to vector<16x128xf32>
    %26 = arith.subf %6, %25 : vector<16x128xf32>
    %27 = arith.mulf %26, %26 : vector<16x128xf32>
    %cst_18 = arith.constant dense<0.000000e+00> : vector<128xf32>
    %28 = vector.multi_reduction <add>, %27, %cst_18 [0] : vector<16x128xf32> to vector<128xf32>
    %29 = vector.shape_cast %28 : vector<128xf32> to vector<1x128xf32>
    %cst_19 = arith.constant 1.600000e+01 : f32
    %30 = vector.broadcast %cst_19 : f32 to vector<1x128xf32>
    %31 = arith.divf %29, %30 : vector<1x128xf32>
    %32 = vector.broadcast %24 : vector<1x128xf32> to vector<16x128xf32>
    %33 = arith.subf %13, %32 : vector<16x128xf32>
    %34 = arith.mulf %33, %33 : vector<16x128xf32>
    %cst_20 = arith.constant dense<0.000000e+00> : vector<128xf32>
    %35 = vector.multi_reduction <add>, %34, %cst_20 [0] : vector<16x128xf32> to vector<128xf32>
    %36 = vector.shape_cast %35 : vector<128xf32> to vector<1x128xf32>
    %cst_21 = arith.constant 1.600000e+01 : f32
    %37 = vector.broadcast %cst_21 : f32 to vector<1x128xf32>
    %38 = arith.divf %36, %37 : vector<1x128xf32>
    %39 = arith.addf %31, %38 : vector<1x128xf32>
    %cst_22 = arith.constant 5.000000e-01 : f32
    %40 = vector.broadcast %cst_22 : f32 to vector<1x128xf32>
    %41 = arith.mulf %40, %39 : vector<1x128xf32>
    %cst_23 = arith.constant 9.99999974E-6 : f32
    %42 = vector.broadcast %cst_23 : f32 to vector<1x128xf32>
    %43 = arith.addf %41, %42 : vector<1x128xf32>
    %44 = math.rsqrt %43 : vector<1x128xf32>
    %c0_24 = arith.constant 0 : index
    %c0_25 = arith.constant 0 : index
    %45 = vector.load %arg6[%c0_24, %c0_25] : memref<1x128xf32, #tpu.memory_space<vmem>>, vector<1x128xf32>
    %46 = arith.mulf %44, %45 : vector<1x128xf32>
    %c0_26 = arith.constant 0 : index
    %c0_27 = arith.constant 0 : index
    %47 = vector.load %arg7[%c0_26, %c0_27] : memref<1x128xf32, #tpu.memory_space<vmem>>, vector<1x128xf32>
    %48 = arith.mulf %24, %46 : vector<1x128xf32>
    %49 = arith.subf %47, %48 : vector<1x128xf32>
    %50 = vector.broadcast %46 : vector<1x128xf32> to vector<16x128xf32>
    %51 = arith.mulf %6, %50 : vector<16x128xf32>
    %52 = vector.broadcast %49 : vector<1x128xf32> to vector<16x128xf32>
    %53 = arith.addf %51, %52 : vector<16x128xf32>
    %54 = vector.broadcast %46 : vector<1x128xf32> to vector<16x128xf32>
    %55 = arith.mulf %13, %54 : vector<16x128xf32>
    %56 = vector.broadcast %49 : vector<1x128xf32> to vector<16x128xf32>
    %57 = arith.addf %55, %56 : vector<16x128xf32>
    %cst_28 = arith.constant 0.000000e+00 : f32
    %58 = vector.broadcast %cst_28 : f32 to vector<16x128xf32>
    %59 = arith.cmpf oge, %53, %58 : vector<16x128xf32>
    %cst_29 = arith.constant 0.00999999977 : f32
    %60 = vector.broadcast %cst_29 : f32 to vector<16x128xf32>
    %61 = arith.mulf %60, %53 : vector<16x128xf32>
    %62 = arith.select %59, %53, %61 : vector<16x128xi1>, vector<16x128xf32>
    %c0_30 = arith.constant 0 : index
    %c0_31 = arith.constant 0 : index
    %63 = vector.load %arg8[%c0_30, %c0_31] : memref<16x128xf32, #tpu.memory_space<vmem>>, vector<16x128xf32>
    tpu.vector_store %arg8[%c0_30, %c0_31], %62 {strides = array<i32>} : memref<16x128xf32, #tpu.memory_space<vmem>>, vector<16x128xf32>,
    %cst_32 = arith.constant 0.000000e+00 : f32
    %64 = vector.broadcast %cst_32 : f32 to vector<16x128xf32>
    %65 = arith.cmpf oge, %57, %64 : vector<16x128xf32>
    %cst_33 = arith.constant 0.00999999977 : f32
    %66 = vector.broadcast %cst_33 : f32 to vector<16x128xf32>
    %67 = arith.mulf %66, %57 : vector<16x128xf32>
    %68 = arith.select %65, %57, %67 : vector<16x128xi1>, vector<16x128xf32>
    %c0_34 = arith.constant 0 : index
    %c0_35 = arith.constant 0 : index
    %69 = vector.load %arg9[%c0_34, %c0_35] : memref<16x128xf32, #tpu.memory_space<vmem>>, vector<16x128xf32>
    tpu.vector_store %arg9[%c0_34, %c0_35], %68 {strides = array<i32>} : memref<16x128xf32, #tpu.memory_space<vmem>>, vector<16x128xf32>,
    return
  }
}

module attributes {stable_mosaic.version = 11 : i64} {
  func.func @_convt_bn_lrelu_kernel(%arg0: memref<32x128xf32, #tpu.memory_space<vmem>>, %arg1: memref<32x128xf32, #tpu.memory_space<vmem>>, %arg2: memref<128x64xf32, #tpu.memory_space<vmem>>, %arg3: memref<128x64xf32, #tpu.memory_space<vmem>>, %arg4: memref<128x64xf32, #tpu.memory_space<vmem>>, %arg5: memref<1x64xf32, #tpu.memory_space<vmem>>, %arg6: memref<1x64xf32, #tpu.memory_space<vmem>>, %arg7: memref<1x64xf32, #tpu.memory_space<vmem>>, %arg8: memref<32x64xf32, #tpu.memory_space<vmem>>, %arg9: memref<32x64xf32, #tpu.memory_space<vmem>>) attributes {dimension_semantics = [], scalar_prefetch = 0 : i64, scratch_operands = 0 : i64, tpu.core_type = #tpu.core_type<tc>} {
    %c0 = arith.constant 0 : index
    %c0_0 = arith.constant 0 : index
    %0 = vector.load %arg0[%c0, %c0_0] : memref<32x128xf32, #tpu.memory_space<vmem>>, vector<32x128xf32>
    %c0_1 = arith.constant 0 : index
    %c0_2 = arith.constant 0 : index
    %1 = vector.load %arg1[%c0_1, %c0_2] : memref<32x128xf32, #tpu.memory_space<vmem>>, vector<32x128xf32>
    %c0_3 = arith.constant 0 : index
    %c0_4 = arith.constant 0 : index
    %2 = vector.load %arg5[%c0_3, %c0_4] : memref<1x64xf32, #tpu.memory_space<vmem>>, vector<1x64xf32>
    %c0_5 = arith.constant 0 : index
    %c0_6 = arith.constant 0 : index
    %3 = vector.load %arg3[%c0_5, %c0_6] : memref<128x64xf32, #tpu.memory_space<vmem>>, vector<128x64xf32>
    %cst = arith.constant dense<0.000000e+00> : vector<32x64xf32>
    %4 = tpu.matmul %0, %3, %cst {dimension_numbers = #tpu.dot_dimension_numbers<[1], [0], [0], [1], [0, 0, 1, 1], [], []>} : vector<32x128xf32>, vector<128x64xf32>, vector<32x64xf32> -> vector<32x64xf32>
    %5 = vector.broadcast %2 : vector<1x64xf32> to vector<32x64xf32>
    %6 = arith.addf %4, %5 : vector<32x64xf32>
    %c0_7 = arith.constant 0 : index
    %c0_8 = arith.constant 0 : index
    %7 = vector.load %arg4[%c0_7, %c0_8] : memref<128x64xf32, #tpu.memory_space<vmem>>, vector<128x64xf32>
    %cst_9 = arith.constant dense<0.000000e+00> : vector<32x64xf32>
    %8 = tpu.matmul %0, %7, %cst_9 {dimension_numbers = #tpu.dot_dimension_numbers<[1], [0], [0], [1], [0, 0, 1, 1], [], []>} : vector<32x128xf32>, vector<128x64xf32>, vector<32x64xf32> -> vector<32x64xf32>
    %c0_10 = arith.constant 0 : index
    %c0_11 = arith.constant 0 : index
    %9 = vector.load %arg2[%c0_10, %c0_11] : memref<128x64xf32, #tpu.memory_space<vmem>>, vector<128x64xf32>
    %cst_12 = arith.constant dense<0.000000e+00> : vector<32x64xf32>
    %10 = tpu.matmul %1, %9, %cst_12 {dimension_numbers = #tpu.dot_dimension_numbers<[1], [0], [0], [1], [0, 0, 1, 1], [], []>} : vector<32x128xf32>, vector<128x64xf32>, vector<32x64xf32> -> vector<32x64xf32>
    %11 = arith.addf %8, %10 : vector<32x64xf32>
    %12 = vector.broadcast %2 : vector<1x64xf32> to vector<32x64xf32>
    %13 = arith.addf %11, %12 : vector<32x64xf32>
    %cst_13 = arith.constant dense<0.000000e+00> : vector<64xf32>
    %14 = vector.multi_reduction <add>, %6, %cst_13 [0] : vector<32x64xf32> to vector<64xf32>
    %15 = vector.shape_cast %14 : vector<64xf32> to vector<1x64xf32>
    %cst_14 = arith.constant 3.200000e+01 : f32
    %16 = vector.broadcast %cst_14 : f32 to vector<1x64xf32>
    %17 = arith.divf %15, %16 : vector<1x64xf32>
    %cst_15 = arith.constant dense<0.000000e+00> : vector<64xf32>
    %18 = vector.multi_reduction <add>, %13, %cst_15 [0] : vector<32x64xf32> to vector<64xf32>
    %19 = vector.shape_cast %18 : vector<64xf32> to vector<1x64xf32>
    %cst_16 = arith.constant 3.200000e+01 : f32
    %20 = vector.broadcast %cst_16 : f32 to vector<1x64xf32>
    %21 = arith.divf %19, %20 : vector<1x64xf32>
    %22 = arith.addf %17, %21 : vector<1x64xf32>
    %cst_17 = arith.constant 5.000000e-01 : f32
    %23 = vector.broadcast %cst_17 : f32 to vector<1x64xf32>
    %24 = arith.mulf %23, %22 : vector<1x64xf32>
    %25 = vector.broadcast %24 : vector<1x64xf32> to vector<32x64xf32>
    %26 = arith.subf %6, %25 : vector<32x64xf32>
    %27 = arith.mulf %26, %26 : vector<32x64xf32>
    %cst_18 = arith.constant dense<0.000000e+00> : vector<64xf32>
    %28 = vector.multi_reduction <add>, %27, %cst_18 [0] : vector<32x64xf32> to vector<64xf32>
    %29 = vector.shape_cast %28 : vector<64xf32> to vector<1x64xf32>
    %cst_19 = arith.constant 3.200000e+01 : f32
    %30 = vector.broadcast %cst_19 : f32 to vector<1x64xf32>
    %31 = arith.divf %29, %30 : vector<1x64xf32>
    %32 = vector.broadcast %24 : vector<1x64xf32> to vector<32x64xf32>
    %33 = arith.subf %13, %32 : vector<32x64xf32>
    %34 = arith.mulf %33, %33 : vector<32x64xf32>
    %cst_20 = arith.constant dense<0.000000e+00> : vector<64xf32>
    %35 = vector.multi_reduction <add>, %34, %cst_20 [0] : vector<32x64xf32> to vector<64xf32>
    %36 = vector.shape_cast %35 : vector<64xf32> to vector<1x64xf32>
    %cst_21 = arith.constant 3.200000e+01 : f32
    %37 = vector.broadcast %cst_21 : f32 to vector<1x64xf32>
    %38 = arith.divf %36, %37 : vector<1x64xf32>
    %39 = arith.addf %31, %38 : vector<1x64xf32>
    %cst_22 = arith.constant 5.000000e-01 : f32
    %40 = vector.broadcast %cst_22 : f32 to vector<1x64xf32>
    %41 = arith.mulf %40, %39 : vector<1x64xf32>
    %cst_23 = arith.constant 9.99999974E-6 : f32
    %42 = vector.broadcast %cst_23 : f32 to vector<1x64xf32>
    %43 = arith.addf %41, %42 : vector<1x64xf32>
    %44 = math.rsqrt %43 : vector<1x64xf32>
    %c0_24 = arith.constant 0 : index
    %c0_25 = arith.constant 0 : index
    %45 = vector.load %arg6[%c0_24, %c0_25] : memref<1x64xf32, #tpu.memory_space<vmem>>, vector<1x64xf32>
    %46 = arith.mulf %44, %45 : vector<1x64xf32>
    %c0_26 = arith.constant 0 : index
    %c0_27 = arith.constant 0 : index
    %47 = vector.load %arg7[%c0_26, %c0_27] : memref<1x64xf32, #tpu.memory_space<vmem>>, vector<1x64xf32>
    %48 = arith.mulf %24, %46 : vector<1x64xf32>
    %49 = arith.subf %47, %48 : vector<1x64xf32>
    %50 = vector.broadcast %46 : vector<1x64xf32> to vector<32x64xf32>
    %51 = arith.mulf %6, %50 : vector<32x64xf32>
    %52 = vector.broadcast %49 : vector<1x64xf32> to vector<32x64xf32>
    %53 = arith.addf %51, %52 : vector<32x64xf32>
    %54 = vector.broadcast %46 : vector<1x64xf32> to vector<32x64xf32>
    %55 = arith.mulf %13, %54 : vector<32x64xf32>
    %56 = vector.broadcast %49 : vector<1x64xf32> to vector<32x64xf32>
    %57 = arith.addf %55, %56 : vector<32x64xf32>
    %cst_28 = arith.constant 0.000000e+00 : f32
    %58 = vector.broadcast %cst_28 : f32 to vector<32x64xf32>
    %59 = arith.cmpf oge, %53, %58 : vector<32x64xf32>
    %cst_29 = arith.constant 0.00999999977 : f32
    %60 = vector.broadcast %cst_29 : f32 to vector<32x64xf32>
    %61 = arith.mulf %60, %53 : vector<32x64xf32>
    %62 = arith.select %59, %53, %61 : vector<32x64xi1>, vector<32x64xf32>
    %c0_30 = arith.constant 0 : index
    %c0_31 = arith.constant 0 : index
    %63 = vector.load %arg8[%c0_30, %c0_31] : memref<32x64xf32, #tpu.memory_space<vmem>>, vector<32x64xf32>
    tpu.vector_store %arg8[%c0_30, %c0_31], %62 {strides = array<i32>} : memref<32x64xf32, #tpu.memory_space<vmem>>, vector<32x64xf32>,
    %cst_32 = arith.constant 0.000000e+00 : f32
    %64 = vector.broadcast %cst_32 : f32 to vector<32x64xf32>
    %65 = arith.cmpf oge, %57, %64 : vector<32x64xf32>
    %cst_33 = arith.constant 0.00999999977 : f32
    %66 = vector.broadcast %cst_33 : f32 to vector<32x64xf32>
    %67 = arith.mulf %66, %57 : vector<32x64xf32>
    %68 = arith.select %65, %57, %67 : vector<32x64xi1>, vector<32x64xf32>
    %c0_34 = arith.constant 0 : index
    %c0_35 = arith.constant 0 : index
    %69 = vector.load %arg9[%c0_34, %c0_35] : memref<32x64xf32, #tpu.memory_space<vmem>>, vector<32x64xf32>
    tpu.vector_store %arg9[%c0_34, %c0_35], %68 {strides = array<i32>} : memref<32x64xf32, #tpu.memory_space<vmem>>, vector<32x64xf32>,
    return
  }
}

module attributes {stable_mosaic.version = 11 : i64} {
  func.func @_convt_bn_lrelu_kernel(%arg0: memref<64x64xf32, #tpu.memory_space<vmem>>, %arg1: memref<64x64xf32, #tpu.memory_space<vmem>>, %arg2: memref<64x32xf32, #tpu.memory_space<vmem>>, %arg3: memref<64x32xf32, #tpu.memory_space<vmem>>, %arg4: memref<64x32xf32, #tpu.memory_space<vmem>>, %arg5: memref<1x32xf32, #tpu.memory_space<vmem>>, %arg6: memref<1x32xf32, #tpu.memory_space<vmem>>, %arg7: memref<1x32xf32, #tpu.memory_space<vmem>>, %arg8: memref<64x32xf32, #tpu.memory_space<vmem>>, %arg9: memref<64x32xf32, #tpu.memory_space<vmem>>) attributes {dimension_semantics = [], scalar_prefetch = 0 : i64, scratch_operands = 0 : i64, tpu.core_type = #tpu.core_type<tc>} {
    %c0 = arith.constant 0 : index
    %c0_0 = arith.constant 0 : index
    %0 = vector.load %arg0[%c0, %c0_0] : memref<64x64xf32, #tpu.memory_space<vmem>>, vector<64x64xf32>
    %c0_1 = arith.constant 0 : index
    %c0_2 = arith.constant 0 : index
    %1 = vector.load %arg1[%c0_1, %c0_2] : memref<64x64xf32, #tpu.memory_space<vmem>>, vector<64x64xf32>
    %c0_3 = arith.constant 0 : index
    %c0_4 = arith.constant 0 : index
    %2 = vector.load %arg5[%c0_3, %c0_4] : memref<1x32xf32, #tpu.memory_space<vmem>>, vector<1x32xf32>
    %c0_5 = arith.constant 0 : index
    %c0_6 = arith.constant 0 : index
    %3 = vector.load %arg3[%c0_5, %c0_6] : memref<64x32xf32, #tpu.memory_space<vmem>>, vector<64x32xf32>
    %cst = arith.constant dense<0.000000e+00> : vector<64x32xf32>
    %4 = tpu.matmul %0, %3, %cst {dimension_numbers = #tpu.dot_dimension_numbers<[1], [0], [0], [1], [0, 0, 1, 1], [], []>} : vector<64x64xf32>, vector<64x32xf32>, vector<64x32xf32> -> vector<64x32xf32>
    %5 = vector.broadcast %2 : vector<1x32xf32> to vector<64x32xf32>
    %6 = arith.addf %4, %5 : vector<64x32xf32>
    %c0_7 = arith.constant 0 : index
    %c0_8 = arith.constant 0 : index
    %7 = vector.load %arg4[%c0_7, %c0_8] : memref<64x32xf32, #tpu.memory_space<vmem>>, vector<64x32xf32>
    %cst_9 = arith.constant dense<0.000000e+00> : vector<64x32xf32>
    %8 = tpu.matmul %0, %7, %cst_9 {dimension_numbers = #tpu.dot_dimension_numbers<[1], [0], [0], [1], [0, 0, 1, 1], [], []>} : vector<64x64xf32>, vector<64x32xf32>, vector<64x32xf32> -> vector<64x32xf32>
    %c0_10 = arith.constant 0 : index
    %c0_11 = arith.constant 0 : index
    %9 = vector.load %arg2[%c0_10, %c0_11] : memref<64x32xf32, #tpu.memory_space<vmem>>, vector<64x32xf32>
    %cst_12 = arith.constant dense<0.000000e+00> : vector<64x32xf32>
    %10 = tpu.matmul %1, %9, %cst_12 {dimension_numbers = #tpu.dot_dimension_numbers<[1], [0], [0], [1], [0, 0, 1, 1], [], []>} : vector<64x64xf32>, vector<64x32xf32>, vector<64x32xf32> -> vector<64x32xf32>
    %11 = arith.addf %8, %10 : vector<64x32xf32>
    %12 = vector.broadcast %2 : vector<1x32xf32> to vector<64x32xf32>
    %13 = arith.addf %11, %12 : vector<64x32xf32>
    %cst_13 = arith.constant dense<0.000000e+00> : vector<32xf32>
    %14 = vector.multi_reduction <add>, %6, %cst_13 [0] : vector<64x32xf32> to vector<32xf32>
    %15 = vector.shape_cast %14 : vector<32xf32> to vector<1x32xf32>
    %cst_14 = arith.constant 6.400000e+01 : f32
    %16 = vector.broadcast %cst_14 : f32 to vector<1x32xf32>
    %17 = arith.divf %15, %16 : vector<1x32xf32>
    %cst_15 = arith.constant dense<0.000000e+00> : vector<32xf32>
    %18 = vector.multi_reduction <add>, %13, %cst_15 [0] : vector<64x32xf32> to vector<32xf32>
    %19 = vector.shape_cast %18 : vector<32xf32> to vector<1x32xf32>
    %cst_16 = arith.constant 6.400000e+01 : f32
    %20 = vector.broadcast %cst_16 : f32 to vector<1x32xf32>
    %21 = arith.divf %19, %20 : vector<1x32xf32>
    %22 = arith.addf %17, %21 : vector<1x32xf32>
    %cst_17 = arith.constant 5.000000e-01 : f32
    %23 = vector.broadcast %cst_17 : f32 to vector<1x32xf32>
    %24 = arith.mulf %23, %22 : vector<1x32xf32>
    %25 = vector.broadcast %24 : vector<1x32xf32> to vector<64x32xf32>
    %26 = arith.subf %6, %25 : vector<64x32xf32>
    %27 = arith.mulf %26, %26 : vector<64x32xf32>
    %cst_18 = arith.constant dense<0.000000e+00> : vector<32xf32>
    %28 = vector.multi_reduction <add>, %27, %cst_18 [0] : vector<64x32xf32> to vector<32xf32>
    %29 = vector.shape_cast %28 : vector<32xf32> to vector<1x32xf32>
    %cst_19 = arith.constant 6.400000e+01 : f32
    %30 = vector.broadcast %cst_19 : f32 to vector<1x32xf32>
    %31 = arith.divf %29, %30 : vector<1x32xf32>
    %32 = vector.broadcast %24 : vector<1x32xf32> to vector<64x32xf32>
    %33 = arith.subf %13, %32 : vector<64x32xf32>
    %34 = arith.mulf %33, %33 : vector<64x32xf32>
    %cst_20 = arith.constant dense<0.000000e+00> : vector<32xf32>
    %35 = vector.multi_reduction <add>, %34, %cst_20 [0] : vector<64x32xf32> to vector<32xf32>
    %36 = vector.shape_cast %35 : vector<32xf32> to vector<1x32xf32>
    %cst_21 = arith.constant 6.400000e+01 : f32
    %37 = vector.broadcast %cst_21 : f32 to vector<1x32xf32>
    %38 = arith.divf %36, %37 : vector<1x32xf32>
    %39 = arith.addf %31, %38 : vector<1x32xf32>
    %cst_22 = arith.constant 5.000000e-01 : f32
    %40 = vector.broadcast %cst_22 : f32 to vector<1x32xf32>
    %41 = arith.mulf %40, %39 : vector<1x32xf32>
    %cst_23 = arith.constant 9.99999974E-6 : f32
    %42 = vector.broadcast %cst_23 : f32 to vector<1x32xf32>
    %43 = arith.addf %41, %42 : vector<1x32xf32>
    %44 = math.rsqrt %43 : vector<1x32xf32>
    %c0_24 = arith.constant 0 : index
    %c0_25 = arith.constant 0 : index
    %45 = vector.load %arg6[%c0_24, %c0_25] : memref<1x32xf32, #tpu.memory_space<vmem>>, vector<1x32xf32>
    %46 = arith.mulf %44, %45 : vector<1x32xf32>
    %c0_26 = arith.constant 0 : index
    %c0_27 = arith.constant 0 : index
    %47 = vector.load %arg7[%c0_26, %c0_27] : memref<1x32xf32, #tpu.memory_space<vmem>>, vector<1x32xf32>
    %48 = arith.mulf %24, %46 : vector<1x32xf32>
    %49 = arith.subf %47, %48 : vector<1x32xf32>
    %50 = vector.broadcast %46 : vector<1x32xf32> to vector<64x32xf32>
    %51 = arith.mulf %6, %50 : vector<64x32xf32>
    %52 = vector.broadcast %49 : vector<1x32xf32> to vector<64x32xf32>
    %53 = arith.addf %51, %52 : vector<64x32xf32>
    %54 = vector.broadcast %46 : vector<1x32xf32> to vector<64x32xf32>
    %55 = arith.mulf %13, %54 : vector<64x32xf32>
    %56 = vector.broadcast %49 : vector<1x32xf32> to vector<64x32xf32>
    %57 = arith.addf %55, %56 : vector<64x32xf32>
    %cst_28 = arith.constant 0.000000e+00 : f32
    %58 = vector.broadcast %cst_28 : f32 to vector<64x32xf32>
    %59 = arith.cmpf oge, %53, %58 : vector<64x32xf32>
    %cst_29 = arith.constant 0.00999999977 : f32
    %60 = vector.broadcast %cst_29 : f32 to vector<64x32xf32>
    %61 = arith.mulf %60, %53 : vector<64x32xf32>
    %62 = arith.select %59, %53, %61 : vector<64x32xi1>, vector<64x32xf32>
    %c0_30 = arith.constant 0 : index
    %c0_31 = arith.constant 0 : index
    %63 = vector.load %arg8[%c0_30, %c0_31] : memref<64x32xf32, #tpu.memory_space<vmem>>, vector<64x32xf32>
    tpu.vector_store %arg8[%c0_30, %c0_31], %62 {strides = array<i32>} : memref<64x32xf32, #tpu.memory_space<vmem>>, vector<64x32xf32>,
    %cst_32 = arith.constant 0.000000e+00 : f32
    %64 = vector.broadcast %cst_32 : f32 to vector<64x32xf32>
    %65 = arith.cmpf oge, %57, %64 : vector<64x32xf32>
    %cst_33 = arith.constant 0.00999999977 : f32
    %66 = vector.broadcast %cst_33 : f32 to vector<64x32xf32>
    %67 = arith.mulf %66, %57 : vector<64x32xf32>
    %68 = arith.select %65, %57, %67 : vector<64x32xi1>, vector<64x32xf32>
    %c0_34 = arith.constant 0 : index
    %c0_35 = arith.constant 0 : index
    %69 = vector.load %arg9[%c0_34, %c0_35] : memref<64x32xf32, #tpu.memory_space<vmem>>, vector<64x32xf32>
    tpu.vector_store %arg9[%c0_34, %c0_35], %68 {strides = array<i32>} : memref<64x32xf32, #tpu.memory_space<vmem>>, vector<64x32xf32>,
    return
  }
}

module attributes {stable_mosaic.version = 11 : i64} {
  func.func @_convt_bn_lrelu_kernel(%arg0: memref<128x32xf32, #tpu.memory_space<vmem>>, %arg1: memref<128x32xf32, #tpu.memory_space<vmem>>, %arg2: memref<32x32xf32, #tpu.memory_space<vmem>>, %arg3: memref<32x32xf32, #tpu.memory_space<vmem>>, %arg4: memref<32x32xf32, #tpu.memory_space<vmem>>, %arg5: memref<1x32xf32, #tpu.memory_space<vmem>>, %arg6: memref<1x32xf32, #tpu.memory_space<vmem>>, %arg7: memref<1x32xf32, #tpu.memory_space<vmem>>, %arg8: memref<128x32xf32, #tpu.memory_space<vmem>>, %arg9: memref<128x32xf32, #tpu.memory_space<vmem>>) attributes {dimension_semantics = [], scalar_prefetch = 0 : i64, scratch_operands = 0 : i64, tpu.core_type = #tpu.core_type<tc>} {
    %c0 = arith.constant 0 : index
    %c0_0 = arith.constant 0 : index
    %0 = vector.load %arg0[%c0, %c0_0] : memref<128x32xf32, #tpu.memory_space<vmem>>, vector<128x32xf32>
    %c0_1 = arith.constant 0 : index
    %c0_2 = arith.constant 0 : index
    %1 = vector.load %arg1[%c0_1, %c0_2] : memref<128x32xf32, #tpu.memory_space<vmem>>, vector<128x32xf32>
    %c0_3 = arith.constant 0 : index
    %c0_4 = arith.constant 0 : index
    %2 = vector.load %arg5[%c0_3, %c0_4] : memref<1x32xf32, #tpu.memory_space<vmem>>, vector<1x32xf32>
    %c0_5 = arith.constant 0 : index
    %c0_6 = arith.constant 0 : index
    %3 = vector.load %arg3[%c0_5, %c0_6] : memref<32x32xf32, #tpu.memory_space<vmem>>, vector<32x32xf32>
    %cst = arith.constant dense<0.000000e+00> : vector<128x32xf32>
    %4 = tpu.matmul %0, %3, %cst {dimension_numbers = #tpu.dot_dimension_numbers<[1], [0], [0], [1], [0, 0, 1, 1], [], []>} : vector<128x32xf32>, vector<32x32xf32>, vector<128x32xf32> -> vector<128x32xf32>
    %5 = vector.broadcast %2 : vector<1x32xf32> to vector<128x32xf32>
    %6 = arith.addf %4, %5 : vector<128x32xf32>
    %c0_7 = arith.constant 0 : index
    %c0_8 = arith.constant 0 : index
    %7 = vector.load %arg4[%c0_7, %c0_8] : memref<32x32xf32, #tpu.memory_space<vmem>>, vector<32x32xf32>
    %cst_9 = arith.constant dense<0.000000e+00> : vector<128x32xf32>
    %8 = tpu.matmul %0, %7, %cst_9 {dimension_numbers = #tpu.dot_dimension_numbers<[1], [0], [0], [1], [0, 0, 1, 1], [], []>} : vector<128x32xf32>, vector<32x32xf32>, vector<128x32xf32> -> vector<128x32xf32>
    %c0_10 = arith.constant 0 : index
    %c0_11 = arith.constant 0 : index
    %9 = vector.load %arg2[%c0_10, %c0_11] : memref<32x32xf32, #tpu.memory_space<vmem>>, vector<32x32xf32>
    %cst_12 = arith.constant dense<0.000000e+00> : vector<128x32xf32>
    %10 = tpu.matmul %1, %9, %cst_12 {dimension_numbers = #tpu.dot_dimension_numbers<[1], [0], [0], [1], [0, 0, 1, 1], [], []>} : vector<128x32xf32>, vector<32x32xf32>, vector<128x32xf32> -> vector<128x32xf32>
    %11 = arith.addf %8, %10 : vector<128x32xf32>
    %12 = vector.broadcast %2 : vector<1x32xf32> to vector<128x32xf32>
    %13 = arith.addf %11, %12 : vector<128x32xf32>
    %cst_13 = arith.constant dense<0.000000e+00> : vector<32xf32>
    %14 = vector.multi_reduction <add>, %6, %cst_13 [0] : vector<128x32xf32> to vector<32xf32>
    %15 = vector.shape_cast %14 : vector<32xf32> to vector<1x32xf32>
    %cst_14 = arith.constant 1.280000e+02 : f32
    %16 = vector.broadcast %cst_14 : f32 to vector<1x32xf32>
    %17 = arith.divf %15, %16 : vector<1x32xf32>
    %cst_15 = arith.constant dense<0.000000e+00> : vector<32xf32>
    %18 = vector.multi_reduction <add>, %13, %cst_15 [0] : vector<128x32xf32> to vector<32xf32>
    %19 = vector.shape_cast %18 : vector<32xf32> to vector<1x32xf32>
    %cst_16 = arith.constant 1.280000e+02 : f32
    %20 = vector.broadcast %cst_16 : f32 to vector<1x32xf32>
    %21 = arith.divf %19, %20 : vector<1x32xf32>
    %22 = arith.addf %17, %21 : vector<1x32xf32>
    %cst_17 = arith.constant 5.000000e-01 : f32
    %23 = vector.broadcast %cst_17 : f32 to vector<1x32xf32>
    %24 = arith.mulf %23, %22 : vector<1x32xf32>
    %25 = vector.broadcast %24 : vector<1x32xf32> to vector<128x32xf32>
    %26 = arith.subf %6, %25 : vector<128x32xf32>
    %27 = arith.mulf %26, %26 : vector<128x32xf32>
    %cst_18 = arith.constant dense<0.000000e+00> : vector<32xf32>
    %28 = vector.multi_reduction <add>, %27, %cst_18 [0] : vector<128x32xf32> to vector<32xf32>
    %29 = vector.shape_cast %28 : vector<32xf32> to vector<1x32xf32>
    %cst_19 = arith.constant 1.280000e+02 : f32
    %30 = vector.broadcast %cst_19 : f32 to vector<1x32xf32>
    %31 = arith.divf %29, %30 : vector<1x32xf32>
    %32 = vector.broadcast %24 : vector<1x32xf32> to vector<128x32xf32>
    %33 = arith.subf %13, %32 : vector<128x32xf32>
    %34 = arith.mulf %33, %33 : vector<128x32xf32>
    %cst_20 = arith.constant dense<0.000000e+00> : vector<32xf32>
    %35 = vector.multi_reduction <add>, %34, %cst_20 [0] : vector<128x32xf32> to vector<32xf32>
    %36 = vector.shape_cast %35 : vector<32xf32> to vector<1x32xf32>
    %cst_21 = arith.constant 1.280000e+02 : f32
    %37 = vector.broadcast %cst_21 : f32 to vector<1x32xf32>
    %38 = arith.divf %36, %37 : vector<1x32xf32>
    %39 = arith.addf %31, %38 : vector<1x32xf32>
    %cst_22 = arith.constant 5.000000e-01 : f32
    %40 = vector.broadcast %cst_22 : f32 to vector<1x32xf32>
    %41 = arith.mulf %40, %39 : vector<1x32xf32>
    %cst_23 = arith.constant 9.99999974E-6 : f32
    %42 = vector.broadcast %cst_23 : f32 to vector<1x32xf32>
    %43 = arith.addf %41, %42 : vector<1x32xf32>
    %44 = math.rsqrt %43 : vector<1x32xf32>
    %c0_24 = arith.constant 0 : index
    %c0_25 = arith.constant 0 : index
    %45 = vector.load %arg6[%c0_24, %c0_25] : memref<1x32xf32, #tpu.memory_space<vmem>>, vector<1x32xf32>
    %46 = arith.mulf %44, %45 : vector<1x32xf32>
    %c0_26 = arith.constant 0 : index
    %c0_27 = arith.constant 0 : index
    %47 = vector.load %arg7[%c0_26, %c0_27] : memref<1x32xf32, #tpu.memory_space<vmem>>, vector<1x32xf32>
    %48 = arith.mulf %24, %46 : vector<1x32xf32>
    %49 = arith.subf %47, %48 : vector<1x32xf32>
    %50 = vector.broadcast %46 : vector<1x32xf32> to vector<128x32xf32>
    %51 = arith.mulf %6, %50 : vector<128x32xf32>
    %52 = vector.broadcast %49 : vector<1x32xf32> to vector<128x32xf32>
    %53 = arith.addf %51, %52 : vector<128x32xf32>
    %54 = vector.broadcast %46 : vector<1x32xf32> to vector<128x32xf32>
    %55 = arith.mulf %13, %54 : vector<128x32xf32>
    %56 = vector.broadcast %49 : vector<1x32xf32> to vector<128x32xf32>
    %57 = arith.addf %55, %56 : vector<128x32xf32>
    %cst_28 = arith.constant 0.000000e+00 : f32
    %58 = vector.broadcast %cst_28 : f32 to vector<128x32xf32>
    %59 = arith.cmpf oge, %53, %58 : vector<128x32xf32>
    %cst_29 = arith.constant 0.00999999977 : f32
    %60 = vector.broadcast %cst_29 : f32 to vector<128x32xf32>
    %61 = arith.mulf %60, %53 : vector<128x32xf32>
    %62 = arith.select %59, %53, %61 : vector<128x32xi1>, vector<128x32xf32>
    %c0_30 = arith.constant 0 : index
    %c0_31 = arith.constant 0 : index
    %63 = vector.load %arg8[%c0_30, %c0_31] : memref<128x32xf32, #tpu.memory_space<vmem>>, vector<128x32xf32>
    tpu.vector_store %arg8[%c0_30, %c0_31], %62 {strides = array<i32>} : memref<128x32xf32, #tpu.memory_space<vmem>>, vector<128x32xf32>,
    %cst_32 = arith.constant 0.000000e+00 : f32
    %64 = vector.broadcast %cst_32 : f32 to vector<128x32xf32>
    %65 = arith.cmpf oge, %57, %64 : vector<128x32xf32>
    %cst_33 = arith.constant 0.00999999977 : f32
    %66 = vector.broadcast %cst_33 : f32 to vector<128x32xf32>
    %67 = arith.mulf %66, %57 : vector<128x32xf32>
    %68 = arith.select %65, %57, %67 : vector<128x32xi1>, vector<128x32xf32>
    %c0_34 = arith.constant 0 : index
    %c0_35 = arith.constant 0 : index
    %69 = vector.load %arg9[%c0_34, %c0_35] : memref<128x32xf32, #tpu.memory_space<vmem>>, vector<128x32xf32>
    tpu.vector_store %arg9[%c0_34, %c0_35], %68 {strides = array<i32>} : memref<128x32xf32, #tpu.memory_space<vmem>>, vector<128x32xf32>,
    return
  }
}

module attributes {stable_mosaic.version = 11 : i64} {
  func.func @_conv_tanh_t_kernel(%arg0: memref<96x256xf32, #tpu.memory_space<vmem>>, %arg1: memref<3x96xf32, #tpu.memory_space<vmem>>, %arg2: memref<3x1xf32, #tpu.memory_space<vmem>>, %arg3: memref<3x256xf32, #tpu.memory_space<vmem>>) attributes {dimension_semantics = [], scalar_prefetch = 0 : i64, scratch_operands = 0 : i64, tpu.core_type = #tpu.core_type<tc>} {
    %c0 = arith.constant 0 : index
    %c0_0 = arith.constant 0 : index
    %0 = vector.load %arg1[%c0, %c0_0] : memref<3x96xf32, #tpu.memory_space<vmem>>, vector<3x96xf32>
    %c0_1 = arith.constant 0 : index
    %c0_2 = arith.constant 0 : index
    %1 = vector.load %arg0[%c0_1, %c0_2] : memref<96x256xf32, #tpu.memory_space<vmem>>, vector<96x256xf32>
    %cst = arith.constant dense<0.000000e+00> : vector<3x256xf32>
    %2 = tpu.matmul %0, %1, %cst {dimension_numbers = #tpu.dot_dimension_numbers<[1], [0], [0], [1], [0, 0, 1, 1], [], []>} : vector<3x96xf32>, vector<96x256xf32>, vector<3x256xf32> -> vector<3x256xf32>
    %c0_3 = arith.constant 0 : index
    %c0_4 = arith.constant 0 : index
    %3 = vector.load %arg2[%c0_3, %c0_4] : memref<3x1xf32, #tpu.memory_space<vmem>>, vector<3x1xf32>
    %4 = vector.broadcast %3 : vector<3x1xf32> to vector<3x256xf32>
    %5 = arith.addf %2, %4 : vector<3x256xf32>
    %6 = math.tanh %5 : vector<3x256xf32>
    %c0_5 = arith.constant 0 : index
    %c0_6 = arith.constant 0 : index
    %7 = vector.load %arg3[%c0_5, %c0_6] : memref<3x256xf32, #tpu.memory_space<vmem>>, vector<3x256xf32>
    tpu.vector_store %arg3[%c0_5, %c0_6], %6 {strides = array<i32>} : memref<3x256xf32, #tpu.memory_space<vmem>>, vector<3x256xf32>,
    return
  }
}

</mosaic_0001>

<llo_original>
// kernel: _lambda_.13
$region0: #{_lambda_.13}
  #allocation0 [shape = 'u32[]', space=smem, size = 0x4, offset = 0x4, fixed_abs, tag = 'smem constant byte address 0x4 - core index']
  #allocation1 [shape = 'u32[144,128]{1,0:T(1,128)}', space=vmem, size = 0x12000, scoped, tag = 'internal scratch']
  %s0 = inlined_call_operand.vmem [shape: f32[64,96], index: 0, kind: input, shape index: {}]
  %s1 = inlined_call_operand.vmem [shape: f32[96,64], index: 1, kind: input, shape index: {}]
  %s2 = inlined_call_operand.hbm [shape: f32[1,64], index: 2, kind: input, shape index: {}]
  %s3 = inlined_call_operand.hbm [shape: f32[1,64], index: 3, kind: input, shape index: {}]
  %s4 = inlined_call_operand.hbm [shape: f32[1,64], index: 4, kind: input, shape index: {}]
  %s5 = inlined_call_operand.vmem [shape: f32[64,64], index: 5, kind: output, shape index: {}]
  %s6 = sld [smem:[#allocation0]]
  $region42: #{_lambda_.13} parent=0
    _
  %s8 = ssub.s32 1, %s6
  %s9 = scalar_select 0, %s8, %s6
  $region1: #{_lambda_.13} parent=0
    #allocation2 [shape = 'u8[512]{0}', space=vmem, size = 0x400, scoped, tag = 'input window, operand 2, single buffered']
    #allocation3 [shape = 's32[1]{0}', space=sflag, size = 0x4, scoped, tag = 'scoped memory for _lambda_.13']
    #allocation4 [shape = 'u8[512]{0}', space=vmem, size = 0x400, scoped, tag = 'input window, operand 3, single buffered']
    #allocation5 [shape = 's32[1]{0}', space=sflag, size = 0x4, scoped, tag = 'scoped memory for _lambda_.13']
    #allocation6 [shape = 'u8[512]{0}', space=vmem, size = 0x400, scoped, tag = 'input window, operand 4, single buffered']
    %10 = vsyncpa [#allocation3], 0
    %11 = vsyncpa [#allocation5], 0
    // Predicated region
    $region2: #{_lambda_.13} parent=1 // pred_check
      _
    $region3: #{_lambda_.13} parent=1 // pred_check_branch
      %13 = sbr.rel (0) target = $region5
    $region4: #{_lambda_.13} parent=1 // pred_region
      _
    $region5: #{_lambda_.13} parent=1 // pred_fallthru
      _
    // Predicated region
    $region6: #{_lambda_.13} parent=1 // pred_check
      _
    $region7: #{_lambda_.13} parent=1 // pred_check_branch
      %15 = sbr.rel (0) target = $region9
    $region8: #{_lambda_.13} parent=1 // pred_region
      _
    $region9: #{_lambda_.13} parent=1 // pred_fallthru
      _
    // Predicated region
    $region10: #{_lambda_.13} parent=1 // pred_check
      _
    $region11: #{_lambda_.13} parent=1 // pred_check_branch
      %17 = sbr.rel (0) target = $region13
    $region12: #{_lambda_.13} parent=1 // pred_region
      %s19 = ssub.s32 16, 16
      %20 = vsyncadd [#allocation3], %s19
      %s22 = sshll.u32 [#allocation2], 4
      %s23 = int_to_ptr.vmem [resolvable:$true] %s22
      %25 = dma.hbm_to_vmem [thread:$0]  %s2, 16, %s23, [#allocation3]
    $region13: #{_lambda_.13} parent=1 // pred_fallthru
      _
    // Predicated region
    $region14: #{_lambda_.13} parent=1 // pred_check
      _
    $region15: #{_lambda_.13} parent=1 // pred_check_branch
      %27 = sbr.rel (0) target = $region17
    $region16: #{_lambda_.13} parent=1 // pred_region
      %s29 = ssub.s32 16, 16
      %30 = vsyncadd [#allocation5], %s29
      %s32 = sshll.u32 [#allocation4], 4
      %s33 = int_to_ptr.vmem [resolvable:$true] %s32
      %35 = dma.hbm_to_vmem [thread:$0]  %s3, 16, %s33, [#allocation5]
    $region17: #{_lambda_.13} parent=1 // pred_fallthru
      _
    // Predicated region
    $region18: #{_lambda_.13} parent=1 // pred_check
      _
    $region19: #{_lambda_.13} parent=1 // pred_check_branch
      %37 = sbr.rel (0) target = $region21
    $region20: #{_lambda_.13} parent=1 // pred_region
      %s39 = ssub.s32 16, 16
      %40 = vsyncadd [#allocation5], %s39
      %s42 = sshll.u32 [#allocation6], 4
      %s43 = int_to_ptr.vmem [resolvable:$true] %s42
      %45 = dma.hbm_to_vmem [thread:$0]  %s4, 16, %s43, [#allocation5]
    $region21: #{_lambda_.13} parent=1 // pred_fallthru
      _
    // Predicated region
    $region22: #{_lambda_.13} parent=1 // pred_check
      _
    $region23: #{_lambda_.13} parent=1 // pred_check_branch
      %47 = sbr.rel (0) target = $region25
    $region24: #{_lambda_.13} parent=1 // pred_region
      %48 = dma.done [#allocation3], 16
    $region25: #{_lambda_.13} parent=1 // pred_fallthru
      _
    // Predicated region
    $region26: #{_lambda_.13} parent=1 // pred_check
      _
    $region27: #{_lambda_.13} parent=1 // pred_check_branch
      %50 = sbr.rel (0) target = $region29
    $region28: #{_lambda_.13} parent=1 // pred_region
      %51 = dma.done [#allocation5], 16
    $region29: #{_lambda_.13} parent=1 // pred_fallthru
      _
    // Predicated region
    $region30: #{_lambda_.13} parent=1 // pred_check
      _
    $region31: #{_lambda_.13} parent=1 // pred_check_branch
      %53 = sbr.rel (0) target = $region33
    $region32: #{_lambda_.13} parent=1 // pred_region
      %54 = dma.done [#allocation5], 16
    $region33: #{_lambda_.13} parent=1 // pred_fallthru
      _
    %v55 = vld [vmem:[%s0] sm:$0xff]
    %v56 = vld [vmem:[%s0 + $0x8] sm:$0xff]
    %v57 = vld [vmem:[%s0 + $0x10] sm:$0xff]
    %v58 = vld [vmem:[%s0 + $0x18] sm:$0xff]
    %v59 = vld [vmem:[%s0 + $0x20] sm:$0xff]
    %v60 = vld [vmem:[%s0 + $0x28] sm:$0xff]
    %v61 = vld [vmem:[%s0 + $0x30] sm:$0xff]
    %v62 = vld [vmem:[%s0 + $0x38] sm:$0xff]
    %v63 = vld [vmem:[%s1] sm:$0xff]
    %v64 = vld [vmem:[%s1 + $0x8] sm:$0xff]
    %v65 = vld [vmem:[%s1 + $0x10] sm:$0xff]
    %v66 = vld [vmem:[%s1 + $0x18] sm:$0xff]
    %v67 = vld [vmem:[%s1 + $0x20] sm:$0xff]
    %v68 = vld [vmem:[%s1 + $0x28] sm:$0xff]
    %v69 = vld [vmem:[%s1 + $0x30] sm:$0xff]
    %v70 = vld [vmem:[%s1 + $0x38] sm:$0xff]
    %v71 = vld [vmem:[%s1 + $0x40] sm:$0xff]
    %v72 = vld [vmem:[%s1 + $0x48] sm:$0xff]
    %v73 = vld [vmem:[%s1 + $0x50] sm:$0xff]
    %v74 = vld [vmem:[%s1 + $0x58] sm:$0xff]
    %v75 = vld [vmem:[#allocation2] sm:$0x1]
    %v77 = vlaneseq
    %v78 = vshrl.u32 %v77, 7
    %v79 = vsub.s32 0, %v78
    %v80 = vrot.slane %v75, %v79
    %vm82 = vcmask 785408
    %v84 = vsel %vm82, %v55, 0
    %v87 = vsel %vm82, %v56, 0
    %v90 = vsel %vm82, %v57, 0
    %v93 = vsel %vm82, %v58, 0
    %v96 = vsel %vm82, %v59, 0
    %v99 = vsel %vm82, %v60, 0
    %v102 = vsel %vm82, %v61, 0
    %v105 = vsel %vm82, %v62, 0
    %107 = vmatprep.subr.mxu0 0.0
    %108 = vmatpush1.msra.mxu0 %v63
    %109 = vmatprep.subr.mxu0 0.0
    %110 = vmatpush1.msra.mxu0 %v64
    %111 = vmatprep.subr.mxu0 0.0
    %112 = vmatpush1.msra.mxu0 %v65
    %113 = vmatprep.subr.mxu0 0.0
    %114 = vmatpush1.msra.mxu0 %v66
    %115 = vmatprep.subr.mxu0 0.0
    %116 = vmatpush1.msra.mxu0 %v67
    %117 = vmatprep.subr.mxu0 0.0
    %118 = vmatpush1.msra.mxu0 %v68
    %119 = vmatprep.subr.mxu0 0.0
    %120 = vmatpush1.msra.mxu0 %v69
    %121 = vmatprep.subr.mxu0 0.0
    %122 = vmatpush1.msra.mxu0 %v70
    %123 = vmatprep.subr.mxu0 0.0
    %124 = vmatpush1.msra.mxu0 %v71
    %125 = vmatprep.subr.mxu0 0.0
    %126 = vmatpush1.msra.mxu0 %v72
    %127 = vmatprep.subr.mxu0 0.0
    %128 = vmatpush1.msra.mxu0 %v73
    %129 = vmatprep.subr.mxu0 0.0
    %130 = vmatpush1.msra.mxu0 %v74
    %131 = vmatprep.subr.mxu0 0.0
    %132 = vmatpush1.msra.mxu0 0.0
    %133 = vmatprep.subr.mxu0 0.0
    %134 = vmatpush1.msra.mxu0 0.0
    %135 = vmatprep.subr.mxu0 0.0
    %136 = vmatpush1.msra.mxu0 0.0
    %137 = vmatprep.subr.mxu0 0.0
    %138 = vmatpush1.msra.mxu0 0.0
    %139 = vmatprep.subr.mxu0 0.0
    %140 = vmatpush1.msra.mxu0 0.0
    %141 = vmatprep.subr.mxu0 0.0
    %142 = vmatpush1.msra.mxu0 0.0
    %143 = vmatprep.subr.mxu0 0.0
    %144 = vmatpush1.msra.mxu0 0.0
    %145 = vmatprep.subr.mxu0 0.0
    %146 = vmatpush1.msra.mxu0 0.0
    %147 = vmatprep.subr.mxu0 0.0
    %148 = vmatpush1.msra.mxu0 0.0
    %149 = vmatprep.subr.mxu0 0.0
    %150 = vmatpush1.msra.mxu0 0.0
    %151 = vmatprep.subr.mxu0 0.0
    %152 = vmatpush1.msra.mxu0 0.0
    %153 = vmatprep.subr.mxu0 0.0
    %154 = vmatpush1.msra.mxu0 0.0
    %155 = vmatprep.subr.mxu0 0.0
    %156 = vmatpush1.msra.mxu0 0.0
    %157 = vmatprep.subr.mxu0 0.0
    %158 = vmatpush1.msra.mxu0 0.0
    %159 = vmatprep.subr.mxu0 0.0
    %160 = vmatpush1.msra.mxu0 0.0
    %161 = vmatprep.subr.mxu0 0.0
    %162 = vmatpush1.msra.mxu0 0.0
    %163 = vmatprep.subr.mxu0 0.0
    %164 = vmatpush1.msra.mxu0 0.0
    %165 = vmatprep.subr.mxu0 0.0
    %166 = vmatpush1.msra.mxu0 0.0
    %167 = vmatprep.subr.mxu0 0.0
    %168 = vmatpush1.msra.mxu0 0.0
    %169 = vmatprep.subr.mxu0 0.0
    %170 = vmatpush1.msra.mxu0 0.0
    %171 = vmatprep.mubr.f32.mxu0 0.0
    %172 = vmatmul.mubr.f32.gmra.mrb[0].mxu0 %v84
    %v173 = vpop.f32.mrb[0].mxu0
    %v174 = vadd.f32 %v80, %v173
    %v175 = vpop.f32.mrb[0].mxu0
    %176 = vmatprep.mubr.f32.mxu0 0.0
    %177 = vmatmul.mubr.f32.gmra.mrb[0].mxu0 %v87
    %v178 = vpop.f32.mrb[0].mxu0
    %v179 = vadd.f32 %v80, %v178
    %v180 = vpop.f32.mrb[0].mxu0
    %181 = vmatprep.mubr.f32.mxu0 0.0
    %182 = vmatmul.mubr.f32.gmra.mrb[0].mxu0 %v90
    %v183 = vpop.f32.mrb[0].mxu0
    %v184 = vadd.f32 %v80, %v183
    %v185 = vpop.f32.mrb[0].mxu0
    %186 = vmatprep.mubr.f32.mxu0 0.0
    %187 = vmatmul.mubr.f32.gmra.mrb[0].mxu0 %v93
    %v188 = vpop.f32.mrb[0].mxu0
    %v189 = vadd.f32 %v80, %v188
    %v190 = vpop.f32.mrb[0].mxu0
    %191 = vmatprep.mubr.f32.mxu0 0.0
    %192 = vmatmul.mubr.f32.gmra.mrb[0].mxu0 %v96
    %v193 = vpop.f32.mrb[0].mxu0
    %v194 = vadd.f32 %v80, %v193
    %v195 = vpop.f32.mrb[0].mxu0
    %196 = vmatprep.mubr.f32.mxu0 0.0
    %197 = vmatmul.mubr.f32.gmra.mrb[0].mxu0 %v99
    %v198 = vpop.f32.mrb[0].mxu0
    %v199 = vadd.f32 %v80, %v198
    %v200 = vpop.f32.mrb[0].mxu0
    %201 = vmatprep.mubr.f32.mxu0 0.0
    %202 = vmatmul.mubr.f32.gmra.mrb[0].mxu0 %v102
    %v203 = vpop.f32.mrb[0].mxu0
    %v204 = vadd.f32 %v80, %v203
    %v205 = vpop.f32.mrb[0].mxu0
    %206 = vmatprep.mubr.f32.mxu0 0.0
    %207 = vmatmul.mubr.f32.gmra.mrb[0].mxu0 %v105
    %v208 = vpop.f32.mrb[0].mxu0
    %v209 = vadd.f32 %v80, %v208
    %v210 = vpop.f32.mrb[0].mxu0
    %211 = vdwg.mxu0
    %vm212 = vcmask 523264
    %v213 = vsel %vm212, %v174, 0.0
    %v214 = vsel %vm212, %v179, 0.0
    %v215 = vadd.f32 %v213, %v214
    %v216 = vsel %vm212, %v184, 0.0
    %v217 = vadd.f32 %v215, %v216
    %v218 = vsel %vm212, %v189, 0.0
    %v219 = vadd.f32 %v217, %v218
    %v220 = vsel %vm212, %v194, 0.0
    %v221 = vadd.f32 %v219, %v220
    %v222 = vsel %vm212, %v199, 0.0
    %v223 = vadd.f32 %v221, %v222
    %v224 = vsel %vm212, %v204, 0.0
    %v225 = vadd.f32 %v223, %v224
    %v226 = vsel %vm212, %v209, 0.0
    %v227 = vadd.f32 %v225, %v226
    %v228 = vrot.slane %v227, 4
    %v229 = vadd.f32 %v227, %v228
    %v230 = vrot.slane %v229, 2
    %v231 = vadd.f32 %v229, %v230
    %v232 = vrot.slane %v231, 1
    %v233 = vadd.f32 %v231, %v232
    %v234 = vrcp.pop 64.0
    %v235 = vmul.f32 %v233, %v234
    %v236 = vsub.f32 %v174, %v235
    %v237 = vsub.f32 %v179, %v235
    %v238 = vsub.f32 %v184, %v235
    %v239 = vsub.f32 %v189, %v235
    %v240 = vsub.f32 %v194, %v235
    %v241 = vsub.f32 %v199, %v235
    %v242 = vsub.f32 %v204, %v235
    %v243 = vsub.f32 %v209, %v235
    %v244 = vmul.f32 %v236, %v236
    %v245 = vmul.f32 %v237, %v237
    %v246 = vmul.f32 %v238, %v238
    %v247 = vmul.f32 %v239, %v239
    %v248 = vmul.f32 %v240, %v240
    %v249 = vmul.f32 %v241, %v241
    %v250 = vmul.f32 %v242, %v242
    %v251 = vmul.f32 %v243, %v243
    %v252 = vsel %vm212, %v244, 0.0
    %v253 = vsel %vm212, %v245, 0.0
    %v254 = vadd.f32 %v252, %v253
    %v255 = vsel %vm212, %v246, 0.0
    %v256 = vadd.f32 %v254, %v255
    %v257 = vsel %vm212, %v247, 0.0
    %v258 = vadd.f32 %v256, %v257
    %v259 = vsel %vm212, %v248, 0.0
    %v260 = vadd.f32 %v258, %v259
    %v261 = vsel %vm212, %v249, 0.0
    %v262 = vadd.f32 %v260, %v261
    %v263 = vsel %vm212, %v250, 0.0
    %v264 = vadd.f32 %v262, %v263
    %v265 = vsel %vm212, %v251, 0.0
    %v266 = vadd.f32 %v264, %v265
    %v267 = vrot.slane %v266, 4
    %v268 = vadd.f32 %v266, %v267
    %v269 = vrot.slane %v268, 2
    %v270 = vadd.f32 %v268, %v269
    %v271 = vrot.slane %v270, 1
    %v272 = vadd.f32 %v270, %v271
    %v273 = vmul.f32 %v272, %v234
    %v274 = vadd.f32 %v273, 1e-05
    %v275 = vrsqrt.pop %v274
    %v276 = vmul.f32 %v236, %v275
    %v277 = vmul.f32 %v237, %v275
    %v278 = vmul.f32 %v238, %v275
    %v279 = vmul.f32 %v239, %v275
    %v280 = vmul.f32 %v240, %v275
    %v281 = vmul.f32 %v241, %v275
    %v282 = vmul.f32 %v242, %v275
    %v283 = vmul.f32 %v243, %v275
    %v284 = vld [vmem:[#allocation4] sm:$0x1]
    %v286 = vlaneseq
    %v287 = vshrl.u32 %v286, 7
    %v288 = vsub.s32 0, %v287
    %v289 = vrot.slane %v284, %v288
    %v291 = vmul.f32 %v276, %v289
    %v292 = vmul.f32 %v277, %v289
    %v293 = vmul.f32 %v278, %v289
    %v294 = vmul.f32 %v279, %v289
    %v295 = vmul.f32 %v280, %v289
    %v296 = vmul.f32 %v281, %v289
    %v297 = vmul.f32 %v282, %v289
    %v298 = vmul.f32 %v283, %v289
    %v299 = vld [vmem:[#allocation6] sm:$0x1]
    %v301 = vlaneseq
    %v302 = vshrl.u32 %v301, 7
    %v303 = vsub.s32 0, %v302
    %v304 = vrot.slane %v299, %v303
    %v306 = vadd.f32 %v291, %v304
    %v307 = vadd.f32 %v292, %v304
    %v308 = vadd.f32 %v293, %v304
    %v309 = vadd.f32 %v294, %v304
    %v310 = vadd.f32 %v295, %v304
    %v311 = vadd.f32 %v296, %v304
    %v312 = vadd.f32 %v297, %v304
    %v313 = vadd.f32 %v298, %v304
    %vm314 = vcmp.ge.f32.partialorder %v306, 0.0
    %vm315 = vcmp.ge.f32.partialorder %v307, 0.0
    %vm316 = vcmp.ge.f32.partialorder %v308, 0.0
    %vm317 = vcmp.ge.f32.partialorder %v309, 0.0
    %vm318 = vcmp.ge.f32.partialorder %v310, 0.0
    %vm319 = vcmp.ge.f32.partialorder %v311, 0.0
    %vm320 = vcmp.ge.f32.partialorder %v312, 0.0
    %vm321 = vcmp.ge.f32.partialorder %v313, 0.0
    %v322 = vmul.f32 %v306, 0.01
    %v323 = vmul.f32 %v307, 0.01
    %v324 = vmul.f32 %v308, 0.01
    %v325 = vmul.f32 %v309, 0.01
    %v326 = vmul.f32 %v310, 0.01
    %v327 = vmul.f32 %v311, 0.01
    %v328 = vmul.f32 %v312, 0.01
    %v329 = vmul.f32 %v313, 0.01
    %v330 = vsel %vm314, %v306, %v322
    %v331 = vsel %vm315, %v307, %v323
    %v332 = vsel %vm316, %v308, %v324
    %v333 = vsel %vm317, %v309, %v325
    %v334 = vsel %vm318, %v310, %v326
    %v335 = vsel %vm319, %v311, %v327
    %v336 = vsel %vm320, %v312, %v328
    %v337 = vsel %vm321, %v313, %v329
    %338 = vst.msk [vmem:[%s5] sm:$0xff] %vm212, %v330
    %339 = vst.msk [vmem:[%s5 + $0x8] sm:$0xff] %vm212, %v331
    %340 = vst.msk [vmem:[%s5 + $0x10] sm:$0xff] %vm212, %v332
    %341 = vst.msk [vmem:[%s5 + $0x18] sm:$0xff] %vm212, %v333
    %342 = vst.msk [vmem:[%s5 + $0x20] sm:$0xff] %vm212, %v334
    %343 = vst.msk [vmem:[%s5 + $0x28] sm:$0xff] %vm212, %v335
    %344 = vst.msk [vmem:[%s5 + $0x30] sm:$0xff] %vm212, %v336
    %345 = vst.msk [vmem:[%s5 + $0x38] sm:$0xff] %vm212, %v337
    // Predicated region
    $region34: #{_lambda_.13} parent=1 // pred_check
      _
    $region35: #{_lambda_.13} parent=1 // pred_check_branch
      %347 = sbr.rel (0) target = $region37
    $region36: #{_lambda_.13} parent=1 // pred_region
      _
    $region37: #{_lambda_.13} parent=1 // pred_fallthru
      _
    // Predicated region
    $region38: #{_lambda_.13} parent=1 // pred_check
      _
    $region39: #{_lambda_.13} parent=1 // pred_check_branch
      %349 = sbr.rel (0) target = $region41
    $region40: #{_lambda_.13} parent=1 // pred_region
      _
    $region41: #{_lambda_.13} parent=1 // pred_fallthru
      _
    %350 = vsyncpa [#allocation3], 1
    %351 = vsyncpa [#allocation5], 1

// kernel: _lambda_.12
$region0: #{_lambda_.12}
  #allocation0 [shape = 'u32[]', space=smem, size = 0x4, offset = 0x4, fixed_abs, tag = 'smem constant byte address 0x4 - core index']
  #allocation1 [shape = 'u32[144,128]{1,0:T(1,128)}', space=vmem, size = 0x12000, scoped, tag = 'internal scratch']
  %s0 = inlined_call_operand.vmem [shape: f32[128,9], index: 0, kind: input, shape index: {}]
  %s1 = inlined_call_operand.hbm [shape: f32[9,32], index: 1, kind: input, shape index: {}]
  %s2 = inlined_call_operand.hbm [shape: f32[1,32], index: 2, kind: input, shape index: {}]
  %s3 = inlined_call_operand.hbm [shape: f32[1,32], index: 3, kind: input, shape index: {}]
  %s4 = inlined_call_operand.hbm [shape: f32[1,32], index: 4, kind: input, shape index: {}]
  %s5 = inlined_call_operand.vmem [shape: f32[128,32], index: 5, kind: output, shape index: {}]
  %s6 = sld [smem:[#allocation0]]
  $region46: #{_lambda_.12} parent=0
    _
  %s8 = ssub.s32 1, %s6
  %s9 = scalar_select 0, %s8, %s6
  $region1: #{_lambda_.12} parent=0
    #allocation2 [shape = 'u8[8192]{0}', space=vmem, size = 0x2000, scoped, tag = 'input window, operand 1, single buffered']
    #allocation3 [shape = 's32[1]{0}', space=sflag, size = 0x4, scoped, tag = 'scoped memory for _lambda_.12']
    #allocation4 [shape = 'u8[512]{0}', space=vmem, size = 0x400, scoped, tag = 'input window, operand 2, single buffered']
    #allocation5 [shape = 's32[1]{0}', space=sflag, size = 0x4, scoped, tag = 'scoped memory for _lambda_.12']
    #allocation6 [shape = 'u8[512]{0}', space=vmem, size = 0x400, scoped, tag = 'input window, operand 3, single buffered']
    #allocation7 [shape = 'u8[512]{0}', space=vmem, size = 0x400, scoped, tag = 'input window, operand 4, single buffered']
    #allocation8 [shape = 's32[1]{0}', space=sflag, size = 0x4, scoped, tag = 'scoped memory for _lambda_.12']
    %10 = vsyncpa [#allocation3], 0
    %11 = vsyncpa [#allocation5], 0
    %12 = vsyncpa [#allocation8], 0
    // Predicated region
    $region2: #{_lambda_.12} parent=1 // pred_check
      _
    $region3: #{_lambda_.12} parent=1 // pred_check_branch
      %14 = sbr.rel (0) target = $region5
    $region4: #{_lambda_.12} parent=1 // pred_region
      _
    $region5: #{_lambda_.12} parent=1 // pred_fallthru
      _
    // Predicated region
    $region6: #{_lambda_.12} parent=1 // pred_check
      _
    $region7: #{_lambda_.12} parent=1 // pred_check_branch
      %16 = sbr.rel (0) target = $region9
    $region8: #{_lambda_.12} parent=1 // pred_region
      %s18 = ssub.s32 256, 256
      %19 = vsyncadd [#allocation3], %s18
      %s20 = sshll.u32 [#allocation2], 4
      %s21 = int_to_ptr.vmem [resolvable:$true] %s20
      %26 = dma.hbm_to_vmem [thread:$0]  %s1, 256, %s21, [#allocation3], 128, 128, 8
    $region9: #{_lambda_.12} parent=1 // pred_fallthru
      _
    // Predicated region
    $region10: #{_lambda_.12} parent=1 // pred_check
      _
    $region11: #{_lambda_.12} parent=1 // pred_check_branch
      %28 = sbr.rel (0) target = $region13
    $region12: #{_lambda_.12} parent=1 // pred_region
      %s30 = ssub.s32 16, 16
      %31 = vsyncadd [#allocation5], %s30
      %s33 = sshll.u32 [#allocation4], 4
      %s34 = int_to_ptr.vmem [resolvable:$true] %s33
      %36 = dma.hbm_to_vmem [thread:$0]  %s2, 16, %s34, [#allocation5]
    $region13: #{_lambda_.12} parent=1 // pred_fallthru
      _
    // Predicated region
    $region14: #{_lambda_.12} parent=1 // pred_check
      _
    $region15: #{_lambda_.12} parent=1 // pred_check_branch
      %38 = sbr.rel (0) target = $region17
    $region16: #{_lambda_.12} parent=1 // pred_region
      %s40 = ssub.s32 16, 16
      %41 = vsyncadd [#allocation5], %s40
      %s43 = sshll.u32 [#allocation6], 4
      %s44 = int_to_ptr.vmem [resolvable:$true] %s43
      %46 = dma.hbm_to_vmem [thread:$0]  %s3, 16, %s44, [#allocation5]
    $region17: #{_lambda_.12} parent=1 // pred_fallthru
      _
    // Predicated region
    $region18: #{_lambda_.12} parent=1 // pred_check
      _
    $region19: #{_lambda_.12} parent=1 // pred_check_branch
      %48 = sbr.rel (0) target = $region21
    $region20: #{_lambda_.12} parent=1 // pred_region
      %s50 = ssub.s32 16, 16
      %51 = vsyncadd [#allocation8], %s50
      %s53 = sshll.u32 [#allocation7], 4
      %s54 = int_to_ptr.vmem [resolvable:$true] %s53
      %56 = dma.hbm_to_vmem [thread:$0]  %s4, 16, %s54, [#allocation8]
    $region21: #{_lambda_.12} parent=1 // pred_fallthru
      _
    // Predicated region
    $region22: #{_lambda_.12} parent=1 // pred_check
      _
    $region23: #{_lambda_.12} parent=1 // pred_check_branch
      %58 = sbr.rel (0) target = $region25
    $region24: #{_lambda_.12} parent=1 // pred_region
      %59 = dma.done [#allocation3], 256
    $region25: #{_lambda_.12} parent=1 // pred_fallthru
      _
    // Predicated region
    $region26: #{_lambda_.12} parent=1 // pred_check
      _
    $region27: #{_lambda_.12} parent=1 // pred_check_branch
      %61 = sbr.rel (0) target = $region29
    $region28: #{_lambda_.12} parent=1 // pred_region
      %62 = dma.done [#allocation5], 16
    $region29: #{_lambda_.12} parent=1 // pred_fallthru
      _
    // Predicated region
    $region30: #{_lambda_.12} parent=1 // pred_check
      _
    $region31: #{_lambda_.12} parent=1 // pred_check_branch
      %64 = sbr.rel (0) target = $region33
    $region32: #{_lambda_.12} parent=1 // pred_region
      %65 = dma.done [#allocation5], 16
    $region33: #{_lambda_.12} parent=1 // pred_fallthru
      _
    // Predicated region
    $region34: #{_lambda_.12} parent=1 // pred_check
      _
    $region35: #{_lambda_.12} parent=1 // pred_check_branch
      %67 = sbr.rel (0) target = $region37
    $region36: #{_lambda_.12} parent=1 // pred_region
      %68 = dma.done [#allocation8], 16
    $region37: #{_lambda_.12} parent=1 // pred_fallthru
      _
    %v69 = vld [vmem:[%s0] sm:$0xff]
    %v70 = vld [vmem:[%s0 + $0x8] sm:$0xff]
    %v71 = vld [vmem:[%s0 + $0x10] sm:$0xff]
    %v72 = vld [vmem:[%s0 + $0x18] sm:$0xff]
    %v73 = vld [vmem:[%s0 + $0x20] sm:$0xff]
    %v74 = vld [vmem:[%s0 + $0x28] sm:$0xff]
    %v75 = vld [vmem:[%s0 + $0x30] sm:$0xff]
    %v76 = vld [vmem:[%s0 + $0x38] sm:$0xff]
    %v77 = vld [vmem:[%s0 + $0x40] sm:$0xff]
    %v78 = vld [vmem:[%s0 + $0x48] sm:$0xff]
    %v79 = vld [vmem:[%s0 + $0x50] sm:$0xff]
    %v80 = vld [vmem:[%s0 + $0x58] sm:$0xff]
    %v81 = vld [vmem:[%s0 + $0x60] sm:$0xff]
    %v82 = vld [vmem:[%s0 + $0x68] sm:$0xff]
    %v83 = vld [vmem:[%s0 + $0x70] sm:$0xff]
    %v84 = vld [vmem:[%s0 + $0x78] sm:$0xff]
    %v85 = vld [vmem:[#allocation2] sm:$0xff]
    %v86 = vld [vmem:[#allocation2 + $0x8] sm:$0x1]
    %v87 = vld [vmem:[#allocation4] sm:$0x1]
    %v89 = vlaneseq
    %v90 = vshrl.u32 %v89, 7
    %v91 = vsub.s32 0, %v90
    %v92 = vrot.slane %v87, %v91
    %vm94 = vcmask 72704
    %v96 = vsel %vm94, %v69, 0
    %v99 = vsel %vm94, %v70, 0
    %v102 = vsel %vm94, %v71, 0
    %v105 = vsel %vm94, %v72, 0
    %v108 = vsel %vm94, %v73, 0
    %v111 = vsel %vm94, %v74, 0
    %v114 = vsel %vm94, %v75, 0
    %v117 = vsel %vm94, %v76, 0
    %v120 = vsel %vm94, %v77, 0
    %v123 = vsel %vm94, %v78, 0
    %v126 = vsel %vm94, %v79, 0
    %v129 = vsel %vm94, %v80, 0
    %v132 = vsel %vm94, %v81, 0
    %v135 = vsel %vm94, %v82, 0
    %v138 = vsel %vm94, %v83, 0
    %v141 = vsel %vm94, %v84, 0
    %vm143 = vcmask 1040384
    %v145 = vsel %vm143, %v86, 0
    %147 = vmatprep.subr.mxu0 0.0
    %148 = vmatpush1.msra.mxu0 %v85
    %149 = vmatprep.subr.mxu0 0.0
    %150 = vmatpush1.msra.mxu0 %v145
    %151 = vmatprep.subr.mxu0 0.0
    %152 = vmatpush1.msra.mxu0 0.0
    %153 = vmatprep.subr.mxu0 0.0
    %154 = vmatpush1.msra.mxu0 0.0
    %155 = vmatprep.subr.mxu0 0.0
    %156 = vmatpush1.msra.mxu0 0.0
    %157 = vmatprep.subr.mxu0 0.0
    %158 = vmatpush1.msra.mxu0 0.0
    %159 = vmatprep.subr.mxu0 0.0
    %160 = vmatpush1.msra.mxu0 0.0
    %161 = vmatprep.subr.mxu0 0.0
    %162 = vmatpush1.msra.mxu0 0.0
    %163 = vmatprep.subr.mxu0 0.0
    %164 = vmatpush1.msra.mxu0 0.0
    %165 = vmatprep.subr.mxu0 0.0
    %166 = vmatpush1.msra.mxu0 0.0
    %167 = vmatprep.subr.mxu0 0.0
    %168 = vmatpush1.msra.mxu0 0.0
    %169 = vmatprep.subr.mxu0 0.0
    %170 = vmatpush1.msra.mxu0 0.0
    %171 = vmatprep.subr.mxu0 0.0
    %172 = vmatpush1.msra.mxu0 0.0
    %173 = vmatprep.subr.mxu0 0.0
    %174 = vmatpush1.msra.mxu0 0.0
    %175 = vmatprep.subr.mxu0 0.0
    %176 = vmatpush1.msra.mxu0 0.0
    %177 = vmatprep.subr.mxu0 0.0
    %178 = vmatpush1.msra.mxu0 0.0
    %179 = vmatprep.subr.mxu0 0.0
    %180 = vmatpush1.msra.mxu0 0.0
    %181 = vmatprep.subr.mxu0 0.0
    %182 = vmatpush1.msra.mxu0 0.0
    %183 = vmatprep.subr.mxu0 0.0
    %184 = vmatpush1.msra.mxu0 0.0
    %185 = vmatprep.subr.mxu0 0.0
    %186 = vmatpush1.msra.mxu0 0.0
    %187 = vmatprep.subr.mxu0 0.0
    %188 = vmatpush1.msra.mxu0 0.0
    %189 = vmatprep.subr.mxu0 0.0
    %190 = vmatpush1.msra.mxu0 0.0
    %191 = vmatprep.subr.mxu0 0.0
    %192 = vmatpush1.msra.mxu0 0.0
    %193 = vmatprep.subr.mxu0 0.0
    %194 = vmatpush1.msra.mxu0 0.0
    %195 = vmatprep.subr.mxu0 0.0
    %196 = vmatpush1.msra.mxu0 0.0
    %197 = vmatprep.subr.mxu0 0.0
    %198 = vmatpush1.msra.mxu0 0.0
    %199 = vmatprep.subr.mxu0 0.0
    %200 = vmatpush1.msra.mxu0 0.0
    %201 = vmatprep.subr.mxu0 0.0
    %202 = vmatpush1.msra.mxu0 0.0
    %203 = vmatprep.subr.mxu0 0.0
    %204 = vmatpush1.msra.mxu0 0.0
    %205 = vmatprep.subr.mxu0 0.0
    %206 = vmatpush1.msra.mxu0 0.0
    %207 = vmatprep.subr.mxu0 0.0
    %208 = vmatpush1.msra.mxu0 0.0
    %209 = vmatprep.subr.mxu0 0.0
    %210 = vmatpush1.msra.mxu0 0.0
    %211 = vmatprep.mubr.f32.mxu0 0.0
    %212 = vmatmul.mubr.f32.gmra.mrb[0].mxu0 %v96
    %v213 = vpop.f32.mrb[0].mxu0
    %v214 = vadd.f32 %v92, %v213
    %v215 = vpop.f32.mrb[0].mxu0
    %216 = vmatprep.mubr.f32.mxu0 0.0
    %217 = vmatmul.mubr.f32.gmra.mrb[0].mxu0 %v99
    %v218 = vpop.f32.mrb[0].mxu0
    %v219 = vadd.f32 %v92, %v218
    %v220 = vpop.f32.mrb[0].mxu0
    %221 = vmatprep.mubr.f32.mxu0 0.0
    %222 = vmatmul.mubr.f32.gmra.mrb[0].mxu0 %v102
    %v223 = vpop.f32.mrb[0].mxu0
    %v224 = vadd.f32 %v92, %v223
    %v225 = vpop.f32.mrb[0].mxu0
    %226 = vmatprep.mubr.f32.mxu0 0.0
    %227 = vmatmul.mubr.f32.gmra.mrb[0].mxu0 %v105
    %v228 = vpop.f32.mrb[0].mxu0
    %v229 = vadd.f32 %v92, %v228
    %v230 = vpop.f32.mrb[0].mxu0
    %231 = vmatprep.mubr.f32.mxu0 0.0
    %232 = vmatmul.mubr.f32.gmra.mrb[0].mxu0 %v108
    %v233 = vpop.f32.mrb[0].mxu0
    %v234 = vadd.f32 %v92, %v233
    %v235 = vpop.f32.mrb[0].mxu0
    %236 = vmatprep.mubr.f32.mxu0 0.0
    %237 = vmatmul.mubr.f32.gmra.mrb[0].mxu0 %v111
    %v238 = vpop.f32.mrb[0].mxu0
    %v239 = vadd.f32 %v92, %v238
    %v240 = vpop.f32.mrb[0].mxu0
    %241 = vmatprep.mubr.f32.mxu0 0.0
    %242 = vmatmul.mubr.f32.gmra.mrb[0].mxu0 %v114
    %v243 = vpop.f32.mrb[0].mxu0
    %v244 = vadd.f32 %v92, %v243
    %v245 = vpop.f32.mrb[0].mxu0
    %246 = vmatprep.mubr.f32.mxu0 0.0
    %247 = vmatmul.mubr.f32.gmra.mrb[0].mxu0 %v117
    %v248 = vpop.f32.mrb[0].mxu0
    %v249 = vadd.f32 %v92, %v248
    %v250 = vpop.f32.mrb[0].mxu0
    %251 = vmatprep.mubr.f32.mxu0 0.0
    %252 = vmatmul.mubr.f32.gmra.mrb[0].mxu0 %v120
    %v253 = vpop.f32.mrb[0].mxu0
    %v254 = vadd.f32 %v92, %v253
    %v255 = vpop.f32.mrb[0].mxu0
    %256 = vmatprep.mubr.f32.mxu0 0.0
    %257 = vmatmul.mubr.f32.gmra.mrb[0].mxu0 %v123
    %v258 = vpop.f32.mrb[0].mxu0
    %v259 = vadd.f32 %v92, %v258
    %v260 = vpop.f32.mrb[0].mxu0
    %261 = vmatprep.mubr.f32.mxu0 0.0
    %262 = vmatmul.mubr.f32.gmra.mrb[0].mxu0 %v126
    %v263 = vpop.f32.mrb[0].mxu0
    %v264 = vadd.f32 %v92, %v263
    %v265 = vpop.f32.mrb[0].mxu0
    %266 = vmatprep.mubr.f32.mxu0 0.0
    %267 = vmatmul.mubr.f32.gmra.mrb[0].mxu0 %v129
    %v268 = vpop.f32.mrb[0].mxu0
    %v269 = vadd.f32 %v92, %v268
    %v270 = vpop.f32.mrb[0].mxu0
    %271 = vmatprep.mubr.f32.mxu0 0.0
    %272 = vmatmul.mubr.f32.gmra.mrb[0].mxu0 %v132
    %v273 = vpop.f32.mrb[0].mxu0
    %v274 = vadd.f32 %v92, %v273
    %v275 = vpop.f32.mrb[0].mxu0
    %276 = vmatprep.mubr.f32.mxu0 0.0
    %277 = vmatmul.mubr.f32.gmra.mrb[0].mxu0 %v135
    %v278 = vpop.f32.mrb[0].mxu0
    %v279 = vadd.f32 %v92, %v278
    %v280 = vpop.f32.mrb[0].mxu0
    %281 = vmatprep.mubr.f32.mxu0 0.0
    %282 = vmatmul.mubr.f32.gmra.mrb[0].mxu0 %v138
    %v283 = vpop.f32.mrb[0].mxu0
    %v284 = vadd.f32 %v92, %v283
    %v285 = vpop.f32.mrb[0].mxu0
    %286 = vmatprep.mubr.f32.mxu0 0.0
    %287 = vmatmul.mubr.f32.gmra.mrb[0].mxu0 %v141
    %v288 = vpop.f32.mrb[0].mxu0
    %v289 = vadd.f32 %v92, %v288
    %v290 = vpop.f32.mrb[0].mxu0
    %291 = vdwg.mxu0
    %vm292 = vcmask 261120
    %v293 = vsel %vm292, %v214, 0.0
    %v294 = vsel %vm292, %v219, 0.0
    %v295 = vadd.f32 %v293, %v294
    %v296 = vsel %vm292, %v224, 0.0
    %v297 = vadd.f32 %v295, %v296
    %v298 = vsel %vm292, %v229, 0.0
    %v299 = vadd.f32 %v297, %v298
    %v300 = vsel %vm292, %v234, 0.0
    %v301 = vadd.f32 %v299, %v300
    %v302 = vsel %vm292, %v239, 0.0
    %v303 = vadd.f32 %v301, %v302
    %v304 = vsel %vm292, %v244, 0.0
    %v305 = vadd.f32 %v303, %v304
    %v306 = vsel %vm292, %v249, 0.0
    %v307 = vadd.f32 %v305, %v306
    %v308 = vsel %vm292, %v254, 0.0
    %v309 = vadd.f32 %v307, %v308
    %v310 = vsel %vm292, %v259, 0.0
    %v311 = vadd.f32 %v309, %v310
    %v312 = vsel %vm292, %v264, 0.0
    %v313 = vadd.f32 %v311, %v312
    %v314 = vsel %vm292, %v269, 0.0
    %v315 = vadd.f32 %v313, %v314
    %v316 = vsel %vm292, %v274, 0.0
    %v317 = vadd.f32 %v315, %v316
    %v318 = vsel %vm292, %v279, 0.0
    %v319 = vadd.f32 %v317, %v318
    %v320 = vsel %vm292, %v284, 0.0
    %v321 = vadd.f32 %v319, %v320
    %v322 = vsel %vm292, %v289, 0.0
    %v323 = vadd.f32 %v321, %v322
    %v324 = vrot.slane %v323, 4
    %v325 = vadd.f32 %v323, %v324
    %v326 = vrot.slane %v325, 2
    %v327 = vadd.f32 %v325, %v326
    %v328 = vrot.slane %v327, 1
    %v329 = vadd.f32 %v327, %v328
    %v330 = vrcp.pop 128.0
    %v331 = vmul.f32 %v329, %v330
    %v332 = vsub.f32 %v214, %v331
    %v333 = vsub.f32 %v219, %v331
    %v334 = vsub.f32 %v224, %v331
    %v335 = vsub.f32 %v229, %v331
    %v336 = vsub.f32 %v234, %v331
    %v337 = vsub.f32 %v239, %v331
    %v338 = vsub.f32 %v244, %v331
    %v339 = vsub.f32 %v249, %v331
    %v340 = vsub.f32 %v254, %v331
    %v341 = vsub.f32 %v259, %v331
    %v342 = vsub.f32 %v264, %v331
    %v343 = vsub.f32 %v269, %v331
    %v344 = vsub.f32 %v274, %v331
    %v345 = vsub.f32 %v279, %v331
    %v346 = vsub.f32 %v284, %v331
    %v347 = vsub.f32 %v289, %v331
    %v348 = vmul.f32 %v332, %v332
    %v349 = vmul.f32 %v333, %v333
    %v350 = vmul.f32 %v334, %v334
    %v351 = vmul.f32 %v335, %v335
    %v352 = vmul.f32 %v336, %v336
    %v353 = vmul.f32 %v337, %v337
    %v354 = vmul.f32 %v338, %v338
    %v355 = vmul.f32 %v339, %v339
    %v356 = vmul.f32 %v340, %v340
    %v357 = vmul.f32 %v341, %v341
    %v358 = vmul.f32 %v342, %v342
    %v359 = vmul.f32 %v343, %v343
    %v360 = vmul.f32 %v344, %v344
    %v361 = vmul.f32 %v345, %v345
    %v362 = vmul.f32 %v346, %v346
    %v363 = vmul.f32 %v347, %v347
    %v364 = vsel %vm292, %v348, 0.0
    %v365 = vsel %vm292, %v349, 0.0
    %v366 = vadd.f32 %v364, %v365
    %v367 = vsel %vm292, %v350, 0.0
    %v368 = vadd.f32 %v366, %v367
    %v369 = vsel %vm292, %v351, 0.0
    %v370 = vadd.f32 %v368, %v369
    %v371 = vsel %vm292, %v352, 0.0
    %v372 = vadd.f32 %v370, %v371
    %v373 = vsel %vm292, %v353, 0.0
    %v374 = vadd.f32 %v372, %v373
    %v375 = vsel %vm292, %v354, 0.0
    %v376 = vadd.f32 %v374, %v375
    %v377 = vsel %vm292, %v355, 0.0
    %v378 = vadd.f32 %v376, %v377
    %v379 = vsel %vm292, %v356, 0.0
    %v380 = vadd.f32 %v378, %v379
    %v381 = vsel %vm292, %v357, 0.0
    %v382 = vadd.f32 %v380, %v381
    %v383 = vsel %vm292, %v358, 0.0
    %v384 = vadd.f32 %v382, %v383
    %v385 = vsel %vm292, %v359, 0.0
    %v386 = vadd.f32 %v384, %v385
    %v387 = vsel %vm292, %v360, 0.0
    %v388 = vadd.f32 %v386, %v387
    %v389 = vsel %vm292, %v361, 0.0
    %v390 = vadd.f32 %v388, %v389
    %v391 = vsel %vm292, %v362, 0.0
    %v392 = vadd.f32 %v390, %v391
    %v393 = vsel %vm292, %v363, 0.0
    %v394 = vadd.f32 %v392, %v393
    %v395 = vrot.slane %v394, 4
    %v396 = vadd.f32 %v394, %v395
    %v397 = vrot.slane %v396, 2
    %v398 = vadd.f32 %v396, %v397
    %v399 = vrot.slane %v398, 1
    %v400 = vadd.f32 %v398, %v399
    %v401 = vmul.f32 %v400, %v330
    %v402 = vadd.f32 %v401, 1e-05
    %v403 = vrsqrt.pop %v402
    %v404 = vmul.f32 %v332, %v403
    %v405 = vmul.f32 %v333, %v403
    %v406 = vmul.f32 %v334, %v403
    %v407 = vmul.f32 %v335, %v403
    %v408 = vmul.f32 %v336, %v403
    %v409 = vmul.f32 %v337, %v403
    %v410 = vmul.f32 %v338, %v403
    %v411 = vmul.f32 %v339, %v403
    %v412 = vmul.f32 %v340, %v403
    %v413 = vmul.f32 %v341, %v403
    %v414 = vmul.f32 %v342, %v403
    %v415 = vmul.f32 %v343, %v403
    %v416 = vmul.f32 %v344, %v403
    %v417 = vmul.f32 %v345, %v403
    %v418 = vmul.f32 %v346, %v403
    %v419 = vmul.f32 %v347, %v403
    %v420 = vld [vmem:[#allocation6] sm:$0x1]
    %v422 = vlaneseq
    %v423 = vshrl.u32 %v422, 7
    %v424 = vsub.s32 0, %v423
    %v425 = vrot.slane %v420, %v424
    %v427 = vmul.f32 %v404, %v425
    %v428 = vmul.f32 %v405, %v425
    %v429 = vmul.f32 %v406, %v425
    %v430 = vmul.f32 %v407, %v425
    %v431 = vmul.f32 %v408, %v425
    %v432 = vmul.f32 %v409, %v425
    %v433 = vmul.f32 %v410, %v425
    %v434 = vmul.f32 %v411, %v425
    %v435 = vmul.f32 %v412, %v425
    %v436 = vmul.f32 %v413, %v425
    %v437 = vmul.f32 %v414, %v425
    %v438 = vmul.f32 %v415, %v425
    %v439 = vmul.f32 %v416, %v425
    %v440 = vmul.f32 %v417, %v425
    %v441 = vmul.f32 %v418, %v425
    %v442 = vmul.f32 %v419, %v425
    %v443 = vld [vmem:[#allocation7] sm:$0x1]
    %v445 = vlaneseq
    %v446 = vshrl.u32 %v445, 7
    %v447 = vsub.s32 0, %v446
    %v448 = vrot.slane %v443, %v447
    %v450 = vadd.f32 %v427, %v448
    %v451 = vadd.f32 %v428, %v448
    %v452 = vadd.f32 %v429, %v448
    %v453 = vadd.f32 %v430, %v448
    %v454 = vadd.f32 %v431, %v448
    %v455 = vadd.f32 %v432, %v448
    %v456 = vadd.f32 %v433, %v448
    %v457 = vadd.f32 %v434, %v448
    %v458 = vadd.f32 %v435, %v448
    %v459 = vadd.f32 %v436, %v448
    %v460 = vadd.f32 %v437, %v448
    %v461 = vadd.f32 %v438, %v448
    %v462 = vadd.f32 %v439, %v448
    %v463 = vadd.f32 %v440, %v448
    %v464 = vadd.f32 %v441, %v448
    %v465 = vadd.f32 %v442, %v448
    %vm466 = vcmp.ge.f32.partialorder %v450, 0.0
    %vm467 = vcmp.ge.f32.partialorder %v451, 0.0
    %vm468 = vcmp.ge.f32.partialorder %v452, 0.0
    %vm469 = vcmp.ge.f32.partialorder %v453, 0.0
    %vm470 = vcmp.ge.f32.partialorder %v454, 0.0
    %vm471 = vcmp.ge.f32.partialorder %v455, 0.0
    %vm472 = vcmp.ge.f32.partialorder %v456, 0.0
    %vm473 = vcmp.ge.f32.partialorder %v457, 0.0
    %vm474 = vcmp.ge.f32.partialorder %v458, 0.0
    %vm475 = vcmp.ge.f32.partialorder %v459, 0.0
    %vm476 = vcmp.ge.f32.partialorder %v460, 0.0
    %vm477 = vcmp.ge.f32.partialorder %v461, 0.0
    %vm478 = vcmp.ge.f32.partialorder %v462, 0.0
    %vm479 = vcmp.ge.f32.partialorder %v463, 0.0
    %vm480 = vcmp.ge.f32.partialorder %v464, 0.0
    %vm481 = vcmp.ge.f32.partialorder %v465, 0.0
    %v482 = vmul.f32 %v450, 0.01
    %v483 = vmul.f32 %v451, 0.01
    %v484 = vmul.f32 %v452, 0.01
    %v485 = vmul.f32 %v453, 0.01
    %v486 = vmul.f32 %v454, 0.01
    %v487 = vmul.f32 %v455, 0.01
    %v488 = vmul.f32 %v456, 0.01
    %v489 = vmul.f32 %v457, 0.01
    %v490 = vmul.f32 %v458, 0.01
    %v491 = vmul.f32 %v459, 0.01
    %v492 = vmul.f32 %v460, 0.01
    %v493 = vmul.f32 %v461, 0.01
    %v494 = vmul.f32 %v462, 0.01
    %v495 = vmul.f32 %v463, 0.01
    %v496 = vmul.f32 %v464, 0.01
    %v497 = vmul.f32 %v465, 0.01
    %v498 = vsel %vm466, %v450, %v482
    %v499 = vsel %vm467, %v451, %v483
    %v500 = vsel %vm468, %v452, %v484
    %v501 = vsel %vm469, %v453, %v485
    %v502 = vsel %vm470, %v454, %v486
    %v503 = vsel %vm471, %v455, %v487
    %v504 = vsel %vm472, %v456, %v488
    %v505 = vsel %vm473, %v457, %v489
    %v506 = vsel %vm474, %v458, %v490
    %v507 = vsel %vm475, %v459, %v491
    %v508 = vsel %vm476, %v460, %v492
    %v509 = vsel %vm477, %v461, %v493
    %v510 = vsel %vm478, %v462, %v494
    %v511 = vsel %vm479, %v463, %v495
    %v512 = vsel %vm480, %v464, %v496
    %v513 = vsel %vm481, %v465, %v497
    %514 = vst.msk [vmem:[%s5] sm:$0xff] %vm292, %v498
    %515 = vst.msk [vmem:[%s5 + $0x8] sm:$0xff] %vm292, %v499
    %516 = vst.msk [vmem:[%s5 + $0x10] sm:$0xff] %vm292, %v500
    %517 = vst.msk [vmem:[%s5 + $0x18] sm:$0xff] %vm292, %v501
    %518 = vst.msk [vmem:[%s5 + $0x20] sm:$0xff] %vm292, %v502
    %519 = vst.msk [vmem:[%s5 + $0x28] sm:$0xff] %vm292, %v503
    %520 = vst.msk [vmem:[%s5 + $0x30] sm:$0xff] %vm292, %v504
    %521 = vst.msk [vmem:[%s5 + $0x38] sm:$0xff] %vm292, %v505
    %522 = vst.msk [vmem:[%s5 + $0x40] sm:$0xff] %vm292, %v506
    %523 = vst.msk [vmem:[%s5 + $0x48] sm:$0xff] %vm292, %v507
    %524 = vst.msk [vmem:[%s5 + $0x50] sm:$0xff] %vm292, %v508
    %525 = vst.msk [vmem:[%s5 + $0x58] sm:$0xff] %vm292, %v509
    %526 = vst.msk [vmem:[%s5 + $0x60] sm:$0xff] %vm292, %v510
    %527 = vst.msk [vmem:[%s5 + $0x68] sm:$0xff] %vm292, %v511
    %528 = vst.msk [vmem:[%s5 + $0x70] sm:$0xff] %vm292, %v512
    %529 = vst.msk [vmem:[%s5 + $0x78] sm:$0xff] %vm292, %v513
    // Predicated region
    $region38: #{_lambda_.12} parent=1 // pred_check
      _
    $region39: #{_lambda_.12} parent=1 // pred_check_branch
      %531 = sbr.rel (0) target = $region41
    $region40: #{_lambda_.12} parent=1 // pred_region
      _
    $region41: #{_lambda_.12} parent=1 // pred_fallthru
      _
    // Predicated region
    $region42: #{_lambda_.12} parent=1 // pred_check
      _
    $region43: #{_lambda_.12} parent=1 // pred_check_branch
      %533 = sbr.rel (0) target = $region45
    $region44: #{_lambda_.12} parent=1 // pred_region
      _
    $region45: #{_lambda_.12} parent=1 // pred_fallthru
      _
    %534 = vsyncpa [#allocation3], 1
    %535 = vsyncpa [#allocation5], 1
    %536 = vsyncpa [#allocation8], 1

// kernel: _lambda_.14
$region0: #{_lambda_.14}
  #allocation0 [shape = 'u32[]', space=smem, size = 0x4, offset = 0x4, fixed_abs, tag = 'smem constant byte address 0x4 - core index']
  #allocation1 [shape = 'u32[144,128]{1,0:T(1,128)}', space=vmem, size = 0x12000, scoped, tag = 'internal scratch']
  %s0 = inlined_call_operand.vmem [shape: f32[32,192], index: 0, kind: input, shape index: {}]
  %s1 = inlined_call_operand.hbm [shape: f32[192,128], index: 1, kind: input, shape index: {}]
  %s2 = inlined_call_operand.hbm [shape: f32[1,128], index: 2, kind: input, shape index: {}]
  %s3 = inlined_call_operand.hbm [shape: f32[1,128], index: 3, kind: input, shape index: {}]
  %s4 = inlined_call_operand.hbm [shape: f32[1,128], index: 4, kind: input, shape index: {}]
  %s5 = inlined_call_operand.vmem [shape: f32[32,128], index: 5, kind: output, shape index: {}]
  %s6 = sld [smem:[#allocation0]]
  $region46: #{_lambda_.14} parent=0
    _
  %s8 = ssub.s32 1, %s6
  %s9 = scalar_select 0, %s8, %s6
  $region1: #{_lambda_.14} parent=0
    #allocation2 [shape = 'u8[98304]{0}', space=vmem, size = 0x18000, scoped, tag = 'input window, operand 1, single buffered']
    #allocation3 [shape = 's32[1]{0}', space=sflag, size = 0x4, scoped, tag = 'scoped memory for _lambda_.14']
    #allocation4 [shape = 'u8[512]{0}', space=vmem, size = 0x400, scoped, tag = 'input window, operand 2, single buffered']
    #allocation5 [shape = 's32[1]{0}', space=sflag, size = 0x4, scoped, tag = 'scoped memory for _lambda_.14']
    #allocation6 [shape = 'u8[512]{0}', space=vmem, size = 0x400, scoped, tag = 'input window, operand 3, single buffered']
    #allocation7 [shape = 'u8[512]{0}', space=vmem, size = 0x400, scoped, tag = 'input window, operand 4, single buffered']
    #allocation8 [shape = 's32[1]{0}', space=sflag, size = 0x4, scoped, tag = 'scoped memory for _lambda_.14']
    %10 = vsyncpa [#allocation3], 0
    %11 = vsyncpa [#allocation5], 0
    %12 = vsyncpa [#allocation8], 0
    // Predicated region
    $region2: #{_lambda_.14} parent=1 // pred_check
      _
    $region3: #{_lambda_.14} parent=1 // pred_check_branch
      %14 = sbr.rel (0) target = $region5
    $region4: #{_lambda_.14} parent=1 // pred_region
      _
    $region5: #{_lambda_.14} parent=1 // pred_fallthru
      _
    // Predicated region
    $region6: #{_lambda_.14} parent=1 // pred_check
      _
    $region7: #{_lambda_.14} parent=1 // pred_check_branch
      %16 = sbr.rel (0) target = $region9
    $region8: #{_lambda_.14} parent=1 // pred_region
      %s18 = ssub.s32 3072, 3072
      %19 = vsyncadd [#allocation3], %s18
      %s20 = sshll.u32 [#allocation2], 4
      %s21 = int_to_ptr.vmem [resolvable:$true] %s20
      %26 = dma.hbm_to_vmem [thread:$0]  %s1, 3072, %s21, [#allocation3], 128, 128, 8
    $region9: #{_lambda_.14} parent=1 // pred_fallthru
      _
    // Predicated region
    $region10: #{_lambda_.14} parent=1 // pred_check
      _
    $region11: #{_lambda_.14} parent=1 // pred_check_branch
      %28 = sbr.rel (0) target = $region13
    $region12: #{_lambda_.14} parent=1 // pred_region
      %s30 = ssub.s32 16, 16
      %31 = vsyncadd [#allocation5], %s30
      %s33 = sshll.u32 [#allocation4], 4
      %s34 = int_to_ptr.vmem [resolvable:$true] %s33
      %36 = dma.hbm_to_vmem [thread:$0]  %s2, 16, %s34, [#allocation5]
    $region13: #{_lambda_.14} parent=1 // pred_fallthru
      _
    // Predicated region
    $region14: #{_lambda_.14} parent=1 // pred_check
      _
    $region15: #{_lambda_.14} parent=1 // pred_check_branch
      %38 = sbr.rel (0) target = $region17
    $region16: #{_lambda_.14} parent=1 // pred_region
      %s40 = ssub.s32 16, 16
      %41 = vsyncadd [#allocation5], %s40
      %s43 = sshll.u32 [#allocation6], 4
      %s44 = int_to_ptr.vmem [resolvable:$true] %s43
      %46 = dma.hbm_to_vmem [thread:$0]  %s3, 16, %s44, [#allocation5]
    $region17: #{_lambda_.14} parent=1 // pred_fallthru
      _
    // Predicated region
    $region18: #{_lambda_.14} parent=1 // pred_check
      _
    $region19: #{_lambda_.14} parent=1 // pred_check_branch
      %48 = sbr.rel (0) target = $region21
    $region20: #{_lambda_.14} parent=1 // pred_region
      %s50 = ssub.s32 16, 16
      %51 = vsyncadd [#allocation8], %s50
      %s53 = sshll.u32 [#allocation7], 4
      %s54 = int_to_ptr.vmem [resolvable:$true] %s53
      %56 = dma.hbm_to_vmem [thread:$0]  %s4, 16, %s54, [#allocation8]
    $region21: #{_lambda_.14} parent=1 // pred_fallthru
      _
    // Predicated region
    $region22: #{_lambda_.14} parent=1 // pred_check
      _
    $region23: #{_lambda_.14} parent=1 // pred_check_branch
      %58 = sbr.rel (0) target = $region25
    $region24: #{_lambda_.14} parent=1 // pred_region
      %59 = dma.done [#allocation3], 3072
    $region25: #{_lambda_.14} parent=1 // pred_fallthru
      _
    // Predicated region
    $region26: #{_lambda_.14} parent=1 // pred_check
      _
    $region27: #{_lambda_.14} parent=1 // pred_check_branch
      %61 = sbr.rel (0) target = $region29
    $region28: #{_lambda_.14} parent=1 // pred_region
      %62 = dma.done [#allocation5], 16
    $region29: #{_lambda_.14} parent=1 // pred_fallthru
      _
    // Predicated region
    $region30: #{_lambda_.14} parent=1 // pred_check
      _
    $region31: #{_lambda_.14} parent=1 // pred_check_branch
      %64 = sbr.rel (0) target = $region33
    $region32: #{_lambda_.14} parent=1 // pred_region
      %65 = dma.done [#allocation5], 16
    $region33: #{_lambda_.14} parent=1 // pred_fallthru
      _
    // Predicated region
    $region34: #{_lambda_.14} parent=1 // pred_check
      _
    $region35: #{_lambda_.14} parent=1 // pred_check_branch
      %67 = sbr.rel (0) target = $region37
    $region36: #{_lambda_.14} parent=1 // pred_region
      %68 = dma.done [#allocation8], 16
    $region37: #{_lambda_.14} parent=1 // pred_fallthru
      _
    %v69 = vld [vmem:[%s0] sm:$0xff]
    %v70 = vld [vmem:[%s0 + $0x8] sm:$0xff]
    %v71 = vld [vmem:[%s0 + $0x10] sm:$0xff]
    %v72 = vld [vmem:[%s0 + $0x18] sm:$0xff]
    %v73 = vld [vmem:[%s0 + $0x20] sm:$0xff]
    %v74 = vld [vmem:[%s0 + $0x28] sm:$0xff]
    %v75 = vld [vmem:[%s0 + $0x30] sm:$0xff]
    %v76 = vld [vmem:[%s0 + $0x38] sm:$0xff]
    %v77 = vld [vmem:[#allocation2] sm:$0xff]
    %v78 = vld [vmem:[#allocation2 + $0x8] sm:$0xff]
    %v79 = vld [vmem:[#allocation2 + $0x10] sm:$0xff]
    %v80 = vld [vmem:[#allocation2 + $0x18] sm:$0xff]
    %v81 = vld [vmem:[#allocation2 + $0x20] sm:$0xff]
    %v82 = vld [vmem:[#allocation2 + $0x28] sm:$0xff]
    %v83 = vld [vmem:[#allocation2 + $0x30] sm:$0xff]
    %v84 = vld [vmem:[#allocation2 + $0x38] sm:$0xff]
    %v85 = vld [vmem:[#allocation2 + $0x40] sm:$0xff]
    %v86 = vld [vmem:[#allocation2 + $0x48] sm:$0xff]
    %v87 = vld [vmem:[#allocation2 + $0x50] sm:$0xff]
    %v88 = vld [vmem:[#allocation2 + $0x58] sm:$0xff]
    %v89 = vld [vmem:[#allocation2 + $0x60] sm:$0xff]
    %v90 = vld [vmem:[#allocation2 + $0x68] sm:$0xff]
    %v91 = vld [vmem:[#allocation2 + $0x70] sm:$0xff]
    %v92 = vld [vmem:[#allocation2 + $0x78] sm:$0xff]
    %v93 = vld [vmem:[#allocation2 + $0x80] sm:$0xff]
    %v94 = vld [vmem:[#allocation2 + $0x88] sm:$0xff]
    %v95 = vld [vmem:[#allocation2 + $0x90] sm:$0xff]
    %v96 = vld [vmem:[#allocation2 + $0x98] sm:$0xff]
    %v97 = vld [vmem:[#allocation2 + $0xa0] sm:$0xff]
    %v98 = vld [vmem:[#allocation2 + $0xa8] sm:$0xff]
    %v99 = vld [vmem:[#allocation2 + $0xb0] sm:$0xff]
    %v100 = vld [vmem:[#allocation2 + $0xb8] sm:$0xff]
    %v101 = vld [vmem:[#allocation4] sm:$0x1]
    %v103 = vlaneseq
    %v104 = vshrl.u32 %v103, 7
    %v105 = vsub.s32 0, %v104
    %v106 = vrot.slane %v101, %v105
    %vm108 = vcmask 523264
    %v110 = vsel %vm108, %v70, 0
    %v113 = vsel %vm108, %v72, 0
    %v116 = vsel %vm108, %v74, 0
    %v119 = vsel %vm108, %v76, 0
    %121 = vmatprep.subr.mxu0 0.0
    %122 = vmatpush1.msra.mxu0 %v77
    %123 = vmatprep.subr.mxu0 0.0
    %124 = vmatpush1.msra.mxu0 %v78
    %125 = vmatprep.subr.mxu0 0.0
    %126 = vmatpush1.msra.mxu0 %v79
    %127 = vmatprep.subr.mxu0 0.0
    %128 = vmatpush1.msra.mxu0 %v80
    %129 = vmatprep.subr.mxu0 0.0
    %130 = vmatpush1.msra.mxu0 %v81
    %131 = vmatprep.subr.mxu0 0.0
    %132 = vmatpush1.msra.mxu0 %v82
    %133 = vmatprep.subr.mxu0 0.0
    %134 = vmatpush1.msra.mxu0 %v83
    %135 = vmatprep.subr.mxu0 0.0
    %136 = vmatpush1.msra.mxu0 %v84
    %137 = vmatprep.subr.mxu0 0.0
    %138 = vmatpush1.msra.mxu0 %v85
    %139 = vmatprep.subr.mxu0 0.0
    %140 = vmatpush1.msra.mxu0 %v86
    %141 = vmatprep.subr.mxu0 0.0
    %142 = vmatpush1.msra.mxu0 %v87
    %143 = vmatprep.subr.mxu0 0.0
    %144 = vmatpush1.msra.mxu0 %v88
    %145 = vmatprep.subr.mxu0 0.0
    %146 = vmatpush1.msra.mxu0 %v89
    %147 = vmatprep.subr.mxu0 0.0
    %148 = vmatpush1.msra.mxu0 %v90
    %149 = vmatprep.subr.mxu0 0.0
    %150 = vmatpush1.msra.mxu0 %v91
    %151 = vmatprep.subr.mxu0 0.0
    %152 = vmatpush1.msra.mxu0 %v92
    %153 = vmatprep.subr.mxu0 0.0
    %154 = vmatpush1.msra.mxu0 %v93
    %155 = vmatprep.subr.mxu0 0.0
    %156 = vmatpush1.msra.mxu0 %v94
    %157 = vmatprep.subr.mxu0 0.0
    %158 = vmatpush1.msra.mxu0 %v95
    %159 = vmatprep.subr.mxu0 0.0
    %160 = vmatpush1.msra.mxu0 %v96
    %161 = vmatprep.subr.mxu0 0.0
    %162 = vmatpush1.msra.mxu0 %v97
    %163 = vmatprep.subr.mxu0 0.0
    %164 = vmatpush1.msra.mxu0 %v98
    %165 = vmatprep.subr.mxu0 0.0
    %166 = vmatpush1.msra.mxu0 %v99
    %167 = vmatprep.subr.mxu0 0.0
    %168 = vmatpush1.msra.mxu0 %v100
    %169 = vmatprep.subr.mxu0 0.0
    %170 = vmatpush1.msra.mxu0 0.0
    %171 = vmatprep.subr.mxu0 0.0
    %172 = vmatpush1.msra.mxu0 0.0
    %173 = vmatprep.subr.mxu0 0.0
    %174 = vmatpush1.msra.mxu0 0.0
    %175 = vmatprep.subr.mxu0 0.0
    %176 = vmatpush1.msra.mxu0 0.0
    %177 = vmatprep.subr.mxu0 0.0
    %178 = vmatpush1.msra.mxu0 0.0
    %179 = vmatprep.subr.mxu0 0.0
    %180 = vmatpush1.msra.mxu0 0.0
    %181 = vmatprep.subr.mxu0 0.0
    %182 = vmatpush1.msra.mxu0 0.0
    %183 = vmatprep.subr.mxu0 0.0
    %184 = vmatpush1.msra.mxu0 0.0
    %185 = vmatprep.mubr.f32.mxu0 %v110
    %186 = vmatmul.mubr.f32.gmra.mrb[0].mxu0 %v69
    %v187 = vpop.f32.mrb[0].mxu0
    %v188 = vadd.f32 %v106, %v187
    %v189 = vpop.f32.mrb[0].mxu0
    %190 = vmatprep.mubr.f32.mxu0 %v113
    %191 = vmatmul.mubr.f32.gmra.mrb[0].mxu0 %v71
    %v192 = vpop.f32.mrb[0].mxu0
    %v193 = vadd.f32 %v106, %v192
    %v194 = vpop.f32.mrb[0].mxu0
    %195 = vmatprep.mubr.f32.mxu0 %v116
    %196 = vmatmul.mubr.f32.gmra.mrb[0].mxu0 %v73
    %v197 = vpop.f32.mrb[0].mxu0
    %v198 = vadd.f32 %v106, %v197
    %v199 = vpop.f32.mrb[0].mxu0
    %200 = vmatprep.mubr.f32.mxu0 %v119
    %201 = vmatmul.mubr.f32.gmra.mrb[0].mxu0 %v75
    %v202 = vpop.f32.mrb[0].mxu0
    %v203 = vadd.f32 %v106, %v202
    %v204 = vpop.f32.mrb[0].mxu0
    %205 = vdwg.mxu0
    %v206 = vadd.f32 %v188, %v193
    %v207 = vadd.f32 %v206, %v198
    %v208 = vadd.f32 %v207, %v203
    %v209 = vrot.slane %v208, 4
    %v210 = vadd.f32 %v208, %v209
    %v211 = vrot.slane %v210, 2
    %v212 = vadd.f32 %v210, %v211
    %v213 = vrot.slane %v212, 1
    %v214 = vadd.f32 %v212, %v213
    %v215 = vrcp.pop 32.0
    %v216 = vmul.f32 %v214, %v215
    %v217 = vsub.f32 %v188, %v216
    %v218 = vsub.f32 %v193, %v216
    %v219 = vsub.f32 %v198, %v216
    %v220 = vsub.f32 %v203, %v216
    %v221 = vmul.f32 %v217, %v217
    %v222 = vmul.f32 %v218, %v218
    %v223 = vmul.f32 %v219, %v219
    %v224 = vmul.f32 %v220, %v220
    %v225 = vadd.f32 %v221, %v222
    %v226 = vadd.f32 %v225, %v223
    %v227 = vadd.f32 %v226, %v224
    %v228 = vrot.slane %v227, 4
    %v229 = vadd.f32 %v227, %v228
    %v230 = vrot.slane %v229, 2
    %v231 = vadd.f32 %v229, %v230
    %v232 = vrot.slane %v231, 1
    %v233 = vadd.f32 %v231, %v232
    %v234 = vmul.f32 %v233, %v215
    %v235 = vadd.f32 %v234, 1e-05
    %v236 = vrsqrt.pop %v235
    %v237 = vmul.f32 %v217, %v236
    %v238 = vmul.f32 %v218, %v236
    %v239 = vmul.f32 %v219, %v236
    %v240 = vmul.f32 %v220, %v236
    %v241 = vld [vmem:[#allocation6] sm:$0x1]
    %v243 = vlaneseq
    %v244 = vshrl.u32 %v243, 7
    %v245 = vsub.s32 0, %v244
    %v246 = vrot.slane %v241, %v245
    %v248 = vmul.f32 %v237, %v246
    %v249 = vmul.f32 %v238, %v246
    %v250 = vmul.f32 %v239, %v246
    %v251 = vmul.f32 %v240, %v246
    %v252 = vld [vmem:[#allocation7] sm:$0x1]
    %v254 = vlaneseq
    %v255 = vshrl.u32 %v254, 7
    %v256 = vsub.s32 0, %v255
    %v257 = vrot.slane %v252, %v256
    %v259 = vadd.f32 %v248, %v257
    %v260 = vadd.f32 %v249, %v257
    %v261 = vadd.f32 %v250, %v257
    %v262 = vadd.f32 %v251, %v257
    %vm263 = vcmp.ge.f32.partialorder %v259, 0.0
    %vm264 = vcmp.ge.f32.partialorder %v260, 0.0
    %vm265 = vcmp.ge.f32.partialorder %v261, 0.0
    %vm266 = vcmp.ge.f32.partialorder %v262, 0.0
    %v267 = vmul.f32 %v259, 0.01
    %v268 = vmul.f32 %v260, 0.01
    %v269 = vmul.f32 %v261, 0.01
    %v270 = vmul.f32 %v262, 0.01
    %v271 = vsel %vm263, %v259, %v267
    %v272 = vsel %vm264, %v260, %v268
    %v273 = vsel %vm265, %v261, %v269
    %v274 = vsel %vm266, %v262, %v270
    %275 = vst [vmem:[%s5] sm:$0xff] %v271
    %276 = vst [vmem:[%s5 + $0x8] sm:$0xff] %v272
    %277 = vst [vmem:[%s5 + $0x10] sm:$0xff] %v273
    %278 = vst [vmem:[%s5 + $0x18] sm:$0xff] %v274
    // Predicated region
    $region38: #{_lambda_.14} parent=1 // pred_check
      _
    $region39: #{_lambda_.14} parent=1 // pred_check_branch
      %280 = sbr.rel (0) target = $region41
    $region40: #{_lambda_.14} parent=1 // pred_region
      _
    $region41: #{_lambda_.14} parent=1 // pred_fallthru
      _
    // Predicated region
    $region42: #{_lambda_.14} parent=1 // pred_check
      _
    $region43: #{_lambda_.14} parent=1 // pred_check_branch
      %282 = sbr.rel (0) target = $region45
    $region44: #{_lambda_.14} parent=1 // pred_region
      _
    $region45: #{_lambda_.14} parent=1 // pred_fallthru
      _
    %283 = vsyncpa [#allocation3], 1
    %284 = vsyncpa [#allocation5], 1
    %285 = vsyncpa [#allocation8], 1

// kernel: _lambda_.15
$region0: #{_lambda_.15}
  #allocation0 [shape = 'u32[]', space=smem, size = 0x4, offset = 0x4, fixed_abs, tag = 'smem constant byte address 0x4 - core index']
  #allocation1 [shape = 'u32[144,128]{1,0:T(1,128)}', space=vmem, size = 0x12000, scoped, tag = 'internal scratch']
  %s0 = inlined_call_operand.vmem [shape: f32[16,384], index: 0, kind: input, shape index: {}]
  %s1 = inlined_call_operand.vmem [shape: f32[384,256], index: 1, kind: input, shape index: {}]
  %s2 = inlined_call_operand.vmem [shape: f32[1,256], index: 2, kind: input, shape index: {}]
  %s3 = inlined_call_operand.hbm [shape: f32[1,256], index: 3, kind: input, shape index: {}]
  %s4 = inlined_call_operand.hbm [shape: f32[1,256], index: 4, kind: input, shape index: {}]
  %s5 = inlined_call_operand.vmem [shape: f32[16,256], index: 5, kind: output, shape index: {}]
  %s6 = sld [smem:[#allocation0]]
  $region38: #{_lambda_.15} parent=0
    _
  %s8 = ssub.s32 1, %s6
  %s9 = scalar_select 0, %s8, %s6
  $region1: #{_lambda_.15} parent=0
    #allocation2 [shape = 'u8[1024]{0}', space=vmem, size = 0x400, scoped, tag = 'input window, operand 3, single buffered']
    #allocation3 [shape = 's32[1]{0}', space=sflag, size = 0x4, scoped, tag = 'scoped memory for _lambda_.15']
    #allocation4 [shape = 'u8[1024]{0}', space=vmem, size = 0x400, scoped, tag = 'input window, operand 4, single buffered']
    #allocation5 [shape = 's32[1]{0}', space=sflag, size = 0x4, scoped, tag = 'scoped memory for _lambda_.15']
    %10 = vsyncpa [#allocation3], 0
    %11 = vsyncpa [#allocation5], 0
    // Predicated region
    $region2: #{_lambda_.15} parent=1 // pred_check
      _
    $region3: #{_lambda_.15} parent=1 // pred_check_branch
      %13 = sbr.rel (0) target = $region5
    $region4: #{_lambda_.15} parent=1 // pred_region
      _
    $region5: #{_lambda_.15} parent=1 // pred_fallthru
      _
    // Predicated region
    $region6: #{_lambda_.15} parent=1 // pred_check
      _
    $region7: #{_lambda_.15} parent=1 // pred_check_branch
      %15 = sbr.rel (0) target = $region9
    $region8: #{_lambda_.15} parent=1 // pred_region
      _
    $region9: #{_lambda_.15} parent=1 // pred_fallthru
      _
    // Predicated region
    $region10: #{_lambda_.15} parent=1 // pred_check
      _
    $region11: #{_lambda_.15} parent=1 // pred_check_branch
      %17 = sbr.rel (0) target = $region13
    $region12: #{_lambda_.15} parent=1 // pred_region
      _
    $region13: #{_lambda_.15} parent=1 // pred_fallthru
      _
    // Predicated region
    $region14: #{_lambda_.15} parent=1 // pred_check
      _
    $region15: #{_lambda_.15} parent=1 // pred_check_branch
      %19 = sbr.rel (0) target = $region17
    $region16: #{_lambda_.15} parent=1 // pred_region
      %s21 = ssub.s32 32, 32
      %22 = vsyncadd [#allocation3], %s21
      %s24 = sshll.u32 [#allocation2], 4
      %s25 = int_to_ptr.vmem [resolvable:$true] %s24
      %27 = dma.hbm_to_vmem [thread:$0]  %s3, 32, %s25, [#allocation3]
    $region17: #{_lambda_.15} parent=1 // pred_fallthru
      _
    // Predicated region
    $region18: #{_lambda_.15} parent=1 // pred_check
      _
    $region19: #{_lambda_.15} parent=1 // pred_check_branch
      %29 = sbr.rel (0) target = $region21
    $region20: #{_lambda_.15} parent=1 // pred_region
      %s31 = ssub.s32 32, 32
      %32 = vsyncadd [#allocation5], %s31
      %s34 = sshll.u32 [#allocation4], 4
      %s35 = int_to_ptr.vmem [resolvable:$true] %s34
      %37 = dma.hbm_to_vmem [thread:$0]  %s4, 32, %s35, [#allocation5]
    $region21: #{_lambda_.15} parent=1 // pred_fallthru
      _
    // Predicated region
    $region22: #{_lambda_.15} parent=1 // pred_check
      _
    $region23: #{_lambda_.15} parent=1 // pred_check_branch
      %39 = sbr.rel (0) target = $region25
    $region24: #{_lambda_.15} parent=1 // pred_region
      %40 = dma.done [#allocation3], 32
    $region25: #{_lambda_.15} parent=1 // pred_fallthru
      _
    // Predicated region
    $region26: #{_lambda_.15} parent=1 // pred_check
      _
    $region27: #{_lambda_.15} parent=1 // pred_check_branch
      %42 = sbr.rel (0) target = $region29
    $region28: #{_lambda_.15} parent=1 // pred_region
      %43 = dma.done [#allocation5], 32
    $region29: #{_lambda_.15} parent=1 // pred_fallthru
      _
    %v44 = vld [vmem:[%s0] sm:$0xff]
    %v45 = vld [vmem:[%s0 + $0x8] sm:$0xff]
    %v46 = vld [vmem:[%s0 + $0x10] sm:$0xff]
    %v47 = vld [vmem:[%s0 + $0x18] sm:$0xff]
    %v48 = vld [vmem:[%s0 + $0x20] sm:$0xff]
    %v49 = vld [vmem:[%s0 + $0x28] sm:$0xff]
    %v50 = vld [vmem:[%s1] sm:$0xff]
    %v51 = vld [vmem:[%s1 + $0x8] sm:$0xff]
    %v52 = vld [vmem:[%s1 + $0x10] sm:$0xff]
    %v53 = vld [vmem:[%s1 + $0x18] sm:$0xff]
    %v54 = vld [vmem:[%s1 + $0x20] sm:$0xff]
    %v55 = vld [vmem:[%s1 + $0x28] sm:$0xff]
    %v56 = vld [vmem:[%s1 + $0x30] sm:$0xff]
    %v57 = vld [vmem:[%s1 + $0x38] sm:$0xff]
    %v58 = vld [vmem:[%s1 + $0x40] sm:$0xff]
    %v59 = vld [vmem:[%s1 + $0x48] sm:$0xff]
    %v60 = vld [vmem:[%s1 + $0x50] sm:$0xff]
    %v61 = vld [vmem:[%s1 + $0x58] sm:$0xff]
    %v62 = vld [vmem:[%s1 + $0x60] sm:$0xff]
    %v63 = vld [vmem:[%s1 + $0x68] sm:$0xff]
    %v64 = vld [vmem:[%s1 + $0x70] sm:$0xff]
    %v65 = vld [vmem:[%s1 + $0x78] sm:$0xff]
    %v66 = vld [vmem:[%s1 + $0x80] sm:$0xff]
    %v67 = vld [vmem:[%s1 + $0x88] sm:$0xff]
    %v68 = vld [vmem:[%s1 + $0x90] sm:$0xff]
    %v69 = vld [vmem:[%s1 + $0x98] sm:$0xff]
    %v70 = vld [vmem:[%s1 + $0xa0] sm:$0xff]
    %v71 = vld [vmem:[%s1 + $0xa8] sm:$0xff]
    %v72 = vld [vmem:[%s1 + $0xb0] sm:$0xff]
    %v73 = vld [vmem:[%s1 + $0xb8] sm:$0xff]
    %v74 = vld [vmem:[%s1 + $0xc0] sm:$0xff]
    %v75 = vld [vmem:[%s1 + $0xc8] sm:$0xff]
    %v76 = vld [vmem:[%s1 + $0xd0] sm:$0xff]
    %v77 = vld [vmem:[%s1 + $0xd8] sm:$0xff]
    %v78 = vld [vmem:[%s1 + $0xe0] sm:$0xff]
    %v79 = vld [vmem:[%s1 + $0xe8] sm:$0xff]
    %v80 = vld [vmem:[%s1 + $0xf0] sm:$0xff]
    %v81 = vld [vmem:[%s1 + $0xf8] sm:$0xff]
    %v82 = vld [vmem:[%s1 + $0x100] sm:$0xff]
    %v83 = vld [vmem:[%s1 + $0x108] sm:$0xff]
    %v84 = vld [vmem:[%s1 + $0x110] sm:$0xff]
    %v85 = vld [vmem:[%s1 + $0x118] sm:$0xff]
    %v86 = vld [vmem:[%s1 + $0x120] sm:$0xff]
    %v87 = vld [vmem:[%s1 + $0x128] sm:$0xff]
    %v88 = vld [vmem:[%s1 + $0x130] sm:$0xff]
    %v89 = vld [vmem:[%s1 + $0x138] sm:$0xff]
    %v90 = vld [vmem:[%s1 + $0x140] sm:$0xff]
    %v91 = vld [vmem:[%s1 + $0x148] sm:$0xff]
    %v92 = vld [vmem:[%s1 + $0x150] sm:$0xff]
    %v93 = vld [vmem:[%s1 + $0x158] sm:$0xff]
    %v94 = vld [vmem:[%s1 + $0x160] sm:$0xff]
    %v95 = vld [vmem:[%s1 + $0x168] sm:$0xff]
    %v96 = vld [vmem:[%s1 + $0x170] sm:$0xff]
    %v97 = vld [vmem:[%s1 + $0x178] sm:$0xff]
    %v98 = vld [vmem:[%s1 + $0x180] sm:$0xff]
    %v99 = vld [vmem:[%s1 + $0x188] sm:$0xff]
    %v100 = vld [vmem:[%s1 + $0x190] sm:$0xff]
    %v101 = vld [vmem:[%s1 + $0x198] sm:$0xff]
    %v102 = vld [vmem:[%s1 + $0x1a0] sm:$0xff]
    %v103 = vld [vmem:[%s1 + $0x1a8] sm:$0xff]
    %v104 = vld [vmem:[%s1 + $0x1b0] sm:$0xff]
    %v105 = vld [vmem:[%s1 + $0x1b8] sm:$0xff]
    %v106 = vld [vmem:[%s1 + $0x1c0] sm:$0xff]
    %v107 = vld [vmem:[%s1 + $0x1c8] sm:$0xff]
    %v108 = vld [vmem:[%s1 + $0x1d0] sm:$0xff]
    %v109 = vld [vmem:[%s1 + $0x1d8] sm:$0xff]
    %v110 = vld [vmem:[%s1 + $0x1e0] sm:$0xff]
    %v111 = vld [vmem:[%s1 + $0x1e8] sm:$0xff]
    %v112 = vld [vmem:[%s1 + $0x1f0] sm:$0xff]
    %v113 = vld [vmem:[%s1 + $0x1f8] sm:$0xff]
    %v114 = vld [vmem:[%s1 + $0x200] sm:$0xff]
    %v115 = vld [vmem:[%s1 + $0x208] sm:$0xff]
    %v116 = vld [vmem:[%s1 + $0x210] sm:$0xff]
    %v117 = vld [vmem:[%s1 + $0x218] sm:$0xff]
    %v118 = vld [vmem:[%s1 + $0x220] sm:$0xff]
    %v119 = vld [vmem:[%s1 + $0x228] sm:$0xff]
    %v120 = vld [vmem:[%s1 + $0x230] sm:$0xff]
    %v121 = vld [vmem:[%s1 + $0x238] sm:$0xff]
    %v122 = vld [vmem:[%s1 + $0x240] sm:$0xff]
    %v123 = vld [vmem:[%s1 + $0x248] sm:$0xff]
    %v124 = vld [vmem:[%s1 + $0x250] sm:$0xff]
    %v125 = vld [vmem:[%s1 + $0x258] sm:$0xff]
    %v126 = vld [vmem:[%s1 + $0x260] sm:$0xff]
    %v127 = vld [vmem:[%s1 + $0x268] sm:$0xff]
    %v128 = vld [vmem:[%s1 + $0x270] sm:$0xff]
    %v129 = vld [vmem:[%s1 + $0x278] sm:$0xff]
    %v130 = vld [vmem:[%s1 + $0x280] sm:$0xff]
    %v131 = vld [vmem:[%s1 + $0x288] sm:$0xff]
    %v132 = vld [vmem:[%s1 + $0x290] sm:$0xff]
    %v133 = vld [vmem:[%s1 + $0x298] sm:$0xff]
    %v134 = vld [vmem:[%s1 + $0x2a0] sm:$0xff]
    %v135 = vld [vmem:[%s1 + $0x2a8] sm:$0xff]
    %v136 = vld [vmem:[%s1 + $0x2b0] sm:$0xff]
    %v137 = vld [vmem:[%s1 + $0x2b8] sm:$0xff]
    %v138 = vld [vmem:[%s1 + $0x2c0] sm:$0xff]
    %v139 = vld [vmem:[%s1 + $0x2c8] sm:$0xff]
    %v140 = vld [vmem:[%s1 + $0x2d0] sm:$0xff]
    %v141 = vld [vmem:[%s1 + $0x2d8] sm:$0xff]
    %v142 = vld [vmem:[%s1 + $0x2e0] sm:$0xff]
    %v143 = vld [vmem:[%s1 + $0x2e8] sm:$0xff]
    %v144 = vld [vmem:[%s1 + $0x2f0] sm:$0xff]
    %v145 = vld [vmem:[%s1 + $0x2f8] sm:$0xff]
    %v146 = vld [vmem:[%s2] sm:$0x3]
    %v148 = vlaneseq
    %v149 = vshrl.u32 %v148, 7
    %v150 = vsub.s32 0, %v149
    %v151 = vrot.slane %v146, %v150
    %v152 = vlaneseq
    %v153 = vshrl.u32 %v152, 7
    %v154 = vsub.s32 1, %v153
    %v155 = vrot.slane %v146, %v154
    %158 = vmatprep.subr.mxu0 %v51
    %159 = vmatpush1.msra.mxu0 %v50
    %160 = vmatprep.subr.mxu0 %v53
    %161 = vmatpush1.msra.mxu0 %v52
    %162 = vmatprep.subr.mxu0 %v55
    %163 = vmatpush1.msra.mxu0 %v54
    %164 = vmatprep.subr.mxu0 %v57
    %165 = vmatpush1.msra.mxu0 %v56
    %166 = vmatprep.subr.mxu0 %v59
    %167 = vmatpush1.msra.mxu0 %v58
    %168 = vmatprep.subr.mxu0 %v61
    %169 = vmatpush1.msra.mxu0 %v60
    %170 = vmatprep.subr.mxu0 %v63
    %171 = vmatpush1.msra.mxu0 %v62
    %172 = vmatprep.subr.mxu0 %v65
    %173 = vmatpush1.msra.mxu0 %v64
    %174 = vmatprep.subr.mxu0 %v67
    %175 = vmatpush1.msra.mxu0 %v66
    %176 = vmatprep.subr.mxu0 %v69
    %177 = vmatpush1.msra.mxu0 %v68
    %178 = vmatprep.subr.mxu0 %v71
    %179 = vmatpush1.msra.mxu0 %v70
    %180 = vmatprep.subr.mxu0 %v73
    %181 = vmatpush1.msra.mxu0 %v72
    %182 = vmatprep.subr.mxu0 %v75
    %183 = vmatpush1.msra.mxu0 %v74
    %184 = vmatprep.subr.mxu0 %v77
    %185 = vmatpush1.msra.mxu0 %v76
    %186 = vmatprep.subr.mxu0 %v79
    %187 = vmatpush1.msra.mxu0 %v78
    %188 = vmatprep.subr.mxu0 %v81
    %189 = vmatpush1.msra.mxu0 %v80
    %190 = vmatprep.subr.mxu0 %v83
    %191 = vmatpush1.msra.mxu0 %v82
    %192 = vmatprep.subr.mxu0 %v85
    %193 = vmatpush1.msra.mxu0 %v84
    %194 = vmatprep.subr.mxu0 %v87
    %195 = vmatpush1.msra.mxu0 %v86
    %196 = vmatprep.subr.mxu0 %v89
    %197 = vmatpush1.msra.mxu0 %v88
    %198 = vmatprep.subr.mxu0 %v91
    %199 = vmatpush1.msra.mxu0 %v90
    %200 = vmatprep.subr.mxu0 %v93
    %201 = vmatpush1.msra.mxu0 %v92
    %202 = vmatprep.subr.mxu0 %v95
    %203 = vmatpush1.msra.mxu0 %v94
    %204 = vmatprep.subr.mxu0 %v97
    %205 = vmatpush1.msra.mxu0 %v96
    %206 = vmatprep.subr.mxu0 %v99
    %207 = vmatpush1.msra.mxu0 %v98
    %208 = vmatprep.subr.mxu0 %v101
    %209 = vmatpush1.msra.mxu0 %v100
    %210 = vmatprep.subr.mxu0 %v103
    %211 = vmatpush1.msra.mxu0 %v102
    %212 = vmatprep.subr.mxu0 %v105
    %213 = vmatpush1.msra.mxu0 %v104
    %214 = vmatprep.subr.mxu0 %v107
    %215 = vmatpush1.msra.mxu0 %v106
    %216 = vmatprep.subr.mxu0 %v109
    %217 = vmatpush1.msra.mxu0 %v108
    %218 = vmatprep.subr.mxu0 %v111
    %219 = vmatpush1.msra.mxu0 %v110
    %220 = vmatprep.subr.mxu0 %v113
    %221 = vmatpush1.msra.mxu0 %v112
    %222 = vmatprep.mubr.f32.mxu0 %v45
    %223 = vmatmul.mubr.f32.gmra.mrb[0].mxu0 %v44
    %v224 = vpop.f32.mrb[0].mxu0
    %v225 = vadd.f32 %v151, %v224
    %v226 = vpop.f32.mrb[0].mxu0
    %v227 = vadd.f32 %v155, %v226
    %228 = vmatprep.mubr.f32.mxu0 %v48
    %229 = vmatmul.mubr.f32.gmra.mrb[0].mxu0 %v47
    %v230 = vpop.f32.mrb[0].mxu0
    %v231 = vadd.f32 %v151, %v230
    %v232 = vpop.f32.mrb[0].mxu0
    %v233 = vadd.f32 %v155, %v232
    %234 = vdwg.mxu0
    %235 = vmatprep.subr.mxu0 %v115
    %236 = vmatpush1.msra.mxu0 %v114
    %237 = vmatprep.subr.mxu0 %v117
    %238 = vmatpush1.msra.mxu0 %v116
    %239 = vmatprep.subr.mxu0 %v119
    %240 = vmatpush1.msra.mxu0 %v118
    %241 = vmatprep.subr.mxu0 %v121
    %242 = vmatpush1.msra.mxu0 %v120
    %243 = vmatprep.subr.mxu0 %v123
    %244 = vmatpush1.msra.mxu0 %v122
    %245 = vmatprep.subr.mxu0 %v125
    %246 = vmatpush1.msra.mxu0 %v124
    %247 = vmatprep.subr.mxu0 %v127
    %248 = vmatpush1.msra.mxu0 %v126
    %249 = vmatprep.subr.mxu0 %v129
    %250 = vmatpush1.msra.mxu0 %v128
    %251 = vmatprep.subr.mxu0 %v131
    %252 = vmatpush1.msra.mxu0 %v130
    %253 = vmatprep.subr.mxu0 %v133
    %254 = vmatpush1.msra.mxu0 %v132
    %255 = vmatprep.subr.mxu0 %v135
    %256 = vmatpush1.msra.mxu0 %v134
    %257 = vmatprep.subr.mxu0 %v137
    %258 = vmatpush1.msra.mxu0 %v136
    %259 = vmatprep.subr.mxu0 %v139
    %260 = vmatpush1.msra.mxu0 %v138
    %261 = vmatprep.subr.mxu0 %v141
    %262 = vmatpush1.msra.mxu0 %v140
    %263 = vmatprep.subr.mxu0 %v143
    %264 = vmatpush1.msra.mxu0 %v142
    %265 = vmatprep.subr.mxu0 %v145
    %266 = vmatpush1.msra.mxu0 %v144
    %267 = vmatprep.subr.mxu0 0.0
    %268 = vmatpush1.msra.mxu0 0.0
    %269 = vmatprep.subr.mxu0 0.0
    %270 = vmatpush1.msra.mxu0 0.0
    %271 = vmatprep.subr.mxu0 0.0
    %272 = vmatpush1.msra.mxu0 0.0
    %273 = vmatprep.subr.mxu0 0.0
    %274 = vmatpush1.msra.mxu0 0.0
    %275 = vmatprep.subr.mxu0 0.0
    %276 = vmatpush1.msra.mxu0 0.0
    %277 = vmatprep.subr.mxu0 0.0
    %278 = vmatpush1.msra.mxu0 0.0
    %279 = vmatprep.subr.mxu0 0.0
    %280 = vmatpush1.msra.mxu0 0.0
    %281 = vmatprep.subr.mxu0 0.0
    %282 = vmatpush1.msra.mxu0 0.0
    %283 = vmatprep.subr.mxu0 0.0
    %284 = vmatpush1.msra.mxu0 0.0
    %285 = vmatprep.subr.mxu0 0.0
    %286 = vmatpush1.msra.mxu0 0.0
    %287 = vmatprep.subr.mxu0 0.0
    %288 = vmatpush1.msra.mxu0 0.0
    %289 = vmatprep.subr.mxu0 0.0
    %290 = vmatpush1.msra.mxu0 0.0
    %291 = vmatprep.subr.mxu0 0.0
    %292 = vmatpush1.msra.mxu0 0.0
    %293 = vmatprep.subr.mxu0 0.0
    %294 = vmatpush1.msra.mxu0 0.0
    %295 = vmatprep.subr.mxu0 0.0
    %296 = vmatpush1.msra.mxu0 0.0
    %297 = vmatprep.subr.mxu0 0.0
    %298 = vmatpush1.msra.mxu0 0.0
    %299 = vmatprep.mubr.f32.mxu0 0.0
    %300 = vmatmul.mubr.f32.gmra.mrb[0].mxu0 %v46
    %v301 = vpop.f32.mrb[0].mxu0
    %v302 = vadd.f32 %v225, %v301
    %v303 = vpop.f32.mrb[0].mxu0
    %v304 = vadd.f32 %v227, %v303
    %305 = vmatprep.mubr.f32.mxu0 0.0
    %306 = vmatmul.mubr.f32.gmra.mrb[0].mxu0 %v49
    %v307 = vpop.f32.mrb[0].mxu0
    %v308 = vadd.f32 %v231, %v307
    %v309 = vpop.f32.mrb[0].mxu0
    %v310 = vadd.f32 %v233, %v309
    %311 = vdwg.mxu0
    %v312 = vadd.f32 %v302, %v308
    %v313 = vrot.slane %v312, 4
    %v314 = vadd.f32 %v312, %v313
    %v315 = vrot.slane %v314, 2
    %v316 = vadd.f32 %v314, %v315
    %v317 = vrot.slane %v316, 1
    %v318 = vadd.f32 %v316, %v317
    %v319 = vadd.f32 %v304, %v310
    %v320 = vrot.slane %v319, 4
    %v321 = vadd.f32 %v319, %v320
    %v322 = vrot.slane %v321, 2
    %v323 = vadd.f32 %v321, %v322
    %v324 = vrot.slane %v323, 1
    %v325 = vadd.f32 %v323, %v324
    %v326 = vrcp.pop 16.0
    %v327 = vmul.f32 %v318, %v326
    %v328 = vmul.f32 %v325, %v326
    %v329 = vsub.f32 %v302, %v327
    %v330 = vsub.f32 %v304, %v328
    %v331 = vsub.f32 %v308, %v327
    %v332 = vsub.f32 %v310, %v328
    %v333 = vmul.f32 %v329, %v329
    %v334 = vmul.f32 %v330, %v330
    %v335 = vmul.f32 %v331, %v331
    %v336 = vmul.f32 %v332, %v332
    %v337 = vadd.f32 %v333, %v335
    %v338 = vrot.slane %v337, 4
    %v339 = vadd.f32 %v337, %v338
    %v340 = vrot.slane %v339, 2
    %v341 = vadd.f32 %v339, %v340
    %v342 = vrot.slane %v341, 1
    %v343 = vadd.f32 %v341, %v342
    %v344 = vadd.f32 %v334, %v336
    %v345 = vrot.slane %v344, 4
    %v346 = vadd.f32 %v344, %v345
    %v347 = vrot.slane %v346, 2
    %v348 = vadd.f32 %v346, %v347
    %v349 = vrot.slane %v348, 1
    %v350 = vadd.f32 %v348, %v349
    %v351 = vmul.f32 %v343, %v326
    %v352 = vmul.f32 %v350, %v326
    %v353 = vadd.f32 %v351, 1e-05
    %v354 = vadd.f32 %v352, 1e-05
    %v355 = vrsqrt.pop %v353
    %v356 = vrsqrt.pop %v354
    %v357 = vmul.f32 %v329, %v355
    %v358 = vmul.f32 %v330, %v356
    %v359 = vmul.f32 %v331, %v355
    %v360 = vmul.f32 %v332, %v356
    %v361 = vld [vmem:[#allocation2] sm:$0x3]
    %v363 = vlaneseq
    %v364 = vshrl.u32 %v363, 7
    %v365 = vsub.s32 0, %v364
    %v366 = vrot.slane %v361, %v365
    %v367 = vlaneseq
    %v368 = vshrl.u32 %v367, 7
    %v369 = vsub.s32 1, %v368
    %v370 = vrot.slane %v361, %v369
    %v373 = vmul.f32 %v357, %v366
    %v374 = vmul.f32 %v358, %v370
    %v375 = vmul.f32 %v359, %v366
    %v376 = vmul.f32 %v360, %v370
    %v377 = vld [vmem:[#allocation4] sm:$0x3]
    %v379 = vlaneseq
    %v380 = vshrl.u32 %v379, 7
    %v381 = vsub.s32 0, %v380
    %v382 = vrot.slane %v377, %v381
    %v383 = vlaneseq
    %v384 = vshrl.u32 %v383, 7
    %v385 = vsub.s32 1, %v384
    %v386 = vrot.slane %v377, %v385
    %v389 = vadd.f32 %v373, %v382
    %v390 = vadd.f32 %v374, %v386
    %v391 = vadd.f32 %v375, %v382
    %v392 = vadd.f32 %v376, %v386
    %vm393 = vcmp.ge.f32.partialorder %v389, 0.0
    %vm394 = vcmp.ge.f32.partialorder %v390, 0.0
    %vm395 = vcmp.ge.f32.partialorder %v391, 0.0
    %vm396 = vcmp.ge.f32.partialorder %v392, 0.0
    %v397 = vmul.f32 %v389, 0.01
    %v398 = vmul.f32 %v390, 0.01
    %v399 = vmul.f32 %v391, 0.01
    %v400 = vmul.f32 %v392, 0.01
    %v401 = vsel %vm393, %v389, %v397
    %v402 = vsel %vm394, %v390, %v398
    %v403 = vsel %vm395, %v391, %v399
    %v404 = vsel %vm396, %v392, %v400
    %405 = vst [vmem:[%s5] sm:$0xff] %v401
    %406 = vst [vmem:[%s5 + $0x8] sm:$0xff] %v402
    %407 = vst [vmem:[%s5 + $0x10] sm:$0xff] %v403
    %408 = vst [vmem:[%s5 + $0x18] sm:$0xff] %v404
    // Predicated region
    $region30: #{_lambda_.15} parent=1 // pred_check
      _
    $region31: #{_lambda_.15} parent=1 // pred_check_branch
      %410 = sbr.rel (0) target = $region33
    $region32: #{_lambda_.15} parent=1 // pred_region
      _
    $region33: #{_lambda_.15} parent=1 // pred_fallthru
      _
    // Predicated region
    $region34: #{_lambda_.15} parent=1 // pred_check
      _
    $region35: #{_lambda_.15} parent=1 // pred_check_branch
      %412 = sbr.rel (0) target = $region37
    $region36: #{_lambda_.15} parent=1 // pred_region
      _
    $region37: #{_lambda_.15} parent=1 // pred_fallthru
      _
    %413 = vsyncpa [#allocation3], 1
    %414 = vsyncpa [#allocation5], 1

// kernel: _lambda_.16
$region0: #{_lambda_.16}
  #allocation0 [shape = 'u32[]', space=smem, size = 0x4, offset = 0x4, fixed_abs, tag = 'smem constant byte address 0x4 - core index']
  #allocation1 [shape = 'u32[144,128]{1,0:T(1,128)}', space=vmem, size = 0x12000, scoped, tag = 'internal scratch']
  %s0 = inlined_call_operand.vmem [shape: f32[8,768], index: 0, kind: input, shape index: {}]
  %s1 = inlined_call_operand.vmem [shape: f32[768,512], index: 1, kind: input, shape index: {}]
  %s2 = inlined_call_operand.vmem [shape: f32[1,512], index: 2, kind: input, shape index: {}]
  %s3 = inlined_call_operand.vmem [shape: f32[1,512], index: 3, kind: input, shape index: {}]
  %s4 = inlined_call_operand.vmem [shape: f32[1,512], index: 4, kind: input, shape index: {}]
  %s5 = inlined_call_operand.vmem [shape: f32[8,512], index: 5, kind: output, shape index: {}]
  %s6 = sld [smem:[#allocation0]]
  $region30: #{_lambda_.16} parent=0
    _
  %s8 = ssub.s32 1, %s6
  %s9 = scalar_select 0, %s8, %s6
  // Predicated region
  $region2: #{_lambda_.16} parent=0 // pred_check
    _
  $region3: #{_lambda_.16} parent=0 // pred_check_branch
    %11 = sbr.rel (0) target = $region5
  $region4: #{_lambda_.16} parent=0 // pred_region
    _
  $region5: #{_lambda_.16} parent=0 // pred_fallthru
    _
  // Predicated region
  $region6: #{_lambda_.16} parent=0 // pred_check
    _
  $region7: #{_lambda_.16} parent=0 // pred_check_branch
    %13 = sbr.rel (0) target = $region9
  $region8: #{_lambda_.16} parent=0 // pred_region
    _
  $region9: #{_lambda_.16} parent=0 // pred_fallthru
    _
  // Predicated region
  $region10: #{_lambda_.16} parent=0 // pred_check
    _
  $region11: #{_lambda_.16} parent=0 // pred_check_branch
    %15 = sbr.rel (0) target = $region13
  $region12: #{_lambda_.16} parent=0 // pred_region
    _
  $region13: #{_lambda_.16} parent=0 // pred_fallthru
    _
  // Predicated region
  $region14: #{_lambda_.16} parent=0 // pred_check
    _
  $region15: #{_lambda_.16} parent=0 // pred_check_branch
    %17 = sbr.rel (0) target = $region17
  $region16: #{_lambda_.16} parent=0 // pred_region
    _
  $region17: #{_lambda_.16} parent=0 // pred_fallthru
    _
  // Predicated region
  $region18: #{_lambda_.16} parent=0 // pred_check
    _
  $region19: #{_lambda_.16} parent=0 // pred_check_branch
    %19 = sbr.rel (0) target = $region21
  $region20: #{_lambda_.16} parent=0 // pred_region
    _
  $region21: #{_lambda_.16} parent=0 // pred_fallthru
    _
  %v20 = vld [vmem:[%s0] sm:$0xff]
  %v21 = vld [vmem:[%s0 + $0x8] sm:$0xff]
  %v22 = vld [vmem:[%s0 + $0x10] sm:$0xff]
  %v23 = vld [vmem:[%s0 + $0x18] sm:$0xff]
  %v24 = vld [vmem:[%s0 + $0x20] sm:$0xff]
  %v25 = vld [vmem:[%s0 + $0x28] sm:$0xff]
  %v26 = vld [vmem:[%s1] sm:$0xff]
  %v27 = vld [vmem:[%s1 + $0x8] sm:$0xff]
  %v28 = vld [vmem:[%s1 + $0x10] sm:$0xff]
  %v29 = vld [vmem:[%s1 + $0x18] sm:$0xff]
  %v30 = vld [vmem:[%s1 + $0x20] sm:$0xff]
  %v31 = vld [vmem:[%s1 + $0x28] sm:$0xff]
  %v32 = vld [vmem:[%s1 + $0x30] sm:$0xff]
  %v33 = vld [vmem:[%s1 + $0x38] sm:$0xff]
  %v34 = vld [vmem:[%s1 + $0x40] sm:$0xff]
  %v35 = vld [vmem:[%s1 + $0x48] sm:$0xff]
  %v36 = vld [vmem:[%s1 + $0x50] sm:$0xff]
  %v37 = vld [vmem:[%s1 + $0x58] sm:$0xff]
  %v38 = vld [vmem:[%s1 + $0x60] sm:$0xff]
  %v39 = vld [vmem:[%s1 + $0x68] sm:$0xff]
  %v40 = vld [vmem:[%s1 + $0x70] sm:$0xff]
  %v41 = vld [vmem:[%s1 + $0x78] sm:$0xff]
  %v42 = vld [vmem:[%s1 + $0x80] sm:$0xff]
  %v43 = vld [vmem:[%s1 + $0x88] sm:$0xff]
  %v44 = vld [vmem:[%s1 + $0x90] sm:$0xff]
  %v45 = vld [vmem:[%s1 + $0x98] sm:$0xff]
  %v46 = vld [vmem:[%s1 + $0xa0] sm:$0xff]
  %v47 = vld [vmem:[%s1 + $0xa8] sm:$0xff]
  %v48 = vld [vmem:[%s1 + $0xb0] sm:$0xff]
  %v49 = vld [vmem:[%s1 + $0xb8] sm:$0xff]
  %v50 = vld [vmem:[%s1 + $0xc0] sm:$0xff]
  %v51 = vld [vmem:[%s1 + $0xc8] sm:$0xff]
  %v52 = vld [vmem:[%s1 + $0xd0] sm:$0xff]
  %v53 = vld [vmem:[%s1 + $0xd8] sm:$0xff]
  %v54 = vld [vmem:[%s1 + $0xe0] sm:$0xff]
  %v55 = vld [vmem:[%s1 + $0xe8] sm:$0xff]
  %v56 = vld [vmem:[%s1 + $0xf0] sm:$0xff]
  %v57 = vld [vmem:[%s1 + $0xf8] sm:$0xff]
  %v58 = vld [vmem:[%s1 + $0x100] sm:$0xff]
  %v59 = vld [vmem:[%s1 + $0x108] sm:$0xff]
  %v60 = vld [vmem:[%s1 + $0x110] sm:$0xff]
  %v61 = vld [vmem:[%s1 + $0x118] sm:$0xff]
  %v62 = vld [vmem:[%s1 + $0x120] sm:$0xff]
  %v63 = vld [vmem:[%s1 + $0x128] sm:$0xff]
  %v64 = vld [vmem:[%s1 + $0x130] sm:$0xff]
  %v65 = vld [vmem:[%s1 + $0x138] sm:$0xff]
  %v66 = vld [vmem:[%s1 + $0x140] sm:$0xff]
  %v67 = vld [vmem:[%s1 + $0x148] sm:$0xff]
  %v68 = vld [vmem:[%s1 + $0x150] sm:$0xff]
  %v69 = vld [vmem:[%s1 + $0x158] sm:$0xff]
  %v70 = vld [vmem:[%s1 + $0x160] sm:$0xff]
  %v71 = vld [vmem:[%s1 + $0x168] sm:$0xff]
  %v72 = vld [vmem:[%s1 + $0x170] sm:$0xff]
  %v73 = vld [vmem:[%s1 + $0x178] sm:$0xff]
  %v74 = vld [vmem:[%s1 + $0x180] sm:$0xff]
  %v75 = vld [vmem:[%s1 + $0x188] sm:$0xff]
  %v76 = vld [vmem:[%s1 + $0x190] sm:$0xff]
  %v77 = vld [vmem:[%s1 + $0x198] sm:$0xff]
  %v78 = vld [vmem:[%s1 + $0x1a0] sm:$0xff]
  %v79 = vld [vmem:[%s1 + $0x1a8] sm:$0xff]
  %v80 = vld [vmem:[%s1 + $0x1b0] sm:$0xff]
  %v81 = vld [vmem:[%s1 + $0x1b8] sm:$0xff]
  %v82 = vld [vmem:[%s1 + $0x1c0] sm:$0xff]
  %v83 = vld [vmem:[%s1 + $0x1c8] sm:$0xff]
  %v84 = vld [vmem:[%s1 + $0x1d0] sm:$0xff]
  %v85 = vld [vmem:[%s1 + $0x1d8] sm:$0xff]
  %v86 = vld [vmem:[%s1 + $0x1e0] sm:$0xff]
  %v87 = vld [vmem:[%s1 + $0x1e8] sm:$0xff]
  %v88 = vld [vmem:[%s1 + $0x1f0] sm:$0xff]
  %v89 = vld [vmem:[%s1 + $0x1f8] sm:$0xff]
  %v90 = vld [vmem:[%s1 + $0x200] sm:$0xff]
  %v91 = vld [vmem:[%s1 + $0x208] sm:$0xff]
  %v92 = vld [vmem:[%s1 + $0x210] sm:$0xff]
  %v93 = vld [vmem:[%s1 + $0x218] sm:$0xff]
  %v94 = vld [vmem:[%s1 + $0x220] sm:$0xff]
  %v95 = vld [vmem:[%s1 + $0x228] sm:$0xff]
  %v96 = vld [vmem:[%s1 + $0x230] sm:$0xff]
  %v97 = vld [vmem:[%s1 + $0x238] sm:$0xff]
  %v98 = vld [vmem:[%s1 + $0x240] sm:$0xff]
  %v99 = vld [vmem:[%s1 + $0x248] sm:$0xff]
  %v100 = vld [vmem:[%s1 + $0x250] sm:$0xff]
  %v101 = vld [vmem:[%s1 + $0x258] sm:$0xff]
  %v102 = vld [vmem:[%s1 + $0x260] sm:$0xff]
  %v103 = vld [vmem:[%s1 + $0x268] sm:$0xff]
  %v104 = vld [vmem:[%s1 + $0x270] sm:$0xff]
  %v105 = vld [vmem:[%s1 + $0x278] sm:$0xff]
  %v106 = vld [vmem:[%s1 + $0x280] sm:$0xff]
  %v107 = vld [vmem:[%s1 + $0x288] sm:$0xff]
  %v108 = vld [vmem:[%s1 + $0x290] sm:$0xff]
  %v109 = vld [vmem:[%s1 + $0x298] sm:$0xff]
  %v110 = vld [vmem:[%s1 + $0x2a0] sm:$0xff]
  %v111 = vld [vmem:[%s1 + $0x2a8] sm:$0xff]
  %v112 = vld [vmem:[%s1 + $0x2b0] sm:$0xff]
  %v113 = vld [vmem:[%s1 + $0x2b8] sm:$0xff]
  %v114 = vld [vmem:[%s1 + $0x2c0] sm:$0xff]
  %v115 = vld [vmem:[%s1 + $0x2c8] sm:$0xff]
  %v116 = vld [vmem:[%s1 + $0x2d0] sm:$0xff]
  %v117 = vld [vmem:[%s1 + $0x2d8] sm:$0xff]
  %v118 = vld [vmem:[%s1 + $0x2e0] sm:$0xff]
  %v119 = vld [vmem:[%s1 + $0x2e8] sm:$0xff]
  %v120 = vld [vmem:[%s1 + $0x2f0] sm:$0xff]
  %v121 = vld [vmem:[%s1 + $0x2f8] sm:$0xff]
  %v122 = vld [vmem:[%s1 + $0x300] sm:$0xff]
  %v123 = vld [vmem:[%s1 + $0x308] sm:$0xff]
  %v124 = vld [vmem:[%s1 + $0x310] sm:$0xff]
  %v125 = vld [vmem:[%s1 + $0x318] sm:$0xff]
  %v126 = vld [vmem:[%s1 + $0x320] sm:$0xff]
  %v127 = vld [vmem:[%s1 + $0x328] sm:$0xff]
  %v128 = vld [vmem:[%s1 + $0x330] sm:$0xff]
  %v129 = vld [vmem:[%s1 + $0x338] sm:$0xff]
  %v130 = vld [vmem:[%s1 + $0x340] sm:$0xff]
  %v131 = vld [vmem:[%s1 + $0x348] sm:$0xff]
  %v132 = vld [vmem:[%s1 + $0x350] sm:$0xff]
  %v133 = vld [vmem:[%s1 + $0x358] sm:$0xff]
  %v134 = vld [vmem:[%s1 + $0x360] sm:$0xff]
  %v135 = vld [vmem:[%s1 + $0x368] sm:$0xff]
  %v136 = vld [vmem:[%s1 + $0x370] sm:$0xff]
  %v137 = vld [vmem:[%s1 + $0x378] sm:$0xff]
  %v138 = vld [vmem:[%s1 + $0x380] sm:$0xff]
  %v139 = vld [vmem:[%s1 + $0x388] sm:$0xff]
  %v140 = vld [vmem:[%s1 + $0x390] sm:$0xff]
  %v141 = vld [vmem:[%s1 + $0x398] sm:$0xff]
  %v142 = vld [vmem:[%s1 + $0x3a0] sm:$0xff]
  %v143 = vld [vmem:[%s1 + $0x3a8] sm:$0xff]
  %v144 = vld [vmem:[%s1 + $0x3b0] sm:$0xff]
  %v145 = vld [vmem:[%s1 + $0x3b8] sm:$0xff]
  %v146 = vld [vmem:[%s1 + $0x3c0] sm:$0xff]
  %v147 = vld [vmem:[%s1 + $0x3c8] sm:$0xff]
  %v148 = vld [vmem:[%s1 + $0x3d0] sm:$0xff]
  %v149 = vld [vmem:[%s1 + $0x3d8] sm:$0xff]
  %v150 = vld [vmem:[%s1 + $0x3e0] sm:$0xff]
  %v151 = vld [vmem:[%s1 + $0x3e8] sm:$0xff]
  %v152 = vld [vmem:[%s1 + $0x3f0] sm:$0xff]
  %v153 = vld [vmem:[%s1 + $0x3f8] sm:$0xff]
  %v154 = vld [vmem:[%s1 + $0x400] sm:$0xff]
  %v155 = vld [vmem:[%s1 + $0x408] sm:$0xff]
  %v156 = vld [vmem:[%s1 + $0x410] sm:$0xff]
  %v157 = vld [vmem:[%s1 + $0x418] sm:$0xff]
  %v158 = vld [vmem:[%s1 + $0x420] sm:$0xff]
  %v159 = vld [vmem:[%s1 + $0x428] sm:$0xff]
  %v160 = vld [vmem:[%s1 + $0x430] sm:$0xff]
  %v161 = vld [vmem:[%s1 + $0x438] sm:$0xff]
  %v162 = vld [vmem:[%s1 + $0x440] sm:$0xff]
  %v163 = vld [vmem:[%s1 + $0x448] sm:$0xff]
  %v164 = vld [vmem:[%s1 + $0x450] sm:$0xff]
  %v165 = vld [vmem:[%s1 + $0x458] sm:$0xff]
  %v166 = vld [vmem:[%s1 + $0x460] sm:$0xff]
  %v167 = vld [vmem:[%s1 + $0x468] sm:$0xff]
  %v168 = vld [vmem:[%s1 + $0x470] sm:$0xff]
  %v169 = vld [vmem:[%s1 + $0x478] sm:$0xff]
  %v170 = vld [vmem:[%s1 + $0x480] sm:$0xff]
  %v171 = vld [vmem:[%s1 + $0x488] sm:$0xff]
  %v172 = vld [vmem:[%s1 + $0x490] sm:$0xff]
  %v173 = vld [vmem:[%s1 + $0x498] sm:$0xff]
  %v174 = vld [vmem:[%s1 + $0x4a0] sm:$0xff]
  %v175 = vld [vmem:[%s1 + $0x4a8] sm:$0xff]
  %v176 = vld [vmem:[%s1 + $0x4b0] sm:$0xff]
  %v177 = vld [vmem:[%s1 + $0x4b8] sm:$0xff]
  %v178 = vld [vmem:[%s1 + $0x4c0] sm:$0xff]
  %v179 = vld [vmem:[%s1 + $0x4c8] sm:$0xff]
  %v180 = vld [vmem:[%s1 + $0x4d0] sm:$0xff]
  %v181 = vld [vmem:[%s1 + $0x4d8] sm:$0xff]
  %v182 = vld [vmem:[%s1 + $0x4e0] sm:$0xff]
  %v183 = vld [vmem:[%s1 + $0x4e8] sm:$0xff]
  %v184 = vld [vmem:[%s1 + $0x4f0] sm:$0xff]
  %v185 = vld [vmem:[%s1 + $0x4f8] sm:$0xff]
  %v186 = vld [vmem:[%s1 + $0x500] sm:$0xff]
  %v187 = vld [vmem:[%s1 + $0x508] sm:$0xff]
  %v188 = vld [vmem:[%s1 + $0x510] sm:$0xff]
  %v189 = vld [vmem:[%s1 + $0x518] sm:$0xff]
  %v190 = vld [vmem:[%s1 + $0x520] sm:$0xff]
  %v191 = vld [vmem:[%s1 + $0x528] sm:$0xff]
  %v192 = vld [vmem:[%s1 + $0x530] sm:$0xff]
  %v193 = vld [vmem:[%s1 + $0x538] sm:$0xff]
  %v194 = vld [vmem:[%s1 + $0x540] sm:$0xff]
  %v195 = vld [vmem:[%s1 + $0x548] sm:$0xff]
  %v196 = vld [vmem:[%s1 + $0x550] sm:$0xff]
  %v197 = vld [vmem:[%s1 + $0x558] sm:$0xff]
  %v198 = vld [vmem:[%s1 + $0x560] sm:$0xff]
  %v199 = vld [vmem:[%s1 + $0x568] sm:$0xff]
  %v200 = vld [vmem:[%s1 + $0x570] sm:$0xff]
  %v201 = vld [vmem:[%s1 + $0x578] sm:$0xff]
  %v202 = vld [vmem:[%s1 + $0x580] sm:$0xff]
  %v203 = vld [vmem:[%s1 + $0x588] sm:$0xff]
  %v204 = vld [vmem:[%s1 + $0x590] sm:$0xff]
  %v205 = vld [vmem:[%s1 + $0x598] sm:$0xff]
  %v206 = vld [vmem:[%s1 + $0x5a0] sm:$0xff]
  %v207 = vld [vmem:[%s1 + $0x5a8] sm:$0xff]
  %v208 = vld [vmem:[%s1 + $0x5b0] sm:$0xff]
  %v209 = vld [vmem:[%s1 + $0x5b8] sm:$0xff]
  %v210 = vld [vmem:[%s1 + $0x5c0] sm:$0xff]
  %v211 = vld [vmem:[%s1 + $0x5c8] sm:$0xff]
  %v212 = vld [vmem:[%s1 + $0x5d0] sm:$0xff]
  %v213 = vld [vmem:[%s1 + $0x5d8] sm:$0xff]
  %v214 = vld [vmem:[%s1 + $0x5e0] sm:$0xff]
  %v215 = vld [vmem:[%s1 + $0x5e8] sm:$0xff]
  %v216 = vld [vmem:[%s1 + $0x5f0] sm:$0xff]
  %v217 = vld [vmem:[%s1 + $0x5f8] sm:$0xff]
  %v218 = vld [vmem:[%s1 + $0x600] sm:$0xff]
  %v219 = vld [vmem:[%s1 + $0x608] sm:$0xff]
  %v220 = vld [vmem:[%s1 + $0x610] sm:$0xff]
  %v221 = vld [vmem:[%s1 + $0x618] sm:$0xff]
  %v222 = vld [vmem:[%s1 + $0x620] sm:$0xff]
  %v223 = vld [vmem:[%s1 + $0x628] sm:$0xff]
  %v224 = vld [vmem:[%s1 + $0x630] sm:$0xff]
  %v225 = vld [vmem:[%s1 + $0x638] sm:$0xff]
  %v226 = vld [vmem:[%s1 + $0x640] sm:$0xff]
  %v227 = vld [vmem:[%s1 + $0x648] sm:$0xff]
  %v228 = vld [vmem:[%s1 + $0x650] sm:$0xff]
  %v229 = vld [vmem:[%s1 + $0x658] sm:$0xff]
  %v230 = vld [vmem:[%s1 + $0x660] sm:$0xff]
  %v231 = vld [vmem:[%s1 + $0x668] sm:$0xff]
  %v232 = vld [vmem:[%s1 + $0x670] sm:$0xff]
  %v233 = vld [vmem:[%s1 + $0x678] sm:$0xff]
  %v234 = vld [vmem:[%s1 + $0x680] sm:$0xff]
  %v235 = vld [vmem:[%s1 + $0x688] sm:$0xff]
  %v236 = vld [vmem:[%s1 + $0x690] sm:$0xff]
  %v237 = vld [vmem:[%s1 + $0x698] sm:$0xff]
  %v238 = vld [vmem:[%s1 + $0x6a0] sm:$0xff]
  %v239 = vld [vmem:[%s1 + $0x6a8] sm:$0xff]
  %v240 = vld [vmem:[%s1 + $0x6b0] sm:$0xff]
  %v241 = vld [vmem:[%s1 + $0x6b8] sm:$0xff]
  %v242 = vld [vmem:[%s1 + $0x6c0] sm:$0xff]
  %v243 = vld [vmem:[%s1 + $0x6c8] sm:$0xff]
  %v244 = vld [vmem:[%s1 + $0x6d0] sm:$0xff]
  %v245 = vld [vmem:[%s1 + $0x6d8] sm:$0xff]
  %v246 = vld [vmem:[%s1 + $0x6e0] sm:$0xff]
  %v247 = vld [vmem:[%s1 + $0x6e8] sm:$0xff]
  %v248 = vld [vmem:[%s1 + $0x6f0] sm:$0xff]
  %v249 = vld [vmem:[%s1 + $0x6f8] sm:$0xff]
  %v250 = vld [vmem:[%s1 + $0x700] sm:$0xff]
  %v251 = vld [vmem:[%s1 + $0x708] sm:$0xff]
  %v252 = vld [vmem:[%s1 + $0x710] sm:$0xff]
  %v253 = vld [vmem:[%s1 + $0x718] sm:$0xff]
  %v254 = vld [vmem:[%s1 + $0x720] sm:$0xff]
  %v255 = vld [vmem:[%s1 + $0x728] sm:$0xff]
  %v256 = vld [vmem:[%s1 + $0x730] sm:$0xff]
  %v257 = vld [vmem:[%s1 + $0x738] sm:$0xff]
  %v258 = vld [vmem:[%s1 + $0x740] sm:$0xff]
  %v259 = vld [vmem:[%s1 + $0x748] sm:$0xff]
  %v260 = vld [vmem:[%s1 + $0x750] sm:$0xff]
  %v261 = vld [vmem:[%s1 + $0x758] sm:$0xff]
  %v262 = vld [vmem:[%s1 + $0x760] sm:$0xff]
  %v263 = vld [vmem:[%s1 + $0x768] sm:$0xff]
  %v264 = vld [vmem:[%s1 + $0x770] sm:$0xff]
  %v265 = vld [vmem:[%s1 + $0x778] sm:$0xff]
  %v266 = vld [vmem:[%s1 + $0x780] sm:$0xff]
  %v267 = vld [vmem:[%s1 + $0x788] sm:$0xff]
  %v268 = vld [vmem:[%s1 + $0x790] sm:$0xff]
  %v269 = vld [vmem:[%s1 + $0x798] sm:$0xff]
  %v270 = vld [vmem:[%s1 + $0x7a0] sm:$0xff]
  %v271 = vld [vmem:[%s1 + $0x7a8] sm:$0xff]
  %v272 = vld [vmem:[%s1 + $0x7b0] sm:$0xff]
  %v273 = vld [vmem:[%s1 + $0x7b8] sm:$0xff]
  %v274 = vld [vmem:[%s1 + $0x7c0] sm:$0xff]
  %v275 = vld [vmem:[%s1 + $0x7c8] sm:$0xff]
  %v276 = vld [vmem:[%s1 + $0x7d0] sm:$0xff]
  %v277 = vld [vmem:[%s1 + $0x7d8] sm:$0xff]
  %v278 = vld [vmem:[%s1 + $0x7e0] sm:$0xff]
  %v279 = vld [vmem:[%s1 + $0x7e8] sm:$0xff]
  %v280 = vld [vmem:[%s1 + $0x7f0] sm:$0xff]
  %v281 = vld [vmem:[%s1 + $0x7f8] sm:$0xff]
  %v282 = vld [vmem:[%s1 + $0x800] sm:$0xff]
  %v283 = vld [vmem:[%s1 + $0x808] sm:$0xff]
  %v284 = vld [vmem:[%s1 + $0x810] sm:$0xff]
  %v285 = vld [vmem:[%s1 + $0x818] sm:$0xff]
  %v286 = vld [vmem:[%s1 + $0x820] sm:$0xff]
  %v287 = vld [vmem:[%s1 + $0x828] sm:$0xff]
  %v288 = vld [vmem:[%s1 + $0x830] sm:$0xff]
  %v289 = vld [vmem:[%s1 + $0x838] sm:$0xff]
  %v290 = vld [vmem:[%s1 + $0x840] sm:$0xff]
  %v291 = vld [vmem:[%s1 + $0x848] sm:$0xff]
  %v292 = vld [vmem:[%s1 + $0x850] sm:$0xff]
  %v293 = vld [vmem:[%s1 + $0x858] sm:$0xff]
  %v294 = vld [vmem:[%s1 + $0x860] sm:$0xff]
  %v295 = vld [vmem:[%s1 + $0x868] sm:$0xff]
  %v296 = vld [vmem:[%s1 + $0x870] sm:$0xff]
  %v297 = vld [vmem:[%s1 + $0x878] sm:$0xff]
  %v298 = vld [vmem:[%s1 + $0x880] sm:$0xff]
  %v299 = vld [vmem:[%s1 + $0x888] sm:$0xff]
  %v300 = vld [vmem:[%s1 + $0x890] sm:$0xff]
  %v301 = vld [vmem:[%s1 + $0x898] sm:$0xff]
  %v302 = vld [vmem:[%s1 + $0x8a0] sm:$0xff]
  %v303 = vld [vmem:[%s1 + $0x8a8] sm:$0xff]
  %v304 = vld [vmem:[%s1 + $0x8b0] sm:$0xff]
  %v305 = vld [vmem:[%s1 + $0x8b8] sm:$0xff]
  %v306 = vld [vmem:[%s1 + $0x8c0] sm:$0xff]
  %v307 = vld [vmem:[%s1 + $0x8c8] sm:$0xff]
  %v308 = vld [vmem:[%s1 + $0x8d0] sm:$0xff]
  %v309 = vld [vmem:[%s1 + $0x8d8] sm:$0xff]
  %v310 = vld [vmem:[%s1 + $0x8e0] sm:$0xff]
  %v311 = vld [vmem:[%s1 + $0x8e8] sm:$0xff]
  %v312 = vld [vmem:[%s1 + $0x8f0] sm:$0xff]
  %v313 = vld [vmem:[%s1 + $0x8f8] sm:$0xff]
  %v314 = vld [vmem:[%s1 + $0x900] sm:$0xff]
  %v315 = vld [vmem:[%s1 + $0x908] sm:$0xff]
  %v316 = vld [vmem:[%s1 + $0x910] sm:$0xff]
  %v317 = vld [vmem:[%s1 + $0x918] sm:$0xff]
  %v318 = vld [vmem:[%s1 + $0x920] sm:$0xff]
  %v319 = vld [vmem:[%s1 + $0x928] sm:$0xff]
  %v320 = vld [vmem:[%s1 + $0x930] sm:$0xff]
  %v321 = vld [vmem:[%s1 + $0x938] sm:$0xff]
  %v322 = vld [vmem:[%s1 + $0x940] sm:$0xff]
  %v323 = vld [vmem:[%s1 + $0x948] sm:$0xff]
  %v324 = vld [vmem:[%s1 + $0x950] sm:$0xff]
  %v325 = vld [vmem:[%s1 + $0x958] sm:$0xff]
  %v326 = vld [vmem:[%s1 + $0x960] sm:$0xff]
  %v327 = vld [vmem:[%s1 + $0x968] sm:$0xff]
  %v328 = vld [vmem:[%s1 + $0x970] sm:$0xff]
  %v329 = vld [vmem:[%s1 + $0x978] sm:$0xff]
  %v330 = vld [vmem:[%s1 + $0x980] sm:$0xff]
  %v331 = vld [vmem:[%s1 + $0x988] sm:$0xff]
  %v332 = vld [vmem:[%s1 + $0x990] sm:$0xff]
  %v333 = vld [vmem:[%s1 + $0x998] sm:$0xff]
  %v334 = vld [vmem:[%s1 + $0x9a0] sm:$0xff]
  %v335 = vld [vmem:[%s1 + $0x9a8] sm:$0xff]
  %v336 = vld [vmem:[%s1 + $0x9b0] sm:$0xff]
  %v337 = vld [vmem:[%s1 + $0x9b8] sm:$0xff]
  %v338 = vld [vmem:[%s1 + $0x9c0] sm:$0xff]
  %v339 = vld [vmem:[%s1 + $0x9c8] sm:$0xff]
  %v340 = vld [vmem:[%s1 + $0x9d0] sm:$0xff]
  %v341 = vld [vmem:[%s1 + $0x9d8] sm:$0xff]
  %v342 = vld [vmem:[%s1 + $0x9e0] sm:$0xff]
  %v343 = vld [vmem:[%s1 + $0x9e8] sm:$0xff]
  %v344 = vld [vmem:[%s1 + $0x9f0] sm:$0xff]
  %v345 = vld [vmem:[%s1 + $0x9f8] sm:$0xff]
  %v346 = vld [vmem:[%s1 + $0xa00] sm:$0xff]
  %v347 = vld [vmem:[%s1 + $0xa08] sm:$0xff]
  %v348 = vld [vmem:[%s1 + $0xa10] sm:$0xff]
  %v349 = vld [vmem:[%s1 + $0xa18] sm:$0xff]
  %v350 = vld [vmem:[%s1 + $0xa20] sm:$0xff]
  %v351 = vld [vmem:[%s1 + $0xa28] sm:$0xff]
  %v352 = vld [vmem:[%s1 + $0xa30] sm:$0xff]
  %v353 = vld [vmem:[%s1 + $0xa38] sm:$0xff]
  %v354 = vld [vmem:[%s1 + $0xa40] sm:$0xff]
  %v355 = vld [vmem:[%s1 + $0xa48] sm:$0xff]
  %v356 = vld [vmem:[%s1 + $0xa50] sm:$0xff]
  %v357 = vld [vmem:[%s1 + $0xa58] sm:$0xff]
  %v358 = vld [vmem:[%s1 + $0xa60] sm:$0xff]
  %v359 = vld [vmem:[%s1 + $0xa68] sm:$0xff]
  %v360 = vld [vmem:[%s1 + $0xa70] sm:$0xff]
  %v361 = vld [vmem:[%s1 + $0xa78] sm:$0xff]
  %v362 = vld [vmem:[%s1 + $0xa80] sm:$0xff]
  %v363 = vld [vmem:[%s1 + $0xa88] sm:$0xff]
  %v364 = vld [vmem:[%s1 + $0xa90] sm:$0xff]
  %v365 = vld [vmem:[%s1 + $0xa98] sm:$0xff]
  %v366 = vld [vmem:[%s1 + $0xaa0] sm:$0xff]
  %v367 = vld [vmem:[%s1 + $0xaa8] sm:$0xff]
  %v368 = vld [vmem:[%s1 + $0xab0] sm:$0xff]
  %v369 = vld [vmem:[%s1 + $0xab8] sm:$0xff]
  %v370 = vld [vmem:[%s1 + $0xac0] sm:$0xff]
  %v371 = vld [vmem:[%s1 + $0xac8] sm:$0xff]
  %v372 = vld [vmem:[%s1 + $0xad0] sm:$0xff]
  %v373 = vld [vmem:[%s1 + $0xad8] sm:$0xff]
  %v374 = vld [vmem:[%s1 + $0xae0] sm:$0xff]
  %v375 = vld [vmem:[%s1 + $0xae8] sm:$0xff]
  %v376 = vld [vmem:[%s1 + $0xaf0] sm:$0xff]
  %v377 = vld [vmem:[%s1 + $0xaf8] sm:$0xff]
  %v378 = vld [vmem:[%s1 + $0xb00] sm:$0xff]
  %v379 = vld [vmem:[%s1 + $0xb08] sm:$0xff]
  %v380 = vld [vmem:[%s1 + $0xb10] sm:$0xff]
  %v381 = vld [vmem:[%s1 + $0xb18] sm:$0xff]
  %v382 = vld [vmem:[%s1 + $0xb20] sm:$0xff]
  %v383 = vld [vmem:[%s1 + $0xb28] sm:$0xff]
  %v384 = vld [vmem:[%s1 + $0xb30] sm:$0xff]
  %v385 = vld [vmem:[%s1 + $0xb38] sm:$0xff]
  %v386 = vld [vmem:[%s1 + $0xb40] sm:$0xff]
  %v387 = vld [vmem:[%s1 + $0xb48] sm:$0xff]
  %v388 = vld [vmem:[%s1 + $0xb50] sm:$0xff]
  %v389 = vld [vmem:[%s1 + $0xb58] sm:$0xff]
  %v390 = vld [vmem:[%s1 + $0xb60] sm:$0xff]
  %v391 = vld [vmem:[%s1 + $0xb68] sm:$0xff]
  %v392 = vld [vmem:[%s1 + $0xb70] sm:$0xff]
  %v393 = vld [vmem:[%s1 + $0xb78] sm:$0xff]
  %v394 = vld [vmem:[%s1 + $0xb80] sm:$0xff]
  %v395 = vld [vmem:[%s1 + $0xb88] sm:$0xff]
  %v396 = vld [vmem:[%s1 + $0xb90] sm:$0xff]
  %v397 = vld [vmem:[%s1 + $0xb98] sm:$0xff]
  %v398 = vld [vmem:[%s1 + $0xba0] sm:$0xff]
  %v399 = vld [vmem:[%s1 + $0xba8] sm:$0xff]
  %v400 = vld [vmem:[%s1 + $0xbb0] sm:$0xff]
  %v401 = vld [vmem:[%s1 + $0xbb8] sm:$0xff]
  %v402 = vld [vmem:[%s1 + $0xbc0] sm:$0xff]
  %v403 = vld [vmem:[%s1 + $0xbc8] sm:$0xff]
  %v404 = vld [vmem:[%s1 + $0xbd0] sm:$0xff]
  %v405 = vld [vmem:[%s1 + $0xbd8] sm:$0xff]
  %v406 = vld [vmem:[%s1 + $0xbe0] sm:$0xff]
  %v407 = vld [vmem:[%s1 + $0xbe8] sm:$0xff]
  %v408 = vld [vmem:[%s1 + $0xbf0] sm:$0xff]
  %v409 = vld [vmem:[%s1 + $0xbf8] sm:$0xff]
  %v410 = vld [vmem:[%s2] sm:$0xf]
  %v412 = vlaneseq
  %v413 = vshrl.u32 %v412, 7
  %v414 = vsub.s32 0, %v413
  %v415 = vrot.slane %v410, %v414
  %v416 = vlaneseq
  %v417 = vshrl.u32 %v416, 7
  %v418 = vsub.s32 1, %v417
  %v419 = vrot.slane %v410, %v418
  %v420 = vlaneseq
  %v421 = vshrl.u32 %v420, 7
  %v422 = vsub.s32 2, %v421
  %v423 = vrot.slane %v410, %v422
  %v424 = vlaneseq
  %v425 = vshrl.u32 %v424, 7
  %v426 = vsub.s32 3, %v425
  %v427 = vrot.slane %v410, %v426
  %432 = vmatprep.subr.mxu0 %v27
  %433 = vmatpush1.msra.mxu0 %v26
  %434 = vmatprep.subr.mxu0 %v31
  %435 = vmatpush1.msra.mxu0 %v30
  %436 = vmatprep.subr.mxu0 %v35
  %437 = vmatpush1.msra.mxu0 %v34
  %438 = vmatprep.subr.mxu0 %v39
  %439 = vmatpush1.msra.mxu0 %v38
  %440 = vmatprep.subr.mxu0 %v43
  %441 = vmatpush1.msra.mxu0 %v42
  %442 = vmatprep.subr.mxu0 %v47
  %443 = vmatpush1.msra.mxu0 %v46
  %444 = vmatprep.subr.mxu0 %v51
  %445 = vmatpush1.msra.mxu0 %v50
  %446 = vmatprep.subr.mxu0 %v55
  %447 = vmatpush1.msra.mxu0 %v54
  %448 = vmatprep.subr.mxu0 %v59
  %449 = vmatpush1.msra.mxu0 %v58
  %450 = vmatprep.subr.mxu0 %v63
  %451 = vmatpush1.msra.mxu0 %v62
  %452 = vmatprep.subr.mxu0 %v67
  %453 = vmatpush1.msra.mxu0 %v66
  %454 = vmatprep.subr.mxu0 %v71
  %455 = vmatpush1.msra.mxu0 %v70
  %456 = vmatprep.subr.mxu0 %v75
  %457 = vmatpush1.msra.mxu0 %v74
  %458 = vmatprep.subr.mxu0 %v79
  %459 = vmatpush1.msra.mxu0 %v78
  %460 = vmatprep.subr.mxu0 %v83
  %461 = vmatpush1.msra.mxu0 %v82
  %462 = vmatprep.subr.mxu0 %v87
  %463 = vmatpush1.msra.mxu0 %v86
  %464 = vmatprep.subr.mxu0 %v91
  %465 = vmatpush1.msra.mxu0 %v90
  %466 = vmatprep.subr.mxu0 %v95
  %467 = vmatpush1.msra.mxu0 %v94
  %468 = vmatprep.subr.mxu0 %v99
  %469 = vmatpush1.msra.mxu0 %v98
  %470 = vmatprep.subr.mxu0 %v103
  %471 = vmatpush1.msra.mxu0 %v102
  %472 = vmatprep.subr.mxu0 %v107
  %473 = vmatpush1.msra.mxu0 %v106
  %474 = vmatprep.subr.mxu0 %v111
  %475 = vmatpush1.msra.mxu0 %v110
  %476 = vmatprep.subr.mxu0 %v115
  %477 = vmatpush1.msra.mxu0 %v114
  %478 = vmatprep.subr.mxu0 %v119
  %479 = vmatpush1.msra.mxu0 %v118
  %480 = vmatprep.subr.mxu0 %v123
  %481 = vmatpush1.msra.mxu0 %v122
  %482 = vmatprep.subr.mxu0 %v127
  %483 = vmatpush1.msra.mxu0 %v126
  %484 = vmatprep.subr.mxu0 %v131
  %485 = vmatpush1.msra.mxu0 %v130
  %486 = vmatprep.subr.mxu0 %v135
  %487 = vmatpush1.msra.mxu0 %v134
  %488 = vmatprep.subr.mxu0 %v139
  %489 = vmatpush1.msra.mxu0 %v138
  %490 = vmatprep.subr.mxu0 %v143
  %491 = vmatpush1.msra.mxu0 %v142
  %492 = vmatprep.subr.mxu0 %v147
  %493 = vmatpush1.msra.mxu0 %v146
  %494 = vmatprep.subr.mxu0 %v151
  %495 = vmatpush1.msra.mxu0 %v150
  %496 = vmatprep.mubr.f32.mxu0 %v21
  %497 = vmatmul.mubr.f32.gmra.mrb[0].mxu0 %v20
  %v498 = vpop.f32.mrb[0].mxu0
  %v499 = vadd.f32 %v415, %v498
  %v500 = vpop.f32.mrb[0].mxu0
  %v501 = vadd.f32 %v419, %v500
  %502 = vdwg.mxu0
  %503 = vmatprep.subr.mxu0 %v155
  %504 = vmatpush1.msra.mxu0 %v154
  %505 = vmatprep.subr.mxu0 %v159
  %506 = vmatpush1.msra.mxu0 %v158
  %507 = vmatprep.subr.mxu0 %v163
  %508 = vmatpush1.msra.mxu0 %v162
  %509 = vmatprep.subr.mxu0 %v167
  %510 = vmatpush1.msra.mxu0 %v166
  %511 = vmatprep.subr.mxu0 %v171
  %512 = vmatpush1.msra.mxu0 %v170
  %513 = vmatprep.subr.mxu0 %v175
  %514 = vmatpush1.msra.mxu0 %v174
  %515 = vmatprep.subr.mxu0 %v179
  %516 = vmatpush1.msra.mxu0 %v178
  %517 = vmatprep.subr.mxu0 %v183
  %518 = vmatpush1.msra.mxu0 %v182
  %519 = vmatprep.subr.mxu0 %v187
  %520 = vmatpush1.msra.mxu0 %v186
  %521 = vmatprep.subr.mxu0 %v191
  %522 = vmatpush1.msra.mxu0 %v190
  %523 = vmatprep.subr.mxu0 %v195
  %524 = vmatpush1.msra.mxu0 %v194
  %525 = vmatprep.subr.mxu0 %v199
  %526 = vmatpush1.msra.mxu0 %v198
  %527 = vmatprep.subr.mxu0 %v203
  %528 = vmatpush1.msra.mxu0 %v202
  %529 = vmatprep.subr.mxu0 %v207
  %530 = vmatpush1.msra.mxu0 %v206
  %531 = vmatprep.subr.mxu0 %v211
  %532 = vmatpush1.msra.mxu0 %v210
  %533 = vmatprep.subr.mxu0 %v215
  %534 = vmatpush1.msra.mxu0 %v214
  %535 = vmatprep.subr.mxu0 %v219
  %536 = vmatpush1.msra.mxu0 %v218
  %537 = vmatprep.subr.mxu0 %v223
  %538 = vmatpush1.msra.mxu0 %v222
  %539 = vmatprep.subr.mxu0 %v227
  %540 = vmatpush1.msra.mxu0 %v226
  %541 = vmatprep.subr.mxu0 %v231
  %542 = vmatpush1.msra.mxu0 %v230
  %543 = vmatprep.subr.mxu0 %v235
  %544 = vmatpush1.msra.mxu0 %v234
  %545 = vmatprep.subr.mxu0 %v239
  %546 = vmatpush1.msra.mxu0 %v238
  %547 = vmatprep.subr.mxu0 %v243
  %548 = vmatpush1.msra.mxu0 %v242
  %549 = vmatprep.subr.mxu0 %v247
  %550 = vmatpush1.msra.mxu0 %v246
  %551 = vmatprep.subr.mxu0 %v251
  %552 = vmatpush1.msra.mxu0 %v250
  %553 = vmatprep.subr.mxu0 %v255
  %554 = vmatpush1.msra.mxu0 %v254
  %555 = vmatprep.subr.mxu0 %v259
  %556 = vmatpush1.msra.mxu0 %v258
  %557 = vmatprep.subr.mxu0 %v263
  %558 = vmatpush1.msra.mxu0 %v262
  %559 = vmatprep.subr.mxu0 %v267
  %560 = vmatpush1.msra.mxu0 %v266
  %561 = vmatprep.subr.mxu0 %v271
  %562 = vmatpush1.msra.mxu0 %v270
  %563 = vmatprep.subr.mxu0 %v275
  %564 = vmatpush1.msra.mxu0 %v274
  %565 = vmatprep.subr.mxu0 %v279
  %566 = vmatpush1.msra.mxu0 %v278
  %567 = vmatprep.mubr.f32.mxu0 %v23
  %568 = vmatmul.mubr.f32.gmra.mrb[0].mxu0 %v22
  %v569 = vpop.f32.mrb[0].mxu0
  %v570 = vadd.f32 %v499, %v569
  %v571 = vpop.f32.mrb[0].mxu0
  %v572 = vadd.f32 %v501, %v571
  %573 = vdwg.mxu0
  %574 = vmatprep.subr.mxu0 %v283
  %575 = vmatpush1.msra.mxu0 %v282
  %576 = vmatprep.subr.mxu0 %v287
  %577 = vmatpush1.msra.mxu0 %v286
  %578 = vmatprep.subr.mxu0 %v291
  %579 = vmatpush1.msra.mxu0 %v290
  %580 = vmatprep.subr.mxu0 %v295
  %581 = vmatpush1.msra.mxu0 %v294
  %582 = vmatprep.subr.mxu0 %v299
  %583 = vmatpush1.msra.mxu0 %v298
  %584 = vmatprep.subr.mxu0 %v303
  %585 = vmatpush1.msra.mxu0 %v302
  %586 = vmatprep.subr.mxu0 %v307
  %587 = vmatpush1.msra.mxu0 %v306
  %588 = vmatprep.subr.mxu0 %v311
  %589 = vmatpush1.msra.mxu0 %v310
  %590 = vmatprep.subr.mxu0 %v315
  %591 = vmatpush1.msra.mxu0 %v314
  %592 = vmatprep.subr.mxu0 %v319
  %593 = vmatpush1.msra.mxu0 %v318
  %594 = vmatprep.subr.mxu0 %v323
  %595 = vmatpush1.msra.mxu0 %v322
  %596 = vmatprep.subr.mxu0 %v327
  %597 = vmatpush1.msra.mxu0 %v326
  %598 = vmatprep.subr.mxu0 %v331
  %599 = vmatpush1.msra.mxu0 %v330
  %600 = vmatprep.subr.mxu0 %v335
  %601 = vmatpush1.msra.mxu0 %v334
  %602 = vmatprep.subr.mxu0 %v339
  %603 = vmatpush1.msra.mxu0 %v338
  %604 = vmatprep.subr.mxu0 %v343
  %605 = vmatpush1.msra.mxu0 %v342
  %606 = vmatprep.subr.mxu0 %v347
  %607 = vmatpush1.msra.mxu0 %v346
  %608 = vmatprep.subr.mxu0 %v351
  %609 = vmatpush1.msra.mxu0 %v350
  %610 = vmatprep.subr.mxu0 %v355
  %611 = vmatpush1.msra.mxu0 %v354
  %612 = vmatprep.subr.mxu0 %v359
  %613 = vmatpush1.msra.mxu0 %v358
  %614 = vmatprep.subr.mxu0 %v363
  %615 = vmatpush1.msra.mxu0 %v362
  %616 = vmatprep.subr.mxu0 %v367
  %617 = vmatpush1.msra.mxu0 %v366
  %618 = vmatprep.subr.mxu0 %v371
  %619 = vmatpush1.msra.mxu0 %v370
  %620 = vmatprep.subr.mxu0 %v375
  %621 = vmatpush1.msra.mxu0 %v374
  %622 = vmatprep.subr.mxu0 %v379
  %623 = vmatpush1.msra.mxu0 %v378
  %624 = vmatprep.subr.mxu0 %v383
  %625 = vmatpush1.msra.mxu0 %v382
  %626 = vmatprep.subr.mxu0 %v387
  %627 = vmatpush1.msra.mxu0 %v386
  %628 = vmatprep.subr.mxu0 %v391
  %629 = vmatpush1.msra.mxu0 %v390
  %630 = vmatprep.subr.mxu0 %v395
  %631 = vmatpush1.msra.mxu0 %v394
  %632 = vmatprep.subr.mxu0 %v399
  %633 = vmatpush1.msra.mxu0 %v398
  %634 = vmatprep.subr.mxu0 %v403
  %635 = vmatpush1.msra.mxu0 %v402
  %636 = vmatprep.subr.mxu0 %v407
  %637 = vmatpush1.msra.mxu0 %v406
  %638 = vmatprep.mubr.f32.mxu0 %v25
  %639 = vmatmul.mubr.f32.gmra.mrb[0].mxu0 %v24
  %v640 = vpop.f32.mrb[0].mxu0
  %v641 = vadd.f32 %v570, %v640
  %v642 = vpop.f32.mrb[0].mxu0
  %v643 = vadd.f32 %v572, %v642
  %644 = vdwg.mxu0
  %645 = vmatprep.subr.mxu0 %v29
  %646 = vmatpush1.msra.mxu0 %v28
  %647 = vmatprep.subr.mxu0 %v33
  %648 = vmatpush1.msra.mxu0 %v32
  %649 = vmatprep.subr.mxu0 %v37
  %650 = vmatpush1.msra.mxu0 %v36
  %651 = vmatprep.subr.mxu0 %v41
  %652 = vmatpush1.msra.mxu0 %v40
  %653 = vmatprep.subr.mxu0 %v45
  %654 = vmatpush1.msra.mxu0 %v44
  %655 = vmatprep.subr.mxu0 %v49
  %656 = vmatpush1.msra.mxu0 %v48
  %657 = vmatprep.subr.mxu0 %v53
  %658 = vmatpush1.msra.mxu0 %v52
  %659 = vmatprep.subr.mxu0 %v57
  %660 = vmatpush1.msra.mxu0 %v56
  %661 = vmatprep.subr.mxu0 %v61
  %662 = vmatpush1.msra.mxu0 %v60
  %663 = vmatprep.subr.mxu0 %v65
  %664 = vmatpush1.msra.mxu0 %v64
  %665 = vmatprep.subr.mxu0 %v69
  %666 = vmatpush1.msra.mxu0 %v68
  %667 = vmatprep.subr.mxu0 %v73
  %668 = vmatpush1.msra.mxu0 %v72
  %669 = vmatprep.subr.mxu0 %v77
  %670 = vmatpush1.msra.mxu0 %v76
  %671 = vmatprep.subr.mxu0 %v81
  %672 = vmatpush1.msra.mxu0 %v80
  %673 = vmatprep.subr.mxu0 %v85
  %674 = vmatpush1.msra.mxu0 %v84
  %675 = vmatprep.subr.mxu0 %v89
  %676 = vmatpush1.msra.mxu0 %v88
  %677 = vmatprep.subr.mxu0 %v93
  %678 = vmatpush1.msra.mxu0 %v92
  %679 = vmatprep.subr.mxu0 %v97
  %680 = vmatpush1.msra.mxu0 %v96
  %681 = vmatprep.subr.mxu0 %v101
  %682 = vmatpush1.msra.mxu0 %v100
  %683 = vmatprep.subr.mxu0 %v105
  %684 = vmatpush1.msra.mxu0 %v104
  %685 = vmatprep.subr.mxu0 %v109
  %686 = vmatpush1.msra.mxu0 %v108
  %687 = vmatprep.subr.mxu0 %v113
  %688 = vmatpush1.msra.mxu0 %v112
  %689 = vmatprep.subr.mxu0 %v117
  %690 = vmatpush1.msra.mxu0 %v116
  %691 = vmatprep.subr.mxu0 %v121
  %692 = vmatpush1.msra.mxu0 %v120
  %693 = vmatprep.subr.mxu0 %v125
  %694 = vmatpush1.msra.mxu0 %v124
  %695 = vmatprep.subr.mxu0 %v129
  %696 = vmatpush1.msra.mxu0 %v128
  %697 = vmatprep.subr.mxu0 %v133
  %698 = vmatpush1.msra.mxu0 %v132
  %699 = vmatprep.subr.mxu0 %v137
  %700 = vmatpush1.msra.mxu0 %v136
  %701 = vmatprep.subr.mxu0 %v141
  %702 = vmatpush1.msra.mxu0 %v140
  %703 = vmatprep.subr.mxu0 %v145
  %704 = vmatpush1.msra.mxu0 %v144
  %705 = vmatprep.subr.mxu0 %v149
  %706 = vmatpush1.msra.mxu0 %v148
  %707 = vmatprep.subr.mxu0 %v153
  %708 = vmatpush1.msra.mxu0 %v152
  %709 = vmatprep.mubr.f32.mxu0 %v21
  %710 = vmatmul.mubr.f32.gmra.mrb[0].mxu0 %v20
  %v711 = vpop.f32.mrb[0].mxu0
  %v712 = vadd.f32 %v423, %v711
  %v713 = vpop.f32.mrb[0].mxu0
  %v714 = vadd.f32 %v427, %v713
  %715 = vdwg.mxu0
  %716 = vmatprep.subr.mxu0 %v157
  %717 = vmatpush1.msra.mxu0 %v156
  %718 = vmatprep.subr.mxu0 %v161
  %719 = vmatpush1.msra.mxu0 %v160
  %720 = vmatprep.subr.mxu0 %v165
  %721 = vmatpush1.msra.mxu0 %v164
  %722 = vmatprep.subr.mxu0 %v169
  %723 = vmatpush1.msra.mxu0 %v168
  %724 = vmatprep.subr.mxu0 %v173
  %725 = vmatpush1.msra.mxu0 %v172
  %726 = vmatprep.subr.mxu0 %v177
  %727 = vmatpush1.msra.mxu0 %v176
  %728 = vmatprep.subr.mxu0 %v181
  %729 = vmatpush1.msra.mxu0 %v180
  %730 = vmatprep.subr.mxu0 %v185
  %731 = vmatpush1.msra.mxu0 %v184
  %732 = vmatprep.subr.mxu0 %v189
  %733 = vmatpush1.msra.mxu0 %v188
  %734 = vmatprep.subr.mxu0 %v193
  %735 = vmatpush1.msra.mxu0 %v192
  %736 = vmatprep.subr.mxu0 %v197
  %737 = vmatpush1.msra.mxu0 %v196
  %738 = vmatprep.subr.mxu0 %v201
  %739 = vmatpush1.msra.mxu0 %v200
  %740 = vmatprep.subr.mxu0 %v205
  %741 = vmatpush1.msra.mxu0 %v204
  %742 = vmatprep.subr.mxu0 %v209
  %743 = vmatpush1.msra.mxu0 %v208
  %744 = vmatprep.subr.mxu0 %v213
  %745 = vmatpush1.msra.mxu0 %v212
  %746 = vmatprep.subr.mxu0 %v217
  %747 = vmatpush1.msra.mxu0 %v216
  %748 = vmatprep.subr.mxu0 %v221
  %749 = vmatpush1.msra.mxu0 %v220
  %750 = vmatprep.subr.mxu0 %v225
  %751 = vmatpush1.msra.mxu0 %v224
  %752 = vmatprep.subr.mxu0 %v229
  %753 = vmatpush1.msra.mxu0 %v228
  %754 = vmatprep.subr.mxu0 %v233
  %755 = vmatpush1.msra.mxu0 %v232
  %756 = vmatprep.subr.mxu0 %v237
  %757 = vmatpush1.msra.mxu0 %v236
  %758 = vmatprep.subr.mxu0 %v241
  %759 = vmatpush1.msra.mxu0 %v240
  %760 = vmatprep.subr.mxu0 %v245
  %761 = vmatpush1.msra.mxu0 %v244
  %762 = vmatprep.subr.mxu0 %v249
  %763 = vmatpush1.msra.mxu0 %v248
  %764 = vmatprep.subr.mxu0 %v253
  %765 = vmatpush1.msra.mxu0 %v252
  %766 = vmatprep.subr.mxu0 %v257
  %767 = vmatpush1.msra.mxu0 %v256
  %768 = vmatprep.subr.mxu0 %v261
  %769 = vmatpush1.msra.mxu0 %v260
  %770 = vmatprep.subr.mxu0 %v265
  %771 = vmatpush1.msra.mxu0 %v264
  %772 = vmatprep.subr.mxu0 %v269
  %773 = vmatpush1.msra.mxu0 %v268
  %774 = vmatprep.subr.mxu0 %v273
  %775 = vmatpush1.msra.mxu0 %v272
  %776 = vmatprep.subr.mxu0 %v277
  %777 = vmatpush1.msra.mxu0 %v276
  %778 = vmatprep.subr.mxu0 %v281
  %779 = vmatpush1.msra.mxu0 %v280
  %780 = vmatprep.mubr.f32.mxu0 %v23
  %781 = vmatmul.mubr.f32.gmra.mrb[0].mxu0 %v22
  %v782 = vpop.f32.mrb[0].mxu0
  %v783 = vadd.f32 %v712, %v782
  %v784 = vpop.f32.mrb[0].mxu0
  %v785 = vadd.f32 %v714, %v784
  %786 = vdwg.mxu0
  %787 = vmatprep.subr.mxu0 %v285
  %788 = vmatpush1.msra.mxu0 %v284
  %789 = vmatprep.subr.mxu0 %v289
  %790 = vmatpush1.msra.mxu0 %v288
  %791 = vmatprep.subr.mxu0 %v293
  %792 = vmatpush1.msra.mxu0 %v292
  %793 = vmatprep.subr.mxu0 %v297
  %794 = vmatpush1.msra.mxu0 %v296
  %795 = vmatprep.subr.mxu0 %v301
  %796 = vmatpush1.msra.mxu0 %v300
  %797 = vmatprep.subr.mxu0 %v305
  %798 = vmatpush1.msra.mxu0 %v304
  %799 = vmatprep.subr.mxu0 %v309
  %800 = vmatpush1.msra.mxu0 %v308
  %801 = vmatprep.subr.mxu0 %v313
  %802 = vmatpush1.msra.mxu0 %v312
  %803 = vmatprep.subr.mxu0 %v317
  %804 = vmatpush1.msra.mxu0 %v316
  %805 = vmatprep.subr.mxu0 %v321
  %806 = vmatpush1.msra.mxu0 %v320
  %807 = vmatprep.subr.mxu0 %v325
  %808 = vmatpush1.msra.mxu0 %v324
  %809 = vmatprep.subr.mxu0 %v329
  %810 = vmatpush1.msra.mxu0 %v328
  %811 = vmatprep.subr.mxu0 %v333
  %812 = vmatpush1.msra.mxu0 %v332
  %813 = vmatprep.subr.mxu0 %v337
  %814 = vmatpush1.msra.mxu0 %v336
  %815 = vmatprep.subr.mxu0 %v341
  %816 = vmatpush1.msra.mxu0 %v340
  %817 = vmatprep.subr.mxu0 %v345
  %818 = vmatpush1.msra.mxu0 %v344
  %819 = vmatprep.subr.mxu0 %v349
  %820 = vmatpush1.msra.mxu0 %v348
  %821 = vmatprep.subr.mxu0 %v353
  %822 = vmatpush1.msra.mxu0 %v352
  %823 = vmatprep.subr.mxu0 %v357
  %824 = vmatpush1.msra.mxu0 %v356
  %825 = vmatprep.subr.mxu0 %v361
  %826 = vmatpush1.msra.mxu0 %v360
  %827 = vmatprep.subr.mxu0 %v365
  %828 = vmatpush1.msra.mxu0 %v364
  %829 = vmatprep.subr.mxu0 %v369
  %830 = vmatpush1.msra.mxu0 %v368
  %831 = vmatprep.subr.mxu0 %v373
  %832 = vmatpush1.msra.mxu0 %v372
  %833 = vmatprep.subr.mxu0 %v377
  %834 = vmatpush1.msra.mxu0 %v376
  %835 = vmatprep.subr.mxu0 %v381
  %836 = vmatpush1.msra.mxu0 %v380
  %837 = vmatprep.subr.mxu0 %v385
  %838 = vmatpush1.msra.mxu0 %v384
  %839 = vmatprep.subr.mxu0 %v389
  %840 = vmatpush1.msra.mxu0 %v388
  %841 = vmatprep.subr.mxu0 %v393
  %842 = vmatpush1.msra.mxu0 %v392
  %843 = vmatprep.subr.mxu0 %v397
  %844 = vmatpush1.msra.mxu0 %v396
  %845 = vmatprep.subr.mxu0 %v401
  %846 = vmatpush1.msra.mxu0 %v400
  %847 = vmatprep.subr.mxu0 %v405
  %848 = vmatpush1.msra.mxu0 %v404
  %849 = vmatprep.subr.mxu0 %v409
  %850 = vmatpush1.msra.mxu0 %v408
  %851 = vmatprep.mubr.f32.mxu0 %v25
  %852 = vmatmul.mubr.f32.gmra.mrb[0].mxu0 %v24
  %v853 = vpop.f32.mrb[0].mxu0
  %v854 = vadd.f32 %v783, %v853
  %v855 = vpop.f32.mrb[0].mxu0
  %v856 = vadd.f32 %v785, %v855
  %857 = vdwg.mxu0
  %v858 = vrot.slane %v641, 4
  %v859 = vadd.f32 %v641, %v858
  %v860 = vrot.slane %v859, 2
  %v861 = vadd.f32 %v859, %v860
  %v862 = vrot.slane %v861, 1
  %v863 = vadd.f32 %v861, %v862
  %v864 = vrot.slane %v643, 4
  %v865 = vadd.f32 %v643, %v864
  %v866 = vrot.slane %v865, 2
  %v867 = vadd.f32 %v865, %v866
  %v868 = vrot.slane %v867, 1
  %v869 = vadd.f32 %v867, %v868
  %v870 = vrot.slane %v854, 4
  %v871 = vadd.f32 %v854, %v870
  %v872 = vrot.slane %v871, 2
  %v873 = vadd.f32 %v871, %v872
  %v874 = vrot.slane %v873, 1
  %v875 = vadd.f32 %v873, %v874
  %v876 = vrot.slane %v856, 4
  %v877 = vadd.f32 %v856, %v876
  %v878 = vrot.slane %v877, 2
  %v879 = vadd.f32 %v877, %v878
  %v880 = vrot.slane %v879, 1
  %v881 = vadd.f32 %v879, %v880
  %v882 = vrcp.pop 8.0
  %v883 = vmul.f32 %v863, %v882
  %v884 = vmul.f32 %v869, %v882
  %v885 = vmul.f32 %v875, %v882
  %v886 = vmul.f32 %v881, %v882
  %v887 = vsub.f32 %v641, %v883
  %v888 = vsub.f32 %v643, %v884
  %v889 = vsub.f32 %v854, %v885
  %v890 = vsub.f32 %v856, %v886
  %v891 = vmul.f32 %v887, %v887
  %v892 = vmul.f32 %v888, %v888
  %v893 = vmul.f32 %v889, %v889
  %v894 = vmul.f32 %v890, %v890
  %v895 = vrot.slane %v891, 4
  %v896 = vadd.f32 %v891, %v895
  %v897 = vrot.slane %v896, 2
  %v898 = vadd.f32 %v896, %v897
  %v899 = vrot.slane %v898, 1
  %v900 = vadd.f32 %v898, %v899
  %v901 = vrot.slane %v892, 4
  %v902 = vadd.f32 %v892, %v901
  %v903 = vrot.slane %v902, 2
  %v904 = vadd.f32 %v902, %v903
  %v905 = vrot.slane %v904, 1
  %v906 = vadd.f32 %v904, %v905
  %v907 = vrot.slane %v893, 4
  %v908 = vadd.f32 %v893, %v907
  %v909 = vrot.slane %v908, 2
  %v910 = vadd.f32 %v908, %v909
  %v911 = vrot.slane %v910, 1
  %v912 = vadd.f32 %v910, %v911
  %v913 = vrot.slane %v894, 4
  %v914 = vadd.f32 %v894, %v913
  %v915 = vrot.slane %v914, 2
  %v916 = vadd.f32 %v914, %v915
  %v917 = vrot.slane %v916, 1
  %v918 = vadd.f32 %v916, %v917
  %v919 = vmul.f32 %v900, %v882
  %v920 = vmul.f32 %v906, %v882
  %v921 = vmul.f32 %v912, %v882
  %v922 = vmul.f32 %v918, %v882
  %v923 = vadd.f32 %v919, 1e-05
  %v924 = vadd.f32 %v920, 1e-05
  %v925 = vadd.f32 %v921, 1e-05
  %v926 = vadd.f32 %v922, 1e-05
  %v927 = vrsqrt.pop %v923
  %v928 = vrsqrt.pop %v924
  %v929 = vrsqrt.pop %v925
  %v930 = vrsqrt.pop %v926
  %v931 = vmul.f32 %v887, %v927
  %v932 = vmul.f32 %v888, %v928
  %v933 = vmul.f32 %v889, %v929
  %v934 = vmul.f32 %v890, %v930
  %v935 = vld [vmem:[%s3] sm:$0xf]
  %v937 = vlaneseq
  %v938 = vshrl.u32 %v937, 7
  %v939 = vsub.s32 0, %v938
  %v940 = vrot.slane %v935, %v939
  %v941 = vlaneseq
  %v942 = vshrl.u32 %v941, 7
  %v943 = vsub.s32 1, %v942
  %v944 = vrot.slane %v935, %v943
  %v945 = vlaneseq
  %v946 = vshrl.u32 %v945, 7
  %v947 = vsub.s32 2, %v946
  %v948 = vrot.slane %v935, %v947
  %v949 = vlaneseq
  %v950 = vshrl.u32 %v949, 7
  %v951 = vsub.s32 3, %v950
  %v952 = vrot.slane %v935, %v951
  %v957 = vmul.f32 %v931, %v940
  %v958 = vmul.f32 %v932, %v944
  %v959 = vmul.f32 %v933, %v948
  %v960 = vmul.f32 %v934, %v952
  %v961 = vld [vmem:[%s4] sm:$0xf]
  %v963 = vlaneseq
  %v964 = vshrl.u32 %v963, 7
  %v965 = vsub.s32 0, %v964
  %v966 = vrot.slane %v961, %v965
  %v967 = vlaneseq
  %v968 = vshrl.u32 %v967, 7
  %v969 = vsub.s32 1, %v968
  %v970 = vrot.slane %v961, %v969
  %v971 = vlaneseq
  %v972 = vshrl.u32 %v971, 7
  %v973 = vsub.s32 2, %v972
  %v974 = vrot.slane %v961, %v973
  %v975 = vlaneseq
  %v976 = vshrl.u32 %v975, 7
  %v977 = vsub.s32 3, %v976
  %v978 = vrot.slane %v961, %v977
  %v983 = vadd.f32 %v957, %v966
  %v984 = vadd.f32 %v958, %v970
  %v985 = vadd.f32 %v959, %v974
  %v986 = vadd.f32 %v960, %v978
  %vm987 = vcmp.ge.f32.partialorder %v983, 0.0
  %vm988 = vcmp.ge.f32.partialorder %v984, 0.0
  %vm989 = vcmp.ge.f32.partialorder %v985, 0.0
  %vm990 = vcmp.ge.f32.partialorder %v986, 0.0
  %v991 = vmul.f32 %v983, 0.01
  %v992 = vmul.f32 %v984, 0.01
  %v993 = vmul.f32 %v985, 0.01
  %v994 = vmul.f32 %v986, 0.01
  %v995 = vsel %vm987, %v983, %v991
  %v996 = vsel %vm988, %v984, %v992
  %v997 = vsel %vm989, %v985, %v993
  %v998 = vsel %vm990, %v986, %v994
  %999 = vst [vmem:[%s5] sm:$0xff] %v995
  %1000 = vst [vmem:[%s5 + $0x8] sm:$0xff] %v996
  %1001 = vst [vmem:[%s5 + $0x10] sm:$0xff] %v997
  %1002 = vst [vmem:[%s5 + $0x18] sm:$0xff] %v998
  // Predicated region
  $region22: #{_lambda_.16} parent=0 // pred_check
    _
  $region23: #{_lambda_.16} parent=0 // pred_check_branch
    %1004 = sbr.rel (0) target = $region25
  $region24: #{_lambda_.16} parent=0 // pred_region
    _
  $region25: #{_lambda_.16} parent=0 // pred_fallthru
    _
  // Predicated region
  $region26: #{_lambda_.16} parent=0 // pred_check
    _
  $region27: #{_lambda_.16} parent=0 // pred_check_branch
    %1006 = sbr.rel (0) target = $region29
  $region28: #{_lambda_.16} parent=0 // pred_region
    _
  $region29: #{_lambda_.16} parent=0 // pred_fallthru
    _

// kernel: _lambda_.17
$region0: #{_lambda_.17}
  #allocation0 [shape = 'u32[]', space=smem, size = 0x4, offset = 0x4, fixed_abs, tag = 'smem constant byte address 0x4 - core index']
  #allocation1 [shape = 'u32[144,128]{1,0:T(1,128)}', space=vmem, size = 0x12000, scoped, tag = 'internal scratch']
  %s0 = inlined_call_operand.vmem [shape: f32[2,2048], index: 0, kind: input, shape index: {}]
  %s1 = inlined_call_operand.vmem [shape: f32[2048,16], index: 1, kind: input, shape index: {}]
  %s2 = inlined_call_operand.vmem [shape: f32[1,16], index: 2, kind: input, shape index: {}]
  %s3 = inlined_call_operand.vmem [shape: f32[2048,16], index: 3, kind: input, shape index: {}]
  %s4 = inlined_call_operand.vmem [shape: f32[1,16], index: 4, kind: input, shape index: {}]
  %s5 = inlined_call_operand.vmem [shape: f32[2,16], index: 5, kind: input, shape index: {}]
  %s6 = inlined_call_operand.vmem [shape: f32[16,2048], index: 6, kind: input, shape index: {}]
  %s7 = inlined_call_operand.vmem [shape: f32[1,2048], index: 7, kind: input, shape index: {}]
  %s8 = inlined_call_operand.hbm [shape: f32[2,16], index: 8, kind: output, shape index: {0}]
  %s9 = inlined_call_operand.hbm [shape: f32[2,16], index: 9, kind: output, shape index: {1}]
  %s10 = inlined_call_operand.vmem [shape: f32[2,2048], index: 10, kind: output, shape index: {2}]
  %11 = xla_tuple %s8, %s9, %s10
  %s12 = sld [smem:[#allocation0]]
  $region58: #{_lambda_.17} parent=0
    _
  %s14 = ssub.s32 1, %s12
  %s15 = scalar_select 0, %s14, %s12
  $region1: #{_lambda_.17} parent=0
    #allocation2 [shape = 'u8[1024]{0}', space=vmem, size = 0x400, scoped, tag = 'output window, operand 0, single buffered']
    #allocation3 [shape = 's32[1]{0}', space=sflag, size = 0x4, scoped, tag = 'scoped memory for _lambda_.17']
    #allocation4 [shape = 'u8[1024]{0}', space=vmem, size = 0x400, scoped, tag = 'output window, operand 1, single buffered']
    #allocation5 [shape = 's32[1]{0}', space=sflag, size = 0x4, scoped, tag = 'scoped memory for _lambda_.17']
    %16 = vsyncpa [#allocation3], 0
    %17 = vsyncpa [#allocation5], 0
    // Predicated region
    $region2: #{_lambda_.17} parent=1 // pred_check
      _
    $region3: #{_lambda_.17} parent=1 // pred_check_branch
      %19 = sbr.rel (0) target = $region5
    $region4: #{_lambda_.17} parent=1 // pred_region
      _
    $region5: #{_lambda_.17} parent=1 // pred_fallthru
      _
    // Predicated region
    $region6: #{_lambda_.17} parent=1 // pred_check
      _
    $region7: #{_lambda_.17} parent=1 // pred_check_branch
      %21 = sbr.rel (0) target = $region9
    $region8: #{_lambda_.17} parent=1 // pred_region
      _
    $region9: #{_lambda_.17} parent=1 // pred_fallthru
      _
    // Predicated region
    $region10: #{_lambda_.17} parent=1 // pred_check
      _
    $region11: #{_lambda_.17} parent=1 // pred_check_branch
      %23 = sbr.rel (0) target = $region13
    $region12: #{_lambda_.17} parent=1 // pred_region
      _
    $region13: #{_lambda_.17} parent=1 // pred_fallthru
      _
    // Predicated region
    $region14: #{_lambda_.17} parent=1 // pred_check
      _
    $region15: #{_lambda_.17} parent=1 // pred_check_branch
      %25 = sbr.rel (0) target = $region17
    $region16: #{_lambda_.17} parent=1 // pred_region
      _
    $region17: #{_lambda_.17} parent=1 // pred_fallthru
      _
    // Predicated region
    $region18: #{_lambda_.17} parent=1 // pred_check
      _
    $region19: #{_lambda_.17} parent=1 // pred_check_branch
      %27 = sbr.rel (0) target = $region21
    $region20: #{_lambda_.17} parent=1 // pred_region
      _
    $region21: #{_lambda_.17} parent=1 // pred_fallthru
      _
    // Predicated region
    $region22: #{_lambda_.17} parent=1 // pred_check
      _
    $region23: #{_lambda_.17} parent=1 // pred_check_branch
      %29 = sbr.rel (0) target = $region25
    $region24: #{_lambda_.17} parent=1 // pred_region
      _
    $region25: #{_lambda_.17} parent=1 // pred_fallthru
      _
    // Predicated region
    $region26: #{_lambda_.17} parent=1 // pred_check
      _
    $region27: #{_lambda_.17} parent=1 // pred_check_branch
      %31 = sbr.rel (0) target = $region29
    $region28: #{_lambda_.17} parent=1 // pred_region
      _
    $region29: #{_lambda_.17} parent=1 // pred_fallthru
      _
    // Predicated region
    $region30: #{_lambda_.17} parent=1 // pred_check
      _
    $region31: #{_lambda_.17} parent=1 // pred_check_branch
      %33 = sbr.rel (0) target = $region33
    $region32: #{_lambda_.17} parent=1 // pred_region
      _
    $region33: #{_lambda_.17} parent=1 // pred_fallthru
      _
    %v34 = vld [vmem:[%s0] sm:$0xff]
    %v35 = vld [vmem:[%s0 + $0x8] sm:$0xff]
    %v36 = vld [vmem:[%s0 + $0x10] sm:$0xff]
    %v37 = vld [vmem:[%s0 + $0x18] sm:$0xff]
    %v38 = vld [vmem:[%s1] sm:$0xff]
    %v39 = vld [vmem:[%s1 + $0x8] sm:$0xff]
    %v40 = vld [vmem:[%s1 + $0x10] sm:$0xff]
    %v41 = vld [vmem:[%s1 + $0x18] sm:$0xff]
    %v42 = vld [vmem:[%s1 + $0x20] sm:$0xff]
    %v43 = vld [vmem:[%s1 + $0x28] sm:$0xff]
    %v44 = vld [vmem:[%s1 + $0x30] sm:$0xff]
    %v45 = vld [vmem:[%s1 + $0x38] sm:$0xff]
    %v46 = vld [vmem:[%s1 + $0x40] sm:$0xff]
    %v47 = vld [vmem:[%s1 + $0x48] sm:$0xff]
    %v48 = vld [vmem:[%s1 + $0x50] sm:$0xff]
    %v49 = vld [vmem:[%s1 + $0x58] sm:$0xff]
    %v50 = vld [vmem:[%s1 + $0x60] sm:$0xff]
    %v51 = vld [vmem:[%s1 + $0x68] sm:$0xff]
    %v52 = vld [vmem:[%s1 + $0x70] sm:$0xff]
    %v53 = vld [vmem:[%s1 + $0x78] sm:$0xff]
    %v54 = vld [vmem:[%s1 + $0x80] sm:$0xff]
    %v55 = vld [vmem:[%s1 + $0x88] sm:$0xff]
    %v56 = vld [vmem:[%s1 + $0x90] sm:$0xff]
    %v57 = vld [vmem:[%s1 + $0x98] sm:$0xff]
    %v58 = vld [vmem:[%s1 + $0xa0] sm:$0xff]
    %v59 = vld [vmem:[%s1 + $0xa8] sm:$0xff]
    %v60 = vld [vmem:[%s1 + $0xb0] sm:$0xff]
    %v61 = vld [vmem:[%s1 + $0xb8] sm:$0xff]
    %v62 = vld [vmem:[%s1 + $0xc0] sm:$0xff]
    %v63 = vld [vmem:[%s1 + $0xc8] sm:$0xff]
    %v64 = vld [vmem:[%s1 + $0xd0] sm:$0xff]
    %v65 = vld [vmem:[%s1 + $0xd8] sm:$0xff]
    %v66 = vld [vmem:[%s1 + $0xe0] sm:$0xff]
    %v67 = vld [vmem:[%s1 + $0xe8] sm:$0xff]
    %v68 = vld [vmem:[%s1 + $0xf0] sm:$0xff]
    %v69 = vld [vmem:[%s1 + $0xf8] sm:$0xff]
    %v70 = vld [vmem:[%s1 + $0x100] sm:$0xff]
    %v71 = vld [vmem:[%s1 + $0x108] sm:$0xff]
    %v72 = vld [vmem:[%s1 + $0x110] sm:$0xff]
    %v73 = vld [vmem:[%s1 + $0x118] sm:$0xff]
    %v74 = vld [vmem:[%s1 + $0x120] sm:$0xff]
    %v75 = vld [vmem:[%s1 + $0x128] sm:$0xff]
    %v76 = vld [vmem:[%s1 + $0x130] sm:$0xff]
    %v77 = vld [vmem:[%s1 + $0x138] sm:$0xff]
    %v78 = vld [vmem:[%s1 + $0x140] sm:$0xff]
    %v79 = vld [vmem:[%s1 + $0x148] sm:$0xff]
    %v80 = vld [vmem:[%s1 + $0x150] sm:$0xff]
    %v81 = vld [vmem:[%s1 + $0x158] sm:$0xff]
    %v82 = vld [vmem:[%s1 + $0x160] sm:$0xff]
    %v83 = vld [vmem:[%s1 + $0x168] sm:$0xff]
    %v84 = vld [vmem:[%s1 + $0x170] sm:$0xff]
    %v85 = vld [vmem:[%s1 + $0x178] sm:$0xff]
    %v86 = vld [vmem:[%s1 + $0x180] sm:$0xff]
    %v87 = vld [vmem:[%s1 + $0x188] sm:$0xff]
    %v88 = vld [vmem:[%s1 + $0x190] sm:$0xff]
    %v89 = vld [vmem:[%s1 + $0x198] sm:$0xff]
    %v90 = vld [vmem:[%s1 + $0x1a0] sm:$0xff]
    %v91 = vld [vmem:[%s1 + $0x1a8] sm:$0xff]
    %v92 = vld [vmem:[%s1 + $0x1b0] sm:$0xff]
    %v93 = vld [vmem:[%s1 + $0x1b8] sm:$0xff]
    %v94 = vld [vmem:[%s1 + $0x1c0] sm:$0xff]
    %v95 = vld [vmem:[%s1 + $0x1c8] sm:$0xff]
    %v96 = vld [vmem:[%s1 + $0x1d0] sm:$0xff]
    %v97 = vld [vmem:[%s1 + $0x1d8] sm:$0xff]
    %v98 = vld [vmem:[%s1 + $0x1e0] sm:$0xff]
    %v99 = vld [vmem:[%s1 + $0x1e8] sm:$0xff]
    %v100 = vld [vmem:[%s1 + $0x1f0] sm:$0xff]
    %v101 = vld [vmem:[%s1 + $0x1f8] sm:$0xff]
    %v102 = vld [vmem:[%s1 + $0x200] sm:$0xff]
    %v103 = vld [vmem:[%s1 + $0x208] sm:$0xff]
    %v104 = vld [vmem:[%s1 + $0x210] sm:$0xff]
    %v105 = vld [vmem:[%s1 + $0x218] sm:$0xff]
    %v106 = vld [vmem:[%s1 + $0x220] sm:$0xff]
    %v107 = vld [vmem:[%s1 + $0x228] sm:$0xff]
    %v108 = vld [vmem:[%s1 + $0x230] sm:$0xff]
    %v109 = vld [vmem:[%s1 + $0x238] sm:$0xff]
    %v110 = vld [vmem:[%s1 + $0x240] sm:$0xff]
    %v111 = vld [vmem:[%s1 + $0x248] sm:$0xff]
    %v112 = vld [vmem:[%s1 + $0x250] sm:$0xff]
    %v113 = vld [vmem:[%s1 + $0x258] sm:$0xff]
    %v114 = vld [vmem:[%s1 + $0x260] sm:$0xff]
    %v115 = vld [vmem:[%s1 + $0x268] sm:$0xff]
    %v116 = vld [vmem:[%s1 + $0x270] sm:$0xff]
    %v117 = vld [vmem:[%s1 + $0x278] sm:$0xff]
    %v118 = vld [vmem:[%s1 + $0x280] sm:$0xff]
    %v119 = vld [vmem:[%s1 + $0x288] sm:$0xff]
    %v120 = vld [vmem:[%s1 + $0x290] sm:$0xff]
    %v121 = vld [vmem:[%s1 + $0x298] sm:$0xff]
    %v122 = vld [vmem:[%s1 + $0x2a0] sm:$0xff]
    %v123 = vld [vmem:[%s1 + $0x2a8] sm:$0xff]
    %v124 = vld [vmem:[%s1 + $0x2b0] sm:$0xff]
    %v125 = vld [vmem:[%s1 + $0x2b8] sm:$0xff]
    %v126 = vld [vmem:[%s1 + $0x2c0] sm:$0xff]
    %v127 = vld [vmem:[%s1 + $0x2c8] sm:$0xff]
    %v128 = vld [vmem:[%s1 + $0x2d0] sm:$0xff]
    %v129 = vld [vmem:[%s1 + $0x2d8] sm:$0xff]
    %v130 = vld [vmem:[%s1 + $0x2e0] sm:$0xff]
    %v131 = vld [vmem:[%s1 + $0x2e8] sm:$0xff]
    %v132 = vld [vmem:[%s1 + $0x2f0] sm:$0xff]
    %v133 = vld [vmem:[%s1 + $0x2f8] sm:$0xff]
    %v134 = vld [vmem:[%s1 + $0x300] sm:$0xff]
    %v135 = vld [vmem:[%s1 + $0x308] sm:$0xff]
    %v136 = vld [vmem:[%s1 + $0x310] sm:$0xff]
    %v137 = vld [vmem:[%s1 + $0x318] sm:$0xff]
    %v138 = vld [vmem:[%s1 + $0x320] sm:$0xff]
    %v139 = vld [vmem:[%s1 + $0x328] sm:$0xff]
    %v140 = vld [vmem:[%s1 + $0x330] sm:$0xff]
    %v141 = vld [vmem:[%s1 + $0x338] sm:$0xff]
    %v142 = vld [vmem:[%s1 + $0x340] sm:$0xff]
    %v143 = vld [vmem:[%s1 + $0x348] sm:$0xff]
    %v144 = vld [vmem:[%s1 + $0x350] sm:$0xff]
    %v145 = vld [vmem:[%s1 + $0x358] sm:$0xff]
    %v146 = vld [vmem:[%s1 + $0x360] sm:$0xff]
    %v147 = vld [vmem:[%s1 + $0x368] sm:$0xff]
    %v148 = vld [vmem:[%s1 + $0x370] sm:$0xff]
    %v149 = vld [vmem:[%s1 + $0x378] sm:$0xff]
    %v150 = vld [vmem:[%s1 + $0x380] sm:$0xff]
    %v151 = vld [vmem:[%s1 + $0x388] sm:$0xff]
    %v152 = vld [vmem:[%s1 + $0x390] sm:$0xff]
    %v153 = vld [vmem:[%s1 + $0x398] sm:$0xff]
    %v154 = vld [vmem:[%s1 + $0x3a0] sm:$0xff]
    %v155 = vld [vmem:[%s1 + $0x3a8] sm:$0xff]
    %v156 = vld [vmem:[%s1 + $0x3b0] sm:$0xff]
    %v157 = vld [vmem:[%s1 + $0x3b8] sm:$0xff]
    %v158 = vld [vmem:[%s1 + $0x3c0] sm:$0xff]
    %v159 = vld [vmem:[%s1 + $0x3c8] sm:$0xff]
    %v160 = vld [vmem:[%s1 + $0x3d0] sm:$0xff]
    %v161 = vld [vmem:[%s1 + $0x3d8] sm:$0xff]
    %v162 = vld [vmem:[%s1 + $0x3e0] sm:$0xff]
    %v163 = vld [vmem:[%s1 + $0x3e8] sm:$0xff]
    %v164 = vld [vmem:[%s1 + $0x3f0] sm:$0xff]
    %v165 = vld [vmem:[%s1 + $0x3f8] sm:$0xff]
    %v166 = vld [vmem:[%s1 + $0x400] sm:$0xff]
    %v167 = vld [vmem:[%s1 + $0x408] sm:$0xff]
    %v168 = vld [vmem:[%s1 + $0x410] sm:$0xff]
    %v169 = vld [vmem:[%s1 + $0x418] sm:$0xff]
    %v170 = vld [vmem:[%s1 + $0x420] sm:$0xff]
    %v171 = vld [vmem:[%s1 + $0x428] sm:$0xff]
    %v172 = vld [vmem:[%s1 + $0x430] sm:$0xff]
    %v173 = vld [vmem:[%s1 + $0x438] sm:$0xff]
    %v174 = vld [vmem:[%s1 + $0x440] sm:$0xff]
    %v175 = vld [vmem:[%s1 + $0x448] sm:$0xff]
    %v176 = vld [vmem:[%s1 + $0x450] sm:$0xff]
    %v177 = vld [vmem:[%s1 + $0x458] sm:$0xff]
    %v178 = vld [vmem:[%s1 + $0x460] sm:$0xff]
    %v179 = vld [vmem:[%s1 + $0x468] sm:$0xff]
    %v180 = vld [vmem:[%s1 + $0x470] sm:$0xff]
    %v181 = vld [vmem:[%s1 + $0x478] sm:$0xff]
    %v182 = vld [vmem:[%s1 + $0x480] sm:$0xff]
    %v183 = vld [vmem:[%s1 + $0x488] sm:$0xff]
    %v184 = vld [vmem:[%s1 + $0x490] sm:$0xff]
    %v185 = vld [vmem:[%s1 + $0x498] sm:$0xff]
    %v186 = vld [vmem:[%s1 + $0x4a0] sm:$0xff]
    %v187 = vld [vmem:[%s1 + $0x4a8] sm:$0xff]
    %v188 = vld [vmem:[%s1 + $0x4b0] sm:$0xff]
    %v189 = vld [vmem:[%s1 + $0x4b8] sm:$0xff]
    %v190 = vld [vmem:[%s1 + $0x4c0] sm:$0xff]
    %v191 = vld [vmem:[%s1 + $0x4c8] sm:$0xff]
    %v192 = vld [vmem:[%s1 + $0x4d0] sm:$0xff]
    %v193 = vld [vmem:[%s1 + $0x4d8] sm:$0xff]
    %v194 = vld [vmem:[%s1 + $0x4e0] sm:$0xff]
    %v195 = vld [vmem:[%s1 + $0x4e8] sm:$0xff]
    %v196 = vld [vmem:[%s1 + $0x4f0] sm:$0xff]
    %v197 = vld [vmem:[%s1 + $0x4f8] sm:$0xff]
    %v198 = vld [vmem:[%s1 + $0x500] sm:$0xff]
    %v199 = vld [vmem:[%s1 + $0x508] sm:$0xff]
    %v200 = vld [vmem:[%s1 + $0x510] sm:$0xff]
    %v201 = vld [vmem:[%s1 + $0x518] sm:$0xff]
    %v202 = vld [vmem:[%s1 + $0x520] sm:$0xff]
    %v203 = vld [vmem:[%s1 + $0x528] sm:$0xff]
    %v204 = vld [vmem:[%s1 + $0x530] sm:$0xff]
    %v205 = vld [vmem:[%s1 + $0x538] sm:$0xff]
    %v206 = vld [vmem:[%s1 + $0x540] sm:$0xff]
    %v207 = vld [vmem:[%s1 + $0x548] sm:$0xff]
    %v208 = vld [vmem:[%s1 + $0x550] sm:$0xff]
    %v209 = vld [vmem:[%s1 + $0x558] sm:$0xff]
    %v210 = vld [vmem:[%s1 + $0x560] sm:$0xff]
    %v211 = vld [vmem:[%s1 + $0x568] sm:$0xff]
    %v212 = vld [vmem:[%s1 + $0x570] sm:$0xff]
    %v213 = vld [vmem:[%s1 + $0x578] sm:$0xff]
    %v214 = vld [vmem:[%s1 + $0x580] sm:$0xff]
    %v215 = vld [vmem:[%s1 + $0x588] sm:$0xff]
    %v216 = vld [vmem:[%s1 + $0x590] sm:$0xff]
    %v217 = vld [vmem:[%s1 + $0x598] sm:$0xff]
    %v218 = vld [vmem:[%s1 + $0x5a0] sm:$0xff]
    %v219 = vld [vmem:[%s1 + $0x5a8] sm:$0xff]
    %v220 = vld [vmem:[%s1 + $0x5b0] sm:$0xff]
    %v221 = vld [vmem:[%s1 + $0x5b8] sm:$0xff]
    %v222 = vld [vmem:[%s1 + $0x5c0] sm:$0xff]
    %v223 = vld [vmem:[%s1 + $0x5c8] sm:$0xff]
    %v224 = vld [vmem:[%s1 + $0x5d0] sm:$0xff]
    %v225 = vld [vmem:[%s1 + $0x5d8] sm:$0xff]
    %v226 = vld [vmem:[%s1 + $0x5e0] sm:$0xff]
    %v227 = vld [vmem:[%s1 + $0x5e8] sm:$0xff]
    %v228 = vld [vmem:[%s1 + $0x5f0] sm:$0xff]
    %v229 = vld [vmem:[%s1 + $0x5f8] sm:$0xff]
    %v230 = vld [vmem:[%s1 + $0x600] sm:$0xff]
    %v231 = vld [vmem:[%s1 + $0x608] sm:$0xff]
    %v232 = vld [vmem:[%s1 + $0x610] sm:$0xff]
    %v233 = vld [vmem:[%s1 + $0x618] sm:$0xff]
    %v234 = vld [vmem:[%s1 + $0x620] sm:$0xff]
    %v235 = vld [vmem:[%s1 + $0x628] sm:$0xff]
    %v236 = vld [vmem:[%s1 + $0x630] sm:$0xff]
    %v237 = vld [vmem:[%s1 + $0x638] sm:$0xff]
    %v238 = vld [vmem:[%s1 + $0x640] sm:$0xff]
    %v239 = vld [vmem:[%s1 + $0x648] sm:$0xff]
    %v240 = vld [vmem:[%s1 + $0x650] sm:$0xff]
    %v241 = vld [vmem:[%s1 + $0x658] sm:$0xff]
    %v242 = vld [vmem:[%s1 + $0x660] sm:$0xff]
    %v243 = vld [vmem:[%s1 + $0x668] sm:$0xff]
    %v244 = vld [vmem:[%s1 + $0x670] sm:$0xff]
    %v245 = vld [vmem:[%s1 + $0x678] sm:$0xff]
    %v246 = vld [vmem:[%s1 + $0x680] sm:$0xff]
    %v247 = vld [vmem:[%s1 + $0x688] sm:$0xff]
    %v248 = vld [vmem:[%s1 + $0x690] sm:$0xff]
    %v249 = vld [vmem:[%s1 + $0x698] sm:$0xff]
    %v250 = vld [vmem:[%s1 + $0x6a0] sm:$0xff]
    %v251 = vld [vmem:[%s1 + $0x6a8] sm:$0xff]
    %v252 = vld [vmem:[%s1 + $0x6b0] sm:$0xff]
    %v253 = vld [vmem:[%s1 + $0x6b8] sm:$0xff]
    %v254 = vld [vmem:[%s1 + $0x6c0] sm:$0xff]
    %v255 = vld [vmem:[%s1 + $0x6c8] sm:$0xff]
    %v256 = vld [vmem:[%s1 + $0x6d0] sm:$0xff]
    %v257 = vld [vmem:[%s1 + $0x6d8] sm:$0xff]
    %v258 = vld [vmem:[%s1 + $0x6e0] sm:$0xff]
    %v259 = vld [vmem:[%s1 + $0x6e8] sm:$0xff]
    %v260 = vld [vmem:[%s1 + $0x6f0] sm:$0xff]
    %v261 = vld [vmem:[%s1 + $0x6f8] sm:$0xff]
    %v262 = vld [vmem:[%s1 + $0x700] sm:$0xff]
    %v263 = vld [vmem:[%s1 + $0x708] sm:$0xff]
    %v264 = vld [vmem:[%s1 + $0x710] sm:$0xff]
    %v265 = vld [vmem:[%s1 + $0x718] sm:$0xff]
    %v266 = vld [vmem:[%s1 + $0x720] sm:$0xff]
    %v267 = vld [vmem:[%s1 + $0x728] sm:$0xff]
    %v268 = vld [vmem:[%s1 + $0x730] sm:$0xff]
    %v269 = vld [vmem:[%s1 + $0x738] sm:$0xff]
    %v270 = vld [vmem:[%s1 + $0x740] sm:$0xff]
    %v271 = vld [vmem:[%s1 + $0x748] sm:$0xff]
    %v272 = vld [vmem:[%s1 + $0x750] sm:$0xff]
    %v273 = vld [vmem:[%s1 + $0x758] sm:$0xff]
    %v274 = vld [vmem:[%s1 + $0x760] sm:$0xff]
    %v275 = vld [vmem:[%s1 + $0x768] sm:$0xff]
    %v276 = vld [vmem:[%s1 + $0x770] sm:$0xff]
    %v277 = vld [vmem:[%s1 + $0x778] sm:$0xff]
    %v278 = vld [vmem:[%s1 + $0x780] sm:$0xff]
    %v279 = vld [vmem:[%s1 + $0x788] sm:$0xff]
    %v280 = vld [vmem:[%s1 + $0x790] sm:$0xff]
    %v281 = vld [vmem:[%s1 + $0x798] sm:$0xff]
    %v282 = vld [vmem:[%s1 + $0x7a0] sm:$0xff]
    %v283 = vld [vmem:[%s1 + $0x7a8] sm:$0xff]
    %v284 = vld [vmem:[%s1 + $0x7b0] sm:$0xff]
    %v285 = vld [vmem:[%s1 + $0x7b8] sm:$0xff]
    %v286 = vld [vmem:[%s1 + $0x7c0] sm:$0xff]
    %v287 = vld [vmem:[%s1 + $0x7c8] sm:$0xff]
    %v288 = vld [vmem:[%s1 + $0x7d0] sm:$0xff]
    %v289 = vld [vmem:[%s1 + $0x7d8] sm:$0xff]
    %v290 = vld [vmem:[%s1 + $0x7e0] sm:$0xff]
    %v291 = vld [vmem:[%s1 + $0x7e8] sm:$0xff]
    %v292 = vld [vmem:[%s1 + $0x7f0] sm:$0xff]
    %v293 = vld [vmem:[%s1 + $0x7f8] sm:$0xff]
    %v294 = vld [vmem:[%s2] sm:$0x1]
    %v296 = vlaneseq
    %v297 = vshrl.u32 %v296, 7
    %v298 = vsub.s32 0, %v297
    %v299 = vrot.slane %v294, %v298
    %v305 = vcombine.high %v34, %v34
    %v307 = vunpack.c.l.s4 1983009808
    %v308 = vunpack.c.0.s8 %v307
    %v309 = vlaneseq
    %v310 = vshrl.u32 %v309, 7
    %v311 = vsub.s32 %v308, %v310
    %v312 = vrot.slane %v34, %v311
    %v314 = vunpack.c.l.s4 1983009808
    %v315 = vunpack.c.0.s8 %v314
    %v316 = vlaneseq
    %v317 = vshrl.u32 %v316, 7
    %v318 = vsub.s32 %v315, %v317
    %v319 = vrot.slane %v305, %v318
    %v320 = vcombine.high %v312, %v312
    %v321 = vcombine.high %v319, %v319
    %v322 = vcombine.high %v35, %v35
    %v324 = vunpack.c.l.s4 1983009808
    %v325 = vunpack.c.0.s8 %v324
    %v326 = vlaneseq
    %v327 = vshrl.u32 %v326, 7
    %v328 = vsub.s32 %v325, %v327
    %v329 = vrot.slane %v35, %v328
    %v331 = vunpack.c.l.s4 1983009808
    %v332 = vunpack.c.0.s8 %v331
    %v333 = vlaneseq
    %v334 = vshrl.u32 %v333, 7
    %v335 = vsub.s32 %v332, %v334
    %v336 = vrot.slane %v322, %v335
    %v337 = vcombine.high %v329, %v329
    %v338 = vcombine.high %v336, %v336
    %v339 = vcombine.high %v36, %v36
    %v341 = vunpack.c.l.s4 1983009808
    %v342 = vunpack.c.0.s8 %v341
    %v343 = vlaneseq
    %v344 = vshrl.u32 %v343, 7
    %v345 = vsub.s32 %v342, %v344
    %v346 = vrot.slane %v36, %v345
    %v348 = vunpack.c.l.s4 1983009808
    %v349 = vunpack.c.0.s8 %v348
    %v350 = vlaneseq
    %v351 = vshrl.u32 %v350, 7
    %v352 = vsub.s32 %v349, %v351
    %v353 = vrot.slane %v339, %v352
    %v354 = vcombine.high %v346, %v346
    %v355 = vcombine.high %v353, %v353
    %v356 = vcombine.high %v37, %v37
    %v358 = vunpack.c.l.s4 1983009808
    %v359 = vunpack.c.0.s8 %v358
    %v360 = vlaneseq
    %v361 = vshrl.u32 %v360, 7
    %v362 = vsub.s32 %v359, %v361
    %v363 = vrot.slane %v37, %v362
    %v365 = vunpack.c.l.s4 1983009808
    %v366 = vunpack.c.0.s8 %v365
    %v367 = vlaneseq
    %v368 = vshrl.u32 %v367, 7
    %v369 = vsub.s32 %v366, %v368
    %v370 = vrot.slane %v356, %v369
    %v371 = vcombine.high %v363, %v363
    %v372 = vcombine.high %v370, %v370
    %389 = vmatprep.subr.mxu0 0.0
    %390 = vmatpush1.msra.mxu0 %v38
    %391 = vmatprep.subr.mxu0 0.0
    %392 = vmatpush1.msra.mxu0 %v39
    %393 = vmatprep.subr.mxu0 0.0
    %394 = vmatpush1.msra.mxu0 %v40
    %395 = vmatprep.subr.mxu0 0.0
    %396 = vmatpush1.msra.mxu0 %v41
    %397 = vmatprep.subr.mxu0 0.0
    %398 = vmatpush1.msra.mxu0 %v42
    %399 = vmatprep.subr.mxu0 0.0
    %400 = vmatpush1.msra.mxu0 %v43
    %401 = vmatprep.subr.mxu0 0.0
    %402 = vmatpush1.msra.mxu0 %v44
    %403 = vmatprep.subr.mxu0 0.0
    %404 = vmatpush1.msra.mxu0 %v45
    %405 = vmatprep.subr.mxu0 0.0
    %406 = vmatpush1.msra.mxu0 %v46
    %407 = vmatprep.subr.mxu0 0.0
    %408 = vmatpush1.msra.mxu0 %v47
    %409 = vmatprep.subr.mxu0 0.0
    %410 = vmatpush1.msra.mxu0 %v48
    %411 = vmatprep.subr.mxu0 0.0
    %412 = vmatpush1.msra.mxu0 %v49
    %413 = vmatprep.subr.mxu0 0.0
    %414 = vmatpush1.msra.mxu0 %v50
    %415 = vmatprep.subr.mxu0 0.0
    %416 = vmatpush1.msra.mxu0 %v51
    %417 = vmatprep.subr.mxu0 0.0
    %418 = vmatpush1.msra.mxu0 %v52
    %419 = vmatprep.subr.mxu0 0.0
    %420 = vmatpush1.msra.mxu0 %v53
    %421 = vmatprep.subr.mxu0 0.0
    %422 = vmatpush1.msra.mxu0 %v54
    %423 = vmatprep.subr.mxu0 0.0
    %424 = vmatpush1.msra.mxu0 %v55
    %425 = vmatprep.subr.mxu0 0.0
    %426 = vmatpush1.msra.mxu0 %v56
    %427 = vmatprep.subr.mxu0 0.0
    %428 = vmatpush1.msra.mxu0 %v57
    %429 = vmatprep.subr.mxu0 0.0
    %430 = vmatpush1.msra.mxu0 %v58
    %431 = vmatprep.subr.mxu0 0.0
    %432 = vmatpush1.msra.mxu0 %v59
    %433 = vmatprep.subr.mxu0 0.0
    %434 = vmatpush1.msra.mxu0 %v60
    %435 = vmatprep.subr.mxu0 0.0
    %436 = vmatpush1.msra.mxu0 %v61
    %437 = vmatprep.subr.mxu0 0.0
    %438 = vmatpush1.msra.mxu0 %v62
    %439 = vmatprep.subr.mxu0 0.0
    %440 = vmatpush1.msra.mxu0 %v63
    %441 = vmatprep.subr.mxu0 0.0
    %442 = vmatpush1.msra.mxu0 %v64
    %443 = vmatprep.subr.mxu0 0.0
    %444 = vmatpush1.msra.mxu0 %v65
    %445 = vmatprep.subr.mxu0 0.0
    %446 = vmatpush1.msra.mxu0 %v66
    %447 = vmatprep.subr.mxu0 0.0
    %448 = vmatpush1.msra.mxu0 %v67
    %449 = vmatprep.subr.mxu0 0.0
    %450 = vmatpush1.msra.mxu0 %v68
    %451 = vmatprep.subr.mxu0 0.0
    %452 = vmatpush1.msra.mxu0 %v69
    %453 = vmatprep.mubr.f32.mxu0 %v320
    %454 = vmatmul.mubr.f32.gmra.mrb[0].mxu0 %v312
    %v455 = vpop.f32.mrb[0].mxu0
    %v456 = vadd.f32 %v299, %v455
    %v457 = vpop.f32.mrb[0].mxu0
    %458 = vdwg.mxu0
    %459 = vmatprep.subr.mxu0 0.0
    %460 = vmatpush1.msra.mxu0 %v70
    %461 = vmatprep.subr.mxu0 0.0
    %462 = vmatpush1.msra.mxu0 %v71
    %463 = vmatprep.subr.mxu0 0.0
    %464 = vmatpush1.msra.mxu0 %v72
    %465 = vmatprep.subr.mxu0 0.0
    %466 = vmatpush1.msra.mxu0 %v73
    %467 = vmatprep.subr.mxu0 0.0
    %468 = vmatpush1.msra.mxu0 %v74
    %469 = vmatprep.subr.mxu0 0.0
    %470 = vmatpush1.msra.mxu0 %v75
    %471 = vmatprep.subr.mxu0 0.0
    %472 = vmatpush1.msra.mxu0 %v76
    %473 = vmatprep.subr.mxu0 0.0
    %474 = vmatpush1.msra.mxu0 %v77
    %475 = vmatprep.subr.mxu0 0.0
    %476 = vmatpush1.msra.mxu0 %v78
    %477 = vmatprep.subr.mxu0 0.0
    %478 = vmatpush1.msra.mxu0 %v79
    %479 = vmatprep.subr.mxu0 0.0
    %480 = vmatpush1.msra.mxu0 %v80
    %481 = vmatprep.subr.mxu0 0.0
    %482 = vmatpush1.msra.mxu0 %v81
    %483 = vmatprep.subr.mxu0 0.0
    %484 = vmatpush1.msra.mxu0 %v82
    %485 = vmatprep.subr.mxu0 0.0
    %486 = vmatpush1.msra.mxu0 %v83
    %487 = vmatprep.subr.mxu0 0.0
    %488 = vmatpush1.msra.mxu0 %v84
    %489 = vmatprep.subr.mxu0 0.0
    %490 = vmatpush1.msra.mxu0 %v85
    %491 = vmatprep.subr.mxu0 0.0
    %492 = vmatpush1.msra.mxu0 %v86
    %493 = vmatprep.subr.mxu0 0.0
    %494 = vmatpush1.msra.mxu0 %v87
    %495 = vmatprep.subr.mxu0 0.0
    %496 = vmatpush1.msra.mxu0 %v88
    %497 = vmatprep.subr.mxu0 0.0
    %498 = vmatpush1.msra.mxu0 %v89
    %499 = vmatprep.subr.mxu0 0.0
    %500 = vmatpush1.msra.mxu0 %v90
    %501 = vmatprep.subr.mxu0 0.0
    %502 = vmatpush1.msra.mxu0 %v91
    %503 = vmatprep.subr.mxu0 0.0
    %504 = vmatpush1.msra.mxu0 %v92
    %505 = vmatprep.subr.mxu0 0.0
    %506 = vmatpush1.msra.mxu0 %v93
    %507 = vmatprep.subr.mxu0 0.0
    %508 = vmatpush1.msra.mxu0 %v94
    %509 = vmatprep.subr.mxu0 0.0
    %510 = vmatpush1.msra.mxu0 %v95
    %511 = vmatprep.subr.mxu0 0.0
    %512 = vmatpush1.msra.mxu0 %v96
    %513 = vmatprep.subr.mxu0 0.0
    %514 = vmatpush1.msra.mxu0 %v97
    %515 = vmatprep.subr.mxu0 0.0
    %516 = vmatpush1.msra.mxu0 %v98
    %517 = vmatprep.subr.mxu0 0.0
    %518 = vmatpush1.msra.mxu0 %v99
    %519 = vmatprep.subr.mxu0 0.0
    %520 = vmatpush1.msra.mxu0 %v100
    %521 = vmatprep.subr.mxu0 0.0
    %522 = vmatpush1.msra.mxu0 %v101
    %523 = vmatprep.mubr.f32.mxu0 %v321
    %524 = vmatmul.mubr.f32.gmra.mrb[0].mxu0 %v319
    %v525 = vpop.f32.mrb[0].mxu0
    %v526 = vadd.f32 %v456, %v525
    %v527 = vpop.f32.mrb[0].mxu0
    %528 = vdwg.mxu0
    %529 = vmatprep.subr.mxu0 0.0
    %530 = vmatpush1.msra.mxu0 %v102
    %531 = vmatprep.subr.mxu0 0.0
    %532 = vmatpush1.msra.mxu0 %v103
    %533 = vmatprep.subr.mxu0 0.0
    %534 = vmatpush1.msra.mxu0 %v104
    %535 = vmatprep.subr.mxu0 0.0
    %536 = vmatpush1.msra.mxu0 %v105
    %537 = vmatprep.subr.mxu0 0.0
    %538 = vmatpush1.msra.mxu0 %v106
    %539 = vmatprep.subr.mxu0 0.0
    %540 = vmatpush1.msra.mxu0 %v107
    %541 = vmatprep.subr.mxu0 0.0
    %542 = vmatpush1.msra.mxu0 %v108
    %543 = vmatprep.subr.mxu0 0.0
    %544 = vmatpush1.msra.mxu0 %v109
    %545 = vmatprep.subr.mxu0 0.0
    %546 = vmatpush1.msra.mxu0 %v110
    %547 = vmatprep.subr.mxu0 0.0
    %548 = vmatpush1.msra.mxu0 %v111
    %549 = vmatprep.subr.mxu0 0.0
    %550 = vmatpush1.msra.mxu0 %v112
    %551 = vmatprep.subr.mxu0 0.0
    %552 = vmatpush1.msra.mxu0 %v113
    %553 = vmatprep.subr.mxu0 0.0
    %554 = vmatpush1.msra.mxu0 %v114
    %555 = vmatprep.subr.mxu0 0.0
    %556 = vmatpush1.msra.mxu0 %v115
    %557 = vmatprep.subr.mxu0 0.0
    %558 = vmatpush1.msra.mxu0 %v116
    %559 = vmatprep.subr.mxu0 0.0
    %560 = vmatpush1.msra.mxu0 %v117
    %561 = vmatprep.subr.mxu0 0.0
    %562 = vmatpush1.msra.mxu0 %v118
    %563 = vmatprep.subr.mxu0 0.0
    %564 = vmatpush1.msra.mxu0 %v119
    %565 = vmatprep.subr.mxu0 0.0
    %566 = vmatpush1.msra.mxu0 %v120
    %567 = vmatprep.subr.mxu0 0.0
    %568 = vmatpush1.msra.mxu0 %v121
    %569 = vmatprep.subr.mxu0 0.0
    %570 = vmatpush1.msra.mxu0 %v122
    %571 = vmatprep.subr.mxu0 0.0
    %572 = vmatpush1.msra.mxu0 %v123
    %573 = vmatprep.subr.mxu0 0.0
    %574 = vmatpush1.msra.mxu0 %v124
    %575 = vmatprep.subr.mxu0 0.0
    %576 = vmatpush1.msra.mxu0 %v125
    %577 = vmatprep.subr.mxu0 0.0
    %578 = vmatpush1.msra.mxu0 %v126
    %579 = vmatprep.subr.mxu0 0.0
    %580 = vmatpush1.msra.mxu0 %v127
    %581 = vmatprep.subr.mxu0 0.0
    %582 = vmatpush1.msra.mxu0 %v128
    %583 = vmatprep.subr.mxu0 0.0
    %584 = vmatpush1.msra.mxu0 %v129
    %585 = vmatprep.subr.mxu0 0.0
    %586 = vmatpush1.msra.mxu0 %v130
    %587 = vmatprep.subr.mxu0 0.0
    %588 = vmatpush1.msra.mxu0 %v131
    %589 = vmatprep.subr.mxu0 0.0
    %590 = vmatpush1.msra.mxu0 %v132
    %591 = vmatprep.subr.mxu0 0.0
    %592 = vmatpush1.msra.mxu0 %v133
    %593 = vmatprep.mubr.f32.mxu0 %v337
    %594 = vmatmul.mubr.f32.gmra.mrb[0].mxu0 %v329
    %v595 = vpop.f32.mrb[0].mxu0
    %v596 = vadd.f32 %v526, %v595
    %v597 = vpop.f32.mrb[0].mxu0
    %598 = vdwg.mxu0
    %599 = vmatprep.subr.mxu0 0.0
    %600 = vmatpush1.msra.mxu0 %v134
    %601 = vmatprep.subr.mxu0 0.0
    %602 = vmatpush1.msra.mxu0 %v135
    %603 = vmatprep.subr.mxu0 0.0
    %604 = vmatpush1.msra.mxu0 %v136
    %605 = vmatprep.subr.mxu0 0.0
    %606 = vmatpush1.msra.mxu0 %v137
    %607 = vmatprep.subr.mxu0 0.0
    %608 = vmatpush1.msra.mxu0 %v138
    %609 = vmatprep.subr.mxu0 0.0
    %610 = vmatpush1.msra.mxu0 %v139
    %611 = vmatprep.subr.mxu0 0.0
    %612 = vmatpush1.msra.mxu0 %v140
    %613 = vmatprep.subr.mxu0 0.0
    %614 = vmatpush1.msra.mxu0 %v141
    %615 = vmatprep.subr.mxu0 0.0
    %616 = vmatpush1.msra.mxu0 %v142
    %617 = vmatprep.subr.mxu0 0.0
    %618 = vmatpush1.msra.mxu0 %v143
    %619 = vmatprep.subr.mxu0 0.0
    %620 = vmatpush1.msra.mxu0 %v144
    %621 = vmatprep.subr.mxu0 0.0
    %622 = vmatpush1.msra.mxu0 %v145
    %623 = vmatprep.subr.mxu0 0.0
    %624 = vmatpush1.msra.mxu0 %v146
    %625 = vmatprep.subr.mxu0 0.0
    %626 = vmatpush1.msra.mxu0 %v147
    %627 = vmatprep.subr.mxu0 0.0
    %628 = vmatpush1.msra.mxu0 %v148
    %629 = vmatprep.subr.mxu0 0.0
    %630 = vmatpush1.msra.mxu0 %v149
    %631 = vmatprep.subr.mxu0 0.0
    %632 = vmatpush1.msra.mxu0 %v150
    %633 = vmatprep.subr.mxu0 0.0
    %634 = vmatpush1.msra.mxu0 %v151
    %635 = vmatprep.subr.mxu0 0.0
    %636 = vmatpush1.msra.mxu0 %v152
    %637 = vmatprep.subr.mxu0 0.0
    %638 = vmatpush1.msra.mxu0 %v153
    %639 = vmatprep.subr.mxu0 0.0
    %640 = vmatpush1.msra.mxu0 %v154
    %641 = vmatprep.subr.mxu0 0.0
    %642 = vmatpush1.msra.mxu0 %v155
    %643 = vmatprep.subr.mxu0 0.0
    %644 = vmatpush1.msra.mxu0 %v156
    %645 = vmatprep.subr.mxu0 0.0
    %646 = vmatpush1.msra.mxu0 %v157
    %647 = vmatprep.subr.mxu0 0.0
    %648 = vmatpush1.msra.mxu0 %v158
    %649 = vmatprep.subr.mxu0 0.0
    %650 = vmatpush1.msra.mxu0 %v159
    %651 = vmatprep.subr.mxu0 0.0
    %652 = vmatpush1.msra.mxu0 %v160
    %653 = vmatprep.subr.mxu0 0.0
    %654 = vmatpush1.msra.mxu0 %v161
    %655 = vmatprep.subr.mxu0 0.0
    %656 = vmatpush1.msra.mxu0 %v162
    %657 = vmatprep.subr.mxu0 0.0
    %658 = vmatpush1.msra.mxu0 %v163
    %659 = vmatprep.subr.mxu0 0.0
    %660 = vmatpush1.msra.mxu0 %v164
    %661 = vmatprep.subr.mxu0 0.0
    %662 = vmatpush1.msra.mxu0 %v165
    %663 = vmatprep.mubr.f32.mxu0 %v338
    %664 = vmatmul.mubr.f32.gmra.mrb[0].mxu0 %v336
    %v665 = vpop.f32.mrb[0].mxu0
    %v666 = vadd.f32 %v596, %v665
    %v667 = vpop.f32.mrb[0].mxu0
    %668 = vdwg.mxu0
    %669 = vmatprep.subr.mxu0 0.0
    %670 = vmatpush1.msra.mxu0 %v166
    %671 = vmatprep.subr.mxu0 0.0
    %672 = vmatpush1.msra.mxu0 %v167
    %673 = vmatprep.subr.mxu0 0.0
    %674 = vmatpush1.msra.mxu0 %v168
    %675 = vmatprep.subr.mxu0 0.0
    %676 = vmatpush1.msra.mxu0 %v169
    %677 = vmatprep.subr.mxu0 0.0
    %678 = vmatpush1.msra.mxu0 %v170
    %679 = vmatprep.subr.mxu0 0.0
    %680 = vmatpush1.msra.mxu0 %v171
    %681 = vmatprep.subr.mxu0 0.0
    %682 = vmatpush1.msra.mxu0 %v172
    %683 = vmatprep.subr.mxu0 0.0
    %684 = vmatpush1.msra.mxu0 %v173
    %685 = vmatprep.subr.mxu0 0.0
    %686 = vmatpush1.msra.mxu0 %v174
    %687 = vmatprep.subr.mxu0 0.0
    %688 = vmatpush1.msra.mxu0 %v175
    %689 = vmatprep.subr.mxu0 0.0
    %690 = vmatpush1.msra.mxu0 %v176
    %691 = vmatprep.subr.mxu0 0.0
    %692 = vmatpush1.msra.mxu0 %v177
    %693 = vmatprep.subr.mxu0 0.0
    %694 = vmatpush1.msra.mxu0 %v178
    %695 = vmatprep.subr.mxu0 0.0
    %696 = vmatpush1.msra.mxu0 %v179
    %697 = vmatprep.subr.mxu0 0.0
    %698 = vmatpush1.msra.mxu0 %v180
    %699 = vmatprep.subr.mxu0 0.0
    %700 = vmatpush1.msra.mxu0 %v181
    %701 = vmatprep.subr.mxu0 0.0
    %702 = vmatpush1.msra.mxu0 %v182
    %703 = vmatprep.subr.mxu0 0.0
    %704 = vmatpush1.msra.mxu0 %v183
    %705 = vmatprep.subr.mxu0 0.0
    %706 = vmatpush1.msra.mxu0 %v184
    %707 = vmatprep.subr.mxu0 0.0
    %708 = vmatpush1.msra.mxu0 %v185
    %709 = vmatprep.subr.mxu0 0.0
    %710 = vmatpush1.msra.mxu0 %v186
    %711 = vmatprep.subr.mxu0 0.0
    %712 = vmatpush1.msra.mxu0 %v187
    %713 = vmatprep.subr.mxu0 0.0
    %714 = vmatpush1.msra.mxu0 %v188
    %715 = vmatprep.subr.mxu0 0.0
    %716 = vmatpush1.msra.mxu0 %v189
    %717 = vmatprep.subr.mxu0 0.0
    %718 = vmatpush1.msra.mxu0 %v190
    %719 = vmatprep.subr.mxu0 0.0
    %720 = vmatpush1.msra.mxu0 %v191
    %721 = vmatprep.subr.mxu0 0.0
    %722 = vmatpush1.msra.mxu0 %v192
    %723 = vmatprep.subr.mxu0 0.0
    %724 = vmatpush1.msra.mxu0 %v193
    %725 = vmatprep.subr.mxu0 0.0
    %726 = vmatpush1.msra.mxu0 %v194
    %727 = vmatprep.subr.mxu0 0.0
    %728 = vmatpush1.msra.mxu0 %v195
    %729 = vmatprep.subr.mxu0 0.0
    %730 = vmatpush1.msra.mxu0 %v196
    %731 = vmatprep.subr.mxu0 0.0
    %732 = vmatpush1.msra.mxu0 %v197
    %733 = vmatprep.mubr.f32.mxu0 %v354
    %734 = vmatmul.mubr.f32.gmra.mrb[0].mxu0 %v346
    %v735 = vpop.f32.mrb[0].mxu0
    %v736 = vadd.f32 %v666, %v735
    %v737 = vpop.f32.mrb[0].mxu0
    %738 = vdwg.mxu0
    %739 = vmatprep.subr.mxu0 0.0
    %740 = vmatpush1.msra.mxu0 %v198
    %741 = vmatprep.subr.mxu0 0.0
    %742 = vmatpush1.msra.mxu0 %v199
    %743 = vmatprep.subr.mxu0 0.0
    %744 = vmatpush1.msra.mxu0 %v200
    %745 = vmatprep.subr.mxu0 0.0
    %746 = vmatpush1.msra.mxu0 %v201
    %747 = vmatprep.subr.mxu0 0.0
    %748 = vmatpush1.msra.mxu0 %v202
    %749 = vmatprep.subr.mxu0 0.0
    %750 = vmatpush1.msra.mxu0 %v203
    %751 = vmatprep.subr.mxu0 0.0
    %752 = vmatpush1.msra.mxu0 %v204
    %753 = vmatprep.subr.mxu0 0.0
    %754 = vmatpush1.msra.mxu0 %v205
    %755 = vmatprep.subr.mxu0 0.0
    %756 = vmatpush1.msra.mxu0 %v206
    %757 = vmatprep.subr.mxu0 0.0
    %758 = vmatpush1.msra.mxu0 %v207
    %759 = vmatprep.subr.mxu0 0.0
    %760 = vmatpush1.msra.mxu0 %v208
    %761 = vmatprep.subr.mxu0 0.0
    %762 = vmatpush1.msra.mxu0 %v209
    %763 = vmatprep.subr.mxu0 0.0
    %764 = vmatpush1.msra.mxu0 %v210
    %765 = vmatprep.subr.mxu0 0.0
    %766 = vmatpush1.msra.mxu0 %v211
    %767 = vmatprep.subr.mxu0 0.0
    %768 = vmatpush1.msra.mxu0 %v212
    %769 = vmatprep.subr.mxu0 0.0
    %770 = vmatpush1.msra.mxu0 %v213
    %771 = vmatprep.subr.mxu0 0.0
    %772 = vmatpush1.msra.mxu0 %v214
    %773 = vmatprep.subr.mxu0 0.0
    %774 = vmatpush1.msra.mxu0 %v215
    %775 = vmatprep.subr.mxu0 0.0
    %776 = vmatpush1.msra.mxu0 %v216
    %777 = vmatprep.subr.mxu0 0.0
    %778 = vmatpush1.msra.mxu0 %v217
    %779 = vmatprep.subr.mxu0 0.0
    %780 = vmatpush1.msra.mxu0 %v218
    %781 = vmatprep.subr.mxu0 0.0
    %782 = vmatpush1.msra.mxu0 %v219
    %783 = vmatprep.subr.mxu0 0.0
    %784 = vmatpush1.msra.mxu0 %v220
    %785 = vmatprep.subr.mxu0 0.0
    %786 = vmatpush1.msra.mxu0 %v221
    %787 = vmatprep.subr.mxu0 0.0
    %788 = vmatpush1.msra.mxu0 %v222
    %789 = vmatprep.subr.mxu0 0.0
    %790 = vmatpush1.msra.mxu0 %v223
    %791 = vmatprep.subr.mxu0 0.0
    %792 = vmatpush1.msra.mxu0 %v224
    %793 = vmatprep.subr.mxu0 0.0
    %794 = vmatpush1.msra.mxu0 %v225
    %795 = vmatprep.subr.mxu0 0.0
    %796 = vmatpush1.msra.mxu0 %v226
    %797 = vmatprep.subr.mxu0 0.0
    %798 = vmatpush1.msra.mxu0 %v227
    %799 = vmatprep.subr.mxu0 0.0
    %800 = vmatpush1.msra.mxu0 %v228
    %801 = vmatprep.subr.mxu0 0.0
    %802 = vmatpush1.msra.mxu0 %v229
    %803 = vmatprep.mubr.f32.mxu0 %v355
    %804 = vmatmul.mubr.f32.gmra.mrb[0].mxu0 %v353
    %v805 = vpop.f32.mrb[0].mxu0
    %v806 = vadd.f32 %v736, %v805
    %v807 = vpop.f32.mrb[0].mxu0
    %808 = vdwg.mxu0
    %809 = vmatprep.subr.mxu0 0.0
    %810 = vmatpush1.msra.mxu0 %v230
    %811 = vmatprep.subr.mxu0 0.0
    %812 = vmatpush1.msra.mxu0 %v231
    %813 = vmatprep.subr.mxu0 0.0
    %814 = vmatpush1.msra.mxu0 %v232
    %815 = vmatprep.subr.mxu0 0.0
    %816 = vmatpush1.msra.mxu0 %v233
    %817 = vmatprep.subr.mxu0 0.0
    %818 = vmatpush1.msra.mxu0 %v234
    %819 = vmatprep.subr.mxu0 0.0
    %820 = vmatpush1.msra.mxu0 %v235
    %821 = vmatprep.subr.mxu0 0.0
    %822 = vmatpush1.msra.mxu0 %v236
    %823 = vmatprep.subr.mxu0 0.0
    %824 = vmatpush1.msra.mxu0 %v237
    %825 = vmatprep.subr.mxu0 0.0
    %826 = vmatpush1.msra.mxu0 %v238
    %827 = vmatprep.subr.mxu0 0.0
    %828 = vmatpush1.msra.mxu0 %v239
    %829 = vmatprep.subr.mxu0 0.0
    %830 = vmatpush1.msra.mxu0 %v240
    %831 = vmatprep.subr.mxu0 0.0
    %832 = vmatpush1.msra.mxu0 %v241
    %833 = vmatprep.subr.mxu0 0.0
    %834 = vmatpush1.msra.mxu0 %v242
    %835 = vmatprep.subr.mxu0 0.0
    %836 = vmatpush1.msra.mxu0 %v243
    %837 = vmatprep.subr.mxu0 0.0
    %838 = vmatpush1.msra.mxu0 %v244
    %839 = vmatprep.subr.mxu0 0.0
    %840 = vmatpush1.msra.mxu0 %v245
    %841 = vmatprep.subr.mxu0 0.0
    %842 = vmatpush1.msra.mxu0 %v246
    %843 = vmatprep.subr.mxu0 0.0
    %844 = vmatpush1.msra.mxu0 %v247
    %845 = vmatprep.subr.mxu0 0.0
    %846 = vmatpush1.msra.mxu0 %v248
    %847 = vmatprep.subr.mxu0 0.0
    %848 = vmatpush1.msra.mxu0 %v249
    %849 = vmatprep.subr.mxu0 0.0
    %850 = vmatpush1.msra.mxu0 %v250
    %851 = vmatprep.subr.mxu0 0.0
    %852 = vmatpush1.msra.mxu0 %v251
    %853 = vmatprep.subr.mxu0 0.0
    %854 = vmatpush1.msra.mxu0 %v252
    %855 = vmatprep.subr.mxu0 0.0
    %856 = vmatpush1.msra.mxu0 %v253
    %857 = vmatprep.subr.mxu0 0.0
    %858 = vmatpush1.msra.mxu0 %v254
    %859 = vmatprep.subr.mxu0 0.0
    %860 = vmatpush1.msra.mxu0 %v255
    %861 = vmatprep.subr.mxu0 0.0
    %862 = vmatpush1.msra.mxu0 %v256
    %863 = vmatprep.subr.mxu0 0.0
    %864 = vmatpush1.msra.mxu0 %v257
    %865 = vmatprep.subr.mxu0 0.0
    %866 = vmatpush1.msra.mxu0 %v258
    %867 = vmatprep.subr.mxu0 0.0
    %868 = vmatpush1.msra.mxu0 %v259
    %869 = vmatprep.subr.mxu0 0.0
    %870 = vmatpush1.msra.mxu0 %v260
    %871 = vmatprep.subr.mxu0 0.0
    %872 = vmatpush1.msra.mxu0 %v261
    %873 = vmatprep.mubr.f32.mxu0 %v371
    %874 = vmatmul.mubr.f32.gmra.mrb[0].mxu0 %v363
    %v875 = vpop.f32.mrb[0].mxu0
    %v876 = vadd.f32 %v806, %v875
    %v877 = vpop.f32.mrb[0].mxu0
    %878 = vdwg.mxu0
    %879 = vmatprep.subr.mxu0 0.0
    %880 = vmatpush1.msra.mxu0 %v262
    %881 = vmatprep.subr.mxu0 0.0
    %882 = vmatpush1.msra.mxu0 %v263
    %883 = vmatprep.subr.mxu0 0.0
    %884 = vmatpush1.msra.mxu0 %v264
    %885 = vmatprep.subr.mxu0 0.0
    %886 = vmatpush1.msra.mxu0 %v265
    %887 = vmatprep.subr.mxu0 0.0
    %888 = vmatpush1.msra.mxu0 %v266
    %889 = vmatprep.subr.mxu0 0.0
    %890 = vmatpush1.msra.mxu0 %v267
    %891 = vmatprep.subr.mxu0 0.0
    %892 = vmatpush1.msra.mxu0 %v268
    %893 = vmatprep.subr.mxu0 0.0
    %894 = vmatpush1.msra.mxu0 %v269
    %895 = vmatprep.subr.mxu0 0.0
    %896 = vmatpush1.msra.mxu0 %v270
    %897 = vmatprep.subr.mxu0 0.0
    %898 = vmatpush1.msra.mxu0 %v271
    %899 = vmatprep.subr.mxu0 0.0
    %900 = vmatpush1.msra.mxu0 %v272
    %901 = vmatprep.subr.mxu0 0.0
    %902 = vmatpush1.msra.mxu0 %v273
    %903 = vmatprep.subr.mxu0 0.0
    %904 = vmatpush1.msra.mxu0 %v274
    %905 = vmatprep.subr.mxu0 0.0
    %906 = vmatpush1.msra.mxu0 %v275
    %907 = vmatprep.subr.mxu0 0.0
    %908 = vmatpush1.msra.mxu0 %v276
    %909 = vmatprep.subr.mxu0 0.0
    %910 = vmatpush1.msra.mxu0 %v277
    %911 = vmatprep.subr.mxu0 0.0
    %912 = vmatpush1.msra.mxu0 %v278
    %913 = vmatprep.subr.mxu0 0.0
    %914 = vmatpush1.msra.mxu0 %v279
    %915 = vmatprep.subr.mxu0 0.0
    %916 = vmatpush1.msra.mxu0 %v280
    %917 = vmatprep.subr.mxu0 0.0
    %918 = vmatpush1.msra.mxu0 %v281
    %919 = vmatprep.subr.mxu0 0.0
    %920 = vmatpush1.msra.mxu0 %v282
    %921 = vmatprep.subr.mxu0 0.0
    %922 = vmatpush1.msra.mxu0 %v283
    %923 = vmatprep.subr.mxu0 0.0
    %924 = vmatpush1.msra.mxu0 %v284
    %925 = vmatprep.subr.mxu0 0.0
    %926 = vmatpush1.msra.mxu0 %v285
    %927 = vmatprep.subr.mxu0 0.0
    %928 = vmatpush1.msra.mxu0 %v286
    %929 = vmatprep.subr.mxu0 0.0
    %930 = vmatpush1.msra.mxu0 %v287
    %931 = vmatprep.subr.mxu0 0.0
    %932 = vmatpush1.msra.mxu0 %v288
    %933 = vmatprep.subr.mxu0 0.0
    %934 = vmatpush1.msra.mxu0 %v289
    %935 = vmatprep.subr.mxu0 0.0
    %936 = vmatpush1.msra.mxu0 %v290
    %937 = vmatprep.subr.mxu0 0.0
    %938 = vmatpush1.msra.mxu0 %v291
    %939 = vmatprep.subr.mxu0 0.0
    %940 = vmatpush1.msra.mxu0 %v292
    %941 = vmatprep.subr.mxu0 0.0
    %942 = vmatpush1.msra.mxu0 %v293
    %943 = vmatprep.mubr.f32.mxu0 %v372
    %944 = vmatmul.mubr.f32.gmra.mrb[0].mxu0 %v370
    %v945 = vpop.f32.mrb[0].mxu0
    %v946 = vadd.f32 %v876, %v945
    %v947 = vpop.f32.mrb[0].mxu0
    %948 = vdwg.mxu0
    %v949 = vld [vmem:[%s3] sm:$0xff]
    %v950 = vld [vmem:[%s3 + $0x8] sm:$0xff]
    %v951 = vld [vmem:[%s3 + $0x10] sm:$0xff]
    %v952 = vld [vmem:[%s3 + $0x18] sm:$0xff]
    %v953 = vld [vmem:[%s3 + $0x20] sm:$0xff]
    %v954 = vld [vmem:[%s3 + $0x28] sm:$0xff]
    %v955 = vld [vmem:[%s3 + $0x30] sm:$0xff]
    %v956 = vld [vmem:[%s3 + $0x38] sm:$0xff]
    %v957 = vld [vmem:[%s3 + $0x40] sm:$0xff]
    %v958 = vld [vmem:[%s3 + $0x48] sm:$0xff]
    %v959 = vld [vmem:[%s3 + $0x50] sm:$0xff]
    %v960 = vld [vmem:[%s3 + $0x58] sm:$0xff]
    %v961 = vld [vmem:[%s3 + $0x60] sm:$0xff]
    %v962 = vld [vmem:[%s3 + $0x68] sm:$0xff]
    %v963 = vld [vmem:[%s3 + $0x70] sm:$0xff]
    %v964 = vld [vmem:[%s3 + $0x78] sm:$0xff]
    %v965 = vld [vmem:[%s3 + $0x80] sm:$0xff]
    %v966 = vld [vmem:[%s3 + $0x88] sm:$0xff]
    %v967 = vld [vmem:[%s3 + $0x90] sm:$0xff]
    %v968 = vld [vmem:[%s3 + $0x98] sm:$0xff]
    %v969 = vld [vmem:[%s3 + $0xa0] sm:$0xff]
    %v970 = vld [vmem:[%s3 + $0xa8] sm:$0xff]
    %v971 = vld [vmem:[%s3 + $0xb0] sm:$0xff]
    %v972 = vld [vmem:[%s3 + $0xb8] sm:$0xff]
    %v973 = vld [vmem:[%s3 + $0xc0] sm:$0xff]
    %v974 = vld [vmem:[%s3 + $0xc8] sm:$0xff]
    %v975 = vld [vmem:[%s3 + $0xd0] sm:$0xff]
    %v976 = vld [vmem:[%s3 + $0xd8] sm:$0xff]
    %v977 = vld [vmem:[%s3 + $0xe0] sm:$0xff]
    %v978 = vld [vmem:[%s3 + $0xe8] sm:$0xff]
    %v979 = vld [vmem:[%s3 + $0xf0] sm:$0xff]
    %v980 = vld [vmem:[%s3 + $0xf8] sm:$0xff]
    %v981 = vld [vmem:[%s3 + $0x100] sm:$0xff]
    %v982 = vld [vmem:[%s3 + $0x108] sm:$0xff]
    %v983 = vld [vmem:[%s3 + $0x110] sm:$0xff]
    %v984 = vld [vmem:[%s3 + $0x118] sm:$0xff]
    %v985 = vld [vmem:[%s3 + $0x120] sm:$0xff]
    %v986 = vld [vmem:[%s3 + $0x128] sm:$0xff]
    %v987 = vld [vmem:[%s3 + $0x130] sm:$0xff]
    %v988 = vld [vmem:[%s3 + $0x138] sm:$0xff]
    %v989 = vld [vmem:[%s3 + $0x140] sm:$0xff]
    %v990 = vld [vmem:[%s3 + $0x148] sm:$0xff]
    %v991 = vld [vmem:[%s3 + $0x150] sm:$0xff]
    %v992 = vld [vmem:[%s3 + $0x158] sm:$0xff]
    %v993 = vld [vmem:[%s3 + $0x160] sm:$0xff]
    %v994 = vld [vmem:[%s3 + $0x168] sm:$0xff]
    %v995 = vld [vmem:[%s3 + $0x170] sm:$0xff]
    %v996 = vld [vmem:[%s3 + $0x178] sm:$0xff]
    %v997 = vld [vmem:[%s3 + $0x180] sm:$0xff]
    %v998 = vld [vmem:[%s3 + $0x188] sm:$0xff]
    %v999 = vld [vmem:[%s3 + $0x190] sm:$0xff]
    %v1000 = vld [vmem:[%s3 + $0x198] sm:$0xff]
    %v1001 = vld [vmem:[%s3 + $0x1a0] sm:$0xff]
    %v1002 = vld [vmem:[%s3 + $0x1a8] sm:$0xff]
    %v1003 = vld [vmem:[%s3 + $0x1b0] sm:$0xff]
    %v1004 = vld [vmem:[%s3 + $0x1b8] sm:$0xff]
    %v1005 = vld [vmem:[%s3 + $0x1c0] sm:$0xff]
    %v1006 = vld [vmem:[%s3 + $0x1c8] sm:$0xff]
    %v1007 = vld [vmem:[%s3 + $0x1d0] sm:$0xff]
    %v1008 = vld [vmem:[%s3 + $0x1d8] sm:$0xff]
    %v1009 = vld [vmem:[%s3 + $0x1e0] sm:$0xff]
    %v1010 = vld [vmem:[%s3 + $0x1e8] sm:$0xff]
    %v1011 = vld [vmem:[%s3 + $0x1f0] sm:$0xff]
    %v1012 = vld [vmem:[%s3 + $0x1f8] sm:$0xff]
    %v1013 = vld [vmem:[%s3 + $0x200] sm:$0xff]
    %v1014 = vld [vmem:[%s3 + $0x208] sm:$0xff]
    %v1015 = vld [vmem:[%s3 + $0x210] sm:$0xff]
    %v1016 = vld [vmem:[%s3 + $0x218] sm:$0xff]
    %v1017 = vld [vmem:[%s3 + $0x220] sm:$0xff]
    %v1018 = vld [vmem:[%s3 + $0x228] sm:$0xff]
    %v1019 = vld [vmem:[%s3 + $0x230] sm:$0xff]
    %v1020 = vld [vmem:[%s3 + $0x238] sm:$0xff]
    %v1021 = vld [vmem:[%s3 + $0x240] sm:$0xff]
    %v1022 = vld [vmem:[%s3 + $0x248] sm:$0xff]
    %v1023 = vld [vmem:[%s3 + $0x250] sm:$0xff]
    %v1024 = vld [vmem:[%s3 + $0x258] sm:$0xff]
    %v1025 = vld [vmem:[%s3 + $0x260] sm:$0xff]
    %v1026 = vld [vmem:[%s3 + $0x268] sm:$0xff]
    %v1027 = vld [vmem:[%s3 + $0x270] sm:$0xff]
    %v1028 = vld [vmem:[%s3 + $0x278] sm:$0xff]
    %v1029 = vld [vmem:[%s3 + $0x280] sm:$0xff]
    %v1030 = vld [vmem:[%s3 + $0x288] sm:$0xff]
    %v1031 = vld [vmem:[%s3 + $0x290] sm:$0xff]
    %v1032 = vld [vmem:[%s3 + $0x298] sm:$0xff]
    %v1033 = vld [vmem:[%s3 + $0x2a0] sm:$0xff]
    %v1034 = vld [vmem:[%s3 + $0x2a8] sm:$0xff]
    %v1035 = vld [vmem:[%s3 + $0x2b0] sm:$0xff]
    %v1036 = vld [vmem:[%s3 + $0x2b8] sm:$0xff]
    %v1037 = vld [vmem:[%s3 + $0x2c0] sm:$0xff]
    %v1038 = vld [vmem:[%s3 + $0x2c8] sm:$0xff]
    %v1039 = vld [vmem:[%s3 + $0x2d0] sm:$0xff]
    %v1040 = vld [vmem:[%s3 + $0x2d8] sm:$0xff]
    %v1041 = vld [vmem:[%s3 + $0x2e0] sm:$0xff]
    %v1042 = vld [vmem:[%s3 + $0x2e8] sm:$0xff]
    %v1043 = vld [vmem:[%s3 + $0x2f0] sm:$0xff]
    %v1044 = vld [vmem:[%s3 + $0x2f8] sm:$0xff]
    %v1045 = vld [vmem:[%s3 + $0x300] sm:$0xff]
    %v1046 = vld [vmem:[%s3 + $0x308] sm:$0xff]
    %v1047 = vld [vmem:[%s3 + $0x310] sm:$0xff]
    %v1048 = vld [vmem:[%s3 + $0x318] sm:$0xff]
    %v1049 = vld [vmem:[%s3 + $0x320] sm:$0xff]
    %v1050 = vld [vmem:[%s3 + $0x328] sm:$0xff]
    %v1051 = vld [vmem:[%s3 + $0x330] sm:$0xff]
    %v1052 = vld [vmem:[%s3 + $0x338] sm:$0xff]
    %v1053 = vld [vmem:[%s3 + $0x340] sm:$0xff]
    %v1054 = vld [vmem:[%s3 + $0x348] sm:$0xff]
    %v1055 = vld [vmem:[%s3 + $0x350] sm:$0xff]
    %v1056 = vld [vmem:[%s3 + $0x358] sm:$0xff]
    %v1057 = vld [vmem:[%s3 + $0x360] sm:$0xff]
    %v1058 = vld [vmem:[%s3 + $0x368] sm:$0xff]
    %v1059 = vld [vmem:[%s3 + $0x370] sm:$0xff]
    %v1060 = vld [vmem:[%s3 + $0x378] sm:$0xff]
    %v1061 = vld [vmem:[%s3 + $0x380] sm:$0xff]
    %v1062 = vld [vmem:[%s3 + $0x388] sm:$0xff]
    %v1063 = vld [vmem:[%s3 + $0x390] sm:$0xff]
    %v1064 = vld [vmem:[%s3 + $0x398] sm:$0xff]
    %v1065 = vld [vmem:[%s3 + $0x3a0] sm:$0xff]
    %v1066 = vld [vmem:[%s3 + $0x3a8] sm:$0xff]
    %v1067 = vld [vmem:[%s3 + $0x3b0] sm:$0xff]
    %v1068 = vld [vmem:[%s3 + $0x3b8] sm:$0xff]
    %v1069 = vld [vmem:[%s3 + $0x3c0] sm:$0xff]
    %v1070 = vld [vmem:[%s3 + $0x3c8] sm:$0xff]
    %v1071 = vld [vmem:[%s3 + $0x3d0] sm:$0xff]
    %v1072 = vld [vmem:[%s3 + $0x3d8] sm:$0xff]
    %v1073 = vld [vmem:[%s3 + $0x3e0] sm:$0xff]
    %v1074 = vld [vmem:[%s3 + $0x3e8] sm:$0xff]
    %v1075 = vld [vmem:[%s3 + $0x3f0] sm:$0xff]
    %v1076 = vld [vmem:[%s3 + $0x3f8] sm:$0xff]
    %v1077 = vld [vmem:[%s3 + $0x400] sm:$0xff]
    %v1078 = vld [vmem:[%s3 + $0x408] sm:$0xff]
    %v1079 = vld [vmem:[%s3 + $0x410] sm:$0xff]
    %v1080 = vld [vmem:[%s3 + $0x418] sm:$0xff]
    %v1081 = vld [vmem:[%s3 + $0x420] sm:$0xff]
    %v1082 = vld [vmem:[%s3 + $0x428] sm:$0xff]
    %v1083 = vld [vmem:[%s3 + $0x430] sm:$0xff]
    %v1084 = vld [vmem:[%s3 + $0x438] sm:$0xff]
    %v1085 = vld [vmem:[%s3 + $0x440] sm:$0xff]
    %v1086 = vld [vmem:[%s3 + $0x448] sm:$0xff]
    %v1087 = vld [vmem:[%s3 + $0x450] sm:$0xff]
    %v1088 = vld [vmem:[%s3 + $0x458] sm:$0xff]
    %v1089 = vld [vmem:[%s3 + $0x460] sm:$0xff]
    %v1090 = vld [vmem:[%s3 + $0x468] sm:$0xff]
    %v1091 = vld [vmem:[%s3 + $0x470] sm:$0xff]
    %v1092 = vld [vmem:[%s3 + $0x478] sm:$0xff]
    %v1093 = vld [vmem:[%s3 + $0x480] sm:$0xff]
    %v1094 = vld [vmem:[%s3 + $0x488] sm:$0xff]
    %v1095 = vld [vmem:[%s3 + $0x490] sm:$0xff]
    %v1096 = vld [vmem:[%s3 + $0x498] sm:$0xff]
    %v1097 = vld [vmem:[%s3 + $0x4a0] sm:$0xff]
    %v1098 = vld [vmem:[%s3 + $0x4a8] sm:$0xff]
    %v1099 = vld [vmem:[%s3 + $0x4b0] sm:$0xff]
    %v1100 = vld [vmem:[%s3 + $0x4b8] sm:$0xff]
    %v1101 = vld [vmem:[%s3 + $0x4c0] sm:$0xff]
    %v1102 = vld [vmem:[%s3 + $0x4c8] sm:$0xff]
    %v1103 = vld [vmem:[%s3 + $0x4d0] sm:$0xff]
    %v1104 = vld [vmem:[%s3 + $0x4d8] sm:$0xff]
    %v1105 = vld [vmem:[%s3 + $0x4e0] sm:$0xff]
    %v1106 = vld [vmem:[%s3 + $0x4e8] sm:$0xff]
    %v1107 = vld [vmem:[%s3 + $0x4f0] sm:$0xff]
    %v1108 = vld [vmem:[%s3 + $0x4f8] sm:$0xff]
    %v1109 = vld [vmem:[%s3 + $0x500] sm:$0xff]
    %v1110 = vld [vmem:[%s3 + $0x508] sm:$0xff]
    %v1111 = vld [vmem:[%s3 + $0x510] sm:$0xff]
    %v1112 = vld [vmem:[%s3 + $0x518] sm:$0xff]
    %v1113 = vld [vmem:[%s3 + $0x520] sm:$0xff]
    %v1114 = vld [vmem:[%s3 + $0x528] sm:$0xff]
    %v1115 = vld [vmem:[%s3 + $0x530] sm:$0xff]
    %v1116 = vld [vmem:[%s3 + $0x538] sm:$0xff]
    %v1117 = vld [vmem:[%s3 + $0x540] sm:$0xff]
    %v1118 = vld [vmem:[%s3 + $0x548] sm:$0xff]
    %v1119 = vld [vmem:[%s3 + $0x550] sm:$0xff]
    %v1120 = vld [vmem:[%s3 + $0x558] sm:$0xff]
    %v1121 = vld [vmem:[%s3 + $0x560] sm:$0xff]
    %v1122 = vld [vmem:[%s3 + $0x568] sm:$0xff]
    %v1123 = vld [vmem:[%s3 + $0x570] sm:$0xff]
    %v1124 = vld [vmem:[%s3 + $0x578] sm:$0xff]
    %v1125 = vld [vmem:[%s3 + $0x580] sm:$0xff]
    %v1126 = vld [vmem:[%s3 + $0x588] sm:$0xff]
    %v1127 = vld [vmem:[%s3 + $0x590] sm:$0xff]
    %v1128 = vld [vmem:[%s3 + $0x598] sm:$0xff]
    %v1129 = vld [vmem:[%s3 + $0x5a0] sm:$0xff]
    %v1130 = vld [vmem:[%s3 + $0x5a8] sm:$0xff]
    %v1131 = vld [vmem:[%s3 + $0x5b0] sm:$0xff]
    %v1132 = vld [vmem:[%s3 + $0x5b8] sm:$0xff]
    %v1133 = vld [vmem:[%s3 + $0x5c0] sm:$0xff]
    %v1134 = vld [vmem:[%s3 + $0x5c8] sm:$0xff]
    %v1135 = vld [vmem:[%s3 + $0x5d0] sm:$0xff]
    %v1136 = vld [vmem:[%s3 + $0x5d8] sm:$0xff]
    %v1137 = vld [vmem:[%s3 + $0x5e0] sm:$0xff]
    %v1138 = vld [vmem:[%s3 + $0x5e8] sm:$0xff]
    %v1139 = vld [vmem:[%s3 + $0x5f0] sm:$0xff]
    %v1140 = vld [vmem:[%s3 + $0x5f8] sm:$0xff]
    %v1141 = vld [vmem:[%s3 + $0x600] sm:$0xff]
    %v1142 = vld [vmem:[%s3 + $0x608] sm:$0xff]
    %v1143 = vld [vmem:[%s3 + $0x610] sm:$0xff]
    %v1144 = vld [vmem:[%s3 + $0x618] sm:$0xff]
    %v1145 = vld [vmem:[%s3 + $0x620] sm:$0xff]
    %v1146 = vld [vmem:[%s3 + $0x628] sm:$0xff]
    %v1147 = vld [vmem:[%s3 + $0x630] sm:$0xff]
    %v1148 = vld [vmem:[%s3 + $0x638] sm:$0xff]
    %v1149 = vld [vmem:[%s3 + $0x640] sm:$0xff]
    %v1150 = vld [vmem:[%s3 + $0x648] sm:$0xff]
    %v1151 = vld [vmem:[%s3 + $0x650] sm:$0xff]
    %v1152 = vld [vmem:[%s3 + $0x658] sm:$0xff]
    %v1153 = vld [vmem:[%s3 + $0x660] sm:$0xff]
    %v1154 = vld [vmem:[%s3 + $0x668] sm:$0xff]
    %v1155 = vld [vmem:[%s3 + $0x670] sm:$0xff]
    %v1156 = vld [vmem:[%s3 + $0x678] sm:$0xff]
    %v1157 = vld [vmem:[%s3 + $0x680] sm:$0xff]
    %v1158 = vld [vmem:[%s3 + $0x688] sm:$0xff]
    %v1159 = vld [vmem:[%s3 + $0x690] sm:$0xff]
    %v1160 = vld [vmem:[%s3 + $0x698] sm:$0xff]
    %v1161 = vld [vmem:[%s3 + $0x6a0] sm:$0xff]
    %v1162 = vld [vmem:[%s3 + $0x6a8] sm:$0xff]
    %v1163 = vld [vmem:[%s3 + $0x6b0] sm:$0xff]
    %v1164 = vld [vmem:[%s3 + $0x6b8] sm:$0xff]
    %v1165 = vld [vmem:[%s3 + $0x6c0] sm:$0xff]
    %v1166 = vld [vmem:[%s3 + $0x6c8] sm:$0xff]
    %v1167 = vld [vmem:[%s3 + $0x6d0] sm:$0xff]
    %v1168 = vld [vmem:[%s3 + $0x6d8] sm:$0xff]
    %v1169 = vld [vmem:[%s3 + $0x6e0] sm:$0xff]
    %v1170 = vld [vmem:[%s3 + $0x6e8] sm:$0xff]
    %v1171 = vld [vmem:[%s3 + $0x6f0] sm:$0xff]
    %v1172 = vld [vmem:[%s3 + $0x6f8] sm:$0xff]
    %v1173 = vld [vmem:[%s3 + $0x700] sm:$0xff]
    %v1174 = vld [vmem:[%s3 + $0x708] sm:$0xff]
    %v1175 = vld [vmem:[%s3 + $0x710] sm:$0xff]
    %v1176 = vld [vmem:[%s3 + $0x718] sm:$0xff]
    %v1177 = vld [vmem:[%s3 + $0x720] sm:$0xff]
    %v1178 = vld [vmem:[%s3 + $0x728] sm:$0xff]
    %v1179 = vld [vmem:[%s3 + $0x730] sm:$0xff]
    %v1180 = vld [vmem:[%s3 + $0x738] sm:$0xff]
    %v1181 = vld [vmem:[%s3 + $0x740] sm:$0xff]
    %v1182 = vld [vmem:[%s3 + $0x748] sm:$0xff]
    %v1183 = vld [vmem:[%s3 + $0x750] sm:$0xff]
    %v1184 = vld [vmem:[%s3 + $0x758] sm:$0xff]
    %v1185 = vld [vmem:[%s3 + $0x760] sm:$0xff]
    %v1186 = vld [vmem:[%s3 + $0x768] sm:$0xff]
    %v1187 = vld [vmem:[%s3 + $0x770] sm:$0xff]
    %v1188 = vld [vmem:[%s3 + $0x778] sm:$0xff]
    %v1189 = vld [vmem:[%s3 + $0x780] sm:$0xff]
    %v1190 = vld [vmem:[%s3 + $0x788] sm:$0xff]
    %v1191 = vld [vmem:[%s3 + $0x790] sm:$0xff]
    %v1192 = vld [vmem:[%s3 + $0x798] sm:$0xff]
    %v1193 = vld [vmem:[%s3 + $0x7a0] sm:$0xff]
    %v1194 = vld [vmem:[%s3 + $0x7a8] sm:$0xff]
    %v1195 = vld [vmem:[%s3 + $0x7b0] sm:$0xff]
    %v1196 = vld [vmem:[%s3 + $0x7b8] sm:$0xff]
    %v1197 = vld [vmem:[%s3 + $0x7c0] sm:$0xff]
    %v1198 = vld [vmem:[%s3 + $0x7c8] sm:$0xff]
    %v1199 = vld [vmem:[%s3 + $0x7d0] sm:$0xff]
    %v1200 = vld [vmem:[%s3 + $0x7d8] sm:$0xff]
    %v1201 = vld [vmem:[%s3 + $0x7e0] sm:$0xff]
    %v1202 = vld [vmem:[%s3 + $0x7e8] sm:$0xff]
    %v1203 = vld [vmem:[%s3 + $0x7f0] sm:$0xff]
    %v1204 = vld [vmem:[%s3 + $0x7f8] sm:$0xff]
    %v1205 = vld [vmem:[%s4] sm:$0x1]
    %v1207 = vlaneseq
    %v1208 = vshrl.u32 %v1207, 7
    %v1209 = vsub.s32 0, %v1208
    %v1210 = vrot.slane %v1205, %v1209
    %1212 = vmatprep.subr.mxu0 0.0
    %1213 = vmatpush1.msra.mxu0 %v949
    %1214 = vmatprep.subr.mxu0 0.0
    %1215 = vmatpush1.msra.mxu0 %v950
    %1216 = vmatprep.subr.mxu0 0.0
    %1217 = vmatpush1.msra.mxu0 %v951
    %1218 = vmatprep.subr.mxu0 0.0
    %1219 = vmatpush1.msra.mxu0 %v952
    %1220 = vmatprep.subr.mxu0 0.0
    %1221 = vmatpush1.msra.mxu0 %v953
    %1222 = vmatprep.subr.mxu0 0.0
    %1223 = vmatpush1.msra.mxu0 %v954
    %1224 = vmatprep.subr.mxu0 0.0
    %1225 = vmatpush1.msra.mxu0 %v955
    %1226 = vmatprep.subr.mxu0 0.0
    %1227 = vmatpush1.msra.mxu0 %v956
    %1228 = vmatprep.subr.mxu0 0.0
    %1229 = vmatpush1.msra.mxu0 %v957
    %1230 = vmatprep.subr.mxu0 0.0
    %1231 = vmatpush1.msra.mxu0 %v958
    %1232 = vmatprep.subr.mxu0 0.0
    %1233 = vmatpush1.msra.mxu0 %v959
    %1234 = vmatprep.subr.mxu0 0.0
    %1235 = vmatpush1.msra.mxu0 %v960
    %1236 = vmatprep.subr.mxu0 0.0
    %1237 = vmatpush1.msra.mxu0 %v961
    %1238 = vmatprep.subr.mxu0 0.0
    %1239 = vmatpush1.msra.mxu0 %v962
    %1240 = vmatprep.subr.mxu0 0.0
    %1241 = vmatpush1.msra.mxu0 %v963
    %1242 = vmatprep.subr.mxu0 0.0
    %1243 = vmatpush1.msra.mxu0 %v964
    %1244 = vmatprep.subr.mxu0 0.0
    %1245 = vmatpush1.msra.mxu0 %v965
    %1246 = vmatprep.subr.mxu0 0.0
    %1247 = vmatpush1.msra.mxu0 %v966
    %1248 = vmatprep.subr.mxu0 0.0
    %1249 = vmatpush1.msra.mxu0 %v967
    %1250 = vmatprep.subr.mxu0 0.0
    %1251 = vmatpush1.msra.mxu0 %v968
    %1252 = vmatprep.subr.mxu0 0.0
    %1253 = vmatpush1.msra.mxu0 %v969
    %1254 = vmatprep.subr.mxu0 0.0
    %1255 = vmatpush1.msra.mxu0 %v970
    %1256 = vmatprep.subr.mxu0 0.0
    %1257 = vmatpush1.msra.mxu0 %v971
    %1258 = vmatprep.subr.mxu0 0.0
    %1259 = vmatpush1.msra.mxu0 %v972
    %1260 = vmatprep.subr.mxu0 0.0
    %1261 = vmatpush1.msra.mxu0 %v973
    %1262 = vmatprep.subr.mxu0 0.0
    %1263 = vmatpush1.msra.mxu0 %v974
    %1264 = vmatprep.subr.mxu0 0.0
    %1265 = vmatpush1.msra.mxu0 %v975
    %1266 = vmatprep.subr.mxu0 0.0
    %1267 = vmatpush1.msra.mxu0 %v976
    %1268 = vmatprep.subr.mxu0 0.0
    %1269 = vmatpush1.msra.mxu0 %v977
    %1270 = vmatprep.subr.mxu0 0.0
    %1271 = vmatpush1.msra.mxu0 %v978
    %1272 = vmatprep.subr.mxu0 0.0
    %1273 = vmatpush1.msra.mxu0 %v979
    %1274 = vmatprep.subr.mxu0 0.0
    %1275 = vmatpush1.msra.mxu0 %v980
    %1276 = vmatprep.mubr.f32.mxu0 %v320
    %1277 = vmatmul.mubr.f32.gmra.mrb[0].mxu0 %v312
    %v1278 = vpop.f32.mrb[0].mxu0
    %v1279 = vadd.f32 %v1210, %v1278
    %v1280 = vpop.f32.mrb[0].mxu0
    %1281 = vdwg.mxu0
    %1282 = vmatprep.subr.mxu0 0.0
    %1283 = vmatpush1.msra.mxu0 %v981
    %1284 = vmatprep.subr.mxu0 0.0
    %1285 = vmatpush1.msra.mxu0 %v982
    %1286 = vmatprep.subr.mxu0 0.0
    %1287 = vmatpush1.msra.mxu0 %v983
    %1288 = vmatprep.subr.mxu0 0.0
    %1289 = vmatpush1.msra.mxu0 %v984
    %1290 = vmatprep.subr.mxu0 0.0
    %1291 = vmatpush1.msra.mxu0 %v985
    %1292 = vmatprep.subr.mxu0 0.0
    %1293 = vmatpush1.msra.mxu0 %v986
    %1294 = vmatprep.subr.mxu0 0.0
    %1295 = vmatpush1.msra.mxu0 %v987
    %1296 = vmatprep.subr.mxu0 0.0
    %1297 = vmatpush1.msra.mxu0 %v988
    %1298 = vmatprep.subr.mxu0 0.0
    %1299 = vmatpush1.msra.mxu0 %v989
    %1300 = vmatprep.subr.mxu0 0.0
    %1301 = vmatpush1.msra.mxu0 %v990
    %1302 = vmatprep.subr.mxu0 0.0
    %1303 = vmatpush1.msra.mxu0 %v991
    %1304 = vmatprep.subr.mxu0 0.0
    %1305 = vmatpush1.msra.mxu0 %v992
    %1306 = vmatprep.subr.mxu0 0.0
    %1307 = vmatpush1.msra.mxu0 %v993
    %1308 = vmatprep.subr.mxu0 0.0
    %1309 = vmatpush1.msra.mxu0 %v994
    %1310 = vmatprep.subr.mxu0 0.0
    %1311 = vmatpush1.msra.mxu0 %v995
    %1312 = vmatprep.subr.mxu0 0.0
    %1313 = vmatpush1.msra.mxu0 %v996
    %1314 = vmatprep.subr.mxu0 0.0
    %1315 = vmatpush1.msra.mxu0 %v997
    %1316 = vmatprep.subr.mxu0 0.0
    %1317 = vmatpush1.msra.mxu0 %v998
    %1318 = vmatprep.subr.mxu0 0.0
    %1319 = vmatpush1.msra.mxu0 %v999
    %1320 = vmatprep.subr.mxu0 0.0
    %1321 = vmatpush1.msra.mxu0 %v1000
    %1322 = vmatprep.subr.mxu0 0.0
    %1323 = vmatpush1.msra.mxu0 %v1001
    %1324 = vmatprep.subr.mxu0 0.0
    %1325 = vmatpush1.msra.mxu0 %v1002
    %1326 = vmatprep.subr.mxu0 0.0
    %1327 = vmatpush1.msra.mxu0 %v1003
    %1328 = vmatprep.subr.mxu0 0.0
    %1329 = vmatpush1.msra.mxu0 %v1004
    %1330 = vmatprep.subr.mxu0 0.0
    %1331 = vmatpush1.msra.mxu0 %v1005
    %1332 = vmatprep.subr.mxu0 0.0
    %1333 = vmatpush1.msra.mxu0 %v1006
    %1334 = vmatprep.subr.mxu0 0.0
    %1335 = vmatpush1.msra.mxu0 %v1007
    %1336 = vmatprep.subr.mxu0 0.0
    %1337 = vmatpush1.msra.mxu0 %v1008
    %1338 = vmatprep.subr.mxu0 0.0
    %1339 = vmatpush1.msra.mxu0 %v1009
    %1340 = vmatprep.subr.mxu0 0.0
    %1341 = vmatpush1.msra.mxu0 %v1010
    %1342 = vmatprep.subr.mxu0 0.0
    %1343 = vmatpush1.msra.mxu0 %v1011
    %1344 = vmatprep.subr.mxu0 0.0
    %1345 = vmatpush1.msra.mxu0 %v1012
    %1346 = vmatprep.mubr.f32.mxu0 %v321
    %1347 = vmatmul.mubr.f32.gmra.mrb[0].mxu0 %v319
    %v1348 = vpop.f32.mrb[0].mxu0
    %v1349 = vadd.f32 %v1279, %v1348
    %v1350 = vpop.f32.mrb[0].mxu0
    %1351 = vdwg.mxu0
    %1352 = vmatprep.subr.mxu0 0.0
    %1353 = vmatpush1.msra.mxu0 %v1013
    %1354 = vmatprep.subr.mxu0 0.0
    %1355 = vmatpush1.msra.mxu0 %v1014
    %1356 = vmatprep.subr.mxu0 0.0
    %1357 = vmatpush1.msra.mxu0 %v1015
    %1358 = vmatprep.subr.mxu0 0.0
    %1359 = vmatpush1.msra.mxu0 %v1016
    %1360 = vmatprep.subr.mxu0 0.0
    %1361 = vmatpush1.msra.mxu0 %v1017
    %1362 = vmatprep.subr.mxu0 0.0
    %1363 = vmatpush1.msra.mxu0 %v1018
    %1364 = vmatprep.subr.mxu0 0.0
    %1365 = vmatpush1.msra.mxu0 %v1019
    %1366 = vmatprep.subr.mxu0 0.0
    %1367 = vmatpush1.msra.mxu0 %v1020
    %1368 = vmatprep.subr.mxu0 0.0
    %1369 = vmatpush1.msra.mxu0 %v1021
    %1370 = vmatprep.subr.mxu0 0.0
    %1371 = vmatpush1.msra.mxu0 %v1022
    %1372 = vmatprep.subr.mxu0 0.0
    %1373 = vmatpush1.msra.mxu0 %v1023
    %1374 = vmatprep.subr.mxu0 0.0
    %1375 = vmatpush1.msra.mxu0 %v1024
    %1376 = vmatprep.subr.mxu0 0.0
    %1377 = vmatpush1.msra.mxu0 %v1025
    %1378 = vmatprep.subr.mxu0 0.0
    %1379 = vmatpush1.msra.mxu0 %v1026
    %1380 = vmatprep.subr.mxu0 0.0
    %1381 = vmatpush1.msra.mxu0 %v1027
    %1382 = vmatprep.subr.mxu0 0.0
    %1383 = vmatpush1.msra.mxu0 %v1028
    %1384 = vmatprep.subr.mxu0 0.0
    %1385 = vmatpush1.msra.mxu0 %v1029
    %1386 = vmatprep.subr.mxu0 0.0
    %1387 = vmatpush1.msra.mxu0 %v1030
    %1388 = vmatprep.subr.mxu0 0.0
    %1389 = vmatpush1.msra.mxu0 %v1031
    %1390 = vmatprep.subr.mxu0 0.0
    %1391 = vmatpush1.msra.mxu0 %v1032
    %1392 = vmatprep.subr.mxu0 0.0
    %1393 = vmatpush1.msra.mxu0 %v1033
    %1394 = vmatprep.subr.mxu0 0.0
    %1395 = vmatpush1.msra.mxu0 %v1034
    %1396 = vmatprep.subr.mxu0 0.0
    %1397 = vmatpush1.msra.mxu0 %v1035
    %1398 = vmatprep.subr.mxu0 0.0
    %1399 = vmatpush1.msra.mxu0 %v1036
    %1400 = vmatprep.subr.mxu0 0.0
    %1401 = vmatpush1.msra.mxu0 %v1037
    %1402 = vmatprep.subr.mxu0 0.0
    %1403 = vmatpush1.msra.mxu0 %v1038
    %1404 = vmatprep.subr.mxu0 0.0
    %1405 = vmatpush1.msra.mxu0 %v1039
    %1406 = vmatprep.subr.mxu0 0.0
    %1407 = vmatpush1.msra.mxu0 %v1040
    %1408 = vmatprep.subr.mxu0 0.0
    %1409 = vmatpush1.msra.mxu0 %v1041
    %1410 = vmatprep.subr.mxu0 0.0
    %1411 = vmatpush1.msra.mxu0 %v1042
    %1412 = vmatprep.subr.mxu0 0.0
    %1413 = vmatpush1.msra.mxu0 %v1043
    %1414 = vmatprep.subr.mxu0 0.0
    %1415 = vmatpush1.msra.mxu0 %v1044
    %1416 = vmatprep.mubr.f32.mxu0 %v337
    %1417 = vmatmul.mubr.f32.gmra.mrb[0].mxu0 %v329
    %v1418 = vpop.f32.mrb[0].mxu0
    %v1419 = vadd.f32 %v1349, %v1418
    %v1420 = vpop.f32.mrb[0].mxu0
    %1421 = vdwg.mxu0
    %1422 = vmatprep.subr.mxu0 0.0
    %1423 = vmatpush1.msra.mxu0 %v1045
    %1424 = vmatprep.subr.mxu0 0.0
    %1425 = vmatpush1.msra.mxu0 %v1046
    %1426 = vmatprep.subr.mxu0 0.0
    %1427 = vmatpush1.msra.mxu0 %v1047
    %1428 = vmatprep.subr.mxu0 0.0
    %1429 = vmatpush1.msra.mxu0 %v1048
    %1430 = vmatprep.subr.mxu0 0.0
    %1431 = vmatpush1.msra.mxu0 %v1049
    %1432 = vmatprep.subr.mxu0 0.0
    %1433 = vmatpush1.msra.mxu0 %v1050
    %1434 = vmatprep.subr.mxu0 0.0
    %1435 = vmatpush1.msra.mxu0 %v1051
    %1436 = vmatprep.subr.mxu0 0.0
    %1437 = vmatpush1.msra.mxu0 %v1052
    %1438 = vmatprep.subr.mxu0 0.0
    %1439 = vmatpush1.msra.mxu0 %v1053
    %1440 = vmatprep.subr.mxu0 0.0
    %1441 = vmatpush1.msra.mxu0 %v1054
    %1442 = vmatprep.subr.mxu0 0.0
    %1443 = vmatpush1.msra.mxu0 %v1055
    %1444 = vmatprep.subr.mxu0 0.0
    %1445 = vmatpush1.msra.mxu0 %v1056
    %1446 = vmatprep.subr.mxu0 0.0
    %1447 = vmatpush1.msra.mxu0 %v1057
    %1448 = vmatprep.subr.mxu0 0.0
    %1449 = vmatpush1.msra.mxu0 %v1058
    %1450 = vmatprep.subr.mxu0 0.0
    %1451 = vmatpush1.msra.mxu0 %v1059
    %1452 = vmatprep.subr.mxu0 0.0
    %1453 = vmatpush1.msra.mxu0 %v1060
    %1454 = vmatprep.subr.mxu0 0.0
    %1455 = vmatpush1.msra.mxu0 %v1061
    %1456 = vmatprep.subr.mxu0 0.0
    %1457 = vmatpush1.msra.mxu0 %v1062
    %1458 = vmatprep.subr.mxu0 0.0
    %1459 = vmatpush1.msra.mxu0 %v1063
    %1460 = vmatprep.subr.mxu0 0.0
    %1461 = vmatpush1.msra.mxu0 %v1064
    %1462 = vmatprep.subr.mxu0 0.0
    %1463 = vmatpush1.msra.mxu0 %v1065
    %1464 = vmatprep.subr.mxu0 0.0
    %1465 = vmatpush1.msra.mxu0 %v1066
    %1466 = vmatprep.subr.mxu0 0.0
    %1467 = vmatpush1.msra.mxu0 %v1067
    %1468 = vmatprep.subr.mxu0 0.0
    %1469 = vmatpush1.msra.mxu0 %v1068
    %1470 = vmatprep.subr.mxu0 0.0
    %1471 = vmatpush1.msra.mxu0 %v1069
    %1472 = vmatprep.subr.mxu0 0.0
    %1473 = vmatpush1.msra.mxu0 %v1070
    %1474 = vmatprep.subr.mxu0 0.0
    %1475 = vmatpush1.msra.mxu0 %v1071
    %1476 = vmatprep.subr.mxu0 0.0
    %1477 = vmatpush1.msra.mxu0 %v1072
    %1478 = vmatprep.subr.mxu0 0.0
    %1479 = vmatpush1.msra.mxu0 %v1073
    %1480 = vmatprep.subr.mxu0 0.0
    %1481 = vmatpush1.msra.mxu0 %v1074
    %1482 = vmatprep.subr.mxu0 0.0
    %1483 = vmatpush1.msra.mxu0 %v1075
    %1484 = vmatprep.subr.mxu0 0.0
    %1485 = vmatpush1.msra.mxu0 %v1076
    %1486 = vmatprep.mubr.f32.mxu0 %v338
    %1487 = vmatmul.mubr.f32.gmra.mrb[0].mxu0 %v336
    %v1488 = vpop.f32.mrb[0].mxu0
    %v1489 = vadd.f32 %v1419, %v1488
    %v1490 = vpop.f32.mrb[0].mxu0
    %1491 = vdwg.mxu0
    %1492 = vmatprep.subr.mxu0 0.0
    %1493 = vmatpush1.msra.mxu0 %v1077
    %1494 = vmatprep.subr.mxu0 0.0
    %1495 = vmatpush1.msra.mxu0 %v1078
    %1496 = vmatprep.subr.mxu0 0.0
    %1497 = vmatpush1.msra.mxu0 %v1079
    %1498 = vmatprep.subr.mxu0 0.0
    %1499 = vmatpush1.msra.mxu0 %v1080
    %1500 = vmatprep.subr.mxu0 0.0
    %1501 = vmatpush1.msra.mxu0 %v1081
    %1502 = vmatprep.subr.mxu0 0.0
    %1503 = vmatpush1.msra.mxu0 %v1082
    %1504 = vmatprep.subr.mxu0 0.0
    %1505 = vmatpush1.msra.mxu0 %v1083
    %1506 = vmatprep.subr.mxu0 0.0
    %1507 = vmatpush1.msra.mxu0 %v1084
    %1508 = vmatprep.subr.mxu0 0.0
    %1509 = vmatpush1.msra.mxu0 %v1085
    %1510 = vmatprep.subr.mxu0 0.0
    %1511 = vmatpush1.msra.mxu0 %v1086
    %1512 = vmatprep.subr.mxu0 0.0
    %1513 = vmatpush1.msra.mxu0 %v1087
    %1514 = vmatprep.subr.mxu0 0.0
    %1515 = vmatpush1.msra.mxu0 %v1088
    %1516 = vmatprep.subr.mxu0 0.0
    %1517 = vmatpush1.msra.mxu0 %v1089
    %1518 = vmatprep.subr.mxu0 0.0
    %1519 = vmatpush1.msra.mxu0 %v1090
    %1520 = vmatprep.subr.mxu0 0.0
    %1521 = vmatpush1.msra.mxu0 %v1091
    %1522 = vmatprep.subr.mxu0 0.0
    %1523 = vmatpush1.msra.mxu0 %v1092
    %1524 = vmatprep.subr.mxu0 0.0
    %1525 = vmatpush1.msra.mxu0 %v1093
    %1526 = vmatprep.subr.mxu0 0.0
    %1527 = vmatpush1.msra.mxu0 %v1094
    %1528 = vmatprep.subr.mxu0 0.0
    %1529 = vmatpush1.msra.mxu0 %v1095
    %1530 = vmatprep.subr.mxu0 0.0
    %1531 = vmatpush1.msra.mxu0 %v1096
    %1532 = vmatprep.subr.mxu0 0.0
    %1533 = vmatpush1.msra.mxu0 %v1097
    %1534 = vmatprep.subr.mxu0 0.0
    %1535 = vmatpush1.msra.mxu0 %v1098
    %1536 = vmatprep.subr.mxu0 0.0
    %1537 = vmatpush1.msra.mxu0 %v1099
    %1538 = vmatprep.subr.mxu0 0.0
    %1539 = vmatpush1.msra.mxu0 %v1100
    %1540 = vmatprep.subr.mxu0 0.0
    %1541 = vmatpush1.msra.mxu0 %v1101
    %1542 = vmatprep.subr.mxu0 0.0
    %1543 = vmatpush1.msra.mxu0 %v1102
    %1544 = vmatprep.subr.mxu0 0.0
    %1545 = vmatpush1.msra.mxu0 %v1103
    %1546 = vmatprep.subr.mxu0 0.0
    %1547 = vmatpush1.msra.mxu0 %v1104
    %1548 = vmatprep.subr.mxu0 0.0
    %1549 = vmatpush1.msra.mxu0 %v1105
    %1550 = vmatprep.subr.mxu0 0.0
    %1551 = vmatpush1.msra.mxu0 %v1106
    %1552 = vmatprep.subr.mxu0 0.0
    %1553 = vmatpush1.msra.mxu0 %v1107
    %1554 = vmatprep.subr.mxu0 0.0
    %1555 = vmatpush1.msra.mxu0 %v1108
    %1556 = vmatprep.mubr.f32.mxu0 %v354
    %1557 = vmatmul.mubr.f32.gmra.mrb[0].mxu0 %v346
    %v1558 = vpop.f32.mrb[0].mxu0
    %v1559 = vadd.f32 %v1489, %v1558
    %v1560 = vpop.f32.mrb[0].mxu0
    %1561 = vdwg.mxu0
    %1562 = vmatprep.subr.mxu0 0.0
    %1563 = vmatpush1.msra.mxu0 %v1109
    %1564 = vmatprep.subr.mxu0 0.0
    %1565 = vmatpush1.msra.mxu0 %v1110
    %1566 = vmatprep.subr.mxu0 0.0
    %1567 = vmatpush1.msra.mxu0 %v1111
    %1568 = vmatprep.subr.mxu0 0.0
    %1569 = vmatpush1.msra.mxu0 %v1112
    %1570 = vmatprep.subr.mxu0 0.0
    %1571 = vmatpush1.msra.mxu0 %v1113
    %1572 = vmatprep.subr.mxu0 0.0
    %1573 = vmatpush1.msra.mxu0 %v1114
    %1574 = vmatprep.subr.mxu0 0.0
    %1575 = vmatpush1.msra.mxu0 %v1115
    %1576 = vmatprep.subr.mxu0 0.0
    %1577 = vmatpush1.msra.mxu0 %v1116
    %1578 = vmatprep.subr.mxu0 0.0
    %1579 = vmatpush1.msra.mxu0 %v1117
    %1580 = vmatprep.subr.mxu0 0.0
    %1581 = vmatpush1.msra.mxu0 %v1118
    %1582 = vmatprep.subr.mxu0 0.0
    %1583 = vmatpush1.msra.mxu0 %v1119
    %1584 = vmatprep.subr.mxu0 0.0
    %1585 = vmatpush1.msra.mxu0 %v1120
    %1586 = vmatprep.subr.mxu0 0.0
    %1587 = vmatpush1.msra.mxu0 %v1121
    %1588 = vmatprep.subr.mxu0 0.0
    %1589 = vmatpush1.msra.mxu0 %v1122
    %1590 = vmatprep.subr.mxu0 0.0
    %1591 = vmatpush1.msra.mxu0 %v1123
    %1592 = vmatprep.subr.mxu0 0.0
    %1593 = vmatpush1.msra.mxu0 %v1124
    %1594 = vmatprep.subr.mxu0 0.0
    %1595 = vmatpush1.msra.mxu0 %v1125
    %1596 = vmatprep.subr.mxu0 0.0
    %1597 = vmatpush1.msra.mxu0 %v1126
    %1598 = vmatprep.subr.mxu0 0.0
    %1599 = vmatpush1.msra.mxu0 %v1127
    %1600 = vmatprep.subr.mxu0 0.0
    %1601 = vmatpush1.msra.mxu0 %v1128
    %1602 = vmatprep.subr.mxu0 0.0
    %1603 = vmatpush1.msra.mxu0 %v1129
    %1604 = vmatprep.subr.mxu0 0.0
    %1605 = vmatpush1.msra.mxu0 %v1130
    %1606 = vmatprep.subr.mxu0 0.0
    %1607 = vmatpush1.msra.mxu0 %v1131
    %1608 = vmatprep.subr.mxu0 0.0
    %1609 = vmatpush1.msra.mxu0 %v1132
    %1610 = vmatprep.subr.mxu0 0.0
    %1611 = vmatpush1.msra.mxu0 %v1133
    %1612 = vmatprep.subr.mxu0 0.0
    %1613 = vmatpush1.msra.mxu0 %v1134
    %1614 = vmatprep.subr.mxu0 0.0
    %1615 = vmatpush1.msra.mxu0 %v1135
    %1616 = vmatprep.subr.mxu0 0.0
    %1617 = vmatpush1.msra.mxu0 %v1136
    %1618 = vmatprep.subr.mxu0 0.0
    %1619 = vmatpush1.msra.mxu0 %v1137
    %1620 = vmatprep.subr.mxu0 0.0
    %1621 = vmatpush1.msra.mxu0 %v1138
    %1622 = vmatprep.subr.mxu0 0.0
    %1623 = vmatpush1.msra.mxu0 %v1139
    %1624 = vmatprep.subr.mxu0 0.0
    %1625 = vmatpush1.msra.mxu0 %v1140
    %1626 = vmatprep.mubr.f32.mxu0 %v355
    %1627 = vmatmul.mubr.f32.gmra.mrb[0].mxu0 %v353
    %v1628 = vpop.f32.mrb[0].mxu0
    %v1629 = vadd.f32 %v1559, %v1628
    %v1630 = vpop.f32.mrb[0].mxu0
    %1631 = vdwg.mxu0
    %1632 = vmatprep.subr.mxu0 0.0
    %1633 = vmatpush1.msra.mxu0 %v1141
    %1634 = vmatprep.subr.mxu0 0.0
    %1635 = vmatpush1.msra.mxu0 %v1142
    %1636 = vmatprep.subr.mxu0 0.0
    %1637 = vmatpush1.msra.mxu0 %v1143
    %1638 = vmatprep.subr.mxu0 0.0
    %1639 = vmatpush1.msra.mxu0 %v1144
    %1640 = vmatprep.subr.mxu0 0.0
    %1641 = vmatpush1.msra.mxu0 %v1145
    %1642 = vmatprep.subr.mxu0 0.0
    %1643 = vmatpush1.msra.mxu0 %v1146
    %1644 = vmatprep.subr.mxu0 0.0
    %1645 = vmatpush1.msra.mxu0 %v1147
    %1646 = vmatprep.subr.mxu0 0.0
    %1647 = vmatpush1.msra.mxu0 %v1148
    %1648 = vmatprep.subr.mxu0 0.0
    %1649 = vmatpush1.msra.mxu0 %v1149
    %1650 = vmatprep.subr.mxu0 0.0
    %1651 = vmatpush1.msra.mxu0 %v1150
    %1652 = vmatprep.subr.mxu0 0.0
    %1653 = vmatpush1.msra.mxu0 %v1151
    %1654 = vmatprep.subr.mxu0 0.0
    %1655 = vmatpush1.msra.mxu0 %v1152
    %1656 = vmatprep.subr.mxu0 0.0
    %1657 = vmatpush1.msra.mxu0 %v1153
    %1658 = vmatprep.subr.mxu0 0.0
    %1659 = vmatpush1.msra.mxu0 %v1154
    %1660 = vmatprep.subr.mxu0 0.0
    %1661 = vmatpush1.msra.mxu0 %v1155
    %1662 = vmatprep.subr.mxu0 0.0
    %1663 = vmatpush1.msra.mxu0 %v1156
    %1664 = vmatprep.subr.mxu0 0.0
    %1665 = vmatpush1.msra.mxu0 %v1157
    %1666 = vmatprep.subr.mxu0 0.0
    %1667 = vmatpush1.msra.mxu0 %v1158
    %1668 = vmatprep.subr.mxu0 0.0
    %1669 = vmatpush1.msra.mxu0 %v1159
    %1670 = vmatprep.subr.mxu0 0.0
    %1671 = vmatpush1.msra.mxu0 %v1160
    %1672 = vmatprep.subr.mxu0 0.0
    %1673 = vmatpush1.msra.mxu0 %v1161
    %1674 = vmatprep.subr.mxu0 0.0
    %1675 = vmatpush1.msra.mxu0 %v1162
    %1676 = vmatprep.subr.mxu0 0.0
    %1677 = vmatpush1.msra.mxu0 %v1163
    %1678 = vmatprep.subr.mxu0 0.0
    %1679 = vmatpush1.msra.mxu0 %v1164
    %1680 = vmatprep.subr.mxu0 0.0
    %1681 = vmatpush1.msra.mxu0 %v1165
    %1682 = vmatprep.subr.mxu0 0.0
    %1683 = vmatpush1.msra.mxu0 %v1166
    %1684 = vmatprep.subr.mxu0 0.0
    %1685 = vmatpush1.msra.mxu0 %v1167
    %1686 = vmatprep.subr.mxu0 0.0
    %1687 = vmatpush1.msra.mxu0 %v1168
    %1688 = vmatprep.subr.mxu0 0.0
    %1689 = vmatpush1.msra.mxu0 %v1169
    %1690 = vmatprep.subr.mxu0 0.0
    %1691 = vmatpush1.msra.mxu0 %v1170
    %1692 = vmatprep.subr.mxu0 0.0
    %1693 = vmatpush1.msra.mxu0 %v1171
    %1694 = vmatprep.subr.mxu0 0.0
    %1695 = vmatpush1.msra.mxu0 %v1172
    %1696 = vmatprep.mubr.f32.mxu0 %v371
    %1697 = vmatmul.mubr.f32.gmra.mrb[0].mxu0 %v363
    %v1698 = vpop.f32.mrb[0].mxu0
    %v1699 = vadd.f32 %v1629, %v1698
    %v1700 = vpop.f32.mrb[0].mxu0
    %1701 = vdwg.mxu0
    %1702 = vmatprep.subr.mxu0 0.0
    %1703 = vmatpush1.msra.mxu0 %v1173
    %1704 = vmatprep.subr.mxu0 0.0
    %1705 = vmatpush1.msra.mxu0 %v1174
    %1706 = vmatprep.subr.mxu0 0.0
    %1707 = vmatpush1.msra.mxu0 %v1175
    %1708 = vmatprep.subr.mxu0 0.0
    %1709 = vmatpush1.msra.mxu0 %v1176
    %1710 = vmatprep.subr.mxu0 0.0
    %1711 = vmatpush1.msra.mxu0 %v1177
    %1712 = vmatprep.subr.mxu0 0.0
    %1713 = vmatpush1.msra.mxu0 %v1178
    %1714 = vmatprep.subr.mxu0 0.0
    %1715 = vmatpush1.msra.mxu0 %v1179
    %1716 = vmatprep.subr.mxu0 0.0
    %1717 = vmatpush1.msra.mxu0 %v1180
    %1718 = vmatprep.subr.mxu0 0.0
    %1719 = vmatpush1.msra.mxu0 %v1181
    %1720 = vmatprep.subr.mxu0 0.0
    %1721 = vmatpush1.msra.mxu0 %v1182
    %1722 = vmatprep.subr.mxu0 0.0
    %1723 = vmatpush1.msra.mxu0 %v1183
    %1724 = vmatprep.subr.mxu0 0.0
    %1725 = vmatpush1.msra.mxu0 %v1184
    %1726 = vmatprep.subr.mxu0 0.0
    %1727 = vmatpush1.msra.mxu0 %v1185
    %1728 = vmatprep.subr.mxu0 0.0
    %1729 = vmatpush1.msra.mxu0 %v1186
    %1730 = vmatprep.subr.mxu0 0.0
    %1731 = vmatpush1.msra.mxu0 %v1187
    %1732 = vmatprep.subr.mxu0 0.0
    %1733 = vmatpush1.msra.mxu0 %v1188
    %1734 = vmatprep.subr.mxu0 0.0
    %1735 = vmatpush1.msra.mxu0 %v1189
    %1736 = vmatprep.subr.mxu0 0.0
    %1737 = vmatpush1.msra.mxu0 %v1190
    %1738 = vmatprep.subr.mxu0 0.0
    %1739 = vmatpush1.msra.mxu0 %v1191
    %1740 = vmatprep.subr.mxu0 0.0
    %1741 = vmatpush1.msra.mxu0 %v1192
    %1742 = vmatprep.subr.mxu0 0.0
    %1743 = vmatpush1.msra.mxu0 %v1193
    %1744 = vmatprep.subr.mxu0 0.0
    %1745 = vmatpush1.msra.mxu0 %v1194
    %1746 = vmatprep.subr.mxu0 0.0
    %1747 = vmatpush1.msra.mxu0 %v1195
    %1748 = vmatprep.subr.mxu0 0.0
    %1749 = vmatpush1.msra.mxu0 %v1196
    %1750 = vmatprep.subr.mxu0 0.0
    %1751 = vmatpush1.msra.mxu0 %v1197
    %1752 = vmatprep.subr.mxu0 0.0
    %1753 = vmatpush1.msra.mxu0 %v1198
    %1754 = vmatprep.subr.mxu0 0.0
    %1755 = vmatpush1.msra.mxu0 %v1199
    %1756 = vmatprep.subr.mxu0 0.0
    %1757 = vmatpush1.msra.mxu0 %v1200
    %1758 = vmatprep.subr.mxu0 0.0
    %1759 = vmatpush1.msra.mxu0 %v1201
    %1760 = vmatprep.subr.mxu0 0.0
    %1761 = vmatpush1.msra.mxu0 %v1202
    %1762 = vmatprep.subr.mxu0 0.0
    %1763 = vmatpush1.msra.mxu0 %v1203
    %1764 = vmatprep.subr.mxu0 0.0
    %1765 = vmatpush1.msra.mxu0 %v1204
    %1766 = vmatprep.mubr.f32.mxu0 %v372
    %1767 = vmatmul.mubr.f32.gmra.mrb[0].mxu0 %v370
    %v1768 = vpop.f32.mrb[0].mxu0
    %v1769 = vadd.f32 %v1699, %v1768
    %v1770 = vpop.f32.mrb[0].mxu0
    %1771 = vdwg.mxu0
    %v1772 = vld [vmem:[%s5] sm:$0x3]
    %v1773 = vmul.f32 %v1769, 0.5
    %v1774 = vmul.f32 %v1773, 1.442695
    %v1775 = vpow.pop %v1774
    %v1776 = vmul.f32 %v1772, %v1775
    %v1777 = vadd.f32 %v1776, %v946
    %vm1778 = vcmask 123904
    %1779 = vst.msk [vmem:[#allocation2] sm:$0x3] %vm1778, %v946
    %1780 = vst.msk [vmem:[#allocation4] sm:$0x3] %vm1778, %v1769
    %v1781 = vld [vmem:[%s6] sm:$0xff]
    %v1782 = vld [vmem:[%s6 + $0x8] sm:$0xff]
    %v1783 = vld [vmem:[%s6 + $0x10] sm:$0xff]
    %v1784 = vld [vmem:[%s6 + $0x18] sm:$0xff]
    %v1785 = vld [vmem:[%s6 + $0x20] sm:$0xff]
    %v1786 = vld [vmem:[%s6 + $0x28] sm:$0xff]
    %v1787 = vld [vmem:[%s6 + $0x30] sm:$0xff]
    %v1788 = vld [vmem:[%s6 + $0x38] sm:$0xff]
    %v1789 = vld [vmem:[%s6 + $0x40] sm:$0xff]
    %v1790 = vld [vmem:[%s6 + $0x48] sm:$0xff]
    %v1791 = vld [vmem:[%s6 + $0x50] sm:$0xff]
    %v1792 = vld [vmem:[%s6 + $0x58] sm:$0xff]
    %v1793 = vld [vmem:[%s6 + $0x60] sm:$0xff]
    %v1794 = vld [vmem:[%s6 + $0x68] sm:$0xff]
    %v1795 = vld [vmem:[%s6 + $0x70] sm:$0xff]
    %v1796 = vld [vmem:[%s6 + $0x78] sm:$0xff]
    %v1797 = vld [vmem:[%s6 + $0x80] sm:$0xff]
    %v1798 = vld [vmem:[%s6 + $0x88] sm:$0xff]
    %v1799 = vld [vmem:[%s6 + $0x90] sm:$0xff]
    %v1800 = vld [vmem:[%s6 + $0x98] sm:$0xff]
    %v1801 = vld [vmem:[%s6 + $0xa0] sm:$0xff]
    %v1802 = vld [vmem:[%s6 + $0xa8] sm:$0xff]
    %v1803 = vld [vmem:[%s6 + $0xb0] sm:$0xff]
    %v1804 = vld [vmem:[%s6 + $0xb8] sm:$0xff]
    %v1805 = vld [vmem:[%s6 + $0xc0] sm:$0xff]
    %v1806 = vld [vmem:[%s6 + $0xc8] sm:$0xff]
    %v1807 = vld [vmem:[%s6 + $0xd0] sm:$0xff]
    %v1808 = vld [vmem:[%s6 + $0xd8] sm:$0xff]
    %v1809 = vld [vmem:[%s6 + $0xe0] sm:$0xff]
    %v1810 = vld [vmem:[%s6 + $0xe8] sm:$0xff]
    %v1811 = vld [vmem:[%s6 + $0xf0] sm:$0xff]
    %v1812 = vld [vmem:[%s6 + $0xf8] sm:$0xff]
    %v1813 = vld [vmem:[%s7] sm:$0xff]
    %v1814 = vld [vmem:[%s7 + $0x8] sm:$0xff]
    %v1817 = vlaneseq
    %v1818 = vshrl.u32 %v1817, 7
    %v1819 = vsub.s32 0, %v1818
    %v1820 = vrot.slane %v1813, %v1819
    %v1821 = vlaneseq
    %v1822 = vshrl.u32 %v1821, 7
    %v1823 = vsub.s32 1, %v1822
    %v1824 = vrot.slane %v1813, %v1823
    %v1825 = vlaneseq
    %v1826 = vshrl.u32 %v1825, 7
    %v1827 = vsub.s32 2, %v1826
    %v1828 = vrot.slane %v1813, %v1827
    %v1829 = vlaneseq
    %v1830 = vshrl.u32 %v1829, 7
    %v1831 = vsub.s32 3, %v1830
    %v1832 = vrot.slane %v1813, %v1831
    %v1833 = vlaneseq
    %v1834 = vshrl.u32 %v1833, 7
    %v1835 = vsub.s32 4, %v1834
    %v1836 = vrot.slane %v1813, %v1835
    %v1837 = vlaneseq
    %v1838 = vshrl.u32 %v1837, 7
    %v1839 = vsub.s32 5, %v1838
    %v1840 = vrot.slane %v1813, %v1839
    %v1841 = vlaneseq
    %v1842 = vshrl.u32 %v1841, 7
    %v1843 = vsub.s32 6, %v1842
    %v1844 = vrot.slane %v1813, %v1843
    %v1845 = vlaneseq
    %v1846 = vshrl.u32 %v1845, 7
    %v1847 = vsub.s32 7, %v1846
    %v1848 = vrot.slane %v1813, %v1847
    %v1849 = vlaneseq
    %v1850 = vshrl.u32 %v1849, 7
    %v1851 = vsub.s32 0, %v1850
    %v1852 = vrot.slane %v1814, %v1851
    %v1853 = vlaneseq
    %v1854 = vshrl.u32 %v1853, 7
    %v1855 = vsub.s32 1, %v1854
    %v1856 = vrot.slane %v1814, %v1855
    %v1857 = vlaneseq
    %v1858 = vshrl.u32 %v1857, 7
    %v1859 = vsub.s32 2, %v1858
    %v1860 = vrot.slane %v1814, %v1859
    %v1861 = vlaneseq
    %v1862 = vshrl.u32 %v1861, 7
    %v1863 = vsub.s32 3, %v1862
    %v1864 = vrot.slane %v1814, %v1863
    %v1865 = vlaneseq
    %v1866 = vshrl.u32 %v1865, 7
    %v1867 = vsub.s32 4, %v1866
    %v1868 = vrot.slane %v1814, %v1867
    %v1869 = vlaneseq
    %v1870 = vshrl.u32 %v1869, 7
    %v1871 = vsub.s32 5, %v1870
    %v1872 = vrot.slane %v1814, %v1871
    %v1873 = vlaneseq
    %v1874 = vshrl.u32 %v1873, 7
    %v1875 = vsub.s32 6, %v1874
    %v1876 = vrot.slane %v1814, %v1875
    %v1877 = vlaneseq
    %v1878 = vshrl.u32 %v1877, 7
    %v1879 = vsub.s32 7, %v1878
    %v1880 = vrot.slane %v1814, %v1879
    %vm1897 = vcmask 130048
    %v1899 = vsel %vm1897, %v1777, 0
    %1901 = vmatprep.subr.mxu0 %v1782
    %1902 = vmatpush1.msra.mxu0 %v1781
    %1903 = vmatprep.subr.mxu0 %v1798
    %1904 = vmatpush1.msra.mxu0 %v1797
    %1905 = vmatprep.subr.mxu0 0.0
    %1906 = vmatpush1.msra.mxu0 0.0
    %1907 = vmatprep.subr.mxu0 0.0
    %1908 = vmatpush1.msra.mxu0 0.0
    %1909 = vmatprep.subr.mxu0 0.0
    %1910 = vmatpush1.msra.mxu0 0.0
    %1911 = vmatprep.subr.mxu0 0.0
    %1912 = vmatpush1.msra.mxu0 0.0
    %1913 = vmatprep.subr.mxu0 0.0
    %1914 = vmatpush1.msra.mxu0 0.0
    %1915 = vmatprep.subr.mxu0 0.0
    %1916 = vmatpush1.msra.mxu0 0.0
    %1917 = vmatprep.subr.mxu0 0.0
    %1918 = vmatpush1.msra.mxu0 0.0
    %1919 = vmatprep.subr.mxu0 0.0
    %1920 = vmatpush1.msra.mxu0 0.0
    %1921 = vmatprep.subr.mxu0 0.0
    %1922 = vmatpush1.msra.mxu0 0.0
    %1923 = vmatprep.subr.mxu0 0.0
    %1924 = vmatpush1.msra.mxu0 0.0
    %1925 = vmatprep.subr.mxu0 0.0
    %1926 = vmatpush1.msra.mxu0 0.0
    %1927 = vmatprep.subr.mxu0 0.0
    %1928 = vmatpush1.msra.mxu0 0.0
    %1929 = vmatprep.subr.mxu0 0.0
    %1930 = vmatpush1.msra.mxu0 0.0
    %1931 = vmatprep.subr.mxu0 0.0
    %1932 = vmatpush1.msra.mxu0 0.0
    %1933 = vmatprep.subr.mxu0 0.0
    %1934 = vmatpush1.msra.mxu0 0.0
    %1935 = vmatprep.subr.mxu0 0.0
    %1936 = vmatpush1.msra.mxu0 0.0
    %1937 = vmatprep.subr.mxu0 0.0
    %1938 = vmatpush1.msra.mxu0 0.0
    %1939 = vmatprep.subr.mxu0 0.0
    %1940 = vmatpush1.msra.mxu0 0.0
    %1941 = vmatprep.subr.mxu0 0.0
    %1942 = vmatpush1.msra.mxu0 0.0
    %1943 = vmatprep.subr.mxu0 0.0
    %1944 = vmatpush1.msra.mxu0 0.0
    %1945 = vmatprep.subr.mxu0 0.0
    %1946 = vmatpush1.msra.mxu0 0.0
    %1947 = vmatprep.subr.mxu0 0.0
    %1948 = vmatpush1.msra.mxu0 0.0
    %1949 = vmatprep.subr.mxu0 0.0
    %1950 = vmatpush1.msra.mxu0 0.0
    %1951 = vmatprep.subr.mxu0 0.0
    %1952 = vmatpush1.msra.mxu0 0.0
    %1953 = vmatprep.subr.mxu0 0.0
    %1954 = vmatpush1.msra.mxu0 0.0
    %1955 = vmatprep.subr.mxu0 0.0
    %1956 = vmatpush1.msra.mxu0 0.0
    %1957 = vmatprep.subr.mxu0 0.0
    %1958 = vmatpush1.msra.mxu0 0.0
    %1959 = vmatprep.subr.mxu0 0.0
    %1960 = vmatpush1.msra.mxu0 0.0
    %1961 = vmatprep.subr.mxu0 0.0
    %1962 = vmatpush1.msra.mxu0 0.0
    %1963 = vmatprep.subr.mxu0 0.0
    %1964 = vmatpush1.msra.mxu0 0.0
    %1965 = vmatprep.mubr.f32.mxu0 0.0
    %1966 = vmatmul.mubr.f32.gmra.mrb[0].mxu0 %v1899
    %v1967 = vpop.f32.mrb[0].mxu0
    %v1968 = vadd.f32 %v1820, %v1967
    %v1969 = vpop.f32.mrb[0].mxu0
    %v1970 = vadd.f32 %v1824, %v1969
    %1971 = vdwg.mxu0
    %1972 = vmatprep.subr.mxu0 %v1784
    %1973 = vmatpush1.msra.mxu0 %v1783
    %1974 = vmatprep.subr.mxu0 %v1800
    %1975 = vmatpush1.msra.mxu0 %v1799
    %1976 = vmatprep.subr.mxu0 0.0
    %1977 = vmatpush1.msra.mxu0 0.0
    %1978 = vmatprep.subr.mxu0 0.0
    %1979 = vmatpush1.msra.mxu0 0.0
    %1980 = vmatprep.subr.mxu0 0.0
    %1981 = vmatpush1.msra.mxu0 0.0
    %1982 = vmatprep.subr.mxu0 0.0
    %1983 = vmatpush1.msra.mxu0 0.0
    %1984 = vmatprep.subr.mxu0 0.0
    %1985 = vmatpush1.msra.mxu0 0.0
    %1986 = vmatprep.subr.mxu0 0.0
    %1987 = vmatpush1.msra.mxu0 0.0
    %1988 = vmatprep.subr.mxu0 0.0
    %1989 = vmatpush1.msra.mxu0 0.0
    %1990 = vmatprep.subr.mxu0 0.0
    %1991 = vmatpush1.msra.mxu0 0.0
    %1992 = vmatprep.subr.mxu0 0.0
    %1993 = vmatpush1.msra.mxu0 0.0
    %1994 = vmatprep.subr.mxu0 0.0
    %1995 = vmatpush1.msra.mxu0 0.0
    %1996 = vmatprep.subr.mxu0 0.0
    %1997 = vmatpush1.msra.mxu0 0.0
    %1998 = vmatprep.subr.mxu0 0.0
    %1999 = vmatpush1.msra.mxu0 0.0
    %2000 = vmatprep.subr.mxu0 0.0
    %2001 = vmatpush1.msra.mxu0 0.0
    %2002 = vmatprep.subr.mxu0 0.0
    %2003 = vmatpush1.msra.mxu0 0.0
    %2004 = vmatprep.subr.mxu0 0.0
    %2005 = vmatpush1.msra.mxu0 0.0
    %2006 = vmatprep.subr.mxu0 0.0
    %2007 = vmatpush1.msra.mxu0 0.0
    %2008 = vmatprep.subr.mxu0 0.0
    %2009 = vmatpush1.msra.mxu0 0.0
    %2010 = vmatprep.subr.mxu0 0.0
    %2011 = vmatpush1.msra.mxu0 0.0
    %2012 = vmatprep.subr.mxu0 0.0
    %2013 = vmatpush1.msra.mxu0 0.0
    %2014 = vmatprep.subr.mxu0 0.0
    %2015 = vmatpush1.msra.mxu0 0.0
    %2016 = vmatprep.subr.mxu0 0.0
    %2017 = vmatpush1.msra.mxu0 0.0
    %2018 = vmatprep.subr.mxu0 0.0
    %2019 = vmatpush1.msra.mxu0 0.0
    %2020 = vmatprep.subr.mxu0 0.0
    %2021 = vmatpush1.msra.mxu0 0.0
    %2022 = vmatprep.subr.mxu0 0.0
    %2023 = vmatpush1.msra.mxu0 0.0
    %2024 = vmatprep.subr.mxu0 0.0
    %2025 = vmatpush1.msra.mxu0 0.0
    %2026 = vmatprep.subr.mxu0 0.0
    %2027 = vmatpush1.msra.mxu0 0.0
    %2028 = vmatprep.subr.mxu0 0.0
    %2029 = vmatpush1.msra.mxu0 0.0
    %2030 = vmatprep.subr.mxu0 0.0
    %2031 = vmatpush1.msra.mxu0 0.0
    %2032 = vmatprep.subr.mxu0 0.0
    %2033 = vmatpush1.msra.mxu0 0.0
    %2034 = vmatprep.subr.mxu0 0.0
    %2035 = vmatpush1.msra.mxu0 0.0
    %2036 = vmatprep.mubr.f32.mxu0 0.0
    %2037 = vmatmul.mubr.f32.gmra.mrb[0].mxu0 %v1899
    %v2038 = vpop.f32.mrb[0].mxu0
    %v2039 = vadd.f32 %v1828, %v2038
    %v2040 = vpop.f32.mrb[0].mxu0
    %v2041 = vadd.f32 %v1832, %v2040
    %2042 = vdwg.mxu0
    %2043 = vmatprep.subr.mxu0 %v1786
    %2044 = vmatpush1.msra.mxu0 %v1785
    %2045 = vmatprep.subr.mxu0 %v1802
    %2046 = vmatpush1.msra.mxu0 %v1801
    %2047 = vmatprep.subr.mxu0 0.0
    %2048 = vmatpush1.msra.mxu0 0.0
    %2049 = vmatprep.subr.mxu0 0.0
    %2050 = vmatpush1.msra.mxu0 0.0
    %2051 = vmatprep.subr.mxu0 0.0
    %2052 = vmatpush1.msra.mxu0 0.0
    %2053 = vmatprep.subr.mxu0 0.0
    %2054 = vmatpush1.msra.mxu0 0.0
    %2055 = vmatprep.subr.mxu0 0.0
    %2056 = vmatpush1.msra.mxu0 0.0
    %2057 = vmatprep.subr.mxu0 0.0
    %2058 = vmatpush1.msra.mxu0 0.0
    %2059 = vmatprep.subr.mxu0 0.0
    %2060 = vmatpush1.msra.mxu0 0.0
    %2061 = vmatprep.subr.mxu0 0.0
    %2062 = vmatpush1.msra.mxu0 0.0
    %2063 = vmatprep.subr.mxu0 0.0
    %2064 = vmatpush1.msra.mxu0 0.0
    %2065 = vmatprep.subr.mxu0 0.0
    %2066 = vmatpush1.msra.mxu0 0.0
    %2067 = vmatprep.subr.mxu0 0.0
    %2068 = vmatpush1.msra.mxu0 0.0
    %2069 = vmatprep.subr.mxu0 0.0
    %2070 = vmatpush1.msra.mxu0 0.0
    %2071 = vmatprep.subr.mxu0 0.0
    %2072 = vmatpush1.msra.mxu0 0.0
    %2073 = vmatprep.subr.mxu0 0.0
    %2074 = vmatpush1.msra.mxu0 0.0
    %2075 = vmatprep.subr.mxu0 0.0
    %2076 = vmatpush1.msra.mxu0 0.0
    %2077 = vmatprep.subr.mxu0 0.0
    %2078 = vmatpush1.msra.mxu0 0.0
    %2079 = vmatprep.subr.mxu0 0.0
    %2080 = vmatpush1.msra.mxu0 0.0
    %2081 = vmatprep.subr.mxu0 0.0
    %2082 = vmatpush1.msra.mxu0 0.0
    %2083 = vmatprep.subr.mxu0 0.0
    %2084 = vmatpush1.msra.mxu0 0.0
    %2085 = vmatprep.subr.mxu0 0.0
    %2086 = vmatpush1.msra.mxu0 0.0
    %2087 = vmatprep.subr.mxu0 0.0
    %2088 = vmatpush1.msra.mxu0 0.0
    %2089 = vmatprep.subr.mxu0 0.0
    %2090 = vmatpush1.msra.mxu0 0.0
    %2091 = vmatprep.subr.mxu0 0.0
    %2092 = vmatpush1.msra.mxu0 0.0
    %2093 = vmatprep.subr.mxu0 0.0
    %2094 = vmatpush1.msra.mxu0 0.0
    %2095 = vmatprep.subr.mxu0 0.0
    %2096 = vmatpush1.msra.mxu0 0.0
    %2097 = vmatprep.subr.mxu0 0.0
    %2098 = vmatpush1.msra.mxu0 0.0
    %2099 = vmatprep.subr.mxu0 0.0
    %2100 = vmatpush1.msra.mxu0 0.0
    %2101 = vmatprep.subr.mxu0 0.0
    %2102 = vmatpush1.msra.mxu0 0.0
    %2103 = vmatprep.subr.mxu0 0.0
    %2104 = vmatpush1.msra.mxu0 0.0
    %2105 = vmatprep.subr.mxu0 0.0
    %2106 = vmatpush1.msra.mxu0 0.0
    %2107 = vmatprep.mubr.f32.mxu0 0.0
    %2108 = vmatmul.mubr.f32.gmra.mrb[0].mxu0 %v1899
    %v2109 = vpop.f32.mrb[0].mxu0
    %v2110 = vadd.f32 %v1836, %v2109
    %v2111 = vpop.f32.mrb[0].mxu0
    %v2112 = vadd.f32 %v1840, %v2111
    %2113 = vdwg.mxu0
    %2114 = vmatprep.subr.mxu0 %v1788
    %2115 = vmatpush1.msra.mxu0 %v1787
    %2116 = vmatprep.subr.mxu0 %v1804
    %2117 = vmatpush1.msra.mxu0 %v1803
    %2118 = vmatprep.subr.mxu0 0.0
    %2119 = vmatpush1.msra.mxu0 0.0
    %2120 = vmatprep.subr.mxu0 0.0
    %2121 = vmatpush1.msra.mxu0 0.0
    %2122 = vmatprep.subr.mxu0 0.0
    %2123 = vmatpush1.msra.mxu0 0.0
    %2124 = vmatprep.subr.mxu0 0.0
    %2125 = vmatpush1.msra.mxu0 0.0
    %2126 = vmatprep.subr.mxu0 0.0
    %2127 = vmatpush1.msra.mxu0 0.0
    %2128 = vmatprep.subr.mxu0 0.0
    %2129 = vmatpush1.msra.mxu0 0.0
    %2130 = vmatprep.subr.mxu0 0.0
    %2131 = vmatpush1.msra.mxu0 0.0
    %2132 = vmatprep.subr.mxu0 0.0
    %2133 = vmatpush1.msra.mxu0 0.0
    %2134 = vmatprep.subr.mxu0 0.0
    %2135 = vmatpush1.msra.mxu0 0.0
    %2136 = vmatprep.subr.mxu0 0.0
    %2137 = vmatpush1.msra.mxu0 0.0
    %2138 = vmatprep.subr.mxu0 0.0
    %2139 = vmatpush1.msra.mxu0 0.0
    %2140 = vmatprep.subr.mxu0 0.0
    %2141 = vmatpush1.msra.mxu0 0.0
    %2142 = vmatprep.subr.mxu0 0.0
    %2143 = vmatpush1.msra.mxu0 0.0
    %2144 = vmatprep.subr.mxu0 0.0
    %2145 = vmatpush1.msra.mxu0 0.0
    %2146 = vmatprep.subr.mxu0 0.0
    %2147 = vmatpush1.msra.mxu0 0.0
    %2148 = vmatprep.subr.mxu0 0.0
    %2149 = vmatpush1.msra.mxu0 0.0
    %2150 = vmatprep.subr.mxu0 0.0
    %2151 = vmatpush1.msra.mxu0 0.0
    %2152 = vmatprep.subr.mxu0 0.0
    %2153 = vmatpush1.msra.mxu0 0.0
    %2154 = vmatprep.subr.mxu0 0.0
    %2155 = vmatpush1.msra.mxu0 0.0
    %2156 = vmatprep.subr.mxu0 0.0
    %2157 = vmatpush1.msra.mxu0 0.0
    %2158 = vmatprep.subr.mxu0 0.0
    %2159 = vmatpush1.msra.mxu0 0.0
    %2160 = vmatprep.subr.mxu0 0.0
    %2161 = vmatpush1.msra.mxu0 0.0
    %2162 = vmatprep.subr.mxu0 0.0
    %2163 = vmatpush1.msra.mxu0 0.0
    %2164 = vmatprep.subr.mxu0 0.0
    %2165 = vmatpush1.msra.mxu0 0.0
    %2166 = vmatprep.subr.mxu0 0.0
    %2167 = vmatpush1.msra.mxu0 0.0
    %2168 = vmatprep.subr.mxu0 0.0
    %2169 = vmatpush1.msra.mxu0 0.0
    %2170 = vmatprep.subr.mxu0 0.0
    %2171 = vmatpush1.msra.mxu0 0.0
    %2172 = vmatprep.subr.mxu0 0.0
    %2173 = vmatpush1.msra.mxu0 0.0
    %2174 = vmatprep.subr.mxu0 0.0
    %2175 = vmatpush1.msra.mxu0 0.0
    %2176 = vmatprep.subr.mxu0 0.0
    %2177 = vmatpush1.msra.mxu0 0.0
    %2178 = vmatprep.mubr.f32.mxu0 0.0
    %2179 = vmatmul.mubr.f32.gmra.mrb[0].mxu0 %v1899
    %v2180 = vpop.f32.mrb[0].mxu0
    %v2181 = vadd.f32 %v1844, %v2180
    %v2182 = vpop.f32.mrb[0].mxu0
    %v2183 = vadd.f32 %v1848, %v2182
    %2184 = vdwg.mxu0
    %2185 = vmatprep.subr.mxu0 %v1790
    %2186 = vmatpush1.msra.mxu0 %v1789
    %2187 = vmatprep.subr.mxu0 %v1806
    %2188 = vmatpush1.msra.mxu0 %v1805
    %2189 = vmatprep.subr.mxu0 0.0
    %2190 = vmatpush1.msra.mxu0 0.0
    %2191 = vmatprep.subr.mxu0 0.0
    %2192 = vmatpush1.msra.mxu0 0.0
    %2193 = vmatprep.subr.mxu0 0.0
    %2194 = vmatpush1.msra.mxu0 0.0
    %2195 = vmatprep.subr.mxu0 0.0
    %2196 = vmatpush1.msra.mxu0 0.0
    %2197 = vmatprep.subr.mxu0 0.0
    %2198 = vmatpush1.msra.mxu0 0.0
    %2199 = vmatprep.subr.mxu0 0.0
    %2200 = vmatpush1.msra.mxu0 0.0
    %2201 = vmatprep.subr.mxu0 0.0
    %2202 = vmatpush1.msra.mxu0 0.0
    %2203 = vmatprep.subr.mxu0 0.0
    %2204 = vmatpush1.msra.mxu0 0.0
    %2205 = vmatprep.subr.mxu0 0.0
    %2206 = vmatpush1.msra.mxu0 0.0
    %2207 = vmatprep.subr.mxu0 0.0
    %2208 = vmatpush1.msra.mxu0 0.0
    %2209 = vmatprep.subr.mxu0 0.0
    %2210 = vmatpush1.msra.mxu0 0.0
    %2211 = vmatprep.subr.mxu0 0.0
    %2212 = vmatpush1.msra.mxu0 0.0
    %2213 = vmatprep.subr.mxu0 0.0
    %2214 = vmatpush1.msra.mxu0 0.0
    %2215 = vmatprep.subr.mxu0 0.0
    %2216 = vmatpush1.msra.mxu0 0.0
    %2217 = vmatprep.subr.mxu0 0.0
    %2218 = vmatpush1.msra.mxu0 0.0
    %2219 = vmatprep.subr.mxu0 0.0
    %2220 = vmatpush1.msra.mxu0 0.0
    %2221 = vmatprep.subr.mxu0 0.0
    %2222 = vmatpush1.msra.mxu0 0.0
    %2223 = vmatprep.subr.mxu0 0.0
    %2224 = vmatpush1.msra.mxu0 0.0
    %2225 = vmatprep.subr.mxu0 0.0
    %2226 = vmatpush1.msra.mxu0 0.0
    %2227 = vmatprep.subr.mxu0 0.0
    %2228 = vmatpush1.msra.mxu0 0.0
    %2229 = vmatprep.subr.mxu0 0.0
    %2230 = vmatpush1.msra.mxu0 0.0
    %2231 = vmatprep.subr.mxu0 0.0
    %2232 = vmatpush1.msra.mxu0 0.0
    %2233 = vmatprep.subr.mxu0 0.0
    %2234 = vmatpush1.msra.mxu0 0.0
    %2235 = vmatprep.subr.mxu0 0.0
    %2236 = vmatpush1.msra.mxu0 0.0
    %2237 = vmatprep.subr.mxu0 0.0
    %2238 = vmatpush1.msra.mxu0 0.0
    %2239 = vmatprep.subr.mxu0 0.0
    %2240 = vmatpush1.msra.mxu0 0.0
    %2241 = vmatprep.subr.mxu0 0.0
    %2242 = vmatpush1.msra.mxu0 0.0
    %2243 = vmatprep.subr.mxu0 0.0
    %2244 = vmatpush1.msra.mxu0 0.0
    %2245 = vmatprep.subr.mxu0 0.0
    %2246 = vmatpush1.msra.mxu0 0.0
    %2247 = vmatprep.subr.mxu0 0.0
    %2248 = vmatpush1.msra.mxu0 0.0
    %2249 = vmatprep.mubr.f32.mxu0 0.0
    %2250 = vmatmul.mubr.f32.gmra.mrb[0].mxu0 %v1899
    %v2251 = vpop.f32.mrb[0].mxu0
    %v2252 = vadd.f32 %v1852, %v2251
    %v2253 = vpop.f32.mrb[0].mxu0
    %v2254 = vadd.f32 %v1856, %v2253
    %2255 = vdwg.mxu0
    %2256 = vmatprep.subr.mxu0 %v1792
    %2257 = vmatpush1.msra.mxu0 %v1791
    %2258 = vmatprep.subr.mxu0 %v1808
    %2259 = vmatpush1.msra.mxu0 %v1807
    %2260 = vmatprep.subr.mxu0 0.0
    %2261 = vmatpush1.msra.mxu0 0.0
    %2262 = vmatprep.subr.mxu0 0.0
    %2263 = vmatpush1.msra.mxu0 0.0
    %2264 = vmatprep.subr.mxu0 0.0
    %2265 = vmatpush1.msra.mxu0 0.0
    %2266 = vmatprep.subr.mxu0 0.0
    %2267 = vmatpush1.msra.mxu0 0.0
    %2268 = vmatprep.subr.mxu0 0.0
    %2269 = vmatpush1.msra.mxu0 0.0
    %2270 = vmatprep.subr.mxu0 0.0
    %2271 = vmatpush1.msra.mxu0 0.0
    %2272 = vmatprep.subr.mxu0 0.0
    %2273 = vmatpush1.msra.mxu0 0.0
    %2274 = vmatprep.subr.mxu0 0.0
    %2275 = vmatpush1.msra.mxu0 0.0
    %2276 = vmatprep.subr.mxu0 0.0
    %2277 = vmatpush1.msra.mxu0 0.0
    %2278 = vmatprep.subr.mxu0 0.0
    %2279 = vmatpush1.msra.mxu0 0.0
    %2280 = vmatprep.subr.mxu0 0.0
    %2281 = vmatpush1.msra.mxu0 0.0
    %2282 = vmatprep.subr.mxu0 0.0
    %2283 = vmatpush1.msra.mxu0 0.0
    %2284 = vmatprep.subr.mxu0 0.0
    %2285 = vmatpush1.msra.mxu0 0.0
    %2286 = vmatprep.subr.mxu0 0.0
    %2287 = vmatpush1.msra.mxu0 0.0
    %2288 = vmatprep.subr.mxu0 0.0
    %2289 = vmatpush1.msra.mxu0 0.0
    %2290 = vmatprep.subr.mxu0 0.0
    %2291 = vmatpush1.msra.mxu0 0.0
    %2292 = vmatprep.subr.mxu0 0.0
    %2293 = vmatpush1.msra.mxu0 0.0
    %2294 = vmatprep.subr.mxu0 0.0
    %2295 = vmatpush1.msra.mxu0 0.0
    %2296 = vmatprep.subr.mxu0 0.0
    %2297 = vmatpush1.msra.mxu0 0.0
    %2298 = vmatprep.subr.mxu0 0.0
    %2299 = vmatpush1.msra.mxu0 0.0
    %2300 = vmatprep.subr.mxu0 0.0
    %2301 = vmatpush1.msra.mxu0 0.0
    %2302 = vmatprep.subr.mxu0 0.0
    %2303 = vmatpush1.msra.mxu0 0.0
    %2304 = vmatprep.subr.mxu0 0.0
    %2305 = vmatpush1.msra.mxu0 0.0
    %2306 = vmatprep.subr.mxu0 0.0
    %2307 = vmatpush1.msra.mxu0 0.0
    %2308 = vmatprep.subr.mxu0 0.0
    %2309 = vmatpush1.msra.mxu0 0.0
    %2310 = vmatprep.subr.mxu0 0.0
    %2311 = vmatpush1.msra.mxu0 0.0
    %2312 = vmatprep.subr.mxu0 0.0
    %2313 = vmatpush1.msra.mxu0 0.0
    %2314 = vmatprep.subr.mxu0 0.0
    %2315 = vmatpush1.msra.mxu0 0.0
    %2316 = vmatprep.subr.mxu0 0.0
    %2317 = vmatpush1.msra.mxu0 0.0
    %2318 = vmatprep.subr.mxu0 0.0
    %2319 = vmatpush1.msra.mxu0 0.0
    %2320 = vmatprep.mubr.f32.mxu0 0.0
    %2321 = vmatmul.mubr.f32.gmra.mrb[0].mxu0 %v1899
    %v2322 = vpop.f32.mrb[0].mxu0
    %v2323 = vadd.f32 %v1860, %v2322
    %v2324 = vpop.f32.mrb[0].mxu0
    %v2325 = vadd.f32 %v1864, %v2324
    %2326 = vdwg.mxu0
    %2327 = vmatprep.subr.mxu0 %v1794
    %2328 = vmatpush1.msra.mxu0 %v1793
    %2329 = vmatprep.subr.mxu0 %v1810
    %2330 = vmatpush1.msra.mxu0 %v1809
    %2331 = vmatprep.subr.mxu0 0.0
    %2332 = vmatpush1.msra.mxu0 0.0
    %2333 = vmatprep.subr.mxu0 0.0
    %2334 = vmatpush1.msra.mxu0 0.0
    %2335 = vmatprep.subr.mxu0 0.0
    %2336 = vmatpush1.msra.mxu0 0.0
    %2337 = vmatprep.subr.mxu0 0.0
    %2338 = vmatpush1.msra.mxu0 0.0
    %2339 = vmatprep.subr.mxu0 0.0
    %2340 = vmatpush1.msra.mxu0 0.0
    %2341 = vmatprep.subr.mxu0 0.0
    %2342 = vmatpush1.msra.mxu0 0.0
    %2343 = vmatprep.subr.mxu0 0.0
    %2344 = vmatpush1.msra.mxu0 0.0
    %2345 = vmatprep.subr.mxu0 0.0
    %2346 = vmatpush1.msra.mxu0 0.0
    %2347 = vmatprep.subr.mxu0 0.0
    %2348 = vmatpush1.msra.mxu0 0.0
    %2349 = vmatprep.subr.mxu0 0.0
    %2350 = vmatpush1.msra.mxu0 0.0
    %2351 = vmatprep.subr.mxu0 0.0
    %2352 = vmatpush1.msra.mxu0 0.0
    %2353 = vmatprep.subr.mxu0 0.0
    %2354 = vmatpush1.msra.mxu0 0.0
    %2355 = vmatprep.subr.mxu0 0.0
    %2356 = vmatpush1.msra.mxu0 0.0
    %2357 = vmatprep.subr.mxu0 0.0
    %2358 = vmatpush1.msra.mxu0 0.0
    %2359 = vmatprep.subr.mxu0 0.0
    %2360 = vmatpush1.msra.mxu0 0.0
    %2361 = vmatprep.subr.mxu0 0.0
    %2362 = vmatpush1.msra.mxu0 0.0
    %2363 = vmatprep.subr.mxu0 0.0
    %2364 = vmatpush1.msra.mxu0 0.0
    %2365 = vmatprep.subr.mxu0 0.0
    %2366 = vmatpush1.msra.mxu0 0.0
    %2367 = vmatprep.subr.mxu0 0.0
    %2368 = vmatpush1.msra.mxu0 0.0
    %2369 = vmatprep.subr.mxu0 0.0
    %2370 = vmatpush1.msra.mxu0 0.0
    %2371 = vmatprep.subr.mxu0 0.0
    %2372 = vmatpush1.msra.mxu0 0.0
    %2373 = vmatprep.subr.mxu0 0.0
    %2374 = vmatpush1.msra.mxu0 0.0
    %2375 = vmatprep.subr.mxu0 0.0
    %2376 = vmatpush1.msra.mxu0 0.0
    %2377 = vmatprep.subr.mxu0 0.0
    %2378 = vmatpush1.msra.mxu0 0.0
    %2379 = vmatprep.subr.mxu0 0.0
    %2380 = vmatpush1.msra.mxu0 0.0
    %2381 = vmatprep.subr.mxu0 0.0
    %2382 = vmatpush1.msra.mxu0 0.0
    %2383 = vmatprep.subr.mxu0 0.0
    %2384 = vmatpush1.msra.mxu0 0.0
    %2385 = vmatprep.subr.mxu0 0.0
    %2386 = vmatpush1.msra.mxu0 0.0
    %2387 = vmatprep.subr.mxu0 0.0
    %2388 = vmatpush1.msra.mxu0 0.0
    %2389 = vmatprep.subr.mxu0 0.0
    %2390 = vmatpush1.msra.mxu0 0.0
    %2391 = vmatprep.mubr.f32.mxu0 0.0
    %2392 = vmatmul.mubr.f32.gmra.mrb[0].mxu0 %v1899
    %v2393 = vpop.f32.mrb[0].mxu0
    %v2394 = vadd.f32 %v1868, %v2393
    %v2395 = vpop.f32.mrb[0].mxu0
    %v2396 = vadd.f32 %v1872, %v2395
    %2397 = vdwg.mxu0
    %2398 = vmatprep.subr.mxu0 %v1796
    %2399 = vmatpush1.msra.mxu0 %v1795
    %2400 = vmatprep.subr.mxu0 %v1812
    %2401 = vmatpush1.msra.mxu0 %v1811
    %2402 = vmatprep.subr.mxu0 0.0
    %2403 = vmatpush1.msra.mxu0 0.0
    %2404 = vmatprep.subr.mxu0 0.0
    %2405 = vmatpush1.msra.mxu0 0.0
    %2406 = vmatprep.subr.mxu0 0.0
    %2407 = vmatpush1.msra.mxu0 0.0
    %2408 = vmatprep.subr.mxu0 0.0
    %2409 = vmatpush1.msra.mxu0 0.0
    %2410 = vmatprep.subr.mxu0 0.0
    %2411 = vmatpush1.msra.mxu0 0.0
    %2412 = vmatprep.subr.mxu0 0.0
    %2413 = vmatpush1.msra.mxu0 0.0
    %2414 = vmatprep.subr.mxu0 0.0
    %2415 = vmatpush1.msra.mxu0 0.0
    %2416 = vmatprep.subr.mxu0 0.0
    %2417 = vmatpush1.msra.mxu0 0.0
    %2418 = vmatprep.subr.mxu0 0.0
    %2419 = vmatpush1.msra.mxu0 0.0
    %2420 = vmatprep.subr.mxu0 0.0
    %2421 = vmatpush1.msra.mxu0 0.0
    %2422 = vmatprep.subr.mxu0 0.0
    %2423 = vmatpush1.msra.mxu0 0.0
    %2424 = vmatprep.subr.mxu0 0.0
    %2425 = vmatpush1.msra.mxu0 0.0
    %2426 = vmatprep.subr.mxu0 0.0
    %2427 = vmatpush1.msra.mxu0 0.0
    %2428 = vmatprep.subr.mxu0 0.0
    %2429 = vmatpush1.msra.mxu0 0.0
    %2430 = vmatprep.subr.mxu0 0.0
    %2431 = vmatpush1.msra.mxu0 0.0
    %2432 = vmatprep.subr.mxu0 0.0
    %2433 = vmatpush1.msra.mxu0 0.0
    %2434 = vmatprep.subr.mxu0 0.0
    %2435 = vmatpush1.msra.mxu0 0.0
    %2436 = vmatprep.subr.mxu0 0.0
    %2437 = vmatpush1.msra.mxu0 0.0
    %2438 = vmatprep.subr.mxu0 0.0
    %2439 = vmatpush1.msra.mxu0 0.0
    %2440 = vmatprep.subr.mxu0 0.0
    %2441 = vmatpush1.msra.mxu0 0.0
    %2442 = vmatprep.subr.mxu0 0.0
    %2443 = vmatpush1.msra.mxu0 0.0
    %2444 = vmatprep.subr.mxu0 0.0
    %2445 = vmatpush1.msra.mxu0 0.0
    %2446 = vmatprep.subr.mxu0 0.0
    %2447 = vmatpush1.msra.mxu0 0.0
    %2448 = vmatprep.subr.mxu0 0.0
    %2449 = vmatpush1.msra.mxu0 0.0
    %2450 = vmatprep.subr.mxu0 0.0
    %2451 = vmatpush1.msra.mxu0 0.0
    %2452 = vmatprep.subr.mxu0 0.0
    %2453 = vmatpush1.msra.mxu0 0.0
    %2454 = vmatprep.subr.mxu0 0.0
    %2455 = vmatpush1.msra.mxu0 0.0
    %2456 = vmatprep.subr.mxu0 0.0
    %2457 = vmatpush1.msra.mxu0 0.0
    %2458 = vmatprep.subr.mxu0 0.0
    %2459 = vmatpush1.msra.mxu0 0.0
    %2460 = vmatprep.subr.mxu0 0.0
    %2461 = vmatpush1.msra.mxu0 0.0
    %2462 = vmatprep.mubr.f32.mxu0 0.0
    %2463 = vmatmul.mubr.f32.gmra.mrb[0].mxu0 %v1899
    %v2464 = vpop.f32.mrb[0].mxu0
    %v2465 = vadd.f32 %v1876, %v2464
    %v2466 = vpop.f32.mrb[0].mxu0
    %v2467 = vadd.f32 %v1880, %v2466
    %2468 = vdwg.mxu0
    %v2485 = vcombine.low %v1968, %v1970
    %v2486 = vcombine.low %v2039, %v2041
    %v2488 = vunpack.c.l.s4 1983009808
    %v2489 = vunpack.c.0.s8 %v2488
    %v2490 = vlaneseq
    %v2491 = vshrl.u32 %v2490, 7
    %v2492 = vsub.s32 %v2489, %v2491
    %v2493 = vrot.slane %v2485, %v2492
    %v2495 = vunpack.c.l.s4 1983009808
    %v2496 = vunpack.c.0.s8 %v2495
    %v2497 = vlaneseq
    %v2498 = vshrl.u32 %v2497, 7
    %v2499 = vsub.s32 %v2496, %v2498
    %v2500 = vrot.slane %v2486, %v2499
    %v2501 = vcombine.low %v2493, %v2500
    %v2502 = vcombine.low %v2110, %v2112
    %v2503 = vcombine.low %v2181, %v2183
    %v2505 = vunpack.c.l.s4 1983009808
    %v2506 = vunpack.c.0.s8 %v2505
    %v2507 = vlaneseq
    %v2508 = vshrl.u32 %v2507, 7
    %v2509 = vsub.s32 %v2506, %v2508
    %v2510 = vrot.slane %v2502, %v2509
    %v2512 = vunpack.c.l.s4 1983009808
    %v2513 = vunpack.c.0.s8 %v2512
    %v2514 = vlaneseq
    %v2515 = vshrl.u32 %v2514, 7
    %v2516 = vsub.s32 %v2513, %v2515
    %v2517 = vrot.slane %v2503, %v2516
    %v2518 = vcombine.low %v2510, %v2517
    %v2519 = vcombine.low %v2252, %v2254
    %v2520 = vcombine.low %v2323, %v2325
    %v2522 = vunpack.c.l.s4 1983009808
    %v2523 = vunpack.c.0.s8 %v2522
    %v2524 = vlaneseq
    %v2525 = vshrl.u32 %v2524, 7
    %v2526 = vsub.s32 %v2523, %v2525
    %v2527 = vrot.slane %v2519, %v2526
    %v2529 = vunpack.c.l.s4 1983009808
    %v2530 = vunpack.c.0.s8 %v2529
    %v2531 = vlaneseq
    %v2532 = vshrl.u32 %v2531, 7
    %v2533 = vsub.s32 %v2530, %v2532
    %v2534 = vrot.slane %v2520, %v2533
    %v2535 = vcombine.low %v2527, %v2534
    %v2536 = vcombine.low %v2394, %v2396
    %v2537 = vcombine.low %v2465, %v2467
    %v2539 = vunpack.c.l.s4 1983009808
    %v2540 = vunpack.c.0.s8 %v2539
    %v2541 = vlaneseq
    %v2542 = vshrl.u32 %v2541, 7
    %v2543 = vsub.s32 %v2540, %v2542
    %v2544 = vrot.slane %v2536, %v2543
    %v2546 = vunpack.c.l.s4 1983009808
    %v2547 = vunpack.c.0.s8 %v2546
    %v2548 = vlaneseq
    %v2549 = vshrl.u32 %v2548, 7
    %v2550 = vsub.s32 %v2547, %v2549
    %v2551 = vrot.slane %v2537, %v2550
    %v2552 = vcombine.low %v2544, %v2551
    %2557 = vst [vmem:[%s10] sm:$0xff] %v2501
    %2558 = vst [vmem:[%s10 + $0x8] sm:$0xff] %v2518
    %2559 = vst [vmem:[%s10 + $0x10] sm:$0xff] %v2535
    %2560 = vst [vmem:[%s10 + $0x18] sm:$0xff] %v2552
    // Predicated region
    $region34: #{_lambda_.17} parent=1 // pred_check
      _
    $region35: #{_lambda_.17} parent=1 // pred_check_branch
      %2562 = sbr.rel (0) target = $region37
    $region36: #{_lambda_.17} parent=1 // pred_region
      %s2564 = ssub.s32 32, 32
      %2565 = vsyncadd [#allocation3], %s2564
      %s2567 = sshll.u32 [#allocation2], 4
      %s2568 = int_to_ptr.vmem [resolvable:$true] %s2567
      %2570 = dma.vmem_to_hbm [thread:$0]  %s2568, 32, %s8, [#allocation3]
    $region37: #{_lambda_.17} parent=1 // pred_fallthru
      _
    // Predicated region
    $region38: #{_lambda_.17} parent=1 // pred_check
      _
    $region39: #{_lambda_.17} parent=1 // pred_check_branch
      %2572 = sbr.rel (0) target = $region41
    $region40: #{_lambda_.17} parent=1 // pred_region
      %s2574 = ssub.s32 32, 32
      %2575 = vsyncadd [#allocation5], %s2574
      %s2577 = sshll.u32 [#allocation4], 4
      %s2578 = int_to_ptr.vmem [resolvable:$true] %s2577
      %2580 = dma.vmem_to_hbm [thread:$0]  %s2578, 32, %s9, [#allocation5]
    $region41: #{_lambda_.17} parent=1 // pred_fallthru
      _
    // Predicated region
    $region42: #{_lambda_.17} parent=1 // pred_check
      _
    $region43: #{_lambda_.17} parent=1 // pred_check_branch
      %2582 = sbr.rel (0) target = $region45
    $region44: #{_lambda_.17} parent=1 // pred_region
      _
    $region45: #{_lambda_.17} parent=1 // pred_fallthru
      _
    // Predicated region
    $region46: #{_lambda_.17} parent=1 // pred_check
      _
    $region47: #{_lambda_.17} parent=1 // pred_check_branch
      %2584 = sbr.rel (0) target = $region49
    $region48: #{_lambda_.17} parent=1 // pred_region
      %2585 = dma.done [#allocation3], 32
    $region49: #{_lambda_.17} parent=1 // pred_fallthru
      _
    // Predicated region
    $region50: #{_lambda_.17} parent=1 // pred_check
      _
    $region51: #{_lambda_.17} parent=1 // pred_check_branch
      %2587 = sbr.rel (0) target = $region53
    $region52: #{_lambda_.17} parent=1 // pred_region
      %2588 = dma.done [#allocation5], 32
    $region53: #{_lambda_.17} parent=1 // pred_fallthru
      _
    // Predicated region
    $region54: #{_lambda_.17} parent=1 // pred_check
      _
    $region55: #{_lambda_.17} parent=1 // pred_check_branch
      %2590 = sbr.rel (0) target = $region57
    $region56: #{_lambda_.17} parent=1 // pred_region
      _
    $region57: #{_lambda_.17} parent=1 // pred_fallthru
      _
    %2591 = vsyncpa [#allocation3], 1
    %2592 = vsyncpa [#allocation5], 1

// kernel: _lambda_.19
$region0: #{_lambda_.19}
  #allocation0 [shape = 'u32[]', space=smem, size = 0x4, offset = 0x4, fixed_abs, tag = 'smem constant byte address 0x4 - core index']
  #allocation1 [shape = 'u32[144,128]{1,0:T(1,128)}', space=vmem, size = 0x12000, scoped, tag = 'internal scratch']
  %s0 = inlined_call_operand.vmem [shape: f32[16,256], index: 0, kind: input, shape index: {}]
  %s1 = inlined_call_operand.vmem [shape: f32[16,256], index: 1, kind: input, shape index: {}]
  %s2 = inlined_call_operand.vmem [shape: f32[256,128], index: 2, kind: input, shape index: {}]
  %s3 = inlined_call_operand.vmem [shape: f32[256,128], index: 3, kind: input, shape index: {}]
  %s4 = inlined_call_operand.vmem [shape: f32[256,128], index: 4, kind: input, shape index: {}]
  %s5 = inlined_call_operand.vmem [shape: f32[1,128], index: 5, kind: input, shape index: {}]
  %s6 = inlined_call_operand.vmem [shape: f32[1,128], index: 6, kind: input, shape index: {}]
  %s7 = inlined_call_operand.vmem [shape: f32[1,128], index: 7, kind: input, shape index: {}]
  %s8 = inlined_call_operand.vmem [shape: f32[16,128], index: 8, kind: output, shape index: {0}]
  %s9 = inlined_call_operand.vmem [shape: f32[16,128], index: 9, kind: output, shape index: {1}]
  %10 = xla_tuple %s8, %s9
  %s11 = sld [smem:[#allocation0]]
  $region50: #{_lambda_.19} parent=0
    _
  %s13 = ssub.s32 1, %s11
  %s14 = scalar_select 0, %s13, %s11
  // Predicated region
  $region2: #{_lambda_.19} parent=0 // pred_check
    _
  $region3: #{_lambda_.19} parent=0 // pred_check_branch
    %16 = sbr.rel (0) target = $region5
  $region4: #{_lambda_.19} parent=0 // pred_region
    _
  $region5: #{_lambda_.19} parent=0 // pred_fallthru
    _
  // Predicated region
  $region6: #{_lambda_.19} parent=0 // pred_check
    _
  $region7: #{_lambda_.19} parent=0 // pred_check_branch
    %18 = sbr.rel (0) target = $region9
  $region8: #{_lambda_.19} parent=0 // pred_region
    _
  $region9: #{_lambda_.19} parent=0 // pred_fallthru
    _
  // Predicated region
  $region10: #{_lambda_.19} parent=0 // pred_check
    _
  $region11: #{_lambda_.19} parent=0 // pred_check_branch
    %20 = sbr.rel (0) target = $region13
  $region12: #{_lambda_.19} parent=0 // pred_region
    _
  $region13: #{_lambda_.19} parent=0 // pred_fallthru
    _
  // Predicated region
  $region14: #{_lambda_.19} parent=0 // pred_check
    _
  $region15: #{_lambda_.19} parent=0 // pred_check_branch
    %22 = sbr.rel (0) target = $region17
  $region16: #{_lambda_.19} parent=0 // pred_region
    _
  $region17: #{_lambda_.19} parent=0 // pred_fallthru
    _
  // Predicated region
  $region18: #{_lambda_.19} parent=0 // pred_check
    _
  $region19: #{_lambda_.19} parent=0 // pred_check_branch
    %24 = sbr.rel (0) target = $region21
  $region20: #{_lambda_.19} parent=0 // pred_region
    _
  $region21: #{_lambda_.19} parent=0 // pred_fallthru
    _
  // Predicated region
  $region22: #{_lambda_.19} parent=0 // pred_check
    _
  $region23: #{_lambda_.19} parent=0 // pred_check_branch
    %26 = sbr.rel (0) target = $region25
  $region24: #{_lambda_.19} parent=0 // pred_region
    _
  $region25: #{_lambda_.19} parent=0 // pred_fallthru
    _
  // Predicated region
  $region26: #{_lambda_.19} parent=0 // pred_check
    _
  $region27: #{_lambda_.19} parent=0 // pred_check_branch
    %28 = sbr.rel (0) target = $region29
  $region28: #{_lambda_.19} parent=0 // pred_region
    _
  $region29: #{_lambda_.19} parent=0 // pred_fallthru
    _
  // Predicated region
  $region30: #{_lambda_.19} parent=0 // pred_check
    _
  $region31: #{_lambda_.19} parent=0 // pred_check_branch
    %30 = sbr.rel (0) target = $region33
  $region32: #{_lambda_.19} parent=0 // pred_region
    _
  $region33: #{_lambda_.19} parent=0 // pred_fallthru
    _
  %v31 = vld [vmem:[%s0] sm:$0xff]
  %v32 = vld [vmem:[%s0 + $0x8] sm:$0xff]
  %v33 = vld [vmem:[%s0 + $0x10] sm:$0xff]
  %v34 = vld [vmem:[%s0 + $0x18] sm:$0xff]
  %v35 = vld [vmem:[%s1] sm:$0xff]
  %v36 = vld [vmem:[%s1 + $0x8] sm:$0xff]
  %v37 = vld [vmem:[%s1 + $0x10] sm:$0xff]
  %v38 = vld [vmem:[%s1 + $0x18] sm:$0xff]
  %v39 = vld [vmem:[%s5] sm:$0x1]
  %v40 = vld [vmem:[%s3] sm:$0xff]
  %v41 = vld [vmem:[%s3 + $0x8] sm:$0xff]
  %v42 = vld [vmem:[%s3 + $0x10] sm:$0xff]
  %v43 = vld [vmem:[%s3 + $0x18] sm:$0xff]
  %v44 = vld [vmem:[%s3 + $0x20] sm:$0xff]
  %v45 = vld [vmem:[%s3 + $0x28] sm:$0xff]
  %v46 = vld [vmem:[%s3 + $0x30] sm:$0xff]
  %v47 = vld [vmem:[%s3 + $0x38] sm:$0xff]
  %v48 = vld [vmem:[%s3 + $0x40] sm:$0xff]
  %v49 = vld [vmem:[%s3 + $0x48] sm:$0xff]
  %v50 = vld [vmem:[%s3 + $0x50] sm:$0xff]
  %v51 = vld [vmem:[%s3 + $0x58] sm:$0xff]
  %v52 = vld [vmem:[%s3 + $0x60] sm:$0xff]
  %v53 = vld [vmem:[%s3 + $0x68] sm:$0xff]
  %v54 = vld [vmem:[%s3 + $0x70] sm:$0xff]
  %v55 = vld [vmem:[%s3 + $0x78] sm:$0xff]
  %v56 = vld [vmem:[%s3 + $0x80] sm:$0xff]
  %v57 = vld [vmem:[%s3 + $0x88] sm:$0xff]
  %v58 = vld [vmem:[%s3 + $0x90] sm:$0xff]
  %v59 = vld [vmem:[%s3 + $0x98] sm:$0xff]
  %v60 = vld [vmem:[%s3 + $0xa0] sm:$0xff]
  %v61 = vld [vmem:[%s3 + $0xa8] sm:$0xff]
  %v62 = vld [vmem:[%s3 + $0xb0] sm:$0xff]
  %v63 = vld [vmem:[%s3 + $0xb8] sm:$0xff]
  %v64 = vld [vmem:[%s3 + $0xc0] sm:$0xff]
  %v65 = vld [vmem:[%s3 + $0xc8] sm:$0xff]
  %v66 = vld [vmem:[%s3 + $0xd0] sm:$0xff]
  %v67 = vld [vmem:[%s3 + $0xd8] sm:$0xff]
  %v68 = vld [vmem:[%s3 + $0xe0] sm:$0xff]
  %v69 = vld [vmem:[%s3 + $0xe8] sm:$0xff]
  %v70 = vld [vmem:[%s3 + $0xf0] sm:$0xff]
  %v71 = vld [vmem:[%s3 + $0xf8] sm:$0xff]
  %v73 = vlaneseq
  %v74 = vshrl.u32 %v73, 7
  %v75 = vsub.s32 0, %v74
  %v76 = vrot.slane %v39, %v75
  %78 = vmatprep.subr.mxu0 0.0
  %79 = vmatpush1.msra.mxu0 %v40
  %80 = vmatprep.subr.mxu0 0.0
  %81 = vmatpush1.msra.mxu0 %v41
  %82 = vmatprep.subr.mxu0 0.0
  %83 = vmatpush1.msra.mxu0 %v42
  %84 = vmatprep.subr.mxu0 0.0
  %85 = vmatpush1.msra.mxu0 %v43
  %86 = vmatprep.subr.mxu0 0.0
  %87 = vmatpush1.msra.mxu0 %v44
  %88 = vmatprep.subr.mxu0 0.0
  %89 = vmatpush1.msra.mxu0 %v45
  %90 = vmatprep.subr.mxu0 0.0
  %91 = vmatpush1.msra.mxu0 %v46
  %92 = vmatprep.subr.mxu0 0.0
  %93 = vmatpush1.msra.mxu0 %v47
  %94 = vmatprep.subr.mxu0 0.0
  %95 = vmatpush1.msra.mxu0 %v48
  %96 = vmatprep.subr.mxu0 0.0
  %97 = vmatpush1.msra.mxu0 %v49
  %98 = vmatprep.subr.mxu0 0.0
  %99 = vmatpush1.msra.mxu0 %v50
  %100 = vmatprep.subr.mxu0 0.0
  %101 = vmatpush1.msra.mxu0 %v51
  %102 = vmatprep.subr.mxu0 0.0
  %103 = vmatpush1.msra.mxu0 %v52
  %104 = vmatprep.subr.mxu0 0.0
  %105 = vmatpush1.msra.mxu0 %v53
  %106 = vmatprep.subr.mxu0 0.0
  %107 = vmatpush1.msra.mxu0 %v54
  %108 = vmatprep.subr.mxu0 0.0
  %109 = vmatpush1.msra.mxu0 %v55
  %110 = vmatprep.subr.mxu0 0.0
  %111 = vmatpush1.msra.mxu0 %v56
  %112 = vmatprep.subr.mxu0 0.0
  %113 = vmatpush1.msra.mxu0 %v57
  %114 = vmatprep.subr.mxu0 0.0
  %115 = vmatpush1.msra.mxu0 %v58
  %116 = vmatprep.subr.mxu0 0.0
  %117 = vmatpush1.msra.mxu0 %v59
  %118 = vmatprep.subr.mxu0 0.0
  %119 = vmatpush1.msra.mxu0 %v60
  %120 = vmatprep.subr.mxu0 0.0
  %121 = vmatpush1.msra.mxu0 %v61
  %122 = vmatprep.subr.mxu0 0.0
  %123 = vmatpush1.msra.mxu0 %v62
  %124 = vmatprep.subr.mxu0 0.0
  %125 = vmatpush1.msra.mxu0 %v63
  %126 = vmatprep.subr.mxu0 0.0
  %127 = vmatpush1.msra.mxu0 %v64
  %128 = vmatprep.subr.mxu0 0.0
  %129 = vmatpush1.msra.mxu0 %v65
  %130 = vmatprep.subr.mxu0 0.0
  %131 = vmatpush1.msra.mxu0 %v66
  %132 = vmatprep.subr.mxu0 0.0
  %133 = vmatpush1.msra.mxu0 %v67
  %134 = vmatprep.subr.mxu0 0.0
  %135 = vmatpush1.msra.mxu0 %v68
  %136 = vmatprep.subr.mxu0 0.0
  %137 = vmatpush1.msra.mxu0 %v69
  %138 = vmatprep.subr.mxu0 0.0
  %139 = vmatpush1.msra.mxu0 %v70
  %140 = vmatprep.subr.mxu0 0.0
  %141 = vmatpush1.msra.mxu0 %v71
  %142 = vmatprep.mubr.f32.mxu0 %v32
  %143 = vmatmul.mubr.f32.gmra.mrb[0].mxu0 %v31
  %v144 = vpop.f32.mrb[0].mxu0
  %v145 = vadd.f32 %v76, %v144
  %v146 = vpop.f32.mrb[0].mxu0
  %147 = vmatprep.mubr.f32.mxu0 %v34
  %148 = vmatmul.mubr.f32.gmra.mrb[0].mxu0 %v33
  %v149 = vpop.f32.mrb[0].mxu0
  %v150 = vadd.f32 %v76, %v149
  %v151 = vpop.f32.mrb[0].mxu0
  %152 = vdwg.mxu0
  %v153 = vld [vmem:[%s4] sm:$0xff]
  %v154 = vld [vmem:[%s4 + $0x8] sm:$0xff]
  %v155 = vld [vmem:[%s4 + $0x10] sm:$0xff]
  %v156 = vld [vmem:[%s4 + $0x18] sm:$0xff]
  %v157 = vld [vmem:[%s4 + $0x20] sm:$0xff]
  %v158 = vld [vmem:[%s4 + $0x28] sm:$0xff]
  %v159 = vld [vmem:[%s4 + $0x30] sm:$0xff]
  %v160 = vld [vmem:[%s4 + $0x38] sm:$0xff]
  %v161 = vld [vmem:[%s4 + $0x40] sm:$0xff]
  %v162 = vld [vmem:[%s4 + $0x48] sm:$0xff]
  %v163 = vld [vmem:[%s4 + $0x50] sm:$0xff]
  %v164 = vld [vmem:[%s4 + $0x58] sm:$0xff]
  %v165 = vld [vmem:[%s4 + $0x60] sm:$0xff]
  %v166 = vld [vmem:[%s4 + $0x68] sm:$0xff]
  %v167 = vld [vmem:[%s4 + $0x70] sm:$0xff]
  %v168 = vld [vmem:[%s4 + $0x78] sm:$0xff]
  %v169 = vld [vmem:[%s4 + $0x80] sm:$0xff]
  %v170 = vld [vmem:[%s4 + $0x88] sm:$0xff]
  %v171 = vld [vmem:[%s4 + $0x90] sm:$0xff]
  %v172 = vld [vmem:[%s4 + $0x98] sm:$0xff]
  %v173 = vld [vmem:[%s4 + $0xa0] sm:$0xff]
  %v174 = vld [vmem:[%s4 + $0xa8] sm:$0xff]
  %v175 = vld [vmem:[%s4 + $0xb0] sm:$0xff]
  %v176 = vld [vmem:[%s4 + $0xb8] sm:$0xff]
  %v177 = vld [vmem:[%s4 + $0xc0] sm:$0xff]
  %v178 = vld [vmem:[%s4 + $0xc8] sm:$0xff]
  %v179 = vld [vmem:[%s4 + $0xd0] sm:$0xff]
  %v180 = vld [vmem:[%s4 + $0xd8] sm:$0xff]
  %v181 = vld [vmem:[%s4 + $0xe0] sm:$0xff]
  %v182 = vld [vmem:[%s4 + $0xe8] sm:$0xff]
  %v183 = vld [vmem:[%s4 + $0xf0] sm:$0xff]
  %v184 = vld [vmem:[%s4 + $0xf8] sm:$0xff]
  %v185 = vld [vmem:[%s2] sm:$0xff]
  %v186 = vld [vmem:[%s2 + $0x8] sm:$0xff]
  %v187 = vld [vmem:[%s2 + $0x10] sm:$0xff]
  %v188 = vld [vmem:[%s2 + $0x18] sm:$0xff]
  %v189 = vld [vmem:[%s2 + $0x20] sm:$0xff]
  %v190 = vld [vmem:[%s2 + $0x28] sm:$0xff]
  %v191 = vld [vmem:[%s2 + $0x30] sm:$0xff]
  %v192 = vld [vmem:[%s2 + $0x38] sm:$0xff]
  %v193 = vld [vmem:[%s2 + $0x40] sm:$0xff]
  %v194 = vld [vmem:[%s2 + $0x48] sm:$0xff]
  %v195 = vld [vmem:[%s2 + $0x50] sm:$0xff]
  %v196 = vld [vmem:[%s2 + $0x58] sm:$0xff]
  %v197 = vld [vmem:[%s2 + $0x60] sm:$0xff]
  %v198 = vld [vmem:[%s2 + $0x68] sm:$0xff]
  %v199 = vld [vmem:[%s2 + $0x70] sm:$0xff]
  %v200 = vld [vmem:[%s2 + $0x78] sm:$0xff]
  %v201 = vld [vmem:[%s2 + $0x80] sm:$0xff]
  %v202 = vld [vmem:[%s2 + $0x88] sm:$0xff]
  %v203 = vld [vmem:[%s2 + $0x90] sm:$0xff]
  %v204 = vld [vmem:[%s2 + $0x98] sm:$0xff]
  %v205 = vld [vmem:[%s2 + $0xa0] sm:$0xff]
  %v206 = vld [vmem:[%s2 + $0xa8] sm:$0xff]
  %v207 = vld [vmem:[%s2 + $0xb0] sm:$0xff]
  %v208 = vld [vmem:[%s2 + $0xb8] sm:$0xff]
  %v209 = vld [vmem:[%s2 + $0xc0] sm:$0xff]
  %v210 = vld [vmem:[%s2 + $0xc8] sm:$0xff]
  %v211 = vld [vmem:[%s2 + $0xd0] sm:$0xff]
  %v212 = vld [vmem:[%s2 + $0xd8] sm:$0xff]
  %v213 = vld [vmem:[%s2 + $0xe0] sm:$0xff]
  %v214 = vld [vmem:[%s2 + $0xe8] sm:$0xff]
  %v215 = vld [vmem:[%s2 + $0xf0] sm:$0xff]
  %v216 = vld [vmem:[%s2 + $0xf8] sm:$0xff]
  %217 = vmatprep.subr.mxu0 0.0
  %218 = vmatpush1.msra.mxu0 %v185
  %219 = vmatprep.subr.mxu0 0.0
  %220 = vmatpush1.msra.mxu0 %v186
  %221 = vmatprep.subr.mxu0 0.0
  %222 = vmatpush1.msra.mxu0 %v187
  %223 = vmatprep.subr.mxu0 0.0
  %224 = vmatpush1.msra.mxu0 %v188
  %225 = vmatprep.subr.mxu0 0.0
  %226 = vmatpush1.msra.mxu0 %v189
  %227 = vmatprep.subr.mxu0 0.0
  %228 = vmatpush1.msra.mxu0 %v190
  %229 = vmatprep.subr.mxu0 0.0
  %230 = vmatpush1.msra.mxu0 %v191
  %231 = vmatprep.subr.mxu0 0.0
  %232 = vmatpush1.msra.mxu0 %v192
  %233 = vmatprep.subr.mxu0 0.0
  %234 = vmatpush1.msra.mxu0 %v193
  %235 = vmatprep.subr.mxu0 0.0
  %236 = vmatpush1.msra.mxu0 %v194
  %237 = vmatprep.subr.mxu0 0.0
  %238 = vmatpush1.msra.mxu0 %v195
  %239 = vmatprep.subr.mxu0 0.0
  %240 = vmatpush1.msra.mxu0 %v196
  %241 = vmatprep.subr.mxu0 0.0
  %242 = vmatpush1.msra.mxu0 %v197
  %243 = vmatprep.subr.mxu0 0.0
  %244 = vmatpush1.msra.mxu0 %v198
  %245 = vmatprep.subr.mxu0 0.0
  %246 = vmatpush1.msra.mxu0 %v199
  %247 = vmatprep.subr.mxu0 0.0
  %248 = vmatpush1.msra.mxu0 %v200
  %249 = vmatprep.subr.mxu0 0.0
  %250 = vmatpush1.msra.mxu0 %v201
  %251 = vmatprep.subr.mxu0 0.0
  %252 = vmatpush1.msra.mxu0 %v202
  %253 = vmatprep.subr.mxu0 0.0
  %254 = vmatpush1.msra.mxu0 %v203
  %255 = vmatprep.subr.mxu0 0.0
  %256 = vmatpush1.msra.mxu0 %v204
  %257 = vmatprep.subr.mxu0 0.0
  %258 = vmatpush1.msra.mxu0 %v205
  %259 = vmatprep.subr.mxu0 0.0
  %260 = vmatpush1.msra.mxu0 %v206
  %261 = vmatprep.subr.mxu0 0.0
  %262 = vmatpush1.msra.mxu0 %v207
  %263 = vmatprep.subr.mxu0 0.0
  %264 = vmatpush1.msra.mxu0 %v208
  %265 = vmatprep.subr.mxu0 0.0
  %266 = vmatpush1.msra.mxu0 %v209
  %267 = vmatprep.subr.mxu0 0.0
  %268 = vmatpush1.msra.mxu0 %v210
  %269 = vmatprep.subr.mxu0 0.0
  %270 = vmatpush1.msra.mxu0 %v211
  %271 = vmatprep.subr.mxu0 0.0
  %272 = vmatpush1.msra.mxu0 %v212
  %273 = vmatprep.subr.mxu0 0.0
  %274 = vmatpush1.msra.mxu0 %v213
  %275 = vmatprep.subr.mxu0 0.0
  %276 = vmatpush1.msra.mxu0 %v214
  %277 = vmatprep.subr.mxu0 0.0
  %278 = vmatpush1.msra.mxu0 %v215
  %279 = vmatprep.subr.mxu0 0.0
  %280 = vmatpush1.msra.mxu0 %v216
  %281 = vmatprep.mubr.f32.mxu0 %v36
  %282 = vmatmul.mubr.f32.gmra.mrb[0].mxu0 %v35
  %v283 = vpop.f32.mrb[0].mxu0
  %v284 = vadd.f32 0.0, %v283
  %v285 = vpop.f32.mrb[0].mxu0
  %286 = vmatprep.mubr.f32.mxu0 %v38
  %287 = vmatmul.mubr.f32.gmra.mrb[0].mxu0 %v37
  %v288 = vpop.f32.mrb[0].mxu0
  %v289 = vadd.f32 0.0, %v288
  %v290 = vpop.f32.mrb[0].mxu0
  %291 = vdwg.mxu0
  %292 = vmatprep.subr.mxu0 0.0
  %293 = vmatpush1.msra.mxu0 %v153
  %294 = vmatprep.subr.mxu0 0.0
  %295 = vmatpush1.msra.mxu0 %v154
  %296 = vmatprep.subr.mxu0 0.0
  %297 = vmatpush1.msra.mxu0 %v155
  %298 = vmatprep.subr.mxu0 0.0
  %299 = vmatpush1.msra.mxu0 %v156
  %300 = vmatprep.subr.mxu0 0.0
  %301 = vmatpush1.msra.mxu0 %v157
  %302 = vmatprep.subr.mxu0 0.0
  %303 = vmatpush1.msra.mxu0 %v158
  %304 = vmatprep.subr.mxu0 0.0
  %305 = vmatpush1.msra.mxu0 %v159
  %306 = vmatprep.subr.mxu0 0.0
  %307 = vmatpush1.msra.mxu0 %v160
  %308 = vmatprep.subr.mxu0 0.0
  %309 = vmatpush1.msra.mxu0 %v161
  %310 = vmatprep.subr.mxu0 0.0
  %311 = vmatpush1.msra.mxu0 %v162
  %312 = vmatprep.subr.mxu0 0.0
  %313 = vmatpush1.msra.mxu0 %v163
  %314 = vmatprep.subr.mxu0 0.0
  %315 = vmatpush1.msra.mxu0 %v164
  %316 = vmatprep.subr.mxu0 0.0
  %317 = vmatpush1.msra.mxu0 %v165
  %318 = vmatprep.subr.mxu0 0.0
  %319 = vmatpush1.msra.mxu0 %v166
  %320 = vmatprep.subr.mxu0 0.0
  %321 = vmatpush1.msra.mxu0 %v167
  %322 = vmatprep.subr.mxu0 0.0
  %323 = vmatpush1.msra.mxu0 %v168
  %324 = vmatprep.subr.mxu0 0.0
  %325 = vmatpush1.msra.mxu0 %v169
  %326 = vmatprep.subr.mxu0 0.0
  %327 = vmatpush1.msra.mxu0 %v170
  %328 = vmatprep.subr.mxu0 0.0
  %329 = vmatpush1.msra.mxu0 %v171
  %330 = vmatprep.subr.mxu0 0.0
  %331 = vmatpush1.msra.mxu0 %v172
  %332 = vmatprep.subr.mxu0 0.0
  %333 = vmatpush1.msra.mxu0 %v173
  %334 = vmatprep.subr.mxu0 0.0
  %335 = vmatpush1.msra.mxu0 %v174
  %336 = vmatprep.subr.mxu0 0.0
  %337 = vmatpush1.msra.mxu0 %v175
  %338 = vmatprep.subr.mxu0 0.0
  %339 = vmatpush1.msra.mxu0 %v176
  %340 = vmatprep.subr.mxu0 0.0
  %341 = vmatpush1.msra.mxu0 %v177
  %342 = vmatprep.subr.mxu0 0.0
  %343 = vmatpush1.msra.mxu0 %v178
  %344 = vmatprep.subr.mxu0 0.0
  %345 = vmatpush1.msra.mxu0 %v179
  %346 = vmatprep.subr.mxu0 0.0
  %347 = vmatpush1.msra.mxu0 %v180
  %348 = vmatprep.subr.mxu0 0.0
  %349 = vmatpush1.msra.mxu0 %v181
  %350 = vmatprep.subr.mxu0 0.0
  %351 = vmatpush1.msra.mxu0 %v182
  %352 = vmatprep.subr.mxu0 0.0
  %353 = vmatpush1.msra.mxu0 %v183
  %354 = vmatprep.subr.mxu0 0.0
  %355 = vmatpush1.msra.mxu0 %v184
  %356 = vmatprep.mubr.f32.mxu0 %v32
  %357 = vmatmul.mubr.f32.gmra.mrb[0].mxu0 %v31
  %v358 = vpop.f32.mrb[0].mxu0
  %v359 = vadd.f32 %v284, %v358
  %v360 = vpop.f32.mrb[0].mxu0
  %361 = vmatprep.mubr.f32.mxu0 %v34
  %362 = vmatmul.mubr.f32.gmra.mrb[0].mxu0 %v33
  %v363 = vpop.f32.mrb[0].mxu0
  %v364 = vadd.f32 %v289, %v363
  %v365 = vpop.f32.mrb[0].mxu0
  %366 = vdwg.mxu0
  %v367 = vadd.f32 %v359, %v76
  %v368 = vadd.f32 %v364, %v76
  %v369 = vadd.f32 %v145, %v150
  %v370 = vrot.slane %v369, 4
  %v371 = vadd.f32 %v369, %v370
  %v372 = vrot.slane %v371, 2
  %v373 = vadd.f32 %v371, %v372
  %v374 = vrot.slane %v373, 1
  %v375 = vadd.f32 %v373, %v374
  %v376 = vrcp.pop 16.0
  %v377 = vmul.f32 %v375, %v376
  %v378 = vadd.f32 %v367, %v368
  %v379 = vrot.slane %v378, 4
  %v380 = vadd.f32 %v378, %v379
  %v381 = vrot.slane %v380, 2
  %v382 = vadd.f32 %v380, %v381
  %v383 = vrot.slane %v382, 1
  %v384 = vadd.f32 %v382, %v383
  %v385 = vmul.f32 %v384, %v376
  %v386 = vadd.f32 %v377, %v385
  %v387 = vmul.f32 %v386, 0.5
  %v388 = vsub.f32 %v145, %v387
  %v389 = vsub.f32 %v150, %v387
  %v390 = vmul.f32 %v388, %v388
  %v391 = vmul.f32 %v389, %v389
  %v392 = vadd.f32 %v390, %v391
  %v393 = vrot.slane %v392, 4
  %v394 = vadd.f32 %v392, %v393
  %v395 = vrot.slane %v394, 2
  %v396 = vadd.f32 %v394, %v395
  %v397 = vrot.slane %v396, 1
  %v398 = vadd.f32 %v396, %v397
  %v399 = vmul.f32 %v398, %v376
  %v400 = vsub.f32 %v367, %v387
  %v401 = vsub.f32 %v368, %v387
  %v402 = vmul.f32 %v400, %v400
  %v403 = vmul.f32 %v401, %v401
  %v404 = vadd.f32 %v402, %v403
  %v405 = vrot.slane %v404, 4
  %v406 = vadd.f32 %v404, %v405
  %v407 = vrot.slane %v406, 2
  %v408 = vadd.f32 %v406, %v407
  %v409 = vrot.slane %v408, 1
  %v410 = vadd.f32 %v408, %v409
  %v411 = vmul.f32 %v410, %v376
  %v412 = vadd.f32 %v399, %v411
  %v413 = vmul.f32 %v412, 0.5
  %v414 = vadd.f32 %v413, 1e-05
  %v415 = vrsqrt.pop %v414
  %v416 = vld [vmem:[%s6] sm:$0x1]
  %v417 = vmul.f32 %v415, %v416
  %v418 = vld [vmem:[%s7] sm:$0x1]
  %v419 = vmul.f32 %v387, %v417
  %v420 = vsub.f32 %v418, %v419
  %v421 = vlaneseq
  %v422 = vshrl.u32 %v421, 7
  %v423 = vsub.s32 0, %v422
  %v424 = vrot.slane %v417, %v423
  %v425 = vmul.f32 %v145, %v424
  %v426 = vmul.f32 %v150, %v424
  %v428 = vlaneseq
  %v429 = vshrl.u32 %v428, 7
  %v430 = vsub.s32 0, %v429
  %v431 = vrot.slane %v420, %v430
  %v433 = vadd.f32 %v425, %v431
  %v434 = vadd.f32 %v426, %v431
  %v435 = vmul.f32 %v367, %v424
  %v436 = vmul.f32 %v368, %v424
  %v437 = vadd.f32 %v435, %v431
  %v438 = vadd.f32 %v436, %v431
  %vm439 = vcmp.ge.f32.partialorder %v433, 0.0
  %vm440 = vcmp.ge.f32.partialorder %v434, 0.0
  %v441 = vmul.f32 %v433, 0.01
  %v442 = vmul.f32 %v434, 0.01
  %v443 = vsel %vm439, %v433, %v441
  %v444 = vsel %vm440, %v434, %v442
  %445 = vst [vmem:[%s8] sm:$0xff] %v443
  %446 = vst [vmem:[%s8 + $0x8] sm:$0xff] %v444
  %vm447 = vcmp.ge.f32.partialorder %v437, 0.0
  %vm448 = vcmp.ge.f32.partialorder %v438, 0.0
  %v449 = vmul.f32 %v437, 0.01
  %v450 = vmul.f32 %v438, 0.01
  %v451 = vsel %vm447, %v437, %v449
  %v452 = vsel %vm448, %v438, %v450
  %453 = vst [vmem:[%s9] sm:$0xff] %v451
  %454 = vst [vmem:[%s9 + $0x8] sm:$0xff] %v452
  // Predicated region
  $region34: #{_lambda_.19} parent=0 // pred_check
    _
  $region35: #{_lambda_.19} parent=0 // pred_check_branch
    %456 = sbr.rel (0) target = $region37
  $region36: #{_lambda_.19} parent=0 // pred_region
    _
  $region37: #{_lambda_.19} parent=0 // pred_fallthru
    _
  // Predicated region
  $region38: #{_lambda_.19} parent=0 // pred_check
    _
  $region39: #{_lambda_.19} parent=0 // pred_check_branch
    %458 = sbr.rel (0) target = $region41
  $region40: #{_lambda_.19} parent=0 // pred_region
    _
  $region41: #{_lambda_.19} parent=0 // pred_fallthru
    _
  // Predicated region
  $region42: #{_lambda_.19} parent=0 // pred_check
    _
  $region43: #{_lambda_.19} parent=0 // pred_check_branch
    %460 = sbr.rel (0) target = $region45
  $region44: #{_lambda_.19} parent=0 // pred_region
    _
  $region45: #{_lambda_.19} parent=0 // pred_fallthru
    _
  // Predicated region
  $region46: #{_lambda_.19} parent=0 // pred_check
    _
  $region47: #{_lambda_.19} parent=0 // pred_check_branch
    %462 = sbr.rel (0) target = $region49
  $region48: #{_lambda_.19} parent=0 // pred_region
    _
  $region49: #{_lambda_.19} parent=0 // pred_fallthru
    _

// kernel: _lambda_.20
$region0: #{_lambda_.20}
  #allocation0 [shape = 'u32[]', space=smem, size = 0x4, offset = 0x4, fixed_abs, tag = 'smem constant byte address 0x4 - core index']
  #allocation1 [shape = 'u32[144,128]{1,0:T(1,128)}', space=vmem, size = 0x12000, scoped, tag = 'internal scratch']
  %s0 = inlined_call_operand.vmem [shape: f32[32,128], index: 0, kind: input, shape index: {}]
  %s1 = inlined_call_operand.vmem [shape: f32[32,128], index: 1, kind: input, shape index: {}]
  %s2 = inlined_call_operand.vmem [shape: f32[128,64], index: 2, kind: input, shape index: {}]
  %s3 = inlined_call_operand.vmem [shape: f32[128,64], index: 3, kind: input, shape index: {}]
  %s4 = inlined_call_operand.vmem [shape: f32[128,64], index: 4, kind: input, shape index: {}]
  %s5 = inlined_call_operand.vmem [shape: f32[1,64], index: 5, kind: input, shape index: {}]
  %s6 = inlined_call_operand.vmem [shape: f32[1,64], index: 6, kind: input, shape index: {}]
  %s7 = inlined_call_operand.vmem [shape: f32[1,64], index: 7, kind: input, shape index: {}]
  %s8 = inlined_call_operand.vmem [shape: f32[32,64], index: 8, kind: output, shape index: {0}]
  %s9 = inlined_call_operand.vmem [shape: f32[32,64], index: 9, kind: output, shape index: {1}]
  %10 = xla_tuple %s8, %s9
  %s11 = sld [smem:[#allocation0]]
  $region50: #{_lambda_.20} parent=0
    _
  %s13 = ssub.s32 1, %s11
  %s14 = scalar_select 0, %s13, %s11
  // Predicated region
  $region2: #{_lambda_.20} parent=0 // pred_check
    _
  $region3: #{_lambda_.20} parent=0 // pred_check_branch
    %16 = sbr.rel (0) target = $region5
  $region4: #{_lambda_.20} parent=0 // pred_region
    _
  $region5: #{_lambda_.20} parent=0 // pred_fallthru
    _
  // Predicated region
  $region6: #{_lambda_.20} parent=0 // pred_check
    _
  $region7: #{_lambda_.20} parent=0 // pred_check_branch
    %18 = sbr.rel (0) target = $region9
  $region8: #{_lambda_.20} parent=0 // pred_region
    _
  $region9: #{_lambda_.20} parent=0 // pred_fallthru
    _
  // Predicated region
  $region10: #{_lambda_.20} parent=0 // pred_check
    _
  $region11: #{_lambda_.20} parent=0 // pred_check_branch
    %20 = sbr.rel (0) target = $region13
  $region12: #{_lambda_.20} parent=0 // pred_region
    _
  $region13: #{_lambda_.20} parent=0 // pred_fallthru
    _
  // Predicated region
  $region14: #{_lambda_.20} parent=0 // pred_check
    _
  $region15: #{_lambda_.20} parent=0 // pred_check_branch
    %22 = sbr.rel (0) target = $region17
  $region16: #{_lambda_.20} parent=0 // pred_region
    _
  $region17: #{_lambda_.20} parent=0 // pred_fallthru
    _
  // Predicated region
  $region18: #{_lambda_.20} parent=0 // pred_check
    _
  $region19: #{_lambda_.20} parent=0 // pred_check_branch
    %24 = sbr.rel (0) target = $region21
  $region20: #{_lambda_.20} parent=0 // pred_region
    _
  $region21: #{_lambda_.20} parent=0 // pred_fallthru
    _
  // Predicated region
  $region22: #{_lambda_.20} parent=0 // pred_check
    _
  $region23: #{_lambda_.20} parent=0 // pred_check_branch
    %26 = sbr.rel (0) target = $region25
  $region24: #{_lambda_.20} parent=0 // pred_region
    _
  $region25: #{_lambda_.20} parent=0 // pred_fallthru
    _
  // Predicated region
  $region26: #{_lambda_.20} parent=0 // pred_check
    _
  $region27: #{_lambda_.20} parent=0 // pred_check_branch
    %28 = sbr.rel (0) target = $region29
  $region28: #{_lambda_.20} parent=0 // pred_region
    _
  $region29: #{_lambda_.20} parent=0 // pred_fallthru
    _
  // Predicated region
  $region30: #{_lambda_.20} parent=0 // pred_check
    _
  $region31: #{_lambda_.20} parent=0 // pred_check_branch
    %30 = sbr.rel (0) target = $region33
  $region32: #{_lambda_.20} parent=0 // pred_region
    _
  $region33: #{_lambda_.20} parent=0 // pred_fallthru
    _
  %v31 = vld [vmem:[%s0] sm:$0xff]
  %v32 = vld [vmem:[%s0 + $0x8] sm:$0xff]
  %v33 = vld [vmem:[%s0 + $0x10] sm:$0xff]
  %v34 = vld [vmem:[%s0 + $0x18] sm:$0xff]
  %v35 = vld [vmem:[%s1] sm:$0xff]
  %v36 = vld [vmem:[%s1 + $0x8] sm:$0xff]
  %v37 = vld [vmem:[%s1 + $0x10] sm:$0xff]
  %v38 = vld [vmem:[%s1 + $0x18] sm:$0xff]
  %v39 = vld [vmem:[%s5] sm:$0x1]
  %v40 = vld [vmem:[%s3] sm:$0xff]
  %v41 = vld [vmem:[%s3 + $0x8] sm:$0xff]
  %v42 = vld [vmem:[%s3 + $0x10] sm:$0xff]
  %v43 = vld [vmem:[%s3 + $0x18] sm:$0xff]
  %v44 = vld [vmem:[%s3 + $0x20] sm:$0xff]
  %v45 = vld [vmem:[%s3 + $0x28] sm:$0xff]
  %v46 = vld [vmem:[%s3 + $0x30] sm:$0xff]
  %v47 = vld [vmem:[%s3 + $0x38] sm:$0xff]
  %v48 = vld [vmem:[%s3 + $0x40] sm:$0xff]
  %v49 = vld [vmem:[%s3 + $0x48] sm:$0xff]
  %v50 = vld [vmem:[%s3 + $0x50] sm:$0xff]
  %v51 = vld [vmem:[%s3 + $0x58] sm:$0xff]
  %v52 = vld [vmem:[%s3 + $0x60] sm:$0xff]
  %v53 = vld [vmem:[%s3 + $0x68] sm:$0xff]
  %v54 = vld [vmem:[%s3 + $0x70] sm:$0xff]
  %v55 = vld [vmem:[%s3 + $0x78] sm:$0xff]
  %v57 = vlaneseq
  %v58 = vshrl.u32 %v57, 7
  %v59 = vsub.s32 0, %v58
  %v60 = vrot.slane %v39, %v59
  %62 = vmatprep.subr.mxu0 0.0
  %63 = vmatpush1.msra.mxu0 %v40
  %64 = vmatprep.subr.mxu0 0.0
  %65 = vmatpush1.msra.mxu0 %v41
  %66 = vmatprep.subr.mxu0 0.0
  %67 = vmatpush1.msra.mxu0 %v42
  %68 = vmatprep.subr.mxu0 0.0
  %69 = vmatpush1.msra.mxu0 %v43
  %70 = vmatprep.subr.mxu0 0.0
  %71 = vmatpush1.msra.mxu0 %v44
  %72 = vmatprep.subr.mxu0 0.0
  %73 = vmatpush1.msra.mxu0 %v45
  %74 = vmatprep.subr.mxu0 0.0
  %75 = vmatpush1.msra.mxu0 %v46
  %76 = vmatprep.subr.mxu0 0.0
  %77 = vmatpush1.msra.mxu0 %v47
  %78 = vmatprep.subr.mxu0 0.0
  %79 = vmatpush1.msra.mxu0 %v48
  %80 = vmatprep.subr.mxu0 0.0
  %81 = vmatpush1.msra.mxu0 %v49
  %82 = vmatprep.subr.mxu0 0.0
  %83 = vmatpush1.msra.mxu0 %v50
  %84 = vmatprep.subr.mxu0 0.0
  %85 = vmatpush1.msra.mxu0 %v51
  %86 = vmatprep.subr.mxu0 0.0
  %87 = vmatpush1.msra.mxu0 %v52
  %88 = vmatprep.subr.mxu0 0.0
  %89 = vmatpush1.msra.mxu0 %v53
  %90 = vmatprep.subr.mxu0 0.0
  %91 = vmatpush1.msra.mxu0 %v54
  %92 = vmatprep.subr.mxu0 0.0
  %93 = vmatpush1.msra.mxu0 %v55
  %94 = vmatprep.subr.mxu0 0.0
  %95 = vmatpush1.msra.mxu0 0.0
  %96 = vmatprep.subr.mxu0 0.0
  %97 = vmatpush1.msra.mxu0 0.0
  %98 = vmatprep.subr.mxu0 0.0
  %99 = vmatpush1.msra.mxu0 0.0
  %100 = vmatprep.subr.mxu0 0.0
  %101 = vmatpush1.msra.mxu0 0.0
  %102 = vmatprep.subr.mxu0 0.0
  %103 = vmatpush1.msra.mxu0 0.0
  %104 = vmatprep.subr.mxu0 0.0
  %105 = vmatpush1.msra.mxu0 0.0
  %106 = vmatprep.subr.mxu0 0.0
  %107 = vmatpush1.msra.mxu0 0.0
  %108 = vmatprep.subr.mxu0 0.0
  %109 = vmatpush1.msra.mxu0 0.0
  %110 = vmatprep.subr.mxu0 0.0
  %111 = vmatpush1.msra.mxu0 0.0
  %112 = vmatprep.subr.mxu0 0.0
  %113 = vmatpush1.msra.mxu0 0.0
  %114 = vmatprep.subr.mxu0 0.0
  %115 = vmatpush1.msra.mxu0 0.0
  %116 = vmatprep.subr.mxu0 0.0
  %117 = vmatpush1.msra.mxu0 0.0
  %118 = vmatprep.subr.mxu0 0.0
  %119 = vmatpush1.msra.mxu0 0.0
  %120 = vmatprep.subr.mxu0 0.0
  %121 = vmatpush1.msra.mxu0 0.0
  %122 = vmatprep.subr.mxu0 0.0
  %123 = vmatpush1.msra.mxu0 0.0
  %124 = vmatprep.subr.mxu0 0.0
  %125 = vmatpush1.msra.mxu0 0.0
  %126 = vmatprep.mubr.f32.mxu0 0.0
  %127 = vmatmul.mubr.f32.gmra.mrb[0].mxu0 %v31
  %v128 = vpop.f32.mrb[0].mxu0
  %v129 = vadd.f32 %v60, %v128
  %v130 = vpop.f32.mrb[0].mxu0
  %131 = vmatprep.mubr.f32.mxu0 0.0
  %132 = vmatmul.mubr.f32.gmra.mrb[0].mxu0 %v32
  %v133 = vpop.f32.mrb[0].mxu0
  %v134 = vadd.f32 %v60, %v133
  %v135 = vpop.f32.mrb[0].mxu0
  %136 = vmatprep.mubr.f32.mxu0 0.0
  %137 = vmatmul.mubr.f32.gmra.mrb[0].mxu0 %v33
  %v138 = vpop.f32.mrb[0].mxu0
  %v139 = vadd.f32 %v60, %v138
  %v140 = vpop.f32.mrb[0].mxu0
  %141 = vmatprep.mubr.f32.mxu0 0.0
  %142 = vmatmul.mubr.f32.gmra.mrb[0].mxu0 %v34
  %v143 = vpop.f32.mrb[0].mxu0
  %v144 = vadd.f32 %v60, %v143
  %v145 = vpop.f32.mrb[0].mxu0
  %146 = vdwg.mxu0
  %v147 = vld [vmem:[%s4] sm:$0xff]
  %v148 = vld [vmem:[%s4 + $0x8] sm:$0xff]
  %v149 = vld [vmem:[%s4 + $0x10] sm:$0xff]
  %v150 = vld [vmem:[%s4 + $0x18] sm:$0xff]
  %v151 = vld [vmem:[%s4 + $0x20] sm:$0xff]
  %v152 = vld [vmem:[%s4 + $0x28] sm:$0xff]
  %v153 = vld [vmem:[%s4 + $0x30] sm:$0xff]
  %v154 = vld [vmem:[%s4 + $0x38] sm:$0xff]
  %v155 = vld [vmem:[%s4 + $0x40] sm:$0xff]
  %v156 = vld [vmem:[%s4 + $0x48] sm:$0xff]
  %v157 = vld [vmem:[%s4 + $0x50] sm:$0xff]
  %v158 = vld [vmem:[%s4 + $0x58] sm:$0xff]
  %v159 = vld [vmem:[%s4 + $0x60] sm:$0xff]
  %v160 = vld [vmem:[%s4 + $0x68] sm:$0xff]
  %v161 = vld [vmem:[%s4 + $0x70] sm:$0xff]
  %v162 = vld [vmem:[%s4 + $0x78] sm:$0xff]
  %v163 = vld [vmem:[%s2] sm:$0xff]
  %v164 = vld [vmem:[%s2 + $0x8] sm:$0xff]
  %v165 = vld [vmem:[%s2 + $0x10] sm:$0xff]
  %v166 = vld [vmem:[%s2 + $0x18] sm:$0xff]
  %v167 = vld [vmem:[%s2 + $0x20] sm:$0xff]
  %v168 = vld [vmem:[%s2 + $0x28] sm:$0xff]
  %v169 = vld [vmem:[%s2 + $0x30] sm:$0xff]
  %v170 = vld [vmem:[%s2 + $0x38] sm:$0xff]
  %v171 = vld [vmem:[%s2 + $0x40] sm:$0xff]
  %v172 = vld [vmem:[%s2 + $0x48] sm:$0xff]
  %v173 = vld [vmem:[%s2 + $0x50] sm:$0xff]
  %v174 = vld [vmem:[%s2 + $0x58] sm:$0xff]
  %v175 = vld [vmem:[%s2 + $0x60] sm:$0xff]
  %v176 = vld [vmem:[%s2 + $0x68] sm:$0xff]
  %v177 = vld [vmem:[%s2 + $0x70] sm:$0xff]
  %v178 = vld [vmem:[%s2 + $0x78] sm:$0xff]
  %179 = vmatprep.subr.mxu0 0.0
  %180 = vmatpush1.msra.mxu0 %v163
  %181 = vmatprep.subr.mxu0 0.0
  %182 = vmatpush1.msra.mxu0 %v164
  %183 = vmatprep.subr.mxu0 0.0
  %184 = vmatpush1.msra.mxu0 %v165
  %185 = vmatprep.subr.mxu0 0.0
  %186 = vmatpush1.msra.mxu0 %v166
  %187 = vmatprep.subr.mxu0 0.0
  %188 = vmatpush1.msra.mxu0 %v167
  %189 = vmatprep.subr.mxu0 0.0
  %190 = vmatpush1.msra.mxu0 %v168
  %191 = vmatprep.subr.mxu0 0.0
  %192 = vmatpush1.msra.mxu0 %v169
  %193 = vmatprep.subr.mxu0 0.0
  %194 = vmatpush1.msra.mxu0 %v170
  %195 = vmatprep.subr.mxu0 0.0
  %196 = vmatpush1.msra.mxu0 %v171
  %197 = vmatprep.subr.mxu0 0.0
  %198 = vmatpush1.msra.mxu0 %v172
  %199 = vmatprep.subr.mxu0 0.0
  %200 = vmatpush1.msra.mxu0 %v173
  %201 = vmatprep.subr.mxu0 0.0
  %202 = vmatpush1.msra.mxu0 %v174
  %203 = vmatprep.subr.mxu0 0.0
  %204 = vmatpush1.msra.mxu0 %v175
  %205 = vmatprep.subr.mxu0 0.0
  %206 = vmatpush1.msra.mxu0 %v176
  %207 = vmatprep.subr.mxu0 0.0
  %208 = vmatpush1.msra.mxu0 %v177
  %209 = vmatprep.subr.mxu0 0.0
  %210 = vmatpush1.msra.mxu0 %v178
  %211 = vmatprep.subr.mxu0 0.0
  %212 = vmatpush1.msra.mxu0 0.0
  %213 = vmatprep.subr.mxu0 0.0
  %214 = vmatpush1.msra.mxu0 0.0
  %215 = vmatprep.subr.mxu0 0.0
  %216 = vmatpush1.msra.mxu0 0.0
  %217 = vmatprep.subr.mxu0 0.0
  %218 = vmatpush1.msra.mxu0 0.0
  %219 = vmatprep.subr.mxu0 0.0
  %220 = vmatpush1.msra.mxu0 0.0
  %221 = vmatprep.subr.mxu0 0.0
  %222 = vmatpush1.msra.mxu0 0.0
  %223 = vmatprep.subr.mxu0 0.0
  %224 = vmatpush1.msra.mxu0 0.0
  %225 = vmatprep.subr.mxu0 0.0
  %226 = vmatpush1.msra.mxu0 0.0
  %227 = vmatprep.subr.mxu0 0.0
  %228 = vmatpush1.msra.mxu0 0.0
  %229 = vmatprep.subr.mxu0 0.0
  %230 = vmatpush1.msra.mxu0 0.0
  %231 = vmatprep.subr.mxu0 0.0
  %232 = vmatpush1.msra.mxu0 0.0
  %233 = vmatprep.subr.mxu0 0.0
  %234 = vmatpush1.msra.mxu0 0.0
  %235 = vmatprep.subr.mxu0 0.0
  %236 = vmatpush1.msra.mxu0 0.0
  %237 = vmatprep.subr.mxu0 0.0
  %238 = vmatpush1.msra.mxu0 0.0
  %239 = vmatprep.subr.mxu0 0.0
  %240 = vmatpush1.msra.mxu0 0.0
  %241 = vmatprep.subr.mxu0 0.0
  %242 = vmatpush1.msra.mxu0 0.0
  %243 = vmatprep.mubr.f32.mxu0 0.0
  %244 = vmatmul.mubr.f32.gmra.mrb[0].mxu0 %v35
  %v245 = vpop.f32.mrb[0].mxu0
  %v246 = vadd.f32 0.0, %v245
  %v247 = vpop.f32.mrb[0].mxu0
  %248 = vmatprep.mubr.f32.mxu0 0.0
  %249 = vmatmul.mubr.f32.gmra.mrb[0].mxu0 %v36
  %v250 = vpop.f32.mrb[0].mxu0
  %v251 = vadd.f32 0.0, %v250
  %v252 = vpop.f32.mrb[0].mxu0
  %253 = vmatprep.mubr.f32.mxu0 0.0
  %254 = vmatmul.mubr.f32.gmra.mrb[0].mxu0 %v37
  %v255 = vpop.f32.mrb[0].mxu0
  %v256 = vadd.f32 0.0, %v255
  %v257 = vpop.f32.mrb[0].mxu0
  %258 = vmatprep.mubr.f32.mxu0 0.0
  %259 = vmatmul.mubr.f32.gmra.mrb[0].mxu0 %v38
  %v260 = vpop.f32.mrb[0].mxu0
  %v261 = vadd.f32 0.0, %v260
  %v262 = vpop.f32.mrb[0].mxu0
  %263 = vdwg.mxu0
  %264 = vmatprep.subr.mxu0 0.0
  %265 = vmatpush1.msra.mxu0 %v147
  %266 = vmatprep.subr.mxu0 0.0
  %267 = vmatpush1.msra.mxu0 %v148
  %268 = vmatprep.subr.mxu0 0.0
  %269 = vmatpush1.msra.mxu0 %v149
  %270 = vmatprep.subr.mxu0 0.0
  %271 = vmatpush1.msra.mxu0 %v150
  %272 = vmatprep.subr.mxu0 0.0
  %273 = vmatpush1.msra.mxu0 %v151
  %274 = vmatprep.subr.mxu0 0.0
  %275 = vmatpush1.msra.mxu0 %v152
  %276 = vmatprep.subr.mxu0 0.0
  %277 = vmatpush1.msra.mxu0 %v153
  %278 = vmatprep.subr.mxu0 0.0
  %279 = vmatpush1.msra.mxu0 %v154
  %280 = vmatprep.subr.mxu0 0.0
  %281 = vmatpush1.msra.mxu0 %v155
  %282 = vmatprep.subr.mxu0 0.0
  %283 = vmatpush1.msra.mxu0 %v156
  %284 = vmatprep.subr.mxu0 0.0
  %285 = vmatpush1.msra.mxu0 %v157
  %286 = vmatprep.subr.mxu0 0.0
  %287 = vmatpush1.msra.mxu0 %v158
  %288 = vmatprep.subr.mxu0 0.0
  %289 = vmatpush1.msra.mxu0 %v159
  %290 = vmatprep.subr.mxu0 0.0
  %291 = vmatpush1.msra.mxu0 %v160
  %292 = vmatprep.subr.mxu0 0.0
  %293 = vmatpush1.msra.mxu0 %v161
  %294 = vmatprep.subr.mxu0 0.0
  %295 = vmatpush1.msra.mxu0 %v162
  %296 = vmatprep.subr.mxu0 0.0
  %297 = vmatpush1.msra.mxu0 0.0
  %298 = vmatprep.subr.mxu0 0.0
  %299 = vmatpush1.msra.mxu0 0.0
  %300 = vmatprep.subr.mxu0 0.0
  %301 = vmatpush1.msra.mxu0 0.0
  %302 = vmatprep.subr.mxu0 0.0
  %303 = vmatpush1.msra.mxu0 0.0
  %304 = vmatprep.subr.mxu0 0.0
  %305 = vmatpush1.msra.mxu0 0.0
  %306 = vmatprep.subr.mxu0 0.0
  %307 = vmatpush1.msra.mxu0 0.0
  %308 = vmatprep.subr.mxu0 0.0
  %309 = vmatpush1.msra.mxu0 0.0
  %310 = vmatprep.subr.mxu0 0.0
  %311 = vmatpush1.msra.mxu0 0.0
  %312 = vmatprep.subr.mxu0 0.0
  %313 = vmatpush1.msra.mxu0 0.0
  %314 = vmatprep.subr.mxu0 0.0
  %315 = vmatpush1.msra.mxu0 0.0
  %316 = vmatprep.subr.mxu0 0.0
  %317 = vmatpush1.msra.mxu0 0.0
  %318 = vmatprep.subr.mxu0 0.0
  %319 = vmatpush1.msra.mxu0 0.0
  %320 = vmatprep.subr.mxu0 0.0
  %321 = vmatpush1.msra.mxu0 0.0
  %322 = vmatprep.subr.mxu0 0.0
  %323 = vmatpush1.msra.mxu0 0.0
  %324 = vmatprep.subr.mxu0 0.0
  %325 = vmatpush1.msra.mxu0 0.0
  %326 = vmatprep.subr.mxu0 0.0
  %327 = vmatpush1.msra.mxu0 0.0
  %328 = vmatprep.mubr.f32.mxu0 0.0
  %329 = vmatmul.mubr.f32.gmra.mrb[0].mxu0 %v31
  %v330 = vpop.f32.mrb[0].mxu0
  %v331 = vadd.f32 %v246, %v330
  %v332 = vpop.f32.mrb[0].mxu0
  %333 = vmatprep.mubr.f32.mxu0 0.0
  %334 = vmatmul.mubr.f32.gmra.mrb[0].mxu0 %v32
  %v335 = vpop.f32.mrb[0].mxu0
  %v336 = vadd.f32 %v251, %v335
  %v337 = vpop.f32.mrb[0].mxu0
  %338 = vmatprep.mubr.f32.mxu0 0.0
  %339 = vmatmul.mubr.f32.gmra.mrb[0].mxu0 %v33
  %v340 = vpop.f32.mrb[0].mxu0
  %v341 = vadd.f32 %v256, %v340
  %v342 = vpop.f32.mrb[0].mxu0
  %343 = vmatprep.mubr.f32.mxu0 0.0
  %344 = vmatmul.mubr.f32.gmra.mrb[0].mxu0 %v34
  %v345 = vpop.f32.mrb[0].mxu0
  %v346 = vadd.f32 %v261, %v345
  %v347 = vpop.f32.mrb[0].mxu0
  %348 = vdwg.mxu0
  %v349 = vadd.f32 %v331, %v60
  %v350 = vadd.f32 %v336, %v60
  %v351 = vadd.f32 %v341, %v60
  %v352 = vadd.f32 %v346, %v60
  %vm353 = vcmask 523264
  %v354 = vsel %vm353, %v129, 0.0
  %v355 = vsel %vm353, %v134, 0.0
  %v356 = vadd.f32 %v354, %v355
  %v357 = vsel %vm353, %v139, 0.0
  %v358 = vadd.f32 %v356, %v357
  %v359 = vsel %vm353, %v144, 0.0
  %v360 = vadd.f32 %v358, %v359
  %v361 = vrot.slane %v360, 4
  %v362 = vadd.f32 %v360, %v361
  %v363 = vrot.slane %v362, 2
  %v364 = vadd.f32 %v362, %v363
  %v365 = vrot.slane %v364, 1
  %v366 = vadd.f32 %v364, %v365
  %v367 = vrcp.pop 32.0
  %v368 = vmul.f32 %v366, %v367
  %v369 = vsel %vm353, %v349, 0.0
  %v370 = vsel %vm353, %v350, 0.0
  %v371 = vadd.f32 %v369, %v370
  %v372 = vsel %vm353, %v351, 0.0
  %v373 = vadd.f32 %v371, %v372
  %v374 = vsel %vm353, %v352, 0.0
  %v375 = vadd.f32 %v373, %v374
  %v376 = vrot.slane %v375, 4
  %v377 = vadd.f32 %v375, %v376
  %v378 = vrot.slane %v377, 2
  %v379 = vadd.f32 %v377, %v378
  %v380 = vrot.slane %v379, 1
  %v381 = vadd.f32 %v379, %v380
  %v382 = vmul.f32 %v381, %v367
  %v383 = vadd.f32 %v368, %v382
  %v384 = vmul.f32 %v383, 0.5
  %v385 = vsub.f32 %v129, %v384
  %v386 = vsub.f32 %v134, %v384
  %v387 = vsub.f32 %v139, %v384
  %v388 = vsub.f32 %v144, %v384
  %v389 = vmul.f32 %v385, %v385
  %v390 = vmul.f32 %v386, %v386
  %v391 = vmul.f32 %v387, %v387
  %v392 = vmul.f32 %v388, %v388
  %v393 = vsel %vm353, %v389, 0.0
  %v394 = vsel %vm353, %v390, 0.0
  %v395 = vadd.f32 %v393, %v394
  %v396 = vsel %vm353, %v391, 0.0
  %v397 = vadd.f32 %v395, %v396
  %v398 = vsel %vm353, %v392, 0.0
  %v399 = vadd.f32 %v397, %v398
  %v400 = vrot.slane %v399, 4
  %v401 = vadd.f32 %v399, %v400
  %v402 = vrot.slane %v401, 2
  %v403 = vadd.f32 %v401, %v402
  %v404 = vrot.slane %v403, 1
  %v405 = vadd.f32 %v403, %v404
  %v406 = vmul.f32 %v405, %v367
  %v407 = vsub.f32 %v349, %v384
  %v408 = vsub.f32 %v350, %v384
  %v409 = vsub.f32 %v351, %v384
  %v410 = vsub.f32 %v352, %v384
  %v411 = vmul.f32 %v407, %v407
  %v412 = vmul.f32 %v408, %v408
  %v413 = vmul.f32 %v409, %v409
  %v414 = vmul.f32 %v410, %v410
  %v415 = vsel %vm353, %v411, 0.0
  %v416 = vsel %vm353, %v412, 0.0
  %v417 = vadd.f32 %v415, %v416
  %v418 = vsel %vm353, %v413, 0.0
  %v419 = vadd.f32 %v417, %v418
  %v420 = vsel %vm353, %v414, 0.0
  %v421 = vadd.f32 %v419, %v420
  %v422 = vrot.slane %v421, 4
  %v423 = vadd.f32 %v421, %v422
  %v424 = vrot.slane %v423, 2
  %v425 = vadd.f32 %v423, %v424
  %v426 = vrot.slane %v425, 1
  %v427 = vadd.f32 %v425, %v426
  %v428 = vmul.f32 %v427, %v367
  %v429 = vadd.f32 %v406, %v428
  %v430 = vmul.f32 %v429, 0.5
  %v431 = vadd.f32 %v430, 1e-05
  %v432 = vrsqrt.pop %v431
  %v433 = vld [vmem:[%s6] sm:$0x1]
  %v434 = vmul.f32 %v432, %v433
  %v435 = vld [vmem:[%s7] sm:$0x1]
  %v436 = vmul.f32 %v384, %v434
  %v437 = vsub.f32 %v435, %v436
  %v438 = vlaneseq
  %v439 = vshrl.u32 %v438, 7
  %v440 = vsub.s32 0, %v439
  %v441 = vrot.slane %v434, %v440
  %v442 = vmul.f32 %v129, %v441
  %v443 = vmul.f32 %v134, %v441
  %v444 = vmul.f32 %v139, %v441
  %v445 = vmul.f32 %v144, %v441
  %v447 = vlaneseq
  %v448 = vshrl.u32 %v447, 7
  %v449 = vsub.s32 0, %v448
  %v450 = vrot.slane %v437, %v449
  %v452 = vadd.f32 %v442, %v450
  %v453 = vadd.f32 %v443, %v450
  %v454 = vadd.f32 %v444, %v450
  %v455 = vadd.f32 %v445, %v450
  %v456 = vmul.f32 %v349, %v441
  %v457 = vmul.f32 %v350, %v441
  %v458 = vmul.f32 %v351, %v441
  %v459 = vmul.f32 %v352, %v441
  %v460 = vadd.f32 %v456, %v450
  %v461 = vadd.f32 %v457, %v450
  %v462 = vadd.f32 %v458, %v450
  %v463 = vadd.f32 %v459, %v450
  %vm464 = vcmp.ge.f32.partialorder %v452, 0.0
  %vm465 = vcmp.ge.f32.partialorder %v453, 0.0
  %vm466 = vcmp.ge.f32.partialorder %v454, 0.0
  %vm467 = vcmp.ge.f32.partialorder %v455, 0.0
  %v468 = vmul.f32 %v452, 0.01
  %v469 = vmul.f32 %v453, 0.01
  %v470 = vmul.f32 %v454, 0.01
  %v471 = vmul.f32 %v455, 0.01
  %v472 = vsel %vm464, %v452, %v468
  %v473 = vsel %vm465, %v453, %v469
  %v474 = vsel %vm466, %v454, %v470
  %v475 = vsel %vm467, %v455, %v471
  %476 = vst.msk [vmem:[%s8] sm:$0xff] %vm353, %v472
  %477 = vst.msk [vmem:[%s8 + $0x8] sm:$0xff] %vm353, %v473
  %478 = vst.msk [vmem:[%s8 + $0x10] sm:$0xff] %vm353, %v474
  %479 = vst.msk [vmem:[%s8 + $0x18] sm:$0xff] %vm353, %v475
  %vm480 = vcmp.ge.f32.partialorder %v460, 0.0
  %vm481 = vcmp.ge.f32.partialorder %v461, 0.0
  %vm482 = vcmp.ge.f32.partialorder %v462, 0.0
  %vm483 = vcmp.ge.f32.partialorder %v463, 0.0
  %v484 = vmul.f32 %v460, 0.01
  %v485 = vmul.f32 %v461, 0.01
  %v486 = vmul.f32 %v462, 0.01
  %v487 = vmul.f32 %v463, 0.01
  %v488 = vsel %vm480, %v460, %v484
  %v489 = vsel %vm481, %v461, %v485
  %v490 = vsel %vm482, %v462, %v486
  %v491 = vsel %vm483, %v463, %v487
  %492 = vst.msk [vmem:[%s9] sm:$0xff] %vm353, %v488
  %493 = vst.msk [vmem:[%s9 + $0x8] sm:$0xff] %vm353, %v489
  %494 = vst.msk [vmem:[%s9 + $0x10] sm:$0xff] %vm353, %v490
  %495 = vst.msk [vmem:[%s9 + $0x18] sm:$0xff] %vm353, %v491
  // Predicated region
  $region34: #{_lambda_.20} parent=0 // pred_check
    _
  $region35: #{_lambda_.20} parent=0 // pred_check_branch
    %497 = sbr.rel (0) target = $region37
  $region36: #{_lambda_.20} parent=0 // pred_region
    _
  $region37: #{_lambda_.20} parent=0 // pred_fallthru
    _
  // Predicated region
  $region38: #{_lambda_.20} parent=0 // pred_check
    _
  $region39: #{_lambda_.20} parent=0 // pred_check_branch
    %499 = sbr.rel (0) target = $region41
  $region40: #{_lambda_.20} parent=0 // pred_region
    _
  $region41: #{_lambda_.20} parent=0 // pred_fallthru
    _
  // Predicated region
  $region42: #{_lambda_.20} parent=0 // pred_check
    _
  $region43: #{_lambda_.20} parent=0 // pred_check_branch
    %501 = sbr.rel (0) target = $region45
  $region44: #{_lambda_.20} parent=0 // pred_region
    _
  $region45: #{_lambda_.20} parent=0 // pred_fallthru
    _
  // Predicated region
  $region46: #{_lambda_.20} parent=0 // pred_check
    _
  $region47: #{_lambda_.20} parent=0 // pred_check_branch
    %503 = sbr.rel (0) target = $region49
  $region48: #{_lambda_.20} parent=0 // pred_region
    _
  $region49: #{_lambda_.20} parent=0 // pred_fallthru
    _

// kernel: _lambda_.18
$region0: #{_lambda_.18}
  #allocation0 [shape = 'u32[]', space=smem, size = 0x4, offset = 0x4, fixed_abs, tag = 'smem constant byte address 0x4 - core index']
  #allocation1 [shape = 'u32[144,128]{1,0:T(1,128)}', space=vmem, size = 0x12000, scoped, tag = 'internal scratch']
  %s0 = inlined_call_operand.vmem [shape: f32[8,512], index: 0, kind: input, shape index: {}]
  %s1 = inlined_call_operand.vmem [shape: f32[8,512], index: 1, kind: input, shape index: {}]
  %s2 = inlined_call_operand.vmem [shape: f32[512,256], index: 2, kind: input, shape index: {}]
  %s3 = inlined_call_operand.vmem [shape: f32[512,256], index: 3, kind: input, shape index: {}]
  %s4 = inlined_call_operand.vmem [shape: f32[512,256], index: 4, kind: input, shape index: {}]
  %s5 = inlined_call_operand.vmem [shape: f32[1,256], index: 5, kind: input, shape index: {}]
  %s6 = inlined_call_operand.vmem [shape: f32[1,256], index: 6, kind: input, shape index: {}]
  %s7 = inlined_call_operand.vmem [shape: f32[1,256], index: 7, kind: input, shape index: {}]
  %s8 = inlined_call_operand.vmem [shape: f32[8,256], index: 8, kind: output, shape index: {0}]
  %s9 = inlined_call_operand.vmem [shape: f32[8,256], index: 9, kind: output, shape index: {1}]
  %10 = xla_tuple %s8, %s9
  %s11 = sld [smem:[#allocation0]]
  $region50: #{_lambda_.18} parent=0
    _
  %s13 = ssub.s32 1, %s11
  %s14 = scalar_select 0, %s13, %s11
  // Predicated region
  $region2: #{_lambda_.18} parent=0 // pred_check
    _
  $region3: #{_lambda_.18} parent=0 // pred_check_branch
    %16 = sbr.rel (0) target = $region5
  $region4: #{_lambda_.18} parent=0 // pred_region
    _
  $region5: #{_lambda_.18} parent=0 // pred_fallthru
    _
  // Predicated region
  $region6: #{_lambda_.18} parent=0 // pred_check
    _
  $region7: #{_lambda_.18} parent=0 // pred_check_branch
    %18 = sbr.rel (0) target = $region9
  $region8: #{_lambda_.18} parent=0 // pred_region
    _
  $region9: #{_lambda_.18} parent=0 // pred_fallthru
    _
  // Predicated region
  $region10: #{_lambda_.18} parent=0 // pred_check
    _
  $region11: #{_lambda_.18} parent=0 // pred_check_branch
    %20 = sbr.rel (0) target = $region13
  $region12: #{_lambda_.18} parent=0 // pred_region
    _
  $region13: #{_lambda_.18} parent=0 // pred_fallthru
    _
  // Predicated region
  $region14: #{_lambda_.18} parent=0 // pred_check
    _
  $region15: #{_lambda_.18} parent=0 // pred_check_branch
    %22 = sbr.rel (0) target = $region17
  $region16: #{_lambda_.18} parent=0 // pred_region
    _
  $region17: #{_lambda_.18} parent=0 // pred_fallthru
    _
  // Predicated region
  $region18: #{_lambda_.18} parent=0 // pred_check
    _
  $region19: #{_lambda_.18} parent=0 // pred_check_branch
    %24 = sbr.rel (0) target = $region21
  $region20: #{_lambda_.18} parent=0 // pred_region
    _
  $region21: #{_lambda_.18} parent=0 // pred_fallthru
    _
  // Predicated region
  $region22: #{_lambda_.18} parent=0 // pred_check
    _
  $region23: #{_lambda_.18} parent=0 // pred_check_branch
    %26 = sbr.rel (0) target = $region25
  $region24: #{_lambda_.18} parent=0 // pred_region
    _
  $region25: #{_lambda_.18} parent=0 // pred_fallthru
    _
  // Predicated region
  $region26: #{_lambda_.18} parent=0 // pred_check
    _
  $region27: #{_lambda_.18} parent=0 // pred_check_branch
    %28 = sbr.rel (0) target = $region29
  $region28: #{_lambda_.18} parent=0 // pred_region
    _
  $region29: #{_lambda_.18} parent=0 // pred_fallthru
    _
  // Predicated region
  $region30: #{_lambda_.18} parent=0 // pred_check
    _
  $region31: #{_lambda_.18} parent=0 // pred_check_branch
    %30 = sbr.rel (0) target = $region33
  $region32: #{_lambda_.18} parent=0 // pred_region
    _
  $region33: #{_lambda_.18} parent=0 // pred_fallthru
    _
  %v31 = vld [vmem:[%s0] sm:$0xff]
  %v32 = vld [vmem:[%s0 + $0x8] sm:$0xff]
  %v33 = vld [vmem:[%s0 + $0x10] sm:$0xff]
  %v34 = vld [vmem:[%s0 + $0x18] sm:$0xff]
  %v35 = vld [vmem:[%s1] sm:$0xff]
  %v36 = vld [vmem:[%s1 + $0x8] sm:$0xff]
  %v37 = vld [vmem:[%s1 + $0x10] sm:$0xff]
  %v38 = vld [vmem:[%s1 + $0x18] sm:$0xff]
  %v39 = vld [vmem:[%s5] sm:$0x3]
  %v40 = vld [vmem:[%s3] sm:$0xff]
  %v41 = vld [vmem:[%s3 + $0x8] sm:$0xff]
  %v42 = vld [vmem:[%s3 + $0x10] sm:$0xff]
  %v43 = vld [vmem:[%s3 + $0x18] sm:$0xff]
  %v44 = vld [vmem:[%s3 + $0x20] sm:$0xff]
  %v45 = vld [vmem:[%s3 + $0x28] sm:$0xff]
  %v46 = vld [vmem:[%s3 + $0x30] sm:$0xff]
  %v47 = vld [vmem:[%s3 + $0x38] sm:$0xff]
  %v48 = vld [vmem:[%s3 + $0x40] sm:$0xff]
  %v49 = vld [vmem:[%s3 + $0x48] sm:$0xff]
  %v50 = vld [vmem:[%s3 + $0x50] sm:$0xff]
  %v51 = vld [vmem:[%s3 + $0x58] sm:$0xff]
  %v52 = vld [vmem:[%s3 + $0x60] sm:$0xff]
  %v53 = vld [vmem:[%s3 + $0x68] sm:$0xff]
  %v54 = vld [vmem:[%s3 + $0x70] sm:$0xff]
  %v55 = vld [vmem:[%s3 + $0x78] sm:$0xff]
  %v56 = vld [vmem:[%s3 + $0x80] sm:$0xff]
  %v57 = vld [vmem:[%s3 + $0x88] sm:$0xff]
  %v58 = vld [vmem:[%s3 + $0x90] sm:$0xff]
  %v59 = vld [vmem:[%s3 + $0x98] sm:$0xff]
  %v60 = vld [vmem:[%s3 + $0xa0] sm:$0xff]
  %v61 = vld [vmem:[%s3 + $0xa8] sm:$0xff]
  %v62 = vld [vmem:[%s3 + $0xb0] sm:$0xff]
  %v63 = vld [vmem:[%s3 + $0xb8] sm:$0xff]
  %v64 = vld [vmem:[%s3 + $0xc0] sm:$0xff]
  %v65 = vld [vmem:[%s3 + $0xc8] sm:$0xff]
  %v66 = vld [vmem:[%s3 + $0xd0] sm:$0xff]
  %v67 = vld [vmem:[%s3 + $0xd8] sm:$0xff]
  %v68 = vld [vmem:[%s3 + $0xe0] sm:$0xff]
  %v69 = vld [vmem:[%s3 + $0xe8] sm:$0xff]
  %v70 = vld [vmem:[%s3 + $0xf0] sm:$0xff]
  %v71 = vld [vmem:[%s3 + $0xf8] sm:$0xff]
  %v72 = vld [vmem:[%s3 + $0x100] sm:$0xff]
  %v73 = vld [vmem:[%s3 + $0x108] sm:$0xff]
  %v74 = vld [vmem:[%s3 + $0x110] sm:$0xff]
  %v75 = vld [vmem:[%s3 + $0x118] sm:$0xff]
  %v76 = vld [vmem:[%s3 + $0x120] sm:$0xff]
  %v77 = vld [vmem:[%s3 + $0x128] sm:$0xff]
  %v78 = vld [vmem:[%s3 + $0x130] sm:$0xff]
  %v79 = vld [vmem:[%s3 + $0x138] sm:$0xff]
  %v80 = vld [vmem:[%s3 + $0x140] sm:$0xff]
  %v81 = vld [vmem:[%s3 + $0x148] sm:$0xff]
  %v82 = vld [vmem:[%s3 + $0x150] sm:$0xff]
  %v83 = vld [vmem:[%s3 + $0x158] sm:$0xff]
  %v84 = vld [vmem:[%s3 + $0x160] sm:$0xff]
  %v85 = vld [vmem:[%s3 + $0x168] sm:$0xff]
  %v86 = vld [vmem:[%s3 + $0x170] sm:$0xff]
  %v87 = vld [vmem:[%s3 + $0x178] sm:$0xff]
  %v88 = vld [vmem:[%s3 + $0x180] sm:$0xff]
  %v89 = vld [vmem:[%s3 + $0x188] sm:$0xff]
  %v90 = vld [vmem:[%s3 + $0x190] sm:$0xff]
  %v91 = vld [vmem:[%s3 + $0x198] sm:$0xff]
  %v92 = vld [vmem:[%s3 + $0x1a0] sm:$0xff]
  %v93 = vld [vmem:[%s3 + $0x1a8] sm:$0xff]
  %v94 = vld [vmem:[%s3 + $0x1b0] sm:$0xff]
  %v95 = vld [vmem:[%s3 + $0x1b8] sm:$0xff]
  %v96 = vld [vmem:[%s3 + $0x1c0] sm:$0xff]
  %v97 = vld [vmem:[%s3 + $0x1c8] sm:$0xff]
  %v98 = vld [vmem:[%s3 + $0x1d0] sm:$0xff]
  %v99 = vld [vmem:[%s3 + $0x1d8] sm:$0xff]
  %v100 = vld [vmem:[%s3 + $0x1e0] sm:$0xff]
  %v101 = vld [vmem:[%s3 + $0x1e8] sm:$0xff]
  %v102 = vld [vmem:[%s3 + $0x1f0] sm:$0xff]
  %v103 = vld [vmem:[%s3 + $0x1f8] sm:$0xff]
  %v104 = vld [vmem:[%s3 + $0x200] sm:$0xff]
  %v105 = vld [vmem:[%s3 + $0x208] sm:$0xff]
  %v106 = vld [vmem:[%s3 + $0x210] sm:$0xff]
  %v107 = vld [vmem:[%s3 + $0x218] sm:$0xff]
  %v108 = vld [vmem:[%s3 + $0x220] sm:$0xff]
  %v109 = vld [vmem:[%s3 + $0x228] sm:$0xff]
  %v110 = vld [vmem:[%s3 + $0x230] sm:$0xff]
  %v111 = vld [vmem:[%s3 + $0x238] sm:$0xff]
  %v112 = vld [vmem:[%s3 + $0x240] sm:$0xff]
  %v113 = vld [vmem:[%s3 + $0x248] sm:$0xff]
  %v114 = vld [vmem:[%s3 + $0x250] sm:$0xff]
  %v115 = vld [vmem:[%s3 + $0x258] sm:$0xff]
  %v116 = vld [vmem:[%s3 + $0x260] sm:$0xff]
  %v117 = vld [vmem:[%s3 + $0x268] sm:$0xff]
  %v118 = vld [vmem:[%s3 + $0x270] sm:$0xff]
  %v119 = vld [vmem:[%s3 + $0x278] sm:$0xff]
  %v120 = vld [vmem:[%s3 + $0x280] sm:$0xff]
  %v121 = vld [vmem:[%s3 + $0x288] sm:$0xff]
  %v122 = vld [vmem:[%s3 + $0x290] sm:$0xff]
  %v123 = vld [vmem:[%s3 + $0x298] sm:$0xff]
  %v124 = vld [vmem:[%s3 + $0x2a0] sm:$0xff]
  %v125 = vld [vmem:[%s3 + $0x2a8] sm:$0xff]
  %v126 = vld [vmem:[%s3 + $0x2b0] sm:$0xff]
  %v127 = vld [vmem:[%s3 + $0x2b8] sm:$0xff]
  %v128 = vld [vmem:[%s3 + $0x2c0] sm:$0xff]
  %v129 = vld [vmem:[%s3 + $0x2c8] sm:$0xff]
  %v130 = vld [vmem:[%s3 + $0x2d0] sm:$0xff]
  %v131 = vld [vmem:[%s3 + $0x2d8] sm:$0xff]
  %v132 = vld [vmem:[%s3 + $0x2e0] sm:$0xff]
  %v133 = vld [vmem:[%s3 + $0x2e8] sm:$0xff]
  %v134 = vld [vmem:[%s3 + $0x2f0] sm:$0xff]
  %v135 = vld [vmem:[%s3 + $0x2f8] sm:$0xff]
  %v136 = vld [vmem:[%s3 + $0x300] sm:$0xff]
  %v137 = vld [vmem:[%s3 + $0x308] sm:$0xff]
  %v138 = vld [vmem:[%s3 + $0x310] sm:$0xff]
  %v139 = vld [vmem:[%s3 + $0x318] sm:$0xff]
  %v140 = vld [vmem:[%s3 + $0x320] sm:$0xff]
  %v141 = vld [vmem:[%s3 + $0x328] sm:$0xff]
  %v142 = vld [vmem:[%s3 + $0x330] sm:$0xff]
  %v143 = vld [vmem:[%s3 + $0x338] sm:$0xff]
  %v144 = vld [vmem:[%s3 + $0x340] sm:$0xff]
  %v145 = vld [vmem:[%s3 + $0x348] sm:$0xff]
  %v146 = vld [vmem:[%s3 + $0x350] sm:$0xff]
  %v147 = vld [vmem:[%s3 + $0x358] sm:$0xff]
  %v148 = vld [vmem:[%s3 + $0x360] sm:$0xff]
  %v149 = vld [vmem:[%s3 + $0x368] sm:$0xff]
  %v150 = vld [vmem:[%s3 + $0x370] sm:$0xff]
  %v151 = vld [vmem:[%s3 + $0x378] sm:$0xff]
  %v152 = vld [vmem:[%s3 + $0x380] sm:$0xff]
  %v153 = vld [vmem:[%s3 + $0x388] sm:$0xff]
  %v154 = vld [vmem:[%s3 + $0x390] sm:$0xff]
  %v155 = vld [vmem:[%s3 + $0x398] sm:$0xff]
  %v156 = vld [vmem:[%s3 + $0x3a0] sm:$0xff]
  %v157 = vld [vmem:[%s3 + $0x3a8] sm:$0xff]
  %v158 = vld [vmem:[%s3 + $0x3b0] sm:$0xff]
  %v159 = vld [vmem:[%s3 + $0x3b8] sm:$0xff]
  %v160 = vld [vmem:[%s3 + $0x3c0] sm:$0xff]
  %v161 = vld [vmem:[%s3 + $0x3c8] sm:$0xff]
  %v162 = vld [vmem:[%s3 + $0x3d0] sm:$0xff]
  %v163 = vld [vmem:[%s3 + $0x3d8] sm:$0xff]
  %v164 = vld [vmem:[%s3 + $0x3e0] sm:$0xff]
  %v165 = vld [vmem:[%s3 + $0x3e8] sm:$0xff]
  %v166 = vld [vmem:[%s3 + $0x3f0] sm:$0xff]
  %v167 = vld [vmem:[%s3 + $0x3f8] sm:$0xff]
  %v169 = vlaneseq
  %v170 = vshrl.u32 %v169, 7
  %v171 = vsub.s32 0, %v170
  %v172 = vrot.slane %v39, %v171
  %v173 = vlaneseq
  %v174 = vshrl.u32 %v173, 7
  %v175 = vsub.s32 1, %v174
  %v176 = vrot.slane %v39, %v175
  %179 = vmatprep.subr.mxu0 %v41
  %180 = vmatpush1.msra.mxu0 %v40
  %181 = vmatprep.subr.mxu0 %v43
  %182 = vmatpush1.msra.mxu0 %v42
  %183 = vmatprep.subr.mxu0 %v45
  %184 = vmatpush1.msra.mxu0 %v44
  %185 = vmatprep.subr.mxu0 %v47
  %186 = vmatpush1.msra.mxu0 %v46
  %187 = vmatprep.subr.mxu0 %v49
  %188 = vmatpush1.msra.mxu0 %v48
  %189 = vmatprep.subr.mxu0 %v51
  %190 = vmatpush1.msra.mxu0 %v50
  %191 = vmatprep.subr.mxu0 %v53
  %192 = vmatpush1.msra.mxu0 %v52
  %193 = vmatprep.subr.mxu0 %v55
  %194 = vmatpush1.msra.mxu0 %v54
  %195 = vmatprep.subr.mxu0 %v57
  %196 = vmatpush1.msra.mxu0 %v56
  %197 = vmatprep.subr.mxu0 %v59
  %198 = vmatpush1.msra.mxu0 %v58
  %199 = vmatprep.subr.mxu0 %v61
  %200 = vmatpush1.msra.mxu0 %v60
  %201 = vmatprep.subr.mxu0 %v63
  %202 = vmatpush1.msra.mxu0 %v62
  %203 = vmatprep.subr.mxu0 %v65
  %204 = vmatpush1.msra.mxu0 %v64
  %205 = vmatprep.subr.mxu0 %v67
  %206 = vmatpush1.msra.mxu0 %v66
  %207 = vmatprep.subr.mxu0 %v69
  %208 = vmatpush1.msra.mxu0 %v68
  %209 = vmatprep.subr.mxu0 %v71
  %210 = vmatpush1.msra.mxu0 %v70
  %211 = vmatprep.subr.mxu0 %v73
  %212 = vmatpush1.msra.mxu0 %v72
  %213 = vmatprep.subr.mxu0 %v75
  %214 = vmatpush1.msra.mxu0 %v74
  %215 = vmatprep.subr.mxu0 %v77
  %216 = vmatpush1.msra.mxu0 %v76
  %217 = vmatprep.subr.mxu0 %v79
  %218 = vmatpush1.msra.mxu0 %v78
  %219 = vmatprep.subr.mxu0 %v81
  %220 = vmatpush1.msra.mxu0 %v80
  %221 = vmatprep.subr.mxu0 %v83
  %222 = vmatpush1.msra.mxu0 %v82
  %223 = vmatprep.subr.mxu0 %v85
  %224 = vmatpush1.msra.mxu0 %v84
  %225 = vmatprep.subr.mxu0 %v87
  %226 = vmatpush1.msra.mxu0 %v86
  %227 = vmatprep.subr.mxu0 %v89
  %228 = vmatpush1.msra.mxu0 %v88
  %229 = vmatprep.subr.mxu0 %v91
  %230 = vmatpush1.msra.mxu0 %v90
  %231 = vmatprep.subr.mxu0 %v93
  %232 = vmatpush1.msra.mxu0 %v92
  %233 = vmatprep.subr.mxu0 %v95
  %234 = vmatpush1.msra.mxu0 %v94
  %235 = vmatprep.subr.mxu0 %v97
  %236 = vmatpush1.msra.mxu0 %v96
  %237 = vmatprep.subr.mxu0 %v99
  %238 = vmatpush1.msra.mxu0 %v98
  %239 = vmatprep.subr.mxu0 %v101
  %240 = vmatpush1.msra.mxu0 %v100
  %241 = vmatprep.subr.mxu0 %v103
  %242 = vmatpush1.msra.mxu0 %v102
  %243 = vmatprep.mubr.f32.mxu0 %v32
  %244 = vmatmul.mubr.f32.gmra.mrb[0].mxu0 %v31
  %v245 = vpop.f32.mrb[0].mxu0
  %v246 = vadd.f32 %v172, %v245
  %v247 = vpop.f32.mrb[0].mxu0
  %v248 = vadd.f32 %v176, %v247
  %249 = vdwg.mxu0
  %250 = vmatprep.subr.mxu0 %v105
  %251 = vmatpush1.msra.mxu0 %v104
  %252 = vmatprep.subr.mxu0 %v107
  %253 = vmatpush1.msra.mxu0 %v106
  %254 = vmatprep.subr.mxu0 %v109
  %255 = vmatpush1.msra.mxu0 %v108
  %256 = vmatprep.subr.mxu0 %v111
  %257 = vmatpush1.msra.mxu0 %v110
  %258 = vmatprep.subr.mxu0 %v113
  %259 = vmatpush1.msra.mxu0 %v112
  %260 = vmatprep.subr.mxu0 %v115
  %261 = vmatpush1.msra.mxu0 %v114
  %262 = vmatprep.subr.mxu0 %v117
  %263 = vmatpush1.msra.mxu0 %v116
  %264 = vmatprep.subr.mxu0 %v119
  %265 = vmatpush1.msra.mxu0 %v118
  %266 = vmatprep.subr.mxu0 %v121
  %267 = vmatpush1.msra.mxu0 %v120
  %268 = vmatprep.subr.mxu0 %v123
  %269 = vmatpush1.msra.mxu0 %v122
  %270 = vmatprep.subr.mxu0 %v125
  %271 = vmatpush1.msra.mxu0 %v124
  %272 = vmatprep.subr.mxu0 %v127
  %273 = vmatpush1.msra.mxu0 %v126
  %274 = vmatprep.subr.mxu0 %v129
  %275 = vmatpush1.msra.mxu0 %v128
  %276 = vmatprep.subr.mxu0 %v131
  %277 = vmatpush1.msra.mxu0 %v130
  %278 = vmatprep.subr.mxu0 %v133
  %279 = vmatpush1.msra.mxu0 %v132
  %280 = vmatprep.subr.mxu0 %v135
  %281 = vmatpush1.msra.mxu0 %v134
  %282 = vmatprep.subr.mxu0 %v137
  %283 = vmatpush1.msra.mxu0 %v136
  %284 = vmatprep.subr.mxu0 %v139
  %285 = vmatpush1.msra.mxu0 %v138
  %286 = vmatprep.subr.mxu0 %v141
  %287 = vmatpush1.msra.mxu0 %v140
  %288 = vmatprep.subr.mxu0 %v143
  %289 = vmatpush1.msra.mxu0 %v142
  %290 = vmatprep.subr.mxu0 %v145
  %291 = vmatpush1.msra.mxu0 %v144
  %292 = vmatprep.subr.mxu0 %v147
  %293 = vmatpush1.msra.mxu0 %v146
  %294 = vmatprep.subr.mxu0 %v149
  %295 = vmatpush1.msra.mxu0 %v148
  %296 = vmatprep.subr.mxu0 %v151
  %297 = vmatpush1.msra.mxu0 %v150
  %298 = vmatprep.subr.mxu0 %v153
  %299 = vmatpush1.msra.mxu0 %v152
  %300 = vmatprep.subr.mxu0 %v155
  %301 = vmatpush1.msra.mxu0 %v154
  %302 = vmatprep.subr.mxu0 %v157
  %303 = vmatpush1.msra.mxu0 %v156
  %304 = vmatprep.subr.mxu0 %v159
  %305 = vmatpush1.msra.mxu0 %v158
  %306 = vmatprep.subr.mxu0 %v161
  %307 = vmatpush1.msra.mxu0 %v160
  %308 = vmatprep.subr.mxu0 %v163
  %309 = vmatpush1.msra.mxu0 %v162
  %310 = vmatprep.subr.mxu0 %v165
  %311 = vmatpush1.msra.mxu0 %v164
  %312 = vmatprep.subr.mxu0 %v167
  %313 = vmatpush1.msra.mxu0 %v166
  %314 = vmatprep.mubr.f32.mxu0 %v34
  %315 = vmatmul.mubr.f32.gmra.mrb[0].mxu0 %v33
  %v316 = vpop.f32.mrb[0].mxu0
  %v317 = vadd.f32 %v246, %v316
  %v318 = vpop.f32.mrb[0].mxu0
  %v319 = vadd.f32 %v248, %v318
  %320 = vdwg.mxu0
  %v321 = vld [vmem:[%s4] sm:$0xff]
  %v322 = vld [vmem:[%s4 + $0x8] sm:$0xff]
  %v323 = vld [vmem:[%s4 + $0x10] sm:$0xff]
  %v324 = vld [vmem:[%s4 + $0x18] sm:$0xff]
  %v325 = vld [vmem:[%s4 + $0x20] sm:$0xff]
  %v326 = vld [vmem:[%s4 + $0x28] sm:$0xff]
  %v327 = vld [vmem:[%s4 + $0x30] sm:$0xff]
  %v328 = vld [vmem:[%s4 + $0x38] sm:$0xff]
  %v329 = vld [vmem:[%s4 + $0x40] sm:$0xff]
  %v330 = vld [vmem:[%s4 + $0x48] sm:$0xff]
  %v331 = vld [vmem:[%s4 + $0x50] sm:$0xff]
  %v332 = vld [vmem:[%s4 + $0x58] sm:$0xff]
  %v333 = vld [vmem:[%s4 + $0x60] sm:$0xff]
  %v334 = vld [vmem:[%s4 + $0x68] sm:$0xff]
  %v335 = vld [vmem:[%s4 + $0x70] sm:$0xff]
  %v336 = vld [vmem:[%s4 + $0x78] sm:$0xff]
  %v337 = vld [vmem:[%s4 + $0x80] sm:$0xff]
  %v338 = vld [vmem:[%s4 + $0x88] sm:$0xff]
  %v339 = vld [vmem:[%s4 + $0x90] sm:$0xff]
  %v340 = vld [vmem:[%s4 + $0x98] sm:$0xff]
  %v341 = vld [vmem:[%s4 + $0xa0] sm:$0xff]
  %v342 = vld [vmem:[%s4 + $0xa8] sm:$0xff]
  %v343 = vld [vmem:[%s4 + $0xb0] sm:$0xff]
  %v344 = vld [vmem:[%s4 + $0xb8] sm:$0xff]
  %v345 = vld [vmem:[%s4 + $0xc0] sm:$0xff]
  %v346 = vld [vmem:[%s4 + $0xc8] sm:$0xff]
  %v347 = vld [vmem:[%s4 + $0xd0] sm:$0xff]
  %v348 = vld [vmem:[%s4 + $0xd8] sm:$0xff]
  %v349 = vld [vmem:[%s4 + $0xe0] sm:$0xff]
  %v350 = vld [vmem:[%s4 + $0xe8] sm:$0xff]
  %v351 = vld [vmem:[%s4 + $0xf0] sm:$0xff]
  %v352 = vld [vmem:[%s4 + $0xf8] sm:$0xff]
  %v353 = vld [vmem:[%s4 + $0x100] sm:$0xff]
  %v354 = vld [vmem:[%s4 + $0x108] sm:$0xff]
  %v355 = vld [vmem:[%s4 + $0x110] sm:$0xff]
  %v356 = vld [vmem:[%s4 + $0x118] sm:$0xff]
  %v357 = vld [vmem:[%s4 + $0x120] sm:$0xff]
  %v358 = vld [vmem:[%s4 + $0x128] sm:$0xff]
  %v359 = vld [vmem:[%s4 + $0x130] sm:$0xff]
  %v360 = vld [vmem:[%s4 + $0x138] sm:$0xff]
  %v361 = vld [vmem:[%s4 + $0x140] sm:$0xff]
  %v362 = vld [vmem:[%s4 + $0x148] sm:$0xff]
  %v363 = vld [vmem:[%s4 + $0x150] sm:$0xff]
  %v364 = vld [vmem:[%s4 + $0x158] sm:$0xff]
  %v365 = vld [vmem:[%s4 + $0x160] sm:$0xff]
  %v366 = vld [vmem:[%s4 + $0x168] sm:$0xff]
  %v367 = vld [vmem:[%s4 + $0x170] sm:$0xff]
  %v368 = vld [vmem:[%s4 + $0x178] sm:$0xff]
  %v369 = vld [vmem:[%s4 + $0x180] sm:$0xff]
  %v370 = vld [vmem:[%s4 + $0x188] sm:$0xff]
  %v371 = vld [vmem:[%s4 + $0x190] sm:$0xff]
  %v372 = vld [vmem:[%s4 + $0x198] sm:$0xff]
  %v373 = vld [vmem:[%s4 + $0x1a0] sm:$0xff]
  %v374 = vld [vmem:[%s4 + $0x1a8] sm:$0xff]
  %v375 = vld [vmem:[%s4 + $0x1b0] sm:$0xff]
  %v376 = vld [vmem:[%s4 + $0x1b8] sm:$0xff]
  %v377 = vld [vmem:[%s4 + $0x1c0] sm:$0xff]
  %v378 = vld [vmem:[%s4 + $0x1c8] sm:$0xff]
  %v379 = vld [vmem:[%s4 + $0x1d0] sm:$0xff]
  %v380 = vld [vmem:[%s4 + $0x1d8] sm:$0xff]
  %v381 = vld [vmem:[%s4 + $0x1e0] sm:$0xff]
  %v382 = vld [vmem:[%s4 + $0x1e8] sm:$0xff]
  %v383 = vld [vmem:[%s4 + $0x1f0] sm:$0xff]
  %v384 = vld [vmem:[%s4 + $0x1f8] sm:$0xff]
  %v385 = vld [vmem:[%s4 + $0x200] sm:$0xff]
  %v386 = vld [vmem:[%s4 + $0x208] sm:$0xff]
  %v387 = vld [vmem:[%s4 + $0x210] sm:$0xff]
  %v388 = vld [vmem:[%s4 + $0x218] sm:$0xff]
  %v389 = vld [vmem:[%s4 + $0x220] sm:$0xff]
  %v390 = vld [vmem:[%s4 + $0x228] sm:$0xff]
  %v391 = vld [vmem:[%s4 + $0x230] sm:$0xff]
  %v392 = vld [vmem:[%s4 + $0x238] sm:$0xff]
  %v393 = vld [vmem:[%s4 + $0x240] sm:$0xff]
  %v394 = vld [vmem:[%s4 + $0x248] sm:$0xff]
  %v395 = vld [vmem:[%s4 + $0x250] sm:$0xff]
  %v396 = vld [vmem:[%s4 + $0x258] sm:$0xff]
  %v397 = vld [vmem:[%s4 + $0x260] sm:$0xff]
  %v398 = vld [vmem:[%s4 + $0x268] sm:$0xff]
  %v399 = vld [vmem:[%s4 + $0x270] sm:$0xff]
  %v400 = vld [vmem:[%s4 + $0x278] sm:$0xff]
  %v401 = vld [vmem:[%s4 + $0x280] sm:$0xff]
  %v402 = vld [vmem:[%s4 + $0x288] sm:$0xff]
  %v403 = vld [vmem:[%s4 + $0x290] sm:$0xff]
  %v404 = vld [vmem:[%s4 + $0x298] sm:$0xff]
  %v405 = vld [vmem:[%s4 + $0x2a0] sm:$0xff]
  %v406 = vld [vmem:[%s4 + $0x2a8] sm:$0xff]
  %v407 = vld [vmem:[%s4 + $0x2b0] sm:$0xff]
  %v408 = vld [vmem:[%s4 + $0x2b8] sm:$0xff]
  %v409 = vld [vmem:[%s4 + $0x2c0] sm:$0xff]
  %v410 = vld [vmem:[%s4 + $0x2c8] sm:$0xff]
  %v411 = vld [vmem:[%s4 + $0x2d0] sm:$0xff]
  %v412 = vld [vmem:[%s4 + $0x2d8] sm:$0xff]
  %v413 = vld [vmem:[%s4 + $0x2e0] sm:$0xff]
  %v414 = vld [vmem:[%s4 + $0x2e8] sm:$0xff]
  %v415 = vld [vmem:[%s4 + $0x2f0] sm:$0xff]
  %v416 = vld [vmem:[%s4 + $0x2f8] sm:$0xff]
  %v417 = vld [vmem:[%s4 + $0x300] sm:$0xff]
  %v418 = vld [vmem:[%s4 + $0x308] sm:$0xff]
  %v419 = vld [vmem:[%s4 + $0x310] sm:$0xff]
  %v420 = vld [vmem:[%s4 + $0x318] sm:$0xff]
  %v421 = vld [vmem:[%s4 + $0x320] sm:$0xff]
  %v422 = vld [vmem:[%s4 + $0x328] sm:$0xff]
  %v423 = vld [vmem:[%s4 + $0x330] sm:$0xff]
  %v424 = vld [vmem:[%s4 + $0x338] sm:$0xff]
  %v425 = vld [vmem:[%s4 + $0x340] sm:$0xff]
  %v426 = vld [vmem:[%s4 + $0x348] sm:$0xff]
  %v427 = vld [vmem:[%s4 + $0x350] sm:$0xff]
  %v428 = vld [vmem:[%s4 + $0x358] sm:$0xff]
  %v429 = vld [vmem:[%s4 + $0x360] sm:$0xff]
  %v430 = vld [vmem:[%s4 + $0x368] sm:$0xff]
  %v431 = vld [vmem:[%s4 + $0x370] sm:$0xff]
  %v432 = vld [vmem:[%s4 + $0x378] sm:$0xff]
  %v433 = vld [vmem:[%s4 + $0x380] sm:$0xff]
  %v434 = vld [vmem:[%s4 + $0x388] sm:$0xff]
  %v435 = vld [vmem:[%s4 + $0x390] sm:$0xff]
  %v436 = vld [vmem:[%s4 + $0x398] sm:$0xff]
  %v437 = vld [vmem:[%s4 + $0x3a0] sm:$0xff]
  %v438 = vld [vmem:[%s4 + $0x3a8] sm:$0xff]
  %v439 = vld [vmem:[%s4 + $0x3b0] sm:$0xff]
  %v440 = vld [vmem:[%s4 + $0x3b8] sm:$0xff]
  %v441 = vld [vmem:[%s4 + $0x3c0] sm:$0xff]
  %v442 = vld [vmem:[%s4 + $0x3c8] sm:$0xff]
  %v443 = vld [vmem:[%s4 + $0x3d0] sm:$0xff]
  %v444 = vld [vmem:[%s4 + $0x3d8] sm:$0xff]
  %v445 = vld [vmem:[%s4 + $0x3e0] sm:$0xff]
  %v446 = vld [vmem:[%s4 + $0x3e8] sm:$0xff]
  %v447 = vld [vmem:[%s4 + $0x3f0] sm:$0xff]
  %v448 = vld [vmem:[%s4 + $0x3f8] sm:$0xff]
  %v449 = vld [vmem:[%s2] sm:$0xff]
  %v450 = vld [vmem:[%s2 + $0x8] sm:$0xff]
  %v451 = vld [vmem:[%s2 + $0x10] sm:$0xff]
  %v452 = vld [vmem:[%s2 + $0x18] sm:$0xff]
  %v453 = vld [vmem:[%s2 + $0x20] sm:$0xff]
  %v454 = vld [vmem:[%s2 + $0x28] sm:$0xff]
  %v455 = vld [vmem:[%s2 + $0x30] sm:$0xff]
  %v456 = vld [vmem:[%s2 + $0x38] sm:$0xff]
  %v457 = vld [vmem:[%s2 + $0x40] sm:$0xff]
  %v458 = vld [vmem:[%s2 + $0x48] sm:$0xff]
  %v459 = vld [vmem:[%s2 + $0x50] sm:$0xff]
  %v460 = vld [vmem:[%s2 + $0x58] sm:$0xff]
  %v461 = vld [vmem:[%s2 + $0x60] sm:$0xff]
  %v462 = vld [vmem:[%s2 + $0x68] sm:$0xff]
  %v463 = vld [vmem:[%s2 + $0x70] sm:$0xff]
  %v464 = vld [vmem:[%s2 + $0x78] sm:$0xff]
  %v465 = vld [vmem:[%s2 + $0x80] sm:$0xff]
  %v466 = vld [vmem:[%s2 + $0x88] sm:$0xff]
  %v467 = vld [vmem:[%s2 + $0x90] sm:$0xff]
  %v468 = vld [vmem:[%s2 + $0x98] sm:$0xff]
  %v469 = vld [vmem:[%s2 + $0xa0] sm:$0xff]
  %v470 = vld [vmem:[%s2 + $0xa8] sm:$0xff]
  %v471 = vld [vmem:[%s2 + $0xb0] sm:$0xff]
  %v472 = vld [vmem:[%s2 + $0xb8] sm:$0xff]
  %v473 = vld [vmem:[%s2 + $0xc0] sm:$0xff]
  %v474 = vld [vmem:[%s2 + $0xc8] sm:$0xff]
  %v475 = vld [vmem:[%s2 + $0xd0] sm:$0xff]
  %v476 = vld [vmem:[%s2 + $0xd8] sm:$0xff]
  %v477 = vld [vmem:[%s2 + $0xe0] sm:$0xff]
  %v478 = vld [vmem:[%s2 + $0xe8] sm:$0xff]
  %v479 = vld [vmem:[%s2 + $0xf0] sm:$0xff]
  %v480 = vld [vmem:[%s2 + $0xf8] sm:$0xff]
  %v481 = vld [vmem:[%s2 + $0x100] sm:$0xff]
  %v482 = vld [vmem:[%s2 + $0x108] sm:$0xff]
  %v483 = vld [vmem:[%s2 + $0x110] sm:$0xff]
  %v484 = vld [vmem:[%s2 + $0x118] sm:$0xff]
  %v485 = vld [vmem:[%s2 + $0x120] sm:$0xff]
  %v486 = vld [vmem:[%s2 + $0x128] sm:$0xff]
  %v487 = vld [vmem:[%s2 + $0x130] sm:$0xff]
  %v488 = vld [vmem:[%s2 + $0x138] sm:$0xff]
  %v489 = vld [vmem:[%s2 + $0x140] sm:$0xff]
  %v490 = vld [vmem:[%s2 + $0x148] sm:$0xff]
  %v491 = vld [vmem:[%s2 + $0x150] sm:$0xff]
  %v492 = vld [vmem:[%s2 + $0x158] sm:$0xff]
  %v493 = vld [vmem:[%s2 + $0x160] sm:$0xff]
  %v494 = vld [vmem:[%s2 + $0x168] sm:$0xff]
  %v495 = vld [vmem:[%s2 + $0x170] sm:$0xff]
  %v496 = vld [vmem:[%s2 + $0x178] sm:$0xff]
  %v497 = vld [vmem:[%s2 + $0x180] sm:$0xff]
  %v498 = vld [vmem:[%s2 + $0x188] sm:$0xff]
  %v499 = vld [vmem:[%s2 + $0x190] sm:$0xff]
  %v500 = vld [vmem:[%s2 + $0x198] sm:$0xff]
  %v501 = vld [vmem:[%s2 + $0x1a0] sm:$0xff]
  %v502 = vld [vmem:[%s2 + $0x1a8] sm:$0xff]
  %v503 = vld [vmem:[%s2 + $0x1b0] sm:$0xff]
  %v504 = vld [vmem:[%s2 + $0x1b8] sm:$0xff]
  %v505 = vld [vmem:[%s2 + $0x1c0] sm:$0xff]
  %v506 = vld [vmem:[%s2 + $0x1c8] sm:$0xff]
  %v507 = vld [vmem:[%s2 + $0x1d0] sm:$0xff]
  %v508 = vld [vmem:[%s2 + $0x1d8] sm:$0xff]
  %v509 = vld [vmem:[%s2 + $0x1e0] sm:$0xff]
  %v510 = vld [vmem:[%s2 + $0x1e8] sm:$0xff]
  %v511 = vld [vmem:[%s2 + $0x1f0] sm:$0xff]
  %v512 = vld [vmem:[%s2 + $0x1f8] sm:$0xff]
  %v513 = vld [vmem:[%s2 + $0x200] sm:$0xff]
  %v514 = vld [vmem:[%s2 + $0x208] sm:$0xff]
  %v515 = vld [vmem:[%s2 + $0x210] sm:$0xff]
  %v516 = vld [vmem:[%s2 + $0x218] sm:$0xff]
  %v517 = vld [vmem:[%s2 + $0x220] sm:$0xff]
  %v518 = vld [vmem:[%s2 + $0x228] sm:$0xff]
  %v519 = vld [vmem:[%s2 + $0x230] sm:$0xff]
  %v520 = vld [vmem:[%s2 + $0x238] sm:$0xff]
  %v521 = vld [vmem:[%s2 + $0x240] sm:$0xff]
  %v522 = vld [vmem:[%s2 + $0x248] sm:$0xff]
  %v523 = vld [vmem:[%s2 + $0x250] sm:$0xff]
  %v524 = vld [vmem:[%s2 + $0x258] sm:$0xff]
  %v525 = vld [vmem:[%s2 + $0x260] sm:$0xff]
  %v526 = vld [vmem:[%s2 + $0x268] sm:$0xff]
  %v527 = vld [vmem:[%s2 + $0x270] sm:$0xff]
  %v528 = vld [vmem:[%s2 + $0x278] sm:$0xff]
  %v529 = vld [vmem:[%s2 + $0x280] sm:$0xff]
  %v530 = vld [vmem:[%s2 + $0x288] sm:$0xff]
  %v531 = vld [vmem:[%s2 + $0x290] sm:$0xff]
  %v532 = vld [vmem:[%s2 + $0x298] sm:$0xff]
  %v533 = vld [vmem:[%s2 + $0x2a0] sm:$0xff]
  %v534 = vld [vmem:[%s2 + $0x2a8] sm:$0xff]
  %v535 = vld [vmem:[%s2 + $0x2b0] sm:$0xff]
  %v536 = vld [vmem:[%s2 + $0x2b8] sm:$0xff]
  %v537 = vld [vmem:[%s2 + $0x2c0] sm:$0xff]
  %v538 = vld [vmem:[%s2 + $0x2c8] sm:$0xff]
  %v539 = vld [vmem:[%s2 + $0x2d0] sm:$0xff]
  %v540 = vld [vmem:[%s2 + $0x2d8] sm:$0xff]
  %v541 = vld [vmem:[%s2 + $0x2e0] sm:$0xff]
  %v542 = vld [vmem:[%s2 + $0x2e8] sm:$0xff]
  %v543 = vld [vmem:[%s2 + $0x2f0] sm:$0xff]
  %v544 = vld [vmem:[%s2 + $0x2f8] sm:$0xff]
  %v545 = vld [vmem:[%s2 + $0x300] sm:$0xff]
  %v546 = vld [vmem:[%s2 + $0x308] sm:$0xff]
  %v547 = vld [vmem:[%s2 + $0x310] sm:$0xff]
  %v548 = vld [vmem:[%s2 + $0x318] sm:$0xff]
  %v549 = vld [vmem:[%s2 + $0x320] sm:$0xff]
  %v550 = vld [vmem:[%s2 + $0x328] sm:$0xff]
  %v551 = vld [vmem:[%s2 + $0x330] sm:$0xff]
  %v552 = vld [vmem:[%s2 + $0x338] sm:$0xff]
  %v553 = vld [vmem:[%s2 + $0x340] sm:$0xff]
  %v554 = vld [vmem:[%s2 + $0x348] sm:$0xff]
  %v555 = vld [vmem:[%s2 + $0x350] sm:$0xff]
  %v556 = vld [vmem:[%s2 + $0x358] sm:$0xff]
  %v557 = vld [vmem:[%s2 + $0x360] sm:$0xff]
  %v558 = vld [vmem:[%s2 + $0x368] sm:$0xff]
  %v559 = vld [vmem:[%s2 + $0x370] sm:$0xff]
  %v560 = vld [vmem:[%s2 + $0x378] sm:$0xff]
  %v561 = vld [vmem:[%s2 + $0x380] sm:$0xff]
  %v562 = vld [vmem:[%s2 + $0x388] sm:$0xff]
  %v563 = vld [vmem:[%s2 + $0x390] sm:$0xff]
  %v564 = vld [vmem:[%s2 + $0x398] sm:$0xff]
  %v565 = vld [vmem:[%s2 + $0x3a0] sm:$0xff]
  %v566 = vld [vmem:[%s2 + $0x3a8] sm:$0xff]
  %v567 = vld [vmem:[%s2 + $0x3b0] sm:$0xff]
  %v568 = vld [vmem:[%s2 + $0x3b8] sm:$0xff]
  %v569 = vld [vmem:[%s2 + $0x3c0] sm:$0xff]
  %v570 = vld [vmem:[%s2 + $0x3c8] sm:$0xff]
  %v571 = vld [vmem:[%s2 + $0x3d0] sm:$0xff]
  %v572 = vld [vmem:[%s2 + $0x3d8] sm:$0xff]
  %v573 = vld [vmem:[%s2 + $0x3e0] sm:$0xff]
  %v574 = vld [vmem:[%s2 + $0x3e8] sm:$0xff]
  %v575 = vld [vmem:[%s2 + $0x3f0] sm:$0xff]
  %v576 = vld [vmem:[%s2 + $0x3f8] sm:$0xff]
  %577 = vmatprep.subr.mxu0 %v450
  %578 = vmatpush1.msra.mxu0 %v449
  %579 = vmatprep.subr.mxu0 %v452
  %580 = vmatpush1.msra.mxu0 %v451
  %581 = vmatprep.subr.mxu0 %v454
  %582 = vmatpush1.msra.mxu0 %v453
  %583 = vmatprep.subr.mxu0 %v456
  %584 = vmatpush1.msra.mxu0 %v455
  %585 = vmatprep.subr.mxu0 %v458
  %586 = vmatpush1.msra.mxu0 %v457
  %587 = vmatprep.subr.mxu0 %v460
  %588 = vmatpush1.msra.mxu0 %v459
  %589 = vmatprep.subr.mxu0 %v462
  %590 = vmatpush1.msra.mxu0 %v461
  %591 = vmatprep.subr.mxu0 %v464
  %592 = vmatpush1.msra.mxu0 %v463
  %593 = vmatprep.subr.mxu0 %v466
  %594 = vmatpush1.msra.mxu0 %v465
  %595 = vmatprep.subr.mxu0 %v468
  %596 = vmatpush1.msra.mxu0 %v467
  %597 = vmatprep.subr.mxu0 %v470
  %598 = vmatpush1.msra.mxu0 %v469
  %599 = vmatprep.subr.mxu0 %v472
  %600 = vmatpush1.msra.mxu0 %v471
  %601 = vmatprep.subr.mxu0 %v474
  %602 = vmatpush1.msra.mxu0 %v473
  %603 = vmatprep.subr.mxu0 %v476
  %604 = vmatpush1.msra.mxu0 %v475
  %605 = vmatprep.subr.mxu0 %v478
  %606 = vmatpush1.msra.mxu0 %v477
  %607 = vmatprep.subr.mxu0 %v480
  %608 = vmatpush1.msra.mxu0 %v479
  %609 = vmatprep.subr.mxu0 %v482
  %610 = vmatpush1.msra.mxu0 %v481
  %611 = vmatprep.subr.mxu0 %v484
  %612 = vmatpush1.msra.mxu0 %v483
  %613 = vmatprep.subr.mxu0 %v486
  %614 = vmatpush1.msra.mxu0 %v485
  %615 = vmatprep.subr.mxu0 %v488
  %616 = vmatpush1.msra.mxu0 %v487
  %617 = vmatprep.subr.mxu0 %v490
  %618 = vmatpush1.msra.mxu0 %v489
  %619 = vmatprep.subr.mxu0 %v492
  %620 = vmatpush1.msra.mxu0 %v491
  %621 = vmatprep.subr.mxu0 %v494
  %622 = vmatpush1.msra.mxu0 %v493
  %623 = vmatprep.subr.mxu0 %v496
  %624 = vmatpush1.msra.mxu0 %v495
  %625 = vmatprep.subr.mxu0 %v498
  %626 = vmatpush1.msra.mxu0 %v497
  %627 = vmatprep.subr.mxu0 %v500
  %628 = vmatpush1.msra.mxu0 %v499
  %629 = vmatprep.subr.mxu0 %v502
  %630 = vmatpush1.msra.mxu0 %v501
  %631 = vmatprep.subr.mxu0 %v504
  %632 = vmatpush1.msra.mxu0 %v503
  %633 = vmatprep.subr.mxu0 %v506
  %634 = vmatpush1.msra.mxu0 %v505
  %635 = vmatprep.subr.mxu0 %v508
  %636 = vmatpush1.msra.mxu0 %v507
  %637 = vmatprep.subr.mxu0 %v510
  %638 = vmatpush1.msra.mxu0 %v509
  %639 = vmatprep.subr.mxu0 %v512
  %640 = vmatpush1.msra.mxu0 %v511
  %641 = vmatprep.mubr.f32.mxu0 %v36
  %642 = vmatmul.mubr.f32.gmra.mrb[0].mxu0 %v35
  %v643 = vpop.f32.mrb[0].mxu0
  %v644 = vadd.f32 0.0, %v643
  %v645 = vpop.f32.mrb[0].mxu0
  %v646 = vadd.f32 0.0, %v645
  %647 = vdwg.mxu0
  %648 = vmatprep.subr.mxu0 %v514
  %649 = vmatpush1.msra.mxu0 %v513
  %650 = vmatprep.subr.mxu0 %v516
  %651 = vmatpush1.msra.mxu0 %v515
  %652 = vmatprep.subr.mxu0 %v518
  %653 = vmatpush1.msra.mxu0 %v517
  %654 = vmatprep.subr.mxu0 %v520
  %655 = vmatpush1.msra.mxu0 %v519
  %656 = vmatprep.subr.mxu0 %v522
  %657 = vmatpush1.msra.mxu0 %v521
  %658 = vmatprep.subr.mxu0 %v524
  %659 = vmatpush1.msra.mxu0 %v523
  %660 = vmatprep.subr.mxu0 %v526
  %661 = vmatpush1.msra.mxu0 %v525
  %662 = vmatprep.subr.mxu0 %v528
  %663 = vmatpush1.msra.mxu0 %v527
  %664 = vmatprep.subr.mxu0 %v530
  %665 = vmatpush1.msra.mxu0 %v529
  %666 = vmatprep.subr.mxu0 %v532
  %667 = vmatpush1.msra.mxu0 %v531
  %668 = vmatprep.subr.mxu0 %v534
  %669 = vmatpush1.msra.mxu0 %v533
  %670 = vmatprep.subr.mxu0 %v536
  %671 = vmatpush1.msra.mxu0 %v535
  %672 = vmatprep.subr.mxu0 %v538
  %673 = vmatpush1.msra.mxu0 %v537
  %674 = vmatprep.subr.mxu0 %v540
  %675 = vmatpush1.msra.mxu0 %v539
  %676 = vmatprep.subr.mxu0 %v542
  %677 = vmatpush1.msra.mxu0 %v541
  %678 = vmatprep.subr.mxu0 %v544
  %679 = vmatpush1.msra.mxu0 %v543
  %680 = vmatprep.subr.mxu0 %v546
  %681 = vmatpush1.msra.mxu0 %v545
  %682 = vmatprep.subr.mxu0 %v548
  %683 = vmatpush1.msra.mxu0 %v547
  %684 = vmatprep.subr.mxu0 %v550
  %685 = vmatpush1.msra.mxu0 %v549
  %686 = vmatprep.subr.mxu0 %v552
  %687 = vmatpush1.msra.mxu0 %v551
  %688 = vmatprep.subr.mxu0 %v554
  %689 = vmatpush1.msra.mxu0 %v553
  %690 = vmatprep.subr.mxu0 %v556
  %691 = vmatpush1.msra.mxu0 %v555
  %692 = vmatprep.subr.mxu0 %v558
  %693 = vmatpush1.msra.mxu0 %v557
  %694 = vmatprep.subr.mxu0 %v560
  %695 = vmatpush1.msra.mxu0 %v559
  %696 = vmatprep.subr.mxu0 %v562
  %697 = vmatpush1.msra.mxu0 %v561
  %698 = vmatprep.subr.mxu0 %v564
  %699 = vmatpush1.msra.mxu0 %v563
  %700 = vmatprep.subr.mxu0 %v566
  %701 = vmatpush1.msra.mxu0 %v565
  %702 = vmatprep.subr.mxu0 %v568
  %703 = vmatpush1.msra.mxu0 %v567
  %704 = vmatprep.subr.mxu0 %v570
  %705 = vmatpush1.msra.mxu0 %v569
  %706 = vmatprep.subr.mxu0 %v572
  %707 = vmatpush1.msra.mxu0 %v571
  %708 = vmatprep.subr.mxu0 %v574
  %709 = vmatpush1.msra.mxu0 %v573
  %710 = vmatprep.subr.mxu0 %v576
  %711 = vmatpush1.msra.mxu0 %v575
  %712 = vmatprep.mubr.f32.mxu0 %v38
  %713 = vmatmul.mubr.f32.gmra.mrb[0].mxu0 %v37
  %v714 = vpop.f32.mrb[0].mxu0
  %v715 = vadd.f32 %v644, %v714
  %v716 = vpop.f32.mrb[0].mxu0
  %v717 = vadd.f32 %v646, %v716
  %718 = vdwg.mxu0
  %719 = vmatprep.subr.mxu0 %v322
  %720 = vmatpush1.msra.mxu0 %v321
  %721 = vmatprep.subr.mxu0 %v324
  %722 = vmatpush1.msra.mxu0 %v323
  %723 = vmatprep.subr.mxu0 %v326
  %724 = vmatpush1.msra.mxu0 %v325
  %725 = vmatprep.subr.mxu0 %v328
  %726 = vmatpush1.msra.mxu0 %v327
  %727 = vmatprep.subr.mxu0 %v330
  %728 = vmatpush1.msra.mxu0 %v329
  %729 = vmatprep.subr.mxu0 %v332
  %730 = vmatpush1.msra.mxu0 %v331
  %731 = vmatprep.subr.mxu0 %v334
  %732 = vmatpush1.msra.mxu0 %v333
  %733 = vmatprep.subr.mxu0 %v336
  %734 = vmatpush1.msra.mxu0 %v335
  %735 = vmatprep.subr.mxu0 %v338
  %736 = vmatpush1.msra.mxu0 %v337
  %737 = vmatprep.subr.mxu0 %v340
  %738 = vmatpush1.msra.mxu0 %v339
  %739 = vmatprep.subr.mxu0 %v342
  %740 = vmatpush1.msra.mxu0 %v341
  %741 = vmatprep.subr.mxu0 %v344
  %742 = vmatpush1.msra.mxu0 %v343
  %743 = vmatprep.subr.mxu0 %v346
  %744 = vmatpush1.msra.mxu0 %v345
  %745 = vmatprep.subr.mxu0 %v348
  %746 = vmatpush1.msra.mxu0 %v347
  %747 = vmatprep.subr.mxu0 %v350
  %748 = vmatpush1.msra.mxu0 %v349
  %749 = vmatprep.subr.mxu0 %v352
  %750 = vmatpush1.msra.mxu0 %v351
  %751 = vmatprep.subr.mxu0 %v354
  %752 = vmatpush1.msra.mxu0 %v353
  %753 = vmatprep.subr.mxu0 %v356
  %754 = vmatpush1.msra.mxu0 %v355
  %755 = vmatprep.subr.mxu0 %v358
  %756 = vmatpush1.msra.mxu0 %v357
  %757 = vmatprep.subr.mxu0 %v360
  %758 = vmatpush1.msra.mxu0 %v359
  %759 = vmatprep.subr.mxu0 %v362
  %760 = vmatpush1.msra.mxu0 %v361
  %761 = vmatprep.subr.mxu0 %v364
  %762 = vmatpush1.msra.mxu0 %v363
  %763 = vmatprep.subr.mxu0 %v366
  %764 = vmatpush1.msra.mxu0 %v365
  %765 = vmatprep.subr.mxu0 %v368
  %766 = vmatpush1.msra.mxu0 %v367
  %767 = vmatprep.subr.mxu0 %v370
  %768 = vmatpush1.msra.mxu0 %v369
  %769 = vmatprep.subr.mxu0 %v372
  %770 = vmatpush1.msra.mxu0 %v371
  %771 = vmatprep.subr.mxu0 %v374
  %772 = vmatpush1.msra.mxu0 %v373
  %773 = vmatprep.subr.mxu0 %v376
  %774 = vmatpush1.msra.mxu0 %v375
  %775 = vmatprep.subr.mxu0 %v378
  %776 = vmatpush1.msra.mxu0 %v377
  %777 = vmatprep.subr.mxu0 %v380
  %778 = vmatpush1.msra.mxu0 %v379
  %779 = vmatprep.subr.mxu0 %v382
  %780 = vmatpush1.msra.mxu0 %v381
  %781 = vmatprep.subr.mxu0 %v384
  %782 = vmatpush1.msra.mxu0 %v383
  %783 = vmatprep.mubr.f32.mxu0 %v32
  %784 = vmatmul.mubr.f32.gmra.mrb[0].mxu0 %v31
  %v785 = vpop.f32.mrb[0].mxu0
  %v786 = vadd.f32 %v715, %v785
  %v787 = vpop.f32.mrb[0].mxu0
  %v788 = vadd.f32 %v717, %v787
  %789 = vdwg.mxu0
  %790 = vmatprep.subr.mxu0 %v386
  %791 = vmatpush1.msra.mxu0 %v385
  %792 = vmatprep.subr.mxu0 %v388
  %793 = vmatpush1.msra.mxu0 %v387
  %794 = vmatprep.subr.mxu0 %v390
  %795 = vmatpush1.msra.mxu0 %v389
  %796 = vmatprep.subr.mxu0 %v392
  %797 = vmatpush1.msra.mxu0 %v391
  %798 = vmatprep.subr.mxu0 %v394
  %799 = vmatpush1.msra.mxu0 %v393
  %800 = vmatprep.subr.mxu0 %v396
  %801 = vmatpush1.msra.mxu0 %v395
  %802 = vmatprep.subr.mxu0 %v398
  %803 = vmatpush1.msra.mxu0 %v397
  %804 = vmatprep.subr.mxu0 %v400
  %805 = vmatpush1.msra.mxu0 %v399
  %806 = vmatprep.subr.mxu0 %v402
  %807 = vmatpush1.msra.mxu0 %v401
  %808 = vmatprep.subr.mxu0 %v404
  %809 = vmatpush1.msra.mxu0 %v403
  %810 = vmatprep.subr.mxu0 %v406
  %811 = vmatpush1.msra.mxu0 %v405
  %812 = vmatprep.subr.mxu0 %v408
  %813 = vmatpush1.msra.mxu0 %v407
  %814 = vmatprep.subr.mxu0 %v410
  %815 = vmatpush1.msra.mxu0 %v409
  %816 = vmatprep.subr.mxu0 %v412
  %817 = vmatpush1.msra.mxu0 %v411
  %818 = vmatprep.subr.mxu0 %v414
  %819 = vmatpush1.msra.mxu0 %v413
  %820 = vmatprep.subr.mxu0 %v416
  %821 = vmatpush1.msra.mxu0 %v415
  %822 = vmatprep.subr.mxu0 %v418
  %823 = vmatpush1.msra.mxu0 %v417
  %824 = vmatprep.subr.mxu0 %v420
  %825 = vmatpush1.msra.mxu0 %v419
  %826 = vmatprep.subr.mxu0 %v422
  %827 = vmatpush1.msra.mxu0 %v421
  %828 = vmatprep.subr.mxu0 %v424
  %829 = vmatpush1.msra.mxu0 %v423
  %830 = vmatprep.subr.mxu0 %v426
  %831 = vmatpush1.msra.mxu0 %v425
  %832 = vmatprep.subr.mxu0 %v428
  %833 = vmatpush1.msra.mxu0 %v427
  %834 = vmatprep.subr.mxu0 %v430
  %835 = vmatpush1.msra.mxu0 %v429
  %836 = vmatprep.subr.mxu0 %v432
  %837 = vmatpush1.msra.mxu0 %v431
  %838 = vmatprep.subr.mxu0 %v434
  %839 = vmatpush1.msra.mxu0 %v433
  %840 = vmatprep.subr.mxu0 %v436
  %841 = vmatpush1.msra.mxu0 %v435
  %842 = vmatprep.subr.mxu0 %v438
  %843 = vmatpush1.msra.mxu0 %v437
  %844 = vmatprep.subr.mxu0 %v440
  %845 = vmatpush1.msra.mxu0 %v439
  %846 = vmatprep.subr.mxu0 %v442
  %847 = vmatpush1.msra.mxu0 %v441
  %848 = vmatprep.subr.mxu0 %v444
  %849 = vmatpush1.msra.mxu0 %v443
  %850 = vmatprep.subr.mxu0 %v446
  %851 = vmatpush1.msra.mxu0 %v445
  %852 = vmatprep.subr.mxu0 %v448
  %853 = vmatpush1.msra.mxu0 %v447
  %854 = vmatprep.mubr.f32.mxu0 %v34
  %855 = vmatmul.mubr.f32.gmra.mrb[0].mxu0 %v33
  %v856 = vpop.f32.mrb[0].mxu0
  %v857 = vadd.f32 %v786, %v856
  %v858 = vpop.f32.mrb[0].mxu0
  %v859 = vadd.f32 %v788, %v858
  %860 = vdwg.mxu0
  %v861 = vadd.f32 %v857, %v172
  %v862 = vadd.f32 %v859, %v176
  %v863 = vrot.slane %v317, 4
  %v864 = vadd.f32 %v317, %v863
  %v865 = vrot.slane %v864, 2
  %v866 = vadd.f32 %v864, %v865
  %v867 = vrot.slane %v866, 1
  %v868 = vadd.f32 %v866, %v867
  %v869 = vrot.slane %v319, 4
  %v870 = vadd.f32 %v319, %v869
  %v871 = vrot.slane %v870, 2
  %v872 = vadd.f32 %v870, %v871
  %v873 = vrot.slane %v872, 1
  %v874 = vadd.f32 %v872, %v873
  %v875 = vrcp.pop 8.0
  %v876 = vmul.f32 %v868, %v875
  %v877 = vmul.f32 %v874, %v875
  %v878 = vrot.slane %v861, 4
  %v879 = vadd.f32 %v861, %v878
  %v880 = vrot.slane %v879, 2
  %v881 = vadd.f32 %v879, %v880
  %v882 = vrot.slane %v881, 1
  %v883 = vadd.f32 %v881, %v882
  %v884 = vrot.slane %v862, 4
  %v885 = vadd.f32 %v862, %v884
  %v886 = vrot.slane %v885, 2
  %v887 = vadd.f32 %v885, %v886
  %v888 = vrot.slane %v887, 1
  %v889 = vadd.f32 %v887, %v888
  %v890 = vmul.f32 %v883, %v875
  %v891 = vmul.f32 %v889, %v875
  %v892 = vadd.f32 %v876, %v890
  %v893 = vadd.f32 %v877, %v891
  %v894 = vmul.f32 %v892, 0.5
  %v895 = vmul.f32 %v893, 0.5
  %v896 = vsub.f32 %v317, %v894
  %v897 = vsub.f32 %v319, %v895
  %v898 = vmul.f32 %v896, %v896
  %v899 = vmul.f32 %v897, %v897
  %v900 = vrot.slane %v898, 4
  %v901 = vadd.f32 %v898, %v900
  %v902 = vrot.slane %v901, 2
  %v903 = vadd.f32 %v901, %v902
  %v904 = vrot.slane %v903, 1
  %v905 = vadd.f32 %v903, %v904
  %v906 = vrot.slane %v899, 4
  %v907 = vadd.f32 %v899, %v906
  %v908 = vrot.slane %v907, 2
  %v909 = vadd.f32 %v907, %v908
  %v910 = vrot.slane %v909, 1
  %v911 = vadd.f32 %v909, %v910
  %v912 = vmul.f32 %v905, %v875
  %v913 = vmul.f32 %v911, %v875
  %v914 = vsub.f32 %v861, %v894
  %v915 = vsub.f32 %v862, %v895
  %v916 = vmul.f32 %v914, %v914
  %v917 = vmul.f32 %v915, %v915
  %v918 = vrot.slane %v916, 4
  %v919 = vadd.f32 %v916, %v918
  %v920 = vrot.slane %v919, 2
  %v921 = vadd.f32 %v919, %v920
  %v922 = vrot.slane %v921, 1
  %v923 = vadd.f32 %v921, %v922
  %v924 = vrot.slane %v917, 4
  %v925 = vadd.f32 %v917, %v924
  %v926 = vrot.slane %v925, 2
  %v927 = vadd.f32 %v925, %v926
  %v928 = vrot.slane %v927, 1
  %v929 = vadd.f32 %v927, %v928
  %v930 = vmul.f32 %v923, %v875
  %v931 = vmul.f32 %v929, %v875
  %v932 = vadd.f32 %v912, %v930
  %v933 = vadd.f32 %v913, %v931
  %v934 = vmul.f32 %v932, 0.5
  %v935 = vmul.f32 %v933, 0.5
  %v936 = vadd.f32 %v934, 1e-05
  %v937 = vadd.f32 %v935, 1e-05
  %v938 = vrsqrt.pop %v936
  %v939 = vrsqrt.pop %v937
  %v940 = vld [vmem:[%s6] sm:$0x3]
  %v942 = vlaneseq
  %v943 = vshrl.u32 %v942, 7
  %v944 = vsub.s32 0, %v943
  %v945 = vrot.slane %v940, %v944
  %v946 = vlaneseq
  %v947 = vshrl.u32 %v946, 7
  %v948 = vsub.s32 1, %v947
  %v949 = vrot.slane %v940, %v948
  %v952 = vmul.f32 %v938, %v945
  %v953 = vmul.f32 %v939, %v949
  %v954 = vld [vmem:[%s7] sm:$0x3]
  %v955 = vmul.f32 %v894, %v952
  %v956 = vmul.f32 %v895, %v953
  %v959 = vcombine.low %v955, %v956
  %v961 = vunpack.c.l.s4 1966171168
  %v962 = vunpack.c.0.s8 %v961
  %v963 = vlaneseq
  %v964 = vshrl.u32 %v963, 7
  %v965 = vsub.s32 %v962, %v964
  %v966 = vrot.slane %v959, %v965
  %v968 = vunpack.c.l.s4 1966171168
  %v969 = vunpack.c.0.s8 %v968
  %v970 = vlaneseq
  %v971 = vshrl.u32 %v970, 7
  %v972 = vsub.s32 %v969, %v971
  %v973 = vrot.slane %v966, %v972
  %v975 = vsub.f32 %v954, %v973
  %v976 = vlaneseq
  %v977 = vshrl.u32 %v976, 7
  %v978 = vsub.s32 0, %v977
  %v979 = vrot.slane %v952, %v978
  %v980 = vlaneseq
  %v981 = vshrl.u32 %v980, 7
  %v982 = vsub.s32 0, %v981
  %v983 = vrot.slane %v953, %v982
  %v984 = vmul.f32 %v317, %v979
  %v985 = vmul.f32 %v319, %v983
  %v987 = vlaneseq
  %v988 = vshrl.u32 %v987, 7
  %v989 = vsub.s32 0, %v988
  %v990 = vrot.slane %v975, %v989
  %v991 = vlaneseq
  %v992 = vshrl.u32 %v991, 7
  %v993 = vsub.s32 1, %v992
  %v994 = vrot.slane %v975, %v993
  %v997 = vadd.f32 %v984, %v990
  %v998 = vadd.f32 %v985, %v994
  %v999 = vmul.f32 %v861, %v979
  %v1000 = vmul.f32 %v862, %v983
  %v1001 = vadd.f32 %v999, %v990
  %v1002 = vadd.f32 %v1000, %v994
  %vm1003 = vcmp.ge.f32.partialorder %v997, 0.0
  %vm1004 = vcmp.ge.f32.partialorder %v998, 0.0
  %v1005 = vmul.f32 %v997, 0.01
  %v1006 = vmul.f32 %v998, 0.01
  %v1007 = vsel %vm1003, %v997, %v1005
  %v1008 = vsel %vm1004, %v998, %v1006
  %1009 = vst [vmem:[%s8] sm:$0xff] %v1007
  %1010 = vst [vmem:[%s8 + $0x8] sm:$0xff] %v1008
  %vm1011 = vcmp.ge.f32.partialorder %v1001, 0.0
  %vm1012 = vcmp.ge.f32.partialorder %v1002, 0.0
  %v1013 = vmul.f32 %v1001, 0.01
  %v1014 = vmul.f32 %v1002, 0.01
  %v1015 = vsel %vm1011, %v1001, %v1013
  %v1016 = vsel %vm1012, %v1002, %v1014
  %1017 = vst [vmem:[%s9] sm:$0xff] %v1015
  %1018 = vst [vmem:[%s9 + $0x8] sm:$0xff] %v1016
  // Predicated region
  $region34: #{_lambda_.18} parent=0 // pred_check
    _
  $region35: #{_lambda_.18} parent=0 // pred_check_branch
    %1020 = sbr.rel (0) target = $region37
  $region36: #{_lambda_.18} parent=0 // pred_region
    _
  $region37: #{_lambda_.18} parent=0 // pred_fallthru
    _
  // Predicated region
  $region38: #{_lambda_.18} parent=0 // pred_check
    _
  $region39: #{_lambda_.18} parent=0 // pred_check_branch
    %1022 = sbr.rel (0) target = $region41
  $region40: #{_lambda_.18} parent=0 // pred_region
    _
  $region41: #{_lambda_.18} parent=0 // pred_fallthru
    _
  // Predicated region
  $region42: #{_lambda_.18} parent=0 // pred_check
    _
  $region43: #{_lambda_.18} parent=0 // pred_check_branch
    %1024 = sbr.rel (0) target = $region45
  $region44: #{_lambda_.18} parent=0 // pred_region
    _
  $region45: #{_lambda_.18} parent=0 // pred_fallthru
    _
  // Predicated region
  $region46: #{_lambda_.18} parent=0 // pred_check
    _
  $region47: #{_lambda_.18} parent=0 // pred_check_branch
    %1026 = sbr.rel (0) target = $region49
  $region48: #{_lambda_.18} parent=0 // pred_region
    _
  $region49: #{_lambda_.18} parent=0 // pred_fallthru
    _

// kernel: _lambda_.21
$region0: #{_lambda_.21}
  #allocation0 [shape = 'u32[]', space=smem, size = 0x4, offset = 0x4, fixed_abs, tag = 'smem constant byte address 0x4 - core index']
  #allocation1 [shape = 'u32[144,128]{1,0:T(1,128)}', space=vmem, size = 0x12000, scoped, tag = 'internal scratch']
  %s0 = inlined_call_operand.vmem [shape: f32[64,64], index: 0, kind: input, shape index: {}]
  %s1 = inlined_call_operand.vmem [shape: f32[64,64], index: 1, kind: input, shape index: {}]
  %s2 = inlined_call_operand.vmem [shape: f32[64,32], index: 2, kind: input, shape index: {}]
  %s3 = inlined_call_operand.vmem [shape: f32[64,32], index: 3, kind: input, shape index: {}]
  %s4 = inlined_call_operand.vmem [shape: f32[64,32], index: 4, kind: input, shape index: {}]
  %s5 = inlined_call_operand.vmem [shape: f32[1,32], index: 5, kind: input, shape index: {}]
  %s6 = inlined_call_operand.vmem [shape: f32[1,32], index: 6, kind: input, shape index: {}]
  %s7 = inlined_call_operand.vmem [shape: f32[1,32], index: 7, kind: input, shape index: {}]
  %s8 = inlined_call_operand.vmem [shape: f32[64,32], index: 8, kind: output, shape index: {0}]
  %s9 = inlined_call_operand.vmem [shape: f32[64,32], index: 9, kind: output, shape index: {1}]
  %10 = xla_tuple %s8, %s9
  %s11 = sld [smem:[#allocation0]]
  $region50: #{_lambda_.21} parent=0
    _
  %s13 = ssub.s32 1, %s11
  %s14 = scalar_select 0, %s13, %s11
  // Predicated region
  $region2: #{_lambda_.21} parent=0 // pred_check
    _
  $region3: #{_lambda_.21} parent=0 // pred_check_branch
    %16 = sbr.rel (0) target = $region5
  $region4: #{_lambda_.21} parent=0 // pred_region
    _
  $region5: #{_lambda_.21} parent=0 // pred_fallthru
    _
  // Predicated region
  $region6: #{_lambda_.21} parent=0 // pred_check
    _
  $region7: #{_lambda_.21} parent=0 // pred_check_branch
    %18 = sbr.rel (0) target = $region9
  $region8: #{_lambda_.21} parent=0 // pred_region
    _
  $region9: #{_lambda_.21} parent=0 // pred_fallthru
    _
  // Predicated region
  $region10: #{_lambda_.21} parent=0 // pred_check
    _
  $region11: #{_lambda_.21} parent=0 // pred_check_branch
    %20 = sbr.rel (0) target = $region13
  $region12: #{_lambda_.21} parent=0 // pred_region
    _
  $region13: #{_lambda_.21} parent=0 // pred_fallthru
    _
  // Predicated region
  $region14: #{_lambda_.21} parent=0 // pred_check
    _
  $region15: #{_lambda_.21} parent=0 // pred_check_branch
    %22 = sbr.rel (0) target = $region17
  $region16: #{_lambda_.21} parent=0 // pred_region
    _
  $region17: #{_lambda_.21} parent=0 // pred_fallthru
    _
  // Predicated region
  $region18: #{_lambda_.21} parent=0 // pred_check
    _
  $region19: #{_lambda_.21} parent=0 // pred_check_branch
    %24 = sbr.rel (0) target = $region21
  $region20: #{_lambda_.21} parent=0 // pred_region
    _
  $region21: #{_lambda_.21} parent=0 // pred_fallthru
    _
  // Predicated region
  $region22: #{_lambda_.21} parent=0 // pred_check
    _
  $region23: #{_lambda_.21} parent=0 // pred_check_branch
    %26 = sbr.rel (0) target = $region25
  $region24: #{_lambda_.21} parent=0 // pred_region
    _
  $region25: #{_lambda_.21} parent=0 // pred_fallthru
    _
  // Predicated region
  $region26: #{_lambda_.21} parent=0 // pred_check
    _
  $region27: #{_lambda_.21} parent=0 // pred_check_branch
    %28 = sbr.rel (0) target = $region29
  $region28: #{_lambda_.21} parent=0 // pred_region
    _
  $region29: #{_lambda_.21} parent=0 // pred_fallthru
    _
  // Predicated region
  $region30: #{_lambda_.21} parent=0 // pred_check
    _
  $region31: #{_lambda_.21} parent=0 // pred_check_branch
    %30 = sbr.rel (0) target = $region33
  $region32: #{_lambda_.21} parent=0 // pred_region
    _
  $region33: #{_lambda_.21} parent=0 // pred_fallthru
    _
  %v31 = vld [vmem:[%s0] sm:$0xff]
  %v32 = vld [vmem:[%s0 + $0x8] sm:$0xff]
  %v33 = vld [vmem:[%s0 + $0x10] sm:$0xff]
  %v34 = vld [vmem:[%s0 + $0x18] sm:$0xff]
  %v35 = vld [vmem:[%s0 + $0x20] sm:$0xff]
  %v36 = vld [vmem:[%s0 + $0x28] sm:$0xff]
  %v37 = vld [vmem:[%s0 + $0x30] sm:$0xff]
  %v38 = vld [vmem:[%s0 + $0x38] sm:$0xff]
  %v39 = vld [vmem:[%s1] sm:$0xff]
  %v40 = vld [vmem:[%s1 + $0x8] sm:$0xff]
  %v41 = vld [vmem:[%s1 + $0x10] sm:$0xff]
  %v42 = vld [vmem:[%s1 + $0x18] sm:$0xff]
  %v43 = vld [vmem:[%s1 + $0x20] sm:$0xff]
  %v44 = vld [vmem:[%s1 + $0x28] sm:$0xff]
  %v45 = vld [vmem:[%s1 + $0x30] sm:$0xff]
  %v46 = vld [vmem:[%s1 + $0x38] sm:$0xff]
  %v47 = vld [vmem:[%s5] sm:$0x1]
  %v48 = vld [vmem:[%s3] sm:$0xff]
  %v49 = vld [vmem:[%s3 + $0x8] sm:$0xff]
  %v50 = vld [vmem:[%s3 + $0x10] sm:$0xff]
  %v51 = vld [vmem:[%s3 + $0x18] sm:$0xff]
  %v52 = vld [vmem:[%s3 + $0x20] sm:$0xff]
  %v53 = vld [vmem:[%s3 + $0x28] sm:$0xff]
  %v54 = vld [vmem:[%s3 + $0x30] sm:$0xff]
  %v55 = vld [vmem:[%s3 + $0x38] sm:$0xff]
  %v57 = vlaneseq
  %v58 = vshrl.u32 %v57, 7
  %v59 = vsub.s32 0, %v58
  %v60 = vrot.slane %v47, %v59
  %vm62 = vcmask 523264
  %v64 = vsel %vm62, %v31, 0
  %v67 = vsel %vm62, %v32, 0
  %v70 = vsel %vm62, %v33, 0
  %v73 = vsel %vm62, %v34, 0
  %v76 = vsel %vm62, %v35, 0
  %v79 = vsel %vm62, %v36, 0
  %v82 = vsel %vm62, %v37, 0
  %v85 = vsel %vm62, %v38, 0
  %87 = vmatprep.subr.mxu0 0.0
  %88 = vmatpush1.msra.mxu0 %v48
  %89 = vmatprep.subr.mxu0 0.0
  %90 = vmatpush1.msra.mxu0 %v49
  %91 = vmatprep.subr.mxu0 0.0
  %92 = vmatpush1.msra.mxu0 %v50
  %93 = vmatprep.subr.mxu0 0.0
  %94 = vmatpush1.msra.mxu0 %v51
  %95 = vmatprep.subr.mxu0 0.0
  %96 = vmatpush1.msra.mxu0 %v52
  %97 = vmatprep.subr.mxu0 0.0
  %98 = vmatpush1.msra.mxu0 %v53
  %99 = vmatprep.subr.mxu0 0.0
  %100 = vmatpush1.msra.mxu0 %v54
  %101 = vmatprep.subr.mxu0 0.0
  %102 = vmatpush1.msra.mxu0 %v55
  %103 = vmatprep.subr.mxu0 0.0
  %104 = vmatpush1.msra.mxu0 0.0
  %105 = vmatprep.subr.mxu0 0.0
  %106 = vmatpush1.msra.mxu0 0.0
  %107 = vmatprep.subr.mxu0 0.0
  %108 = vmatpush1.msra.mxu0 0.0
  %109 = vmatprep.subr.mxu0 0.0
  %110 = vmatpush1.msra.mxu0 0.0
  %111 = vmatprep.subr.mxu0 0.0
  %112 = vmatpush1.msra.mxu0 0.0
  %113 = vmatprep.subr.mxu0 0.0
  %114 = vmatpush1.msra.mxu0 0.0
  %115 = vmatprep.subr.mxu0 0.0
  %116 = vmatpush1.msra.mxu0 0.0
  %117 = vmatprep.subr.mxu0 0.0
  %118 = vmatpush1.msra.mxu0 0.0
  %119 = vmatprep.subr.mxu0 0.0
  %120 = vmatpush1.msra.mxu0 0.0
  %121 = vmatprep.subr.mxu0 0.0
  %122 = vmatpush1.msra.mxu0 0.0
  %123 = vmatprep.subr.mxu0 0.0
  %124 = vmatpush1.msra.mxu0 0.0
  %125 = vmatprep.subr.mxu0 0.0
  %126 = vmatpush1.msra.mxu0 0.0
  %127 = vmatprep.subr.mxu0 0.0
  %128 = vmatpush1.msra.mxu0 0.0
  %129 = vmatprep.subr.mxu0 0.0
  %130 = vmatpush1.msra.mxu0 0.0
  %131 = vmatprep.subr.mxu0 0.0
  %132 = vmatpush1.msra.mxu0 0.0
  %133 = vmatprep.subr.mxu0 0.0
  %134 = vmatpush1.msra.mxu0 0.0
  %135 = vmatprep.subr.mxu0 0.0
  %136 = vmatpush1.msra.mxu0 0.0
  %137 = vmatprep.subr.mxu0 0.0
  %138 = vmatpush1.msra.mxu0 0.0
  %139 = vmatprep.subr.mxu0 0.0
  %140 = vmatpush1.msra.mxu0 0.0
  %141 = vmatprep.subr.mxu0 0.0
  %142 = vmatpush1.msra.mxu0 0.0
  %143 = vmatprep.subr.mxu0 0.0
  %144 = vmatpush1.msra.mxu0 0.0
  %145 = vmatprep.subr.mxu0 0.0
  %146 = vmatpush1.msra.mxu0 0.0
  %147 = vmatprep.subr.mxu0 0.0
  %148 = vmatpush1.msra.mxu0 0.0
  %149 = vmatprep.subr.mxu0 0.0
  %150 = vmatpush1.msra.mxu0 0.0
  %151 = vmatprep.mubr.f32.mxu0 0.0
  %152 = vmatmul.mubr.f32.gmra.mrb[0].mxu0 %v64
  %v153 = vpop.f32.mrb[0].mxu0
  %v154 = vadd.f32 %v60, %v153
  %v155 = vpop.f32.mrb[0].mxu0
  %156 = vmatprep.mubr.f32.mxu0 0.0
  %157 = vmatmul.mubr.f32.gmra.mrb[0].mxu0 %v67
  %v158 = vpop.f32.mrb[0].mxu0
  %v159 = vadd.f32 %v60, %v158
  %v160 = vpop.f32.mrb[0].mxu0
  %161 = vmatprep.mubr.f32.mxu0 0.0
  %162 = vmatmul.mubr.f32.gmra.mrb[0].mxu0 %v70
  %v163 = vpop.f32.mrb[0].mxu0
  %v164 = vadd.f32 %v60, %v163
  %v165 = vpop.f32.mrb[0].mxu0
  %166 = vmatprep.mubr.f32.mxu0 0.0
  %167 = vmatmul.mubr.f32.gmra.mrb[0].mxu0 %v73
  %v168 = vpop.f32.mrb[0].mxu0
  %v169 = vadd.f32 %v60, %v168
  %v170 = vpop.f32.mrb[0].mxu0
  %171 = vmatprep.mubr.f32.mxu0 0.0
  %172 = vmatmul.mubr.f32.gmra.mrb[0].mxu0 %v76
  %v173 = vpop.f32.mrb[0].mxu0
  %v174 = vadd.f32 %v60, %v173
  %v175 = vpop.f32.mrb[0].mxu0
  %176 = vmatprep.mubr.f32.mxu0 0.0
  %177 = vmatmul.mubr.f32.gmra.mrb[0].mxu0 %v79
  %v178 = vpop.f32.mrb[0].mxu0
  %v179 = vadd.f32 %v60, %v178
  %v180 = vpop.f32.mrb[0].mxu0
  %181 = vmatprep.mubr.f32.mxu0 0.0
  %182 = vmatmul.mubr.f32.gmra.mrb[0].mxu0 %v82
  %v183 = vpop.f32.mrb[0].mxu0
  %v184 = vadd.f32 %v60, %v183
  %v185 = vpop.f32.mrb[0].mxu0
  %186 = vmatprep.mubr.f32.mxu0 0.0
  %187 = vmatmul.mubr.f32.gmra.mrb[0].mxu0 %v85
  %v188 = vpop.f32.mrb[0].mxu0
  %v189 = vadd.f32 %v60, %v188
  %v190 = vpop.f32.mrb[0].mxu0
  %191 = vdwg.mxu0
  %v192 = vld [vmem:[%s4] sm:$0xff]
  %v193 = vld [vmem:[%s4 + $0x8] sm:$0xff]
  %v194 = vld [vmem:[%s4 + $0x10] sm:$0xff]
  %v195 = vld [vmem:[%s4 + $0x18] sm:$0xff]
  %v196 = vld [vmem:[%s4 + $0x20] sm:$0xff]
  %v197 = vld [vmem:[%s4 + $0x28] sm:$0xff]
  %v198 = vld [vmem:[%s4 + $0x30] sm:$0xff]
  %v199 = vld [vmem:[%s4 + $0x38] sm:$0xff]
  %v200 = vld [vmem:[%s2] sm:$0xff]
  %v201 = vld [vmem:[%s2 + $0x8] sm:$0xff]
  %v202 = vld [vmem:[%s2 + $0x10] sm:$0xff]
  %v203 = vld [vmem:[%s2 + $0x18] sm:$0xff]
  %v204 = vld [vmem:[%s2 + $0x20] sm:$0xff]
  %v205 = vld [vmem:[%s2 + $0x28] sm:$0xff]
  %v206 = vld [vmem:[%s2 + $0x30] sm:$0xff]
  %v207 = vld [vmem:[%s2 + $0x38] sm:$0xff]
  %v209 = vsel %vm62, %v39, 0
  %v212 = vsel %vm62, %v40, 0
  %v215 = vsel %vm62, %v41, 0
  %v218 = vsel %vm62, %v42, 0
  %v221 = vsel %vm62, %v43, 0
  %v224 = vsel %vm62, %v44, 0
  %v227 = vsel %vm62, %v45, 0
  %v230 = vsel %vm62, %v46, 0
  %232 = vmatprep.subr.mxu0 0.0
  %233 = vmatpush1.msra.mxu0 %v200
  %234 = vmatprep.subr.mxu0 0.0
  %235 = vmatpush1.msra.mxu0 %v201
  %236 = vmatprep.subr.mxu0 0.0
  %237 = vmatpush1.msra.mxu0 %v202
  %238 = vmatprep.subr.mxu0 0.0
  %239 = vmatpush1.msra.mxu0 %v203
  %240 = vmatprep.subr.mxu0 0.0
  %241 = vmatpush1.msra.mxu0 %v204
  %242 = vmatprep.subr.mxu0 0.0
  %243 = vmatpush1.msra.mxu0 %v205
  %244 = vmatprep.subr.mxu0 0.0
  %245 = vmatpush1.msra.mxu0 %v206
  %246 = vmatprep.subr.mxu0 0.0
  %247 = vmatpush1.msra.mxu0 %v207
  %248 = vmatprep.subr.mxu0 0.0
  %249 = vmatpush1.msra.mxu0 0.0
  %250 = vmatprep.subr.mxu0 0.0
  %251 = vmatpush1.msra.mxu0 0.0
  %252 = vmatprep.subr.mxu0 0.0
  %253 = vmatpush1.msra.mxu0 0.0
  %254 = vmatprep.subr.mxu0 0.0
  %255 = vmatpush1.msra.mxu0 0.0
  %256 = vmatprep.subr.mxu0 0.0
  %257 = vmatpush1.msra.mxu0 0.0
  %258 = vmatprep.subr.mxu0 0.0
  %259 = vmatpush1.msra.mxu0 0.0
  %260 = vmatprep.subr.mxu0 0.0
  %261 = vmatpush1.msra.mxu0 0.0
  %262 = vmatprep.subr.mxu0 0.0
  %263 = vmatpush1.msra.mxu0 0.0
  %264 = vmatprep.subr.mxu0 0.0
  %265 = vmatpush1.msra.mxu0 0.0
  %266 = vmatprep.subr.mxu0 0.0
  %267 = vmatpush1.msra.mxu0 0.0
  %268 = vmatprep.subr.mxu0 0.0
  %269 = vmatpush1.msra.mxu0 0.0
  %270 = vmatprep.subr.mxu0 0.0
  %271 = vmatpush1.msra.mxu0 0.0
  %272 = vmatprep.subr.mxu0 0.0
  %273 = vmatpush1.msra.mxu0 0.0
  %274 = vmatprep.subr.mxu0 0.0
  %275 = vmatpush1.msra.mxu0 0.0
  %276 = vmatprep.subr.mxu0 0.0
  %277 = vmatpush1.msra.mxu0 0.0
  %278 = vmatprep.subr.mxu0 0.0
  %279 = vmatpush1.msra.mxu0 0.0
  %280 = vmatprep.subr.mxu0 0.0
  %281 = vmatpush1.msra.mxu0 0.0
  %282 = vmatprep.subr.mxu0 0.0
  %283 = vmatpush1.msra.mxu0 0.0
  %284 = vmatprep.subr.mxu0 0.0
  %285 = vmatpush1.msra.mxu0 0.0
  %286 = vmatprep.subr.mxu0 0.0
  %287 = vmatpush1.msra.mxu0 0.0
  %288 = vmatprep.subr.mxu0 0.0
  %289 = vmatpush1.msra.mxu0 0.0
  %290 = vmatprep.subr.mxu0 0.0
  %291 = vmatpush1.msra.mxu0 0.0
  %292 = vmatprep.subr.mxu0 0.0
  %293 = vmatpush1.msra.mxu0 0.0
  %294 = vmatprep.subr.mxu0 0.0
  %295 = vmatpush1.msra.mxu0 0.0
  %296 = vmatprep.mubr.f32.mxu0 0.0
  %297 = vmatmul.mubr.f32.gmra.mrb[0].mxu0 %v209
  %v298 = vpop.f32.mrb[0].mxu0
  %v299 = vadd.f32 0.0, %v298
  %v300 = vpop.f32.mrb[0].mxu0
  %301 = vmatprep.mubr.f32.mxu0 0.0
  %302 = vmatmul.mubr.f32.gmra.mrb[0].mxu0 %v212
  %v303 = vpop.f32.mrb[0].mxu0
  %v304 = vadd.f32 0.0, %v303
  %v305 = vpop.f32.mrb[0].mxu0
  %306 = vmatprep.mubr.f32.mxu0 0.0
  %307 = vmatmul.mubr.f32.gmra.mrb[0].mxu0 %v215
  %v308 = vpop.f32.mrb[0].mxu0
  %v309 = vadd.f32 0.0, %v308
  %v310 = vpop.f32.mrb[0].mxu0
  %311 = vmatprep.mubr.f32.mxu0 0.0
  %312 = vmatmul.mubr.f32.gmra.mrb[0].mxu0 %v218
  %v313 = vpop.f32.mrb[0].mxu0
  %v314 = vadd.f32 0.0, %v313
  %v315 = vpop.f32.mrb[0].mxu0
  %316 = vmatprep.mubr.f32.mxu0 0.0
  %317 = vmatmul.mubr.f32.gmra.mrb[0].mxu0 %v221
  %v318 = vpop.f32.mrb[0].mxu0
  %v319 = vadd.f32 0.0, %v318
  %v320 = vpop.f32.mrb[0].mxu0
  %321 = vmatprep.mubr.f32.mxu0 0.0
  %322 = vmatmul.mubr.f32.gmra.mrb[0].mxu0 %v224
  %v323 = vpop.f32.mrb[0].mxu0
  %v324 = vadd.f32 0.0, %v323
  %v325 = vpop.f32.mrb[0].mxu0
  %326 = vmatprep.mubr.f32.mxu0 0.0
  %327 = vmatmul.mubr.f32.gmra.mrb[0].mxu0 %v227
  %v328 = vpop.f32.mrb[0].mxu0
  %v329 = vadd.f32 0.0, %v328
  %v330 = vpop.f32.mrb[0].mxu0
  %331 = vmatprep.mubr.f32.mxu0 0.0
  %332 = vmatmul.mubr.f32.gmra.mrb[0].mxu0 %v230
  %v333 = vpop.f32.mrb[0].mxu0
  %v334 = vadd.f32 0.0, %v333
  %v335 = vpop.f32.mrb[0].mxu0
  %336 = vdwg.mxu0
  %337 = vmatprep.subr.mxu0 0.0
  %338 = vmatpush1.msra.mxu0 %v192
  %339 = vmatprep.subr.mxu0 0.0
  %340 = vmatpush1.msra.mxu0 %v193
  %341 = vmatprep.subr.mxu0 0.0
  %342 = vmatpush1.msra.mxu0 %v194
  %343 = vmatprep.subr.mxu0 0.0
  %344 = vmatpush1.msra.mxu0 %v195
  %345 = vmatprep.subr.mxu0 0.0
  %346 = vmatpush1.msra.mxu0 %v196
  %347 = vmatprep.subr.mxu0 0.0
  %348 = vmatpush1.msra.mxu0 %v197
  %349 = vmatprep.subr.mxu0 0.0
  %350 = vmatpush1.msra.mxu0 %v198
  %351 = vmatprep.subr.mxu0 0.0
  %352 = vmatpush1.msra.mxu0 %v199
  %353 = vmatprep.subr.mxu0 0.0
  %354 = vmatpush1.msra.mxu0 0.0
  %355 = vmatprep.subr.mxu0 0.0
  %356 = vmatpush1.msra.mxu0 0.0
  %357 = vmatprep.subr.mxu0 0.0
  %358 = vmatpush1.msra.mxu0 0.0
  %359 = vmatprep.subr.mxu0 0.0
  %360 = vmatpush1.msra.mxu0 0.0
  %361 = vmatprep.subr.mxu0 0.0
  %362 = vmatpush1.msra.mxu0 0.0
  %363 = vmatprep.subr.mxu0 0.0
  %364 = vmatpush1.msra.mxu0 0.0
  %365 = vmatprep.subr.mxu0 0.0
  %366 = vmatpush1.msra.mxu0 0.0
  %367 = vmatprep.subr.mxu0 0.0
  %368 = vmatpush1.msra.mxu0 0.0
  %369 = vmatprep.subr.mxu0 0.0
  %370 = vmatpush1.msra.mxu0 0.0
  %371 = vmatprep.subr.mxu0 0.0
  %372 = vmatpush1.msra.mxu0 0.0
  %373 = vmatprep.subr.mxu0 0.0
  %374 = vmatpush1.msra.mxu0 0.0
  %375 = vmatprep.subr.mxu0 0.0
  %376 = vmatpush1.msra.mxu0 0.0
  %377 = vmatprep.subr.mxu0 0.0
  %378 = vmatpush1.msra.mxu0 0.0
  %379 = vmatprep.subr.mxu0 0.0
  %380 = vmatpush1.msra.mxu0 0.0
  %381 = vmatprep.subr.mxu0 0.0
  %382 = vmatpush1.msra.mxu0 0.0
  %383 = vmatprep.subr.mxu0 0.0
  %384 = vmatpush1.msra.mxu0 0.0
  %385 = vmatprep.subr.mxu0 0.0
  %386 = vmatpush1.msra.mxu0 0.0
  %387 = vmatprep.subr.mxu0 0.0
  %388 = vmatpush1.msra.mxu0 0.0
  %389 = vmatprep.subr.mxu0 0.0
  %390 = vmatpush1.msra.mxu0 0.0
  %391 = vmatprep.subr.mxu0 0.0
  %392 = vmatpush1.msra.mxu0 0.0
  %393 = vmatprep.subr.mxu0 0.0
  %394 = vmatpush1.msra.mxu0 0.0
  %395 = vmatprep.subr.mxu0 0.0
  %396 = vmatpush1.msra.mxu0 0.0
  %397 = vmatprep.subr.mxu0 0.0
  %398 = vmatpush1.msra.mxu0 0.0
  %399 = vmatprep.subr.mxu0 0.0
  %400 = vmatpush1.msra.mxu0 0.0
  %401 = vmatprep.mubr.f32.mxu0 0.0
  %402 = vmatmul.mubr.f32.gmra.mrb[0].mxu0 %v64
  %v403 = vpop.f32.mrb[0].mxu0
  %v404 = vadd.f32 %v299, %v403
  %v405 = vpop.f32.mrb[0].mxu0
  %406 = vmatprep.mubr.f32.mxu0 0.0
  %407 = vmatmul.mubr.f32.gmra.mrb[0].mxu0 %v67
  %v408 = vpop.f32.mrb[0].mxu0
  %v409 = vadd.f32 %v304, %v408
  %v410 = vpop.f32.mrb[0].mxu0
  %411 = vmatprep.mubr.f32.mxu0 0.0
  %412 = vmatmul.mubr.f32.gmra.mrb[0].mxu0 %v70
  %v413 = vpop.f32.mrb[0].mxu0
  %v414 = vadd.f32 %v309, %v413
  %v415 = vpop.f32.mrb[0].mxu0
  %416 = vmatprep.mubr.f32.mxu0 0.0
  %417 = vmatmul.mubr.f32.gmra.mrb[0].mxu0 %v73
  %v418 = vpop.f32.mrb[0].mxu0
  %v419 = vadd.f32 %v314, %v418
  %v420 = vpop.f32.mrb[0].mxu0
  %421 = vmatprep.mubr.f32.mxu0 0.0
  %422 = vmatmul.mubr.f32.gmra.mrb[0].mxu0 %v76
  %v423 = vpop.f32.mrb[0].mxu0
  %v424 = vadd.f32 %v319, %v423
  %v425 = vpop.f32.mrb[0].mxu0
  %426 = vmatprep.mubr.f32.mxu0 0.0
  %427 = vmatmul.mubr.f32.gmra.mrb[0].mxu0 %v79
  %v428 = vpop.f32.mrb[0].mxu0
  %v429 = vadd.f32 %v324, %v428
  %v430 = vpop.f32.mrb[0].mxu0
  %431 = vmatprep.mubr.f32.mxu0 0.0
  %432 = vmatmul.mubr.f32.gmra.mrb[0].mxu0 %v82
  %v433 = vpop.f32.mrb[0].mxu0
  %v434 = vadd.f32 %v329, %v433
  %v435 = vpop.f32.mrb[0].mxu0
  %436 = vmatprep.mubr.f32.mxu0 0.0
  %437 = vmatmul.mubr.f32.gmra.mrb[0].mxu0 %v85
  %v438 = vpop.f32.mrb[0].mxu0
  %v439 = vadd.f32 %v334, %v438
  %v440 = vpop.f32.mrb[0].mxu0
  %441 = vdwg.mxu0
  %v442 = vadd.f32 %v404, %v60
  %v443 = vadd.f32 %v409, %v60
  %v444 = vadd.f32 %v414, %v60
  %v445 = vadd.f32 %v419, %v60
  %v446 = vadd.f32 %v424, %v60
  %v447 = vadd.f32 %v429, %v60
  %v448 = vadd.f32 %v434, %v60
  %v449 = vadd.f32 %v439, %v60
  %vm450 = vcmask 261120
  %v451 = vsel %vm450, %v154, 0.0
  %v452 = vsel %vm450, %v159, 0.0
  %v453 = vadd.f32 %v451, %v452
  %v454 = vsel %vm450, %v164, 0.0
  %v455 = vadd.f32 %v453, %v454
  %v456 = vsel %vm450, %v169, 0.0
  %v457 = vadd.f32 %v455, %v456
  %v458 = vsel %vm450, %v174, 0.0
  %v459 = vadd.f32 %v457, %v458
  %v460 = vsel %vm450, %v179, 0.0
  %v461 = vadd.f32 %v459, %v460
  %v462 = vsel %vm450, %v184, 0.0
  %v463 = vadd.f32 %v461, %v462
  %v464 = vsel %vm450, %v189, 0.0
  %v465 = vadd.f32 %v463, %v464
  %v466 = vrot.slane %v465, 4
  %v467 = vadd.f32 %v465, %v466
  %v468 = vrot.slane %v467, 2
  %v469 = vadd.f32 %v467, %v468
  %v470 = vrot.slane %v469, 1
  %v471 = vadd.f32 %v469, %v470
  %v472 = vrcp.pop 64.0
  %v473 = vmul.f32 %v471, %v472
  %v474 = vsel %vm450, %v442, 0.0
  %v475 = vsel %vm450, %v443, 0.0
  %v476 = vadd.f32 %v474, %v475
  %v477 = vsel %vm450, %v444, 0.0
  %v478 = vadd.f32 %v476, %v477
  %v479 = vsel %vm450, %v445, 0.0
  %v480 = vadd.f32 %v478, %v479
  %v481 = vsel %vm450, %v446, 0.0
  %v482 = vadd.f32 %v480, %v481
  %v483 = vsel %vm450, %v447, 0.0
  %v484 = vadd.f32 %v482, %v483
  %v485 = vsel %vm450, %v448, 0.0
  %v486 = vadd.f32 %v484, %v485
  %v487 = vsel %vm450, %v449, 0.0
  %v488 = vadd.f32 %v486, %v487
  %v489 = vrot.slane %v488, 4
  %v490 = vadd.f32 %v488, %v489
  %v491 = vrot.slane %v490, 2
  %v492 = vadd.f32 %v490, %v491
  %v493 = vrot.slane %v492, 1
  %v494 = vadd.f32 %v492, %v493
  %v495 = vmul.f32 %v494, %v472
  %v496 = vadd.f32 %v473, %v495
  %v497 = vmul.f32 %v496, 0.5
  %v498 = vsub.f32 %v154, %v497
  %v499 = vsub.f32 %v159, %v497
  %v500 = vsub.f32 %v164, %v497
  %v501 = vsub.f32 %v169, %v497
  %v502 = vsub.f32 %v174, %v497
  %v503 = vsub.f32 %v179, %v497
  %v504 = vsub.f32 %v184, %v497
  %v505 = vsub.f32 %v189, %v497
  %v506 = vmul.f32 %v498, %v498
  %v507 = vmul.f32 %v499, %v499
  %v508 = vmul.f32 %v500, %v500
  %v509 = vmul.f32 %v501, %v501
  %v510 = vmul.f32 %v502, %v502
  %v511 = vmul.f32 %v503, %v503
  %v512 = vmul.f32 %v504, %v504
  %v513 = vmul.f32 %v505, %v505
  %v514 = vsel %vm450, %v506, 0.0
  %v515 = vsel %vm450, %v507, 0.0
  %v516 = vadd.f32 %v514, %v515
  %v517 = vsel %vm450, %v508, 0.0
  %v518 = vadd.f32 %v516, %v517
  %v519 = vsel %vm450, %v509, 0.0
  %v520 = vadd.f32 %v518, %v519
  %v521 = vsel %vm450, %v510, 0.0
  %v522 = vadd.f32 %v520, %v521
  %v523 = vsel %vm450, %v511, 0.0
  %v524 = vadd.f32 %v522, %v523
  %v525 = vsel %vm450, %v512, 0.0
  %v526 = vadd.f32 %v524, %v525
  %v527 = vsel %vm450, %v513, 0.0
  %v528 = vadd.f32 %v526, %v527
  %v529 = vrot.slane %v528, 4
  %v530 = vadd.f32 %v528, %v529
  %v531 = vrot.slane %v530, 2
  %v532 = vadd.f32 %v530, %v531
  %v533 = vrot.slane %v532, 1
  %v534 = vadd.f32 %v532, %v533
  %v535 = vmul.f32 %v534, %v472
  %v536 = vsub.f32 %v442, %v497
  %v537 = vsub.f32 %v443, %v497
  %v538 = vsub.f32 %v444, %v497
  %v539 = vsub.f32 %v445, %v497
  %v540 = vsub.f32 %v446, %v497
  %v541 = vsub.f32 %v447, %v497
  %v542 = vsub.f32 %v448, %v497
  %v543 = vsub.f32 %v449, %v497
  %v544 = vmul.f32 %v536, %v536
  %v545 = vmul.f32 %v537, %v537
  %v546 = vmul.f32 %v538, %v538
  %v547 = vmul.f32 %v539, %v539
  %v548 = vmul.f32 %v540, %v540
  %v549 = vmul.f32 %v541, %v541
  %v550 = vmul.f32 %v542, %v542
  %v551 = vmul.f32 %v543, %v543
  %v552 = vsel %vm450, %v544, 0.0
  %v553 = vsel %vm450, %v545, 0.0
  %v554 = vadd.f32 %v552, %v553
  %v555 = vsel %vm450, %v546, 0.0
  %v556 = vadd.f32 %v554, %v555
  %v557 = vsel %vm450, %v547, 0.0
  %v558 = vadd.f32 %v556, %v557
  %v559 = vsel %vm450, %v548, 0.0
  %v560 = vadd.f32 %v558, %v559
  %v561 = vsel %vm450, %v549, 0.0
  %v562 = vadd.f32 %v560, %v561
  %v563 = vsel %vm450, %v550, 0.0
  %v564 = vadd.f32 %v562, %v563
  %v565 = vsel %vm450, %v551, 0.0
  %v566 = vadd.f32 %v564, %v565
  %v567 = vrot.slane %v566, 4
  %v568 = vadd.f32 %v566, %v567
  %v569 = vrot.slane %v568, 2
  %v570 = vadd.f32 %v568, %v569
  %v571 = vrot.slane %v570, 1
  %v572 = vadd.f32 %v570, %v571
  %v573 = vmul.f32 %v572, %v472
  %v574 = vadd.f32 %v535, %v573
  %v575 = vmul.f32 %v574, 0.5
  %v576 = vadd.f32 %v575, 1e-05
  %v577 = vrsqrt.pop %v576
  %v578 = vld [vmem:[%s6] sm:$0x1]
  %v579 = vmul.f32 %v577, %v578
  %v580 = vld [vmem:[%s7] sm:$0x1]
  %v581 = vmul.f32 %v497, %v579
  %v582 = vsub.f32 %v580, %v581
  %v583 = vlaneseq
  %v584 = vshrl.u32 %v583, 7
  %v585 = vsub.s32 0, %v584
  %v586 = vrot.slane %v579, %v585
  %v587 = vmul.f32 %v154, %v586
  %v588 = vmul.f32 %v159, %v586
  %v589 = vmul.f32 %v164, %v586
  %v590 = vmul.f32 %v169, %v586
  %v591 = vmul.f32 %v174, %v586
  %v592 = vmul.f32 %v179, %v586
  %v593 = vmul.f32 %v184, %v586
  %v594 = vmul.f32 %v189, %v586
  %v596 = vlaneseq
  %v597 = vshrl.u32 %v596, 7
  %v598 = vsub.s32 0, %v597
  %v599 = vrot.slane %v582, %v598
  %v601 = vadd.f32 %v587, %v599
  %v602 = vadd.f32 %v588, %v599
  %v603 = vadd.f32 %v589, %v599
  %v604 = vadd.f32 %v590, %v599
  %v605 = vadd.f32 %v591, %v599
  %v606 = vadd.f32 %v592, %v599
  %v607 = vadd.f32 %v593, %v599
  %v608 = vadd.f32 %v594, %v599
  %v609 = vmul.f32 %v442, %v586
  %v610 = vmul.f32 %v443, %v586
  %v611 = vmul.f32 %v444, %v586
  %v612 = vmul.f32 %v445, %v586
  %v613 = vmul.f32 %v446, %v586
  %v614 = vmul.f32 %v447, %v586
  %v615 = vmul.f32 %v448, %v586
  %v616 = vmul.f32 %v449, %v586
  %v617 = vadd.f32 %v609, %v599
  %v618 = vadd.f32 %v610, %v599
  %v619 = vadd.f32 %v611, %v599
  %v620 = vadd.f32 %v612, %v599
  %v621 = vadd.f32 %v613, %v599
  %v622 = vadd.f32 %v614, %v599
  %v623 = vadd.f32 %v615, %v599
  %v624 = vadd.f32 %v616, %v599
  %vm625 = vcmp.ge.f32.partialorder %v601, 0.0
  %vm626 = vcmp.ge.f32.partialorder %v602, 0.0
  %vm627 = vcmp.ge.f32.partialorder %v603, 0.0
  %vm628 = vcmp.ge.f32.partialorder %v604, 0.0
  %vm629 = vcmp.ge.f32.partialorder %v605, 0.0
  %vm630 = vcmp.ge.f32.partialorder %v606, 0.0
  %vm631 = vcmp.ge.f32.partialorder %v607, 0.0
  %vm632 = vcmp.ge.f32.partialorder %v608, 0.0
  %v633 = vmul.f32 %v601, 0.01
  %v634 = vmul.f32 %v602, 0.01
  %v635 = vmul.f32 %v603, 0.01
  %v636 = vmul.f32 %v604, 0.01
  %v637 = vmul.f32 %v605, 0.01
  %v638 = vmul.f32 %v606, 0.01
  %v639 = vmul.f32 %v607, 0.01
  %v640 = vmul.f32 %v608, 0.01
  %v641 = vsel %vm625, %v601, %v633
  %v642 = vsel %vm626, %v602, %v634
  %v643 = vsel %vm627, %v603, %v635
  %v644 = vsel %vm628, %v604, %v636
  %v645 = vsel %vm629, %v605, %v637
  %v646 = vsel %vm630, %v606, %v638
  %v647 = vsel %vm631, %v607, %v639
  %v648 = vsel %vm632, %v608, %v640
  %649 = vst.msk [vmem:[%s8] sm:$0xff] %vm450, %v641
  %650 = vst.msk [vmem:[%s8 + $0x8] sm:$0xff] %vm450, %v642
  %651 = vst.msk [vmem:[%s8 + $0x10] sm:$0xff] %vm450, %v643
  %652 = vst.msk [vmem:[%s8 + $0x18] sm:$0xff] %vm450, %v644
  %653 = vst.msk [vmem:[%s8 + $0x20] sm:$0xff] %vm450, %v645
  %654 = vst.msk [vmem:[%s8 + $0x28] sm:$0xff] %vm450, %v646
  %655 = vst.msk [vmem:[%s8 + $0x30] sm:$0xff] %vm450, %v647
  %656 = vst.msk [vmem:[%s8 + $0x38] sm:$0xff] %vm450, %v648
  %vm657 = vcmp.ge.f32.partialorder %v617, 0.0
  %vm658 = vcmp.ge.f32.partialorder %v618, 0.0
  %vm659 = vcmp.ge.f32.partialorder %v619, 0.0
  %vm660 = vcmp.ge.f32.partialorder %v620, 0.0
  %vm661 = vcmp.ge.f32.partialorder %v621, 0.0
  %vm662 = vcmp.ge.f32.partialorder %v622, 0.0
  %vm663 = vcmp.ge.f32.partialorder %v623, 0.0
  %vm664 = vcmp.ge.f32.partialorder %v624, 0.0
  %v665 = vmul.f32 %v617, 0.01
  %v666 = vmul.f32 %v618, 0.01
  %v667 = vmul.f32 %v619, 0.01
  %v668 = vmul.f32 %v620, 0.01
  %v669 = vmul.f32 %v621, 0.01
  %v670 = vmul.f32 %v622, 0.01
  %v671 = vmul.f32 %v623, 0.01
  %v672 = vmul.f32 %v624, 0.01
  %v673 = vsel %vm657, %v617, %v665
  %v674 = vsel %vm658, %v618, %v666
  %v675 = vsel %vm659, %v619, %v667
  %v676 = vsel %vm660, %v620, %v668
  %v677 = vsel %vm661, %v621, %v669
  %v678 = vsel %vm662, %v622, %v670
  %v679 = vsel %vm663, %v623, %v671
  %v680 = vsel %vm664, %v624, %v672
  %681 = vst.msk [vmem:[%s9] sm:$0xff] %vm450, %v673
  %682 = vst.msk [vmem:[%s9 + $0x8] sm:$0xff] %vm450, %v674
  %683 = vst.msk [vmem:[%s9 + $0x10] sm:$0xff] %vm450, %v675
  %684 = vst.msk [vmem:[%s9 + $0x18] sm:$0xff] %vm450, %v676
  %685 = vst.msk [vmem:[%s9 + $0x20] sm:$0xff] %vm450, %v677
  %686 = vst.msk [vmem:[%s9 + $0x28] sm:$0xff] %vm450, %v678
  %687 = vst.msk [vmem:[%s9 + $0x30] sm:$0xff] %vm450, %v679
  %688 = vst.msk [vmem:[%s9 + $0x38] sm:$0xff] %vm450, %v680
  // Predicated region
  $region34: #{_lambda_.21} parent=0 // pred_check
    _
  $region35: #{_lambda_.21} parent=0 // pred_check_branch
    %690 = sbr.rel (0) target = $region37
  $region36: #{_lambda_.21} parent=0 // pred_region
    _
  $region37: #{_lambda_.21} parent=0 // pred_fallthru
    _
  // Predicated region
  $region38: #{_lambda_.21} parent=0 // pred_check
    _
  $region39: #{_lambda_.21} parent=0 // pred_check_branch
    %692 = sbr.rel (0) target = $region41
  $region40: #{_lambda_.21} parent=0 // pred_region
    _
  $region41: #{_lambda_.21} parent=0 // pred_fallthru
    _
  // Predicated region
  $region42: #{_lambda_.21} parent=0 // pred_check
    _
  $region43: #{_lambda_.21} parent=0 // pred_check_branch
    %694 = sbr.rel (0) target = $region45
  $region44: #{_lambda_.21} parent=0 // pred_region
    _
  $region45: #{_lambda_.21} parent=0 // pred_fallthru
    _
  // Predicated region
  $region46: #{_lambda_.21} parent=0 // pred_check
    _
  $region47: #{_lambda_.21} parent=0 // pred_check_branch
    %696 = sbr.rel (0) target = $region49
  $region48: #{_lambda_.21} parent=0 // pred_region
    _
  $region49: #{_lambda_.21} parent=0 // pred_fallthru
    _

// kernel: _lambda_.22
$region0: #{_lambda_.22}
  #allocation0 [shape = 'u32[]', space=smem, size = 0x4, offset = 0x4, fixed_abs, tag = 'smem constant byte address 0x4 - core index']
  #allocation1 [shape = 'u32[144,128]{1,0:T(1,128)}', space=vmem, size = 0x12000, scoped, tag = 'internal scratch']
  %s0 = inlined_call_operand.vmem [shape: f32[128,32], index: 0, kind: input, shape index: {}]
  %s1 = inlined_call_operand.vmem [shape: f32[128,32], index: 1, kind: input, shape index: {}]
  %s2 = inlined_call_operand.vmem [shape: f32[32,32], index: 2, kind: input, shape index: {}]
  %s3 = inlined_call_operand.vmem [shape: f32[32,32], index: 3, kind: input, shape index: {}]
  %s4 = inlined_call_operand.vmem [shape: f32[32,32], index: 4, kind: input, shape index: {}]
  %s5 = inlined_call_operand.vmem [shape: f32[1,32], index: 5, kind: input, shape index: {}]
  %s6 = inlined_call_operand.vmem [shape: f32[1,32], index: 6, kind: input, shape index: {}]
  %s7 = inlined_call_operand.vmem [shape: f32[1,32], index: 7, kind: input, shape index: {}]
  %s8 = inlined_call_operand.vmem [shape: f32[128,32], index: 8, kind: output, shape index: {0}]
  %s9 = inlined_call_operand.vmem [shape: f32[128,32], index: 9, kind: output, shape index: {1}]
  %10 = xla_tuple %s8, %s9
  %s11 = sld [smem:[#allocation0]]
  $region50: #{_lambda_.22} parent=0
    _
  %s13 = ssub.s32 1, %s11
  %s14 = scalar_select 0, %s13, %s11
  // Predicated region
  $region2: #{_lambda_.22} parent=0 // pred_check
    _
  $region3: #{_lambda_.22} parent=0 // pred_check_branch
    %16 = sbr.rel (0) target = $region5
  $region4: #{_lambda_.22} parent=0 // pred_region
    _
  $region5: #{_lambda_.22} parent=0 // pred_fallthru
    _
  // Predicated region
  $region6: #{_lambda_.22} parent=0 // pred_check
    _
  $region7: #{_lambda_.22} parent=0 // pred_check_branch
    %18 = sbr.rel (0) target = $region9
  $region8: #{_lambda_.22} parent=0 // pred_region
    _
  $region9: #{_lambda_.22} parent=0 // pred_fallthru
    _
  // Predicated region
  $region10: #{_lambda_.22} parent=0 // pred_check
    _
  $region11: #{_lambda_.22} parent=0 // pred_check_branch
    %20 = sbr.rel (0) target = $region13
  $region12: #{_lambda_.22} parent=0 // pred_region
    _
  $region13: #{_lambda_.22} parent=0 // pred_fallthru
    _
  // Predicated region
  $region14: #{_lambda_.22} parent=0 // pred_check
    _
  $region15: #{_lambda_.22} parent=0 // pred_check_branch
    %22 = sbr.rel (0) target = $region17
  $region16: #{_lambda_.22} parent=0 // pred_region
    _
  $region17: #{_lambda_.22} parent=0 // pred_fallthru
    _
  // Predicated region
  $region18: #{_lambda_.22} parent=0 // pred_check
    _
  $region19: #{_lambda_.22} parent=0 // pred_check_branch
    %24 = sbr.rel (0) target = $region21
  $region20: #{_lambda_.22} parent=0 // pred_region
    _
  $region21: #{_lambda_.22} parent=0 // pred_fallthru
    _
  // Predicated region
  $region22: #{_lambda_.22} parent=0 // pred_check
    _
  $region23: #{_lambda_.22} parent=0 // pred_check_branch
    %26 = sbr.rel (0) target = $region25
  $region24: #{_lambda_.22} parent=0 // pred_region
    _
  $region25: #{_lambda_.22} parent=0 // pred_fallthru
    _
  // Predicated region
  $region26: #{_lambda_.22} parent=0 // pred_check
    _
  $region27: #{_lambda_.22} parent=0 // pred_check_branch
    %28 = sbr.rel (0) target = $region29
  $region28: #{_lambda_.22} parent=0 // pred_region
    _
  $region29: #{_lambda_.22} parent=0 // pred_fallthru
    _
  // Predicated region
  $region30: #{_lambda_.22} parent=0 // pred_check
    _
  $region31: #{_lambda_.22} parent=0 // pred_check_branch
    %30 = sbr.rel (0) target = $region33
  $region32: #{_lambda_.22} parent=0 // pred_region
    _
  $region33: #{_lambda_.22} parent=0 // pred_fallthru
    _
  %v31 = vld [vmem:[%s0] sm:$0xff]
  %v32 = vld [vmem:[%s0 + $0x8] sm:$0xff]
  %v33 = vld [vmem:[%s0 + $0x10] sm:$0xff]
  %v34 = vld [vmem:[%s0 + $0x18] sm:$0xff]
  %v35 = vld [vmem:[%s0 + $0x20] sm:$0xff]
  %v36 = vld [vmem:[%s0 + $0x28] sm:$0xff]
  %v37 = vld [vmem:[%s0 + $0x30] sm:$0xff]
  %v38 = vld [vmem:[%s0 + $0x38] sm:$0xff]
  %v39 = vld [vmem:[%s0 + $0x40] sm:$0xff]
  %v40 = vld [vmem:[%s0 + $0x48] sm:$0xff]
  %v41 = vld [vmem:[%s0 + $0x50] sm:$0xff]
  %v42 = vld [vmem:[%s0 + $0x58] sm:$0xff]
  %v43 = vld [vmem:[%s0 + $0x60] sm:$0xff]
  %v44 = vld [vmem:[%s0 + $0x68] sm:$0xff]
  %v45 = vld [vmem:[%s0 + $0x70] sm:$0xff]
  %v46 = vld [vmem:[%s0 + $0x78] sm:$0xff]
  %v47 = vld [vmem:[%s1] sm:$0xff]
  %v48 = vld [vmem:[%s1 + $0x8] sm:$0xff]
  %v49 = vld [vmem:[%s1 + $0x10] sm:$0xff]
  %v50 = vld [vmem:[%s1 + $0x18] sm:$0xff]
  %v51 = vld [vmem:[%s1 + $0x20] sm:$0xff]
  %v52 = vld [vmem:[%s1 + $0x28] sm:$0xff]
  %v53 = vld [vmem:[%s1 + $0x30] sm:$0xff]
  %v54 = vld [vmem:[%s1 + $0x38] sm:$0xff]
  %v55 = vld [vmem:[%s1 + $0x40] sm:$0xff]
  %v56 = vld [vmem:[%s1 + $0x48] sm:$0xff]
  %v57 = vld [vmem:[%s1 + $0x50] sm:$0xff]
  %v58 = vld [vmem:[%s1 + $0x58] sm:$0xff]
  %v59 = vld [vmem:[%s1 + $0x60] sm:$0xff]
  %v60 = vld [vmem:[%s1 + $0x68] sm:$0xff]
  %v61 = vld [vmem:[%s1 + $0x70] sm:$0xff]
  %v62 = vld [vmem:[%s1 + $0x78] sm:$0xff]
  %v63 = vld [vmem:[%s5] sm:$0x1]
  %v64 = vld [vmem:[%s3] sm:$0xff]
  %v65 = vld [vmem:[%s3 + $0x8] sm:$0xff]
  %v66 = vld [vmem:[%s3 + $0x10] sm:$0xff]
  %v67 = vld [vmem:[%s3 + $0x18] sm:$0xff]
  %v69 = vlaneseq
  %v70 = vshrl.u32 %v69, 7
  %v71 = vsub.s32 0, %v70
  %v72 = vrot.slane %v63, %v71
  %vm74 = vcmask 261120
  %v76 = vsel %vm74, %v31, 0
  %v79 = vsel %vm74, %v32, 0
  %v82 = vsel %vm74, %v33, 0
  %v85 = vsel %vm74, %v34, 0
  %v88 = vsel %vm74, %v35, 0
  %v91 = vsel %vm74, %v36, 0
  %v94 = vsel %vm74, %v37, 0
  %v97 = vsel %vm74, %v38, 0
  %v100 = vsel %vm74, %v39, 0
  %v103 = vsel %vm74, %v40, 0
  %v106 = vsel %vm74, %v41, 0
  %v109 = vsel %vm74, %v42, 0
  %v112 = vsel %vm74, %v43, 0
  %v115 = vsel %vm74, %v44, 0
  %v118 = vsel %vm74, %v45, 0
  %v121 = vsel %vm74, %v46, 0
  %123 = vmatprep.subr.mxu0 0.0
  %124 = vmatpush1.msra.mxu0 %v64
  %125 = vmatprep.subr.mxu0 0.0
  %126 = vmatpush1.msra.mxu0 %v65
  %127 = vmatprep.subr.mxu0 0.0
  %128 = vmatpush1.msra.mxu0 %v66
  %129 = vmatprep.subr.mxu0 0.0
  %130 = vmatpush1.msra.mxu0 %v67
  %131 = vmatprep.subr.mxu0 0.0
  %132 = vmatpush1.msra.mxu0 0.0
  %133 = vmatprep.subr.mxu0 0.0
  %134 = vmatpush1.msra.mxu0 0.0
  %135 = vmatprep.subr.mxu0 0.0
  %136 = vmatpush1.msra.mxu0 0.0
  %137 = vmatprep.subr.mxu0 0.0
  %138 = vmatpush1.msra.mxu0 0.0
  %139 = vmatprep.subr.mxu0 0.0
  %140 = vmatpush1.msra.mxu0 0.0
  %141 = vmatprep.subr.mxu0 0.0
  %142 = vmatpush1.msra.mxu0 0.0
  %143 = vmatprep.subr.mxu0 0.0
  %144 = vmatpush1.msra.mxu0 0.0
  %145 = vmatprep.subr.mxu0 0.0
  %146 = vmatpush1.msra.mxu0 0.0
  %147 = vmatprep.subr.mxu0 0.0
  %148 = vmatpush1.msra.mxu0 0.0
  %149 = vmatprep.subr.mxu0 0.0
  %150 = vmatpush1.msra.mxu0 0.0
  %151 = vmatprep.subr.mxu0 0.0
  %152 = vmatpush1.msra.mxu0 0.0
  %153 = vmatprep.subr.mxu0 0.0
  %154 = vmatpush1.msra.mxu0 0.0
  %155 = vmatprep.subr.mxu0 0.0
  %156 = vmatpush1.msra.mxu0 0.0
  %157 = vmatprep.subr.mxu0 0.0
  %158 = vmatpush1.msra.mxu0 0.0
  %159 = vmatprep.subr.mxu0 0.0
  %160 = vmatpush1.msra.mxu0 0.0
  %161 = vmatprep.subr.mxu0 0.0
  %162 = vmatpush1.msra.mxu0 0.0
  %163 = vmatprep.subr.mxu0 0.0
  %164 = vmatpush1.msra.mxu0 0.0
  %165 = vmatprep.subr.mxu0 0.0
  %166 = vmatpush1.msra.mxu0 0.0
  %167 = vmatprep.subr.mxu0 0.0
  %168 = vmatpush1.msra.mxu0 0.0
  %169 = vmatprep.subr.mxu0 0.0
  %170 = vmatpush1.msra.mxu0 0.0
  %171 = vmatprep.subr.mxu0 0.0
  %172 = vmatpush1.msra.mxu0 0.0
  %173 = vmatprep.subr.mxu0 0.0
  %174 = vmatpush1.msra.mxu0 0.0
  %175 = vmatprep.subr.mxu0 0.0
  %176 = vmatpush1.msra.mxu0 0.0
  %177 = vmatprep.subr.mxu0 0.0
  %178 = vmatpush1.msra.mxu0 0.0
  %179 = vmatprep.subr.mxu0 0.0
  %180 = vmatpush1.msra.mxu0 0.0
  %181 = vmatprep.subr.mxu0 0.0
  %182 = vmatpush1.msra.mxu0 0.0
  %183 = vmatprep.subr.mxu0 0.0
  %184 = vmatpush1.msra.mxu0 0.0
  %185 = vmatprep.subr.mxu0 0.0
  %186 = vmatpush1.msra.mxu0 0.0
  %187 = vmatprep.mubr.f32.mxu0 0.0
  %188 = vmatmul.mubr.f32.gmra.mrb[0].mxu0 %v76
  %v189 = vpop.f32.mrb[0].mxu0
  %v190 = vadd.f32 %v72, %v189
  %v191 = vpop.f32.mrb[0].mxu0
  %192 = vmatprep.mubr.f32.mxu0 0.0
  %193 = vmatmul.mubr.f32.gmra.mrb[0].mxu0 %v79
  %v194 = vpop.f32.mrb[0].mxu0
  %v195 = vadd.f32 %v72, %v194
  %v196 = vpop.f32.mrb[0].mxu0
  %197 = vmatprep.mubr.f32.mxu0 0.0
  %198 = vmatmul.mubr.f32.gmra.mrb[0].mxu0 %v82
  %v199 = vpop.f32.mrb[0].mxu0
  %v200 = vadd.f32 %v72, %v199
  %v201 = vpop.f32.mrb[0].mxu0
  %202 = vmatprep.mubr.f32.mxu0 0.0
  %203 = vmatmul.mubr.f32.gmra.mrb[0].mxu0 %v85
  %v204 = vpop.f32.mrb[0].mxu0
  %v205 = vadd.f32 %v72, %v204
  %v206 = vpop.f32.mrb[0].mxu0
  %207 = vmatprep.mubr.f32.mxu0 0.0
  %208 = vmatmul.mubr.f32.gmra.mrb[0].mxu0 %v88
  %v209 = vpop.f32.mrb[0].mxu0
  %v210 = vadd.f32 %v72, %v209
  %v211 = vpop.f32.mrb[0].mxu0
  %212 = vmatprep.mubr.f32.mxu0 0.0
  %213 = vmatmul.mubr.f32.gmra.mrb[0].mxu0 %v91
  %v214 = vpop.f32.mrb[0].mxu0
  %v215 = vadd.f32 %v72, %v214
  %v216 = vpop.f32.mrb[0].mxu0
  %217 = vmatprep.mubr.f32.mxu0 0.0
  %218 = vmatmul.mubr.f32.gmra.mrb[0].mxu0 %v94
  %v219 = vpop.f32.mrb[0].mxu0
  %v220 = vadd.f32 %v72, %v219
  %v221 = vpop.f32.mrb[0].mxu0
  %222 = vmatprep.mubr.f32.mxu0 0.0
  %223 = vmatmul.mubr.f32.gmra.mrb[0].mxu0 %v97
  %v224 = vpop.f32.mrb[0].mxu0
  %v225 = vadd.f32 %v72, %v224
  %v226 = vpop.f32.mrb[0].mxu0
  %227 = vmatprep.mubr.f32.mxu0 0.0
  %228 = vmatmul.mubr.f32.gmra.mrb[0].mxu0 %v100
  %v229 = vpop.f32.mrb[0].mxu0
  %v230 = vadd.f32 %v72, %v229
  %v231 = vpop.f32.mrb[0].mxu0
  %232 = vmatprep.mubr.f32.mxu0 0.0
  %233 = vmatmul.mubr.f32.gmra.mrb[0].mxu0 %v103
  %v234 = vpop.f32.mrb[0].mxu0
  %v235 = vadd.f32 %v72, %v234
  %v236 = vpop.f32.mrb[0].mxu0
  %237 = vmatprep.mubr.f32.mxu0 0.0
  %238 = vmatmul.mubr.f32.gmra.mrb[0].mxu0 %v106
  %v239 = vpop.f32.mrb[0].mxu0
  %v240 = vadd.f32 %v72, %v239
  %v241 = vpop.f32.mrb[0].mxu0
  %242 = vmatprep.mubr.f32.mxu0 0.0
  %243 = vmatmul.mubr.f32.gmra.mrb[0].mxu0 %v109
  %v244 = vpop.f32.mrb[0].mxu0
  %v245 = vadd.f32 %v72, %v244
  %v246 = vpop.f32.mrb[0].mxu0
  %247 = vmatprep.mubr.f32.mxu0 0.0
  %248 = vmatmul.mubr.f32.gmra.mrb[0].mxu0 %v112
  %v249 = vpop.f32.mrb[0].mxu0
  %v250 = vadd.f32 %v72, %v249
  %v251 = vpop.f32.mrb[0].mxu0
  %252 = vmatprep.mubr.f32.mxu0 0.0
  %253 = vmatmul.mubr.f32.gmra.mrb[0].mxu0 %v115
  %v254 = vpop.f32.mrb[0].mxu0
  %v255 = vadd.f32 %v72, %v254
  %v256 = vpop.f32.mrb[0].mxu0
  %257 = vmatprep.mubr.f32.mxu0 0.0
  %258 = vmatmul.mubr.f32.gmra.mrb[0].mxu0 %v118
  %v259 = vpop.f32.mrb[0].mxu0
  %v260 = vadd.f32 %v72, %v259
  %v261 = vpop.f32.mrb[0].mxu0
  %262 = vmatprep.mubr.f32.mxu0 0.0
  %263 = vmatmul.mubr.f32.gmra.mrb[0].mxu0 %v121
  %v264 = vpop.f32.mrb[0].mxu0
  %v265 = vadd.f32 %v72, %v264
  %v266 = vpop.f32.mrb[0].mxu0
  %267 = vdwg.mxu0
  %v268 = vld [vmem:[%s4] sm:$0xff]
  %v269 = vld [vmem:[%s4 + $0x8] sm:$0xff]
  %v270 = vld [vmem:[%s4 + $0x10] sm:$0xff]
  %v271 = vld [vmem:[%s4 + $0x18] sm:$0xff]
  %v272 = vld [vmem:[%s2] sm:$0xff]
  %v273 = vld [vmem:[%s2 + $0x8] sm:$0xff]
  %v274 = vld [vmem:[%s2 + $0x10] sm:$0xff]
  %v275 = vld [vmem:[%s2 + $0x18] sm:$0xff]
  %v277 = vsel %vm74, %v47, 0
  %v280 = vsel %vm74, %v48, 0
  %v283 = vsel %vm74, %v49, 0
  %v286 = vsel %vm74, %v50, 0
  %v289 = vsel %vm74, %v51, 0
  %v292 = vsel %vm74, %v52, 0
  %v295 = vsel %vm74, %v53, 0
  %v298 = vsel %vm74, %v54, 0
  %v301 = vsel %vm74, %v55, 0
  %v304 = vsel %vm74, %v56, 0
  %v307 = vsel %vm74, %v57, 0
  %v310 = vsel %vm74, %v58, 0
  %v313 = vsel %vm74, %v59, 0
  %v316 = vsel %vm74, %v60, 0
  %v319 = vsel %vm74, %v61, 0
  %v322 = vsel %vm74, %v62, 0
  %324 = vmatprep.subr.mxu0 0.0
  %325 = vmatpush1.msra.mxu0 %v272
  %326 = vmatprep.subr.mxu0 0.0
  %327 = vmatpush1.msra.mxu0 %v273
  %328 = vmatprep.subr.mxu0 0.0
  %329 = vmatpush1.msra.mxu0 %v274
  %330 = vmatprep.subr.mxu0 0.0
  %331 = vmatpush1.msra.mxu0 %v275
  %332 = vmatprep.subr.mxu0 0.0
  %333 = vmatpush1.msra.mxu0 0.0
  %334 = vmatprep.subr.mxu0 0.0
  %335 = vmatpush1.msra.mxu0 0.0
  %336 = vmatprep.subr.mxu0 0.0
  %337 = vmatpush1.msra.mxu0 0.0
  %338 = vmatprep.subr.mxu0 0.0
  %339 = vmatpush1.msra.mxu0 0.0
  %340 = vmatprep.subr.mxu0 0.0
  %341 = vmatpush1.msra.mxu0 0.0
  %342 = vmatprep.subr.mxu0 0.0
  %343 = vmatpush1.msra.mxu0 0.0
  %344 = vmatprep.subr.mxu0 0.0
  %345 = vmatpush1.msra.mxu0 0.0
  %346 = vmatprep.subr.mxu0 0.0
  %347 = vmatpush1.msra.mxu0 0.0
  %348 = vmatprep.subr.mxu0 0.0
  %349 = vmatpush1.msra.mxu0 0.0
  %350 = vmatprep.subr.mxu0 0.0
  %351 = vmatpush1.msra.mxu0 0.0
  %352 = vmatprep.subr.mxu0 0.0
  %353 = vmatpush1.msra.mxu0 0.0
  %354 = vmatprep.subr.mxu0 0.0
  %355 = vmatpush1.msra.mxu0 0.0
  %356 = vmatprep.subr.mxu0 0.0
  %357 = vmatpush1.msra.mxu0 0.0
  %358 = vmatprep.subr.mxu0 0.0
  %359 = vmatpush1.msra.mxu0 0.0
  %360 = vmatprep.subr.mxu0 0.0
  %361 = vmatpush1.msra.mxu0 0.0
  %362 = vmatprep.subr.mxu0 0.0
  %363 = vmatpush1.msra.mxu0 0.0
  %364 = vmatprep.subr.mxu0 0.0
  %365 = vmatpush1.msra.mxu0 0.0
  %366 = vmatprep.subr.mxu0 0.0
  %367 = vmatpush1.msra.mxu0 0.0
  %368 = vmatprep.subr.mxu0 0.0
  %369 = vmatpush1.msra.mxu0 0.0
  %370 = vmatprep.subr.mxu0 0.0
  %371 = vmatpush1.msra.mxu0 0.0
  %372 = vmatprep.subr.mxu0 0.0
  %373 = vmatpush1.msra.mxu0 0.0
  %374 = vmatprep.subr.mxu0 0.0
  %375 = vmatpush1.msra.mxu0 0.0
  %376 = vmatprep.subr.mxu0 0.0
  %377 = vmatpush1.msra.mxu0 0.0
  %378 = vmatprep.subr.mxu0 0.0
  %379 = vmatpush1.msra.mxu0 0.0
  %380 = vmatprep.subr.mxu0 0.0
  %381 = vmatpush1.msra.mxu0 0.0
  %382 = vmatprep.subr.mxu0 0.0
  %383 = vmatpush1.msra.mxu0 0.0
  %384 = vmatprep.subr.mxu0 0.0
  %385 = vmatpush1.msra.mxu0 0.0
  %386 = vmatprep.subr.mxu0 0.0
  %387 = vmatpush1.msra.mxu0 0.0
  %388 = vmatprep.mubr.f32.mxu0 0.0
  %389 = vmatmul.mubr.f32.gmra.mrb[0].mxu0 %v277
  %v390 = vpop.f32.mrb[0].mxu0
  %v391 = vadd.f32 0.0, %v390
  %v392 = vpop.f32.mrb[0].mxu0
  %393 = vmatprep.mubr.f32.mxu0 0.0
  %394 = vmatmul.mubr.f32.gmra.mrb[0].mxu0 %v280
  %v395 = vpop.f32.mrb[0].mxu0
  %v396 = vadd.f32 0.0, %v395
  %v397 = vpop.f32.mrb[0].mxu0
  %398 = vmatprep.mubr.f32.mxu0 0.0
  %399 = vmatmul.mubr.f32.gmra.mrb[0].mxu0 %v283
  %v400 = vpop.f32.mrb[0].mxu0
  %v401 = vadd.f32 0.0, %v400
  %v402 = vpop.f32.mrb[0].mxu0
  %403 = vmatprep.mubr.f32.mxu0 0.0
  %404 = vmatmul.mubr.f32.gmra.mrb[0].mxu0 %v286
  %v405 = vpop.f32.mrb[0].mxu0
  %v406 = vadd.f32 0.0, %v405
  %v407 = vpop.f32.mrb[0].mxu0
  %408 = vmatprep.mubr.f32.mxu0 0.0
  %409 = vmatmul.mubr.f32.gmra.mrb[0].mxu0 %v289
  %v410 = vpop.f32.mrb[0].mxu0
  %v411 = vadd.f32 0.0, %v410
  %v412 = vpop.f32.mrb[0].mxu0
  %413 = vmatprep.mubr.f32.mxu0 0.0
  %414 = vmatmul.mubr.f32.gmra.mrb[0].mxu0 %v292
  %v415 = vpop.f32.mrb[0].mxu0
  %v416 = vadd.f32 0.0, %v415
  %v417 = vpop.f32.mrb[0].mxu0
  %418 = vmatprep.mubr.f32.mxu0 0.0
  %419 = vmatmul.mubr.f32.gmra.mrb[0].mxu0 %v295
  %v420 = vpop.f32.mrb[0].mxu0
  %v421 = vadd.f32 0.0, %v420
  %v422 = vpop.f32.mrb[0].mxu0
  %423 = vmatprep.mubr.f32.mxu0 0.0
  %424 = vmatmul.mubr.f32.gmra.mrb[0].mxu0 %v298
  %v425 = vpop.f32.mrb[0].mxu0
  %v426 = vadd.f32 0.0, %v425
  %v427 = vpop.f32.mrb[0].mxu0
  %428 = vmatprep.mubr.f32.mxu0 0.0
  %429 = vmatmul.mubr.f32.gmra.mrb[0].mxu0 %v301
  %v430 = vpop.f32.mrb[0].mxu0
  %v431 = vadd.f32 0.0, %v430
  %v432 = vpop.f32.mrb[0].mxu0
  %433 = vmatprep.mubr.f32.mxu0 0.0
  %434 = vmatmul.mubr.f32.gmra.mrb[0].mxu0 %v304
  %v435 = vpop.f32.mrb[0].mxu0
  %v436 = vadd.f32 0.0, %v435
  %v437 = vpop.f32.mrb[0].mxu0
  %438 = vmatprep.mubr.f32.mxu0 0.0
  %439 = vmatmul.mubr.f32.gmra.mrb[0].mxu0 %v307
  %v440 = vpop.f32.mrb[0].mxu0
  %v441 = vadd.f32 0.0, %v440
  %v442 = vpop.f32.mrb[0].mxu0
  %443 = vmatprep.mubr.f32.mxu0 0.0
  %444 = vmatmul.mubr.f32.gmra.mrb[0].mxu0 %v310
  %v445 = vpop.f32.mrb[0].mxu0
  %v446 = vadd.f32 0.0, %v445
  %v447 = vpop.f32.mrb[0].mxu0
  %448 = vmatprep.mubr.f32.mxu0 0.0
  %449 = vmatmul.mubr.f32.gmra.mrb[0].mxu0 %v313
  %v450 = vpop.f32.mrb[0].mxu0
  %v451 = vadd.f32 0.0, %v450
  %v452 = vpop.f32.mrb[0].mxu0
  %453 = vmatprep.mubr.f32.mxu0 0.0
  %454 = vmatmul.mubr.f32.gmra.mrb[0].mxu0 %v316
  %v455 = vpop.f32.mrb[0].mxu0
  %v456 = vadd.f32 0.0, %v455
  %v457 = vpop.f32.mrb[0].mxu0
  %458 = vmatprep.mubr.f32.mxu0 0.0
  %459 = vmatmul.mubr.f32.gmra.mrb[0].mxu0 %v319
  %v460 = vpop.f32.mrb[0].mxu0
  %v461 = vadd.f32 0.0, %v460
  %v462 = vpop.f32.mrb[0].mxu0
  %463 = vmatprep.mubr.f32.mxu0 0.0
  %464 = vmatmul.mubr.f32.gmra.mrb[0].mxu0 %v322
  %v465 = vpop.f32.mrb[0].mxu0
  %v466 = vadd.f32 0.0, %v465
  %v467 = vpop.f32.mrb[0].mxu0
  %468 = vdwg.mxu0
  %469 = vmatprep.subr.mxu0 0.0
  %470 = vmatpush1.msra.mxu0 %v268
  %471 = vmatprep.subr.mxu0 0.0
  %472 = vmatpush1.msra.mxu0 %v269
  %473 = vmatprep.subr.mxu0 0.0
  %474 = vmatpush1.msra.mxu0 %v270
  %475 = vmatprep.subr.mxu0 0.0
  %476 = vmatpush1.msra.mxu0 %v271
  %477 = vmatprep.subr.mxu0 0.0
  %478 = vmatpush1.msra.mxu0 0.0
  %479 = vmatprep.subr.mxu0 0.0
  %480 = vmatpush1.msra.mxu0 0.0
  %481 = vmatprep.subr.mxu0 0.0
  %482 = vmatpush1.msra.mxu0 0.0
  %483 = vmatprep.subr.mxu0 0.0
  %484 = vmatpush1.msra.mxu0 0.0
  %485 = vmatprep.subr.mxu0 0.0
  %486 = vmatpush1.msra.mxu0 0.0
  %487 = vmatprep.subr.mxu0 0.0
  %488 = vmatpush1.msra.mxu0 0.0
  %489 = vmatprep.subr.mxu0 0.0
  %490 = vmatpush1.msra.mxu0 0.0
  %491 = vmatprep.subr.mxu0 0.0
  %492 = vmatpush1.msra.mxu0 0.0
  %493 = vmatprep.subr.mxu0 0.0
  %494 = vmatpush1.msra.mxu0 0.0
  %495 = vmatprep.subr.mxu0 0.0
  %496 = vmatpush1.msra.mxu0 0.0
  %497 = vmatprep.subr.mxu0 0.0
  %498 = vmatpush1.msra.mxu0 0.0
  %499 = vmatprep.subr.mxu0 0.0
  %500 = vmatpush1.msra.mxu0 0.0
  %501 = vmatprep.subr.mxu0 0.0
  %502 = vmatpush1.msra.mxu0 0.0
  %503 = vmatprep.subr.mxu0 0.0
  %504 = vmatpush1.msra.mxu0 0.0
  %505 = vmatprep.subr.mxu0 0.0
  %506 = vmatpush1.msra.mxu0 0.0
  %507 = vmatprep.subr.mxu0 0.0
  %508 = vmatpush1.msra.mxu0 0.0
  %509 = vmatprep.subr.mxu0 0.0
  %510 = vmatpush1.msra.mxu0 0.0
  %511 = vmatprep.subr.mxu0 0.0
  %512 = vmatpush1.msra.mxu0 0.0
  %513 = vmatprep.subr.mxu0 0.0
  %514 = vmatpush1.msra.mxu0 0.0
  %515 = vmatprep.subr.mxu0 0.0
  %516 = vmatpush1.msra.mxu0 0.0
  %517 = vmatprep.subr.mxu0 0.0
  %518 = vmatpush1.msra.mxu0 0.0
  %519 = vmatprep.subr.mxu0 0.0
  %520 = vmatpush1.msra.mxu0 0.0
  %521 = vmatprep.subr.mxu0 0.0
  %522 = vmatpush1.msra.mxu0 0.0
  %523 = vmatprep.subr.mxu0 0.0
  %524 = vmatpush1.msra.mxu0 0.0
  %525 = vmatprep.subr.mxu0 0.0
  %526 = vmatpush1.msra.mxu0 0.0
  %527 = vmatprep.subr.mxu0 0.0
  %528 = vmatpush1.msra.mxu0 0.0
  %529 = vmatprep.subr.mxu0 0.0
  %530 = vmatpush1.msra.mxu0 0.0
  %531 = vmatprep.subr.mxu0 0.0
  %532 = vmatpush1.msra.mxu0 0.0
  %533 = vmatprep.mubr.f32.mxu0 0.0
  %534 = vmatmul.mubr.f32.gmra.mrb[0].mxu0 %v76
  %v535 = vpop.f32.mrb[0].mxu0
  %v536 = vadd.f32 %v391, %v535
  %v537 = vpop.f32.mrb[0].mxu0
  %538 = vmatprep.mubr.f32.mxu0 0.0
  %539 = vmatmul.mubr.f32.gmra.mrb[0].mxu0 %v79
  %v540 = vpop.f32.mrb[0].mxu0
  %v541 = vadd.f32 %v396, %v540
  %v542 = vpop.f32.mrb[0].mxu0
  %543 = vmatprep.mubr.f32.mxu0 0.0
  %544 = vmatmul.mubr.f32.gmra.mrb[0].mxu0 %v82
  %v545 = vpop.f32.mrb[0].mxu0
  %v546 = vadd.f32 %v401, %v545
  %v547 = vpop.f32.mrb[0].mxu0
  %548 = vmatprep.mubr.f32.mxu0 0.0
  %549 = vmatmul.mubr.f32.gmra.mrb[0].mxu0 %v85
  %v550 = vpop.f32.mrb[0].mxu0
  %v551 = vadd.f32 %v406, %v550
  %v552 = vpop.f32.mrb[0].mxu0
  %553 = vmatprep.mubr.f32.mxu0 0.0
  %554 = vmatmul.mubr.f32.gmra.mrb[0].mxu0 %v88
  %v555 = vpop.f32.mrb[0].mxu0
  %v556 = vadd.f32 %v411, %v555
  %v557 = vpop.f32.mrb[0].mxu0
  %558 = vmatprep.mubr.f32.mxu0 0.0
  %559 = vmatmul.mubr.f32.gmra.mrb[0].mxu0 %v91
  %v560 = vpop.f32.mrb[0].mxu0
  %v561 = vadd.f32 %v416, %v560
  %v562 = vpop.f32.mrb[0].mxu0
  %563 = vmatprep.mubr.f32.mxu0 0.0
  %564 = vmatmul.mubr.f32.gmra.mrb[0].mxu0 %v94
  %v565 = vpop.f32.mrb[0].mxu0
  %v566 = vadd.f32 %v421, %v565
  %v567 = vpop.f32.mrb[0].mxu0
  %568 = vmatprep.mubr.f32.mxu0 0.0
  %569 = vmatmul.mubr.f32.gmra.mrb[0].mxu0 %v97
  %v570 = vpop.f32.mrb[0].mxu0
  %v571 = vadd.f32 %v426, %v570
  %v572 = vpop.f32.mrb[0].mxu0
  %573 = vmatprep.mubr.f32.mxu0 0.0
  %574 = vmatmul.mubr.f32.gmra.mrb[0].mxu0 %v100
  %v575 = vpop.f32.mrb[0].mxu0
  %v576 = vadd.f32 %v431, %v575
  %v577 = vpop.f32.mrb[0].mxu0
  %578 = vmatprep.mubr.f32.mxu0 0.0
  %579 = vmatmul.mubr.f32.gmra.mrb[0].mxu0 %v103
  %v580 = vpop.f32.mrb[0].mxu0
  %v581 = vadd.f32 %v436, %v580
  %v582 = vpop.f32.mrb[0].mxu0
  %583 = vmatprep.mubr.f32.mxu0 0.0
  %584 = vmatmul.mubr.f32.gmra.mrb[0].mxu0 %v106
  %v585 = vpop.f32.mrb[0].mxu0
  %v586 = vadd.f32 %v441, %v585
  %v587 = vpop.f32.mrb[0].mxu0
  %588 = vmatprep.mubr.f32.mxu0 0.0
  %589 = vmatmul.mubr.f32.gmra.mrb[0].mxu0 %v109
  %v590 = vpop.f32.mrb[0].mxu0
  %v591 = vadd.f32 %v446, %v590
  %v592 = vpop.f32.mrb[0].mxu0
  %593 = vmatprep.mubr.f32.mxu0 0.0
  %594 = vmatmul.mubr.f32.gmra.mrb[0].mxu0 %v112
  %v595 = vpop.f32.mrb[0].mxu0
  %v596 = vadd.f32 %v451, %v595
  %v597 = vpop.f32.mrb[0].mxu0
  %598 = vmatprep.mubr.f32.mxu0 0.0
  %599 = vmatmul.mubr.f32.gmra.mrb[0].mxu0 %v115
  %v600 = vpop.f32.mrb[0].mxu0
  %v601 = vadd.f32 %v456, %v600
  %v602 = vpop.f32.mrb[0].mxu0
  %603 = vmatprep.mubr.f32.mxu0 0.0
  %604 = vmatmul.mubr.f32.gmra.mrb[0].mxu0 %v118
  %v605 = vpop.f32.mrb[0].mxu0
  %v606 = vadd.f32 %v461, %v605
  %v607 = vpop.f32.mrb[0].mxu0
  %608 = vmatprep.mubr.f32.mxu0 0.0
  %609 = vmatmul.mubr.f32.gmra.mrb[0].mxu0 %v121
  %v610 = vpop.f32.mrb[0].mxu0
  %v611 = vadd.f32 %v466, %v610
  %v612 = vpop.f32.mrb[0].mxu0
  %613 = vdwg.mxu0
  %v614 = vadd.f32 %v536, %v72
  %v615 = vadd.f32 %v541, %v72
  %v616 = vadd.f32 %v546, %v72
  %v617 = vadd.f32 %v551, %v72
  %v618 = vadd.f32 %v556, %v72
  %v619 = vadd.f32 %v561, %v72
  %v620 = vadd.f32 %v566, %v72
  %v621 = vadd.f32 %v571, %v72
  %v622 = vadd.f32 %v576, %v72
  %v623 = vadd.f32 %v581, %v72
  %v624 = vadd.f32 %v586, %v72
  %v625 = vadd.f32 %v591, %v72
  %v626 = vadd.f32 %v596, %v72
  %v627 = vadd.f32 %v601, %v72
  %v628 = vadd.f32 %v606, %v72
  %v629 = vadd.f32 %v611, %v72
  %v630 = vsel %vm74, %v190, 0.0
  %v631 = vsel %vm74, %v195, 0.0
  %v632 = vadd.f32 %v630, %v631
  %v633 = vsel %vm74, %v200, 0.0
  %v634 = vadd.f32 %v632, %v633
  %v635 = vsel %vm74, %v205, 0.0
  %v636 = vadd.f32 %v634, %v635
  %v637 = vsel %vm74, %v210, 0.0
  %v638 = vadd.f32 %v636, %v637
  %v639 = vsel %vm74, %v215, 0.0
  %v640 = vadd.f32 %v638, %v639
  %v641 = vsel %vm74, %v220, 0.0
  %v642 = vadd.f32 %v640, %v641
  %v643 = vsel %vm74, %v225, 0.0
  %v644 = vadd.f32 %v642, %v643
  %v645 = vsel %vm74, %v230, 0.0
  %v646 = vadd.f32 %v644, %v645
  %v647 = vsel %vm74, %v235, 0.0
  %v648 = vadd.f32 %v646, %v647
  %v649 = vsel %vm74, %v240, 0.0
  %v650 = vadd.f32 %v648, %v649
  %v651 = vsel %vm74, %v245, 0.0
  %v652 = vadd.f32 %v650, %v651
  %v653 = vsel %vm74, %v250, 0.0
  %v654 = vadd.f32 %v652, %v653
  %v655 = vsel %vm74, %v255, 0.0
  %v656 = vadd.f32 %v654, %v655
  %v657 = vsel %vm74, %v260, 0.0
  %v658 = vadd.f32 %v656, %v657
  %v659 = vsel %vm74, %v265, 0.0
  %v660 = vadd.f32 %v658, %v659
  %v661 = vrot.slane %v660, 4
  %v662 = vadd.f32 %v660, %v661
  %v663 = vrot.slane %v662, 2
  %v664 = vadd.f32 %v662, %v663
  %v665 = vrot.slane %v664, 1
  %v666 = vadd.f32 %v664, %v665
  %v667 = vrcp.pop 128.0
  %v668 = vmul.f32 %v666, %v667
  %v669 = vsel %vm74, %v614, 0.0
  %v670 = vsel %vm74, %v615, 0.0
  %v671 = vadd.f32 %v669, %v670
  %v672 = vsel %vm74, %v616, 0.0
  %v673 = vadd.f32 %v671, %v672
  %v674 = vsel %vm74, %v617, 0.0
  %v675 = vadd.f32 %v673, %v674
  %v676 = vsel %vm74, %v618, 0.0
  %v677 = vadd.f32 %v675, %v676
  %v678 = vsel %vm74, %v619, 0.0
  %v679 = vadd.f32 %v677, %v678
  %v680 = vsel %vm74, %v620, 0.0
  %v681 = vadd.f32 %v679, %v680
  %v682 = vsel %vm74, %v621, 0.0
  %v683 = vadd.f32 %v681, %v682
  %v684 = vsel %vm74, %v622, 0.0
  %v685 = vadd.f32 %v683, %v684
  %v686 = vsel %vm74, %v623, 0.0
  %v687 = vadd.f32 %v685, %v686
  %v688 = vsel %vm74, %v624, 0.0
  %v689 = vadd.f32 %v687, %v688
  %v690 = vsel %vm74, %v625, 0.0
  %v691 = vadd.f32 %v689, %v690
  %v692 = vsel %vm74, %v626, 0.0
  %v693 = vadd.f32 %v691, %v692
  %v694 = vsel %vm74, %v627, 0.0
  %v695 = vadd.f32 %v693, %v694
  %v696 = vsel %vm74, %v628, 0.0
  %v697 = vadd.f32 %v695, %v696
  %v698 = vsel %vm74, %v629, 0.0
  %v699 = vadd.f32 %v697, %v698
  %v700 = vrot.slane %v699, 4
  %v701 = vadd.f32 %v699, %v700
  %v702 = vrot.slane %v701, 2
  %v703 = vadd.f32 %v701, %v702
  %v704 = vrot.slane %v703, 1
  %v705 = vadd.f32 %v703, %v704
  %v706 = vmul.f32 %v705, %v667
  %v707 = vadd.f32 %v668, %v706
  %v708 = vmul.f32 %v707, 0.5
  %v709 = vsub.f32 %v190, %v708
  %v710 = vsub.f32 %v195, %v708
  %v711 = vsub.f32 %v200, %v708
  %v712 = vsub.f32 %v205, %v708
  %v713 = vsub.f32 %v210, %v708
  %v714 = vsub.f32 %v215, %v708
  %v715 = vsub.f32 %v220, %v708
  %v716 = vsub.f32 %v225, %v708
  %v717 = vsub.f32 %v230, %v708
  %v718 = vsub.f32 %v235, %v708
  %v719 = vsub.f32 %v240, %v708
  %v720 = vsub.f32 %v245, %v708
  %v721 = vsub.f32 %v250, %v708
  %v722 = vsub.f32 %v255, %v708
  %v723 = vsub.f32 %v260, %v708
  %v724 = vsub.f32 %v265, %v708
  %v725 = vmul.f32 %v709, %v709
  %v726 = vmul.f32 %v710, %v710
  %v727 = vmul.f32 %v711, %v711
  %v728 = vmul.f32 %v712, %v712
  %v729 = vmul.f32 %v713, %v713
  %v730 = vmul.f32 %v714, %v714
  %v731 = vmul.f32 %v715, %v715
  %v732 = vmul.f32 %v716, %v716
  %v733 = vmul.f32 %v717, %v717
  %v734 = vmul.f32 %v718, %v718
  %v735 = vmul.f32 %v719, %v719
  %v736 = vmul.f32 %v720, %v720
  %v737 = vmul.f32 %v721, %v721
  %v738 = vmul.f32 %v722, %v722
  %v739 = vmul.f32 %v723, %v723
  %v740 = vmul.f32 %v724, %v724
  %v741 = vsel %vm74, %v725, 0.0
  %v742 = vsel %vm74, %v726, 0.0
  %v743 = vadd.f32 %v741, %v742
  %v744 = vsel %vm74, %v727, 0.0
  %v745 = vadd.f32 %v743, %v744
  %v746 = vsel %vm74, %v728, 0.0
  %v747 = vadd.f32 %v745, %v746
  %v748 = vsel %vm74, %v729, 0.0
  %v749 = vadd.f32 %v747, %v748
  %v750 = vsel %vm74, %v730, 0.0
  %v751 = vadd.f32 %v749, %v750
  %v752 = vsel %vm74, %v731, 0.0
  %v753 = vadd.f32 %v751, %v752
  %v754 = vsel %vm74, %v732, 0.0
  %v755 = vadd.f32 %v753, %v754
  %v756 = vsel %vm74, %v733, 0.0
  %v757 = vadd.f32 %v755, %v756
  %v758 = vsel %vm74, %v734, 0.0
  %v759 = vadd.f32 %v757, %v758
  %v760 = vsel %vm74, %v735, 0.0
  %v761 = vadd.f32 %v759, %v760
  %v762 = vsel %vm74, %v736, 0.0
  %v763 = vadd.f32 %v761, %v762
  %v764 = vsel %vm74, %v737, 0.0
  %v765 = vadd.f32 %v763, %v764
  %v766 = vsel %vm74, %v738, 0.0
  %v767 = vadd.f32 %v765, %v766
  %v768 = vsel %vm74, %v739, 0.0
  %v769 = vadd.f32 %v767, %v768
  %v770 = vsel %vm74, %v740, 0.0
  %v771 = vadd.f32 %v769, %v770
  %v772 = vrot.slane %v771, 4
  %v773 = vadd.f32 %v771, %v772
  %v774 = vrot.slane %v773, 2
  %v775 = vadd.f32 %v773, %v774
  %v776 = vrot.slane %v775, 1
  %v777 = vadd.f32 %v775, %v776
  %v778 = vmul.f32 %v777, %v667
  %v779 = vsub.f32 %v614, %v708
  %v780 = vsub.f32 %v615, %v708
  %v781 = vsub.f32 %v616, %v708
  %v782 = vsub.f32 %v617, %v708
  %v783 = vsub.f32 %v618, %v708
  %v784 = vsub.f32 %v619, %v708
  %v785 = vsub.f32 %v620, %v708
  %v786 = vsub.f32 %v621, %v708
  %v787 = vsub.f32 %v622, %v708
  %v788 = vsub.f32 %v623, %v708
  %v789 = vsub.f32 %v624, %v708
  %v790 = vsub.f32 %v625, %v708
  %v791 = vsub.f32 %v626, %v708
  %v792 = vsub.f32 %v627, %v708
  %v793 = vsub.f32 %v628, %v708
  %v794 = vsub.f32 %v629, %v708
  %v795 = vmul.f32 %v779, %v779
  %v796 = vmul.f32 %v780, %v780
  %v797 = vmul.f32 %v781, %v781
  %v798 = vmul.f32 %v782, %v782
  %v799 = vmul.f32 %v783, %v783
  %v800 = vmul.f32 %v784, %v784
  %v801 = vmul.f32 %v785, %v785
  %v802 = vmul.f32 %v786, %v786
  %v803 = vmul.f32 %v787, %v787
  %v804 = vmul.f32 %v788, %v788
  %v805 = vmul.f32 %v789, %v789
  %v806 = vmul.f32 %v790, %v790
  %v807 = vmul.f32 %v791, %v791
  %v808 = vmul.f32 %v792, %v792
  %v809 = vmul.f32 %v793, %v793
  %v810 = vmul.f32 %v794, %v794
  %v811 = vsel %vm74, %v795, 0.0
  %v812 = vsel %vm74, %v796, 0.0
  %v813 = vadd.f32 %v811, %v812
  %v814 = vsel %vm74, %v797, 0.0
  %v815 = vadd.f32 %v813, %v814
  %v816 = vsel %vm74, %v798, 0.0
  %v817 = vadd.f32 %v815, %v816
  %v818 = vsel %vm74, %v799, 0.0
  %v819 = vadd.f32 %v817, %v818
  %v820 = vsel %vm74, %v800, 0.0
  %v821 = vadd.f32 %v819, %v820
  %v822 = vsel %vm74, %v801, 0.0
  %v823 = vadd.f32 %v821, %v822
  %v824 = vsel %vm74, %v802, 0.0
  %v825 = vadd.f32 %v823, %v824
  %v826 = vsel %vm74, %v803, 0.0
  %v827 = vadd.f32 %v825, %v826
  %v828 = vsel %vm74, %v804, 0.0
  %v829 = vadd.f32 %v827, %v828
  %v830 = vsel %vm74, %v805, 0.0
  %v831 = vadd.f32 %v829, %v830
  %v832 = vsel %vm74, %v806, 0.0
  %v833 = vadd.f32 %v831, %v832
  %v834 = vsel %vm74, %v807, 0.0
  %v835 = vadd.f32 %v833, %v834
  %v836 = vsel %vm74, %v808, 0.0
  %v837 = vadd.f32 %v835, %v836
  %v838 = vsel %vm74, %v809, 0.0
  %v839 = vadd.f32 %v837, %v838
  %v840 = vsel %vm74, %v810, 0.0
  %v841 = vadd.f32 %v839, %v840
  %v842 = vrot.slane %v841, 4
  %v843 = vadd.f32 %v841, %v842
  %v844 = vrot.slane %v843, 2
  %v845 = vadd.f32 %v843, %v844
  %v846 = vrot.slane %v845, 1
  %v847 = vadd.f32 %v845, %v846
  %v848 = vmul.f32 %v847, %v667
  %v849 = vadd.f32 %v778, %v848
  %v850 = vmul.f32 %v849, 0.5
  %v851 = vadd.f32 %v850, 1e-05
  %v852 = vrsqrt.pop %v851
  %v853 = vld [vmem:[%s6] sm:$0x1]
  %v854 = vmul.f32 %v852, %v853
  %v855 = vld [vmem:[%s7] sm:$0x1]
  %v856 = vmul.f32 %v708, %v854
  %v857 = vsub.f32 %v855, %v856
  %v858 = vlaneseq
  %v859 = vshrl.u32 %v858, 7
  %v860 = vsub.s32 0, %v859
  %v861 = vrot.slane %v854, %v860
  %v862 = vmul.f32 %v190, %v861
  %v863 = vmul.f32 %v195, %v861
  %v864 = vmul.f32 %v200, %v861
  %v865 = vmul.f32 %v205, %v861
  %v866 = vmul.f32 %v210, %v861
  %v867 = vmul.f32 %v215, %v861
  %v868 = vmul.f32 %v220, %v861
  %v869 = vmul.f32 %v225, %v861
  %v870 = vmul.f32 %v230, %v861
  %v871 = vmul.f32 %v235, %v861
  %v872 = vmul.f32 %v240, %v861
  %v873 = vmul.f32 %v245, %v861
  %v874 = vmul.f32 %v250, %v861
  %v875 = vmul.f32 %v255, %v861
  %v876 = vmul.f32 %v260, %v861
  %v877 = vmul.f32 %v265, %v861
  %v879 = vlaneseq
  %v880 = vshrl.u32 %v879, 7
  %v881 = vsub.s32 0, %v880
  %v882 = vrot.slane %v857, %v881
  %v884 = vadd.f32 %v862, %v882
  %v885 = vadd.f32 %v863, %v882
  %v886 = vadd.f32 %v864, %v882
  %v887 = vadd.f32 %v865, %v882
  %v888 = vadd.f32 %v866, %v882
  %v889 = vadd.f32 %v867, %v882
  %v890 = vadd.f32 %v868, %v882
  %v891 = vadd.f32 %v869, %v882
  %v892 = vadd.f32 %v870, %v882
  %v893 = vadd.f32 %v871, %v882
  %v894 = vadd.f32 %v872, %v882
  %v895 = vadd.f32 %v873, %v882
  %v896 = vadd.f32 %v874, %v882
  %v897 = vadd.f32 %v875, %v882
  %v898 = vadd.f32 %v876, %v882
  %v899 = vadd.f32 %v877, %v882
  %v900 = vmul.f32 %v614, %v861
  %v901 = vmul.f32 %v615, %v861
  %v902 = vmul.f32 %v616, %v861
  %v903 = vmul.f32 %v617, %v861
  %v904 = vmul.f32 %v618, %v861
  %v905 = vmul.f32 %v619, %v861
  %v906 = vmul.f32 %v620, %v861
  %v907 = vmul.f32 %v621, %v861
  %v908 = vmul.f32 %v622, %v861
  %v909 = vmul.f32 %v623, %v861
  %v910 = vmul.f32 %v624, %v861
  %v911 = vmul.f32 %v625, %v861
  %v912 = vmul.f32 %v626, %v861
  %v913 = vmul.f32 %v627, %v861
  %v914 = vmul.f32 %v628, %v861
  %v915 = vmul.f32 %v629, %v861
  %v916 = vadd.f32 %v900, %v882
  %v917 = vadd.f32 %v901, %v882
  %v918 = vadd.f32 %v902, %v882
  %v919 = vadd.f32 %v903, %v882
  %v920 = vadd.f32 %v904, %v882
  %v921 = vadd.f32 %v905, %v882
  %v922 = vadd.f32 %v906, %v882
  %v923 = vadd.f32 %v907, %v882
  %v924 = vadd.f32 %v908, %v882
  %v925 = vadd.f32 %v909, %v882
  %v926 = vadd.f32 %v910, %v882
  %v927 = vadd.f32 %v911, %v882
  %v928 = vadd.f32 %v912, %v882
  %v929 = vadd.f32 %v913, %v882
  %v930 = vadd.f32 %v914, %v882
  %v931 = vadd.f32 %v915, %v882
  %vm932 = vcmp.ge.f32.partialorder %v884, 0.0
  %vm933 = vcmp.ge.f32.partialorder %v885, 0.0
  %vm934 = vcmp.ge.f32.partialorder %v886, 0.0
  %vm935 = vcmp.ge.f32.partialorder %v887, 0.0
  %vm936 = vcmp.ge.f32.partialorder %v888, 0.0
  %vm937 = vcmp.ge.f32.partialorder %v889, 0.0
  %vm938 = vcmp.ge.f32.partialorder %v890, 0.0
  %vm939 = vcmp.ge.f32.partialorder %v891, 0.0
  %vm940 = vcmp.ge.f32.partialorder %v892, 0.0
  %vm941 = vcmp.ge.f32.partialorder %v893, 0.0
  %vm942 = vcmp.ge.f32.partialorder %v894, 0.0
  %vm943 = vcmp.ge.f32.partialorder %v895, 0.0
  %vm944 = vcmp.ge.f32.partialorder %v896, 0.0
  %vm945 = vcmp.ge.f32.partialorder %v897, 0.0
  %vm946 = vcmp.ge.f32.partialorder %v898, 0.0
  %vm947 = vcmp.ge.f32.partialorder %v899, 0.0
  %v948 = vmul.f32 %v884, 0.01
  %v949 = vmul.f32 %v885, 0.01
  %v950 = vmul.f32 %v886, 0.01
  %v951 = vmul.f32 %v887, 0.01
  %v952 = vmul.f32 %v888, 0.01
  %v953 = vmul.f32 %v889, 0.01
  %v954 = vmul.f32 %v890, 0.01
  %v955 = vmul.f32 %v891, 0.01
  %v956 = vmul.f32 %v892, 0.01
  %v957 = vmul.f32 %v893, 0.01
  %v958 = vmul.f32 %v894, 0.01
  %v959 = vmul.f32 %v895, 0.01
  %v960 = vmul.f32 %v896, 0.01
  %v961 = vmul.f32 %v897, 0.01
  %v962 = vmul.f32 %v898, 0.01
  %v963 = vmul.f32 %v899, 0.01
  %v964 = vsel %vm932, %v884, %v948
  %v965 = vsel %vm933, %v885, %v949
  %v966 = vsel %vm934, %v886, %v950
  %v967 = vsel %vm935, %v887, %v951
  %v968 = vsel %vm936, %v888, %v952
  %v969 = vsel %vm937, %v889, %v953
  %v970 = vsel %vm938, %v890, %v954
  %v971 = vsel %vm939, %v891, %v955
  %v972 = vsel %vm940, %v892, %v956
  %v973 = vsel %vm941, %v893, %v957
  %v974 = vsel %vm942, %v894, %v958
  %v975 = vsel %vm943, %v895, %v959
  %v976 = vsel %vm944, %v896, %v960
  %v977 = vsel %vm945, %v897, %v961
  %v978 = vsel %vm946, %v898, %v962
  %v979 = vsel %vm947, %v899, %v963
  %980 = vst.msk [vmem:[%s8] sm:$0xff] %vm74, %v964
  %981 = vst.msk [vmem:[%s8 + $0x8] sm:$0xff] %vm74, %v965
  %982 = vst.msk [vmem:[%s8 + $0x10] sm:$0xff] %vm74, %v966
  %983 = vst.msk [vmem:[%s8 + $0x18] sm:$0xff] %vm74, %v967
  %984 = vst.msk [vmem:[%s8 + $0x20] sm:$0xff] %vm74, %v968
  %985 = vst.msk [vmem:[%s8 + $0x28] sm:$0xff] %vm74, %v969
  %986 = vst.msk [vmem:[%s8 + $0x30] sm:$0xff] %vm74, %v970
  %987 = vst.msk [vmem:[%s8 + $0x38] sm:$0xff] %vm74, %v971
  %988 = vst.msk [vmem:[%s8 + $0x40] sm:$0xff] %vm74, %v972
  %989 = vst.msk [vmem:[%s8 + $0x48] sm:$0xff] %vm74, %v973
  %990 = vst.msk [vmem:[%s8 + $0x50] sm:$0xff] %vm74, %v974
  %991 = vst.msk [vmem:[%s8 + $0x58] sm:$0xff] %vm74, %v975
  %992 = vst.msk [vmem:[%s8 + $0x60] sm:$0xff] %vm74, %v976
  %993 = vst.msk [vmem:[%s8 + $0x68] sm:$0xff] %vm74, %v977
  %994 = vst.msk [vmem:[%s8 + $0x70] sm:$0xff] %vm74, %v978
  %995 = vst.msk [vmem:[%s8 + $0x78] sm:$0xff] %vm74, %v979
  %vm996 = vcmp.ge.f32.partialorder %v916, 0.0
  %vm997 = vcmp.ge.f32.partialorder %v917, 0.0
  %vm998 = vcmp.ge.f32.partialorder %v918, 0.0
  %vm999 = vcmp.ge.f32.partialorder %v919, 0.0
  %vm1000 = vcmp.ge.f32.partialorder %v920, 0.0
  %vm1001 = vcmp.ge.f32.partialorder %v921, 0.0
  %vm1002 = vcmp.ge.f32.partialorder %v922, 0.0
  %vm1003 = vcmp.ge.f32.partialorder %v923, 0.0
  %vm1004 = vcmp.ge.f32.partialorder %v924, 0.0
  %vm1005 = vcmp.ge.f32.partialorder %v925, 0.0
  %vm1006 = vcmp.ge.f32.partialorder %v926, 0.0
  %vm1007 = vcmp.ge.f32.partialorder %v927, 0.0
  %vm1008 = vcmp.ge.f32.partialorder %v928, 0.0
  %vm1009 = vcmp.ge.f32.partialorder %v929, 0.0
  %vm1010 = vcmp.ge.f32.partialorder %v930, 0.0
  %vm1011 = vcmp.ge.f32.partialorder %v931, 0.0
  %v1012 = vmul.f32 %v916, 0.01
  %v1013 = vmul.f32 %v917, 0.01
  %v1014 = vmul.f32 %v918, 0.01
  %v1015 = vmul.f32 %v919, 0.01
  %v1016 = vmul.f32 %v920, 0.01
  %v1017 = vmul.f32 %v921, 0.01
  %v1018 = vmul.f32 %v922, 0.01
  %v1019 = vmul.f32 %v923, 0.01
  %v1020 = vmul.f32 %v924, 0.01
  %v1021 = vmul.f32 %v925, 0.01
  %v1022 = vmul.f32 %v926, 0.01
  %v1023 = vmul.f32 %v927, 0.01
  %v1024 = vmul.f32 %v928, 0.01
  %v1025 = vmul.f32 %v929, 0.01
  %v1026 = vmul.f32 %v930, 0.01
  %v1027 = vmul.f32 %v931, 0.01
  %v1028 = vsel %vm996, %v916, %v1012
  %v1029 = vsel %vm997, %v917, %v1013
  %v1030 = vsel %vm998, %v918, %v1014
  %v1031 = vsel %vm999, %v919, %v1015
  %v1032 = vsel %vm1000, %v920, %v1016
  %v1033 = vsel %vm1001, %v921, %v1017
  %v1034 = vsel %vm1002, %v922, %v1018
  %v1035 = vsel %vm1003, %v923, %v1019
  %v1036 = vsel %vm1004, %v924, %v1020
  %v1037 = vsel %vm1005, %v925, %v1021
  %v1038 = vsel %vm1006, %v926, %v1022
  %v1039 = vsel %vm1007, %v927, %v1023
  %v1040 = vsel %vm1008, %v928, %v1024
  %v1041 = vsel %vm1009, %v929, %v1025
  %v1042 = vsel %vm1010, %v930, %v1026
  %v1043 = vsel %vm1011, %v931, %v1027
  %1044 = vst.msk [vmem:[%s9] sm:$0xff] %vm74, %v1028
  %1045 = vst.msk [vmem:[%s9 + $0x8] sm:$0xff] %vm74, %v1029
  %1046 = vst.msk [vmem:[%s9 + $0x10] sm:$0xff] %vm74, %v1030
  %1047 = vst.msk [vmem:[%s9 + $0x18] sm:$0xff] %vm74, %v1031
  %1048 = vst.msk [vmem:[%s9 + $0x20] sm:$0xff] %vm74, %v1032
  %1049 = vst.msk [vmem:[%s9 + $0x28] sm:$0xff] %vm74, %v1033
  %1050 = vst.msk [vmem:[%s9 + $0x30] sm:$0xff] %vm74, %v1034
  %1051 = vst.msk [vmem:[%s9 + $0x38] sm:$0xff] %vm74, %v1035
  %1052 = vst.msk [vmem:[%s9 + $0x40] sm:$0xff] %vm74, %v1036
  %1053 = vst.msk [vmem:[%s9 + $0x48] sm:$0xff] %vm74, %v1037
  %1054 = vst.msk [vmem:[%s9 + $0x50] sm:$0xff] %vm74, %v1038
  %1055 = vst.msk [vmem:[%s9 + $0x58] sm:$0xff] %vm74, %v1039
  %1056 = vst.msk [vmem:[%s9 + $0x60] sm:$0xff] %vm74, %v1040
  %1057 = vst.msk [vmem:[%s9 + $0x68] sm:$0xff] %vm74, %v1041
  %1058 = vst.msk [vmem:[%s9 + $0x70] sm:$0xff] %vm74, %v1042
  %1059 = vst.msk [vmem:[%s9 + $0x78] sm:$0xff] %vm74, %v1043
  // Predicated region
  $region34: #{_lambda_.22} parent=0 // pred_check
    _
  $region35: #{_lambda_.22} parent=0 // pred_check_branch
    %1061 = sbr.rel (0) target = $region37
  $region36: #{_lambda_.22} parent=0 // pred_region
    _
  $region37: #{_lambda_.22} parent=0 // pred_fallthru
    _
  // Predicated region
  $region38: #{_lambda_.22} parent=0 // pred_check
    _
  $region39: #{_lambda_.22} parent=0 // pred_check_branch
    %1063 = sbr.rel (0) target = $region41
  $region40: #{_lambda_.22} parent=0 // pred_region
    _
  $region41: #{_lambda_.22} parent=0 // pred_fallthru
    _
  // Predicated region
  $region42: #{_lambda_.22} parent=0 // pred_check
    _
  $region43: #{_lambda_.22} parent=0 // pred_check_branch
    %1065 = sbr.rel (0) target = $region45
  $region44: #{_lambda_.22} parent=0 // pred_region
    _
  $region45: #{_lambda_.22} parent=0 // pred_fallthru
    _
  // Predicated region
  $region46: #{_lambda_.22} parent=0 // pred_check
    _
  $region47: #{_lambda_.22} parent=0 // pred_check_branch
    %1067 = sbr.rel (0) target = $region49
  $region48: #{_lambda_.22} parent=0 // pred_region
    _
  $region49: #{_lambda_.22} parent=0 // pred_fallthru
    _

// kernel: _lambda_.23
$region0: #{_lambda_.23}
  #allocation0 [shape = 'u32[]', space=smem, size = 0x4, offset = 0x4, fixed_abs, tag = 'smem constant byte address 0x4 - core index']
  #allocation1 [shape = 'u32[144,128]{1,0:T(1,128)}', space=vmem, size = 0x12000, scoped, tag = 'internal scratch']
  %s0 = inlined_call_operand.vmem [shape: f32[96,256], index: 0, kind: input, shape index: {}]
  %s1 = inlined_call_operand.vmem [shape: f32[3,96], index: 1, kind: input, shape index: {}]
  %s2 = inlined_call_operand.vmem [shape: f32[3,1], index: 2, kind: input, shape index: {}]
  %s3 = inlined_call_operand.vmem [shape: f32[3,256], index: 3, kind: output, shape index: {}]
  %s4 = sld [smem:[#allocation0]]
  $region22: #{_lambda_.23} parent=0
    _
  %s6 = ssub.s32 1, %s4
  %s7 = scalar_select 0, %s6, %s4
  // Predicated region
  $region2: #{_lambda_.23} parent=0 // pred_check
    _
  $region3: #{_lambda_.23} parent=0 // pred_check_branch
    %9 = sbr.rel (0) target = $region5
  $region4: #{_lambda_.23} parent=0 // pred_region
    _
  $region5: #{_lambda_.23} parent=0 // pred_fallthru
    _
  // Predicated region
  $region6: #{_lambda_.23} parent=0 // pred_check
    _
  $region7: #{_lambda_.23} parent=0 // pred_check_branch
    %11 = sbr.rel (0) target = $region9
  $region8: #{_lambda_.23} parent=0 // pred_region
    _
  $region9: #{_lambda_.23} parent=0 // pred_fallthru
    _
  // Predicated region
  $region10: #{_lambda_.23} parent=0 // pred_check
    _
  $region11: #{_lambda_.23} parent=0 // pred_check_branch
    %13 = sbr.rel (0) target = $region13
  $region12: #{_lambda_.23} parent=0 // pred_region
    _
  $region13: #{_lambda_.23} parent=0 // pred_fallthru
    _
  %v14 = vld [vmem:[%s1] sm:$0x7]
  %v15 = vld [vmem:[%s0] sm:$0xff]
  %v16 = vld [vmem:[%s0 + $0x8] sm:$0xff]
  %v17 = vld [vmem:[%s0 + $0x10] sm:$0xff]
  %v18 = vld [vmem:[%s0 + $0x18] sm:$0xff]
  %v19 = vld [vmem:[%s0 + $0x20] sm:$0xff]
  %v20 = vld [vmem:[%s0 + $0x28] sm:$0xff]
  %v21 = vld [vmem:[%s0 + $0x30] sm:$0xff]
  %v22 = vld [vmem:[%s0 + $0x38] sm:$0xff]
  %v23 = vld [vmem:[%s0 + $0x40] sm:$0xff]
  %v24 = vld [vmem:[%s0 + $0x48] sm:$0xff]
  %v25 = vld [vmem:[%s0 + $0x50] sm:$0xff]
  %v26 = vld [vmem:[%s0 + $0x58] sm:$0xff]
  %v27 = vld [vmem:[%s0 + $0x60] sm:$0xff]
  %v28 = vld [vmem:[%s0 + $0x68] sm:$0xff]
  %v29 = vld [vmem:[%s0 + $0x70] sm:$0xff]
  %v30 = vld [vmem:[%s0 + $0x78] sm:$0xff]
  %v31 = vld [vmem:[%s0 + $0x80] sm:$0xff]
  %v32 = vld [vmem:[%s0 + $0x88] sm:$0xff]
  %v33 = vld [vmem:[%s0 + $0x90] sm:$0xff]
  %v34 = vld [vmem:[%s0 + $0x98] sm:$0xff]
  %v35 = vld [vmem:[%s0 + $0xa0] sm:$0xff]
  %v36 = vld [vmem:[%s0 + $0xa8] sm:$0xff]
  %v37 = vld [vmem:[%s0 + $0xb0] sm:$0xff]
  %v38 = vld [vmem:[%s0 + $0xb8] sm:$0xff]
  %v39 = vld [vmem:[%s2] sm:$0x7]
  %41 = vset.pattern.permute.xlu0 0
  %42 = vperm.xlu0 %41, %v39
  %v43 = vpop.permute.xlu0 %42
  %vm45 = vcmask 785408
  %v47 = vsel %vm45, %v14, 0
  %49 = vmatprep.subr.mxu0 %v16
  %50 = vmatpush1.msra.mxu0 %v15
  %51 = vmatprep.subr.mxu0 %v18
  %52 = vmatpush1.msra.mxu0 %v17
  %53 = vmatprep.subr.mxu0 %v20
  %54 = vmatpush1.msra.mxu0 %v19
  %55 = vmatprep.subr.mxu0 %v22
  %56 = vmatpush1.msra.mxu0 %v21
  %57 = vmatprep.subr.mxu0 %v24
  %58 = vmatpush1.msra.mxu0 %v23
  %59 = vmatprep.subr.mxu0 %v26
  %60 = vmatpush1.msra.mxu0 %v25
  %61 = vmatprep.subr.mxu0 %v28
  %62 = vmatpush1.msra.mxu0 %v27
  %63 = vmatprep.subr.mxu0 %v30
  %64 = vmatpush1.msra.mxu0 %v29
  %65 = vmatprep.subr.mxu0 %v32
  %66 = vmatpush1.msra.mxu0 %v31
  %67 = vmatprep.subr.mxu0 %v34
  %68 = vmatpush1.msra.mxu0 %v33
  %69 = vmatprep.subr.mxu0 %v36
  %70 = vmatpush1.msra.mxu0 %v35
  %71 = vmatprep.subr.mxu0 %v38
  %72 = vmatpush1.msra.mxu0 %v37
  %73 = vmatprep.subr.mxu0 0.0
  %74 = vmatpush1.msra.mxu0 0.0
  %75 = vmatprep.subr.mxu0 0.0
  %76 = vmatpush1.msra.mxu0 0.0
  %77 = vmatprep.subr.mxu0 0.0
  %78 = vmatpush1.msra.mxu0 0.0
  %79 = vmatprep.subr.mxu0 0.0
  %80 = vmatpush1.msra.mxu0 0.0
  %81 = vmatprep.subr.mxu0 0.0
  %82 = vmatpush1.msra.mxu0 0.0
  %83 = vmatprep.subr.mxu0 0.0
  %84 = vmatpush1.msra.mxu0 0.0
  %85 = vmatprep.subr.mxu0 0.0
  %86 = vmatpush1.msra.mxu0 0.0
  %87 = vmatprep.subr.mxu0 0.0
  %88 = vmatpush1.msra.mxu0 0.0
  %89 = vmatprep.subr.mxu0 0.0
  %90 = vmatpush1.msra.mxu0 0.0
  %91 = vmatprep.subr.mxu0 0.0
  %92 = vmatpush1.msra.mxu0 0.0
  %93 = vmatprep.subr.mxu0 0.0
  %94 = vmatpush1.msra.mxu0 0.0
  %95 = vmatprep.subr.mxu0 0.0
  %96 = vmatpush1.msra.mxu0 0.0
  %97 = vmatprep.subr.mxu0 0.0
  %98 = vmatpush1.msra.mxu0 0.0
  %99 = vmatprep.subr.mxu0 0.0
  %100 = vmatpush1.msra.mxu0 0.0
  %101 = vmatprep.subr.mxu0 0.0
  %102 = vmatpush1.msra.mxu0 0.0
  %103 = vmatprep.subr.mxu0 0.0
  %104 = vmatpush1.msra.mxu0 0.0
  %105 = vmatprep.subr.mxu0 0.0
  %106 = vmatpush1.msra.mxu0 0.0
  %107 = vmatprep.subr.mxu0 0.0
  %108 = vmatpush1.msra.mxu0 0.0
  %109 = vmatprep.subr.mxu0 0.0
  %110 = vmatpush1.msra.mxu0 0.0
  %111 = vmatprep.subr.mxu0 0.0
  %112 = vmatpush1.msra.mxu0 0.0
  %113 = vmatprep.mubr.f32.mxu0 0.0
  %114 = vmatmul.mubr.f32.gmra.mrb[0].mxu0 %v47
  %v115 = vpop.f32.mrb[0].mxu0
  %v116 = vadd.f32 %v43, %v115
  %v117 = vpop.f32.mrb[0].mxu0
  %v118 = vadd.f32 %v43, %v117
  %119 = vdwg.mxu0
  %v120 = vtanh.pop %v116
  %v121 = vtanh.pop %v118
  %v124 = vcombine.low %v120, %v121
  %126 = vst [vmem:[%s3] sm:$0x77] %v124
  // Predicated region
  $region14: #{_lambda_.23} parent=0 // pred_check
    _
  $region15: #{_lambda_.23} parent=0 // pred_check_branch
    %128 = sbr.rel (0) target = $region17
  $region16: #{_lambda_.23} parent=0 // pred_region
    _
  $region17: #{_lambda_.23} parent=0 // pred_fallthru
    _
  // Predicated region
  $region18: #{_lambda_.23} parent=0 // pred_check
    _
  $region19: #{_lambda_.23} parent=0 // pred_check_branch
    %130 = sbr.rel (0) target = $region21
  $region20: #{_lambda_.23} parent=0 // pred_region
    _
  $region21: #{_lambda_.23} parent=0 // pred_fallthru
    _

</llo_original>
